<compile_context>
chip_gen: v6e
topology: v6e:2x2x1
jax: 0.10.0
libtpu: 0.0.40
codegen_flags: <defaults>
</compile_context>

<pallas_src>
import functools
import math

import jax
import jax.numpy as jnp
from jax.experimental import pallas as pl
from jax.experimental.pallas import tpu as pltpu

EPS = 1e-5                       # PyTorch BatchNorm2d default
LANES = 128
VMEM_LIMIT = 32 * 1024 * 1024    # explicit scoped-VMEM budget (safe on v5e/v6e/v7x)


def _round_up(x, m):
    return (x + m - 1) // m * m


def _pad_to(a, shape):
    return jnp.pad(a, [(0, s - d) for d, s in zip(a.shape, shape)])


def _pick_row_tile(m, target):
    """Largest multiple-of-8 divisor of m that is <= target (m itself if small)."""
    if m <= target or m % 8 != 0:
        return m
    best = 8
    for t in range(8, target + 1, 8):
        if m % t == 0:
            best = t
    return best


def _bn_scale_shift(stats, gamma, beta, count):
    """stats: (2, C) f32 = [sum; sumsq] -> per-channel affine (scale, shift), (1, C)."""
    mean = stats[0:1, :] / count
    # Single-pass var = E[x^2] - mean^2 (biased, as PyTorch); fine at these
    # magnitudes.  TODO(synk): shifted sums / Welford for ill-conditioned stats.
    var = jnp.maximum(stats[1:2, :] / count - mean * mean, 0.0)
    scale = gamma * jax.lax.rsqrt(var + EPS)                      # EUP rsqrt
    shift = beta - mean * scale
    return scale, shift


def _accum_stats(stats_ref, y):
    """Accumulate per-channel sum / sumsq with two row updates (no concat)."""
    stats_ref[0, 0:1, :] += jnp.sum(y, axis=0, keepdims=True)
    stats_ref[0, 1:2, :] += jnp.sum(y * y, axis=0, keepdims=True)


# ---------------------------------------------------------------------------
# Kernel A: 1x1 reduce conv (matmul) + per-core per-channel sum/sumsq.
# Grid: (ncores, steps_per_core); stats block indexed by the core axis.
# ---------------------------------------------------------------------------
def _conv1x1_stats_kernel(x_ref, w_ref, y_ref, stats_ref):
    @pl.when(pl.program_id(1) == 0)
    def _():
        stats_ref[...] = jnp.zeros_like(stats_ref)

    y = jnp.dot(x_ref[...], w_ref[...], preferred_element_type=jnp.float32)
    y_ref[...] = y.astype(jnp.bfloat16)
    _accum_stats(stats_ref, y)


# ---------------------------------------------------------------------------
# Kernel B: BN1 + ReLU + grouped 3x3 conv (block-diag weights) + stats.
# Grid: (ncores, images_per_core).  The zero-halo slab is a flat bf16 VMEM
# scratch; the 9 taps are row-offset ref slices; accumulation goes through an
# f32 VMEM scratch to keep vreg pressure bounded.
# ---------------------------------------------------------------------------
def _bn_relu_gconv3x3_stats_kernel(y1_ref, stats1_ref, g_ref, b_ref, w_ref,
                                   y2_ref, stats2_ref, pad_ref, acc_ref, *,
                                   count, padded_w):
    n = pl.program_id(1)
    _, H, W, C = y1_ref.shape
    Wp = padded_w                       # W + 2 rounded up to a multiple of 8
    HWp = H * Wp

    @pl.when(n == 0)
    def _():
        stats2_ref[...] = jnp.zeros_like(stats2_ref)
        # Zero the halo (and alignment columns) once per core; only the
        # interior columns [1, W] of rows [1, H] are rewritten afterwards, so
        # the halo stays zero across grid steps.
        pad_ref[...] = jnp.zeros_like(pad_ref)

    stats1 = jnp.sum(stats1_ref[...], axis=0)            # combine per-core partials
    scale, shift = _bn_scale_shift(stats1, g_ref[...], b_ref[...], count)
    a = jnp.maximum(y1_ref[0].astype(jnp.float32) * scale + shift, 0.0)
    a16 = a.astype(jnp.bfloat16)                         # (H, W, C)

    # Write the interior rows into the flat padded slab (row r = h_pad*Wp + w_pad).
    for h in range(H):
        pad_ref[pl.ds((h + 1) * Wp + 1, W), :] = a16[h]

    # The (dy, dx) tap for accumulator row j = h*Wp + w is slab row j + dy*Wp + dx,
    # so each tap is one contiguous row-offset slice streamed from VMEM into the
    # MXU against the block-diagonal grouped weights.  Accumulator rows with
    # w >= W are garbage and are dropped before the store / the stats.
    for dy in range(3):
        for dx in range(3):
            off = dy * Wp + dx
            contrib = jnp.dot(pad_ref[pl.ds(off, HWp), :], w_ref[dy, dx],
                              preferred_element_type=jnp.float32)
            if dy == 0 and dx == 0:
                acc_ref[...] = contrib
            else:
                acc_ref[...] += contrib

    y2 = acc_ref[...].reshape(H, Wp, C)[:, :W, :]        # drop alignment columns
    y2_ref[0] = y2.astype(jnp.bfloat16)
    _accum_stats(stats2_ref, y2.reshape(H * W, C))


# ---------------------------------------------------------------------------
# Kernel C: BN2 + ReLU + 1x1 expand conv + stats.
# ---------------------------------------------------------------------------
def _bn_relu_conv1x1_stats_kernel(y_ref, stats_in_ref, g_ref, b_ref, w_ref,
                                  out_ref, stats_out_ref, *, count):
    @pl.when(pl.program_id(1) == 0)
    def _():
        stats_out_ref[...] = jnp.zeros_like(stats_out_ref)

    stats_in = jnp.sum(stats_in_ref[...], axis=0)
    scale, shift = _bn_scale_shift(stats_in, g_ref[...], b_ref[...], count)
    a = jnp.maximum(y_ref[...].astype(jnp.float32) * scale + shift, 0.0)
    y = jnp.dot(a.astype(jnp.bfloat16), w_ref[...],
                preferred_element_type=jnp.float32)
    out_ref[...] = y.astype(jnp.bfloat16)
    _accum_stats(stats_out_ref, y)


# ---------------------------------------------------------------------------
# Kernel D: BN3 + residual add + final ReLU (fully "parallel" over row tiles).
# ---------------------------------------------------------------------------
def _bn_residual_relu_kernel(y3_ref, x_ref, stats_ref, g_ref, b_ref, o_ref, *,
                             count):
    stats = jnp.sum(stats_ref[...], axis=0)
    scale, shift = _bn_scale_shift(stats, g_ref[...], b_ref[...], count)
    o_ref[...] = jnp.maximum(
        x_ref[...].astype(jnp.float32) + y3_ref[...].astype(jnp.float32) * scale + shift,
        0.0)


# ---------------------------------------------------------------------------
# Wrapper: layout conversion, channel padding, weight prep, 4 pallas_calls.
# ---------------------------------------------------------------------------
def resnext_bottleneck(x_nchw, params, *, cardinality, row_tile=1024):
    N, Cin, H, W = x_nchw.shape
    w_red = params["w_reduce"]          # (DC, Cin, 1, 1)
    w_conv = params["w_conv"]           # (DC, D,  3, 3)
    w_exp = params["w_expand"]          # (Cout, DC, 1, 1)
    DC = w_red.shape[0]
    D = w_conv.shape[1]
    Cout = w_exp.shape[0]
    assert Cin == Cout, "downsample=None requires inplanes == planes*expansion"

    Cp = _round_up(max(Cin, Cout), LANES)    # padded input/output channels
    DCp = _round_up(DC, LANES)               # padded bottleneck channels
    M = N * H * W
    Wp = _round_up(W + 2, 8)                 # 8-aligned padded row width (kernel B)

    # Row tiling for the flattened (M, C) stages.
    tm = _pick_row_tile(M, row_tile)
    steps = M // tm
    # 2-way split ("parallel" leading axis) so both v7x TensorCores are used;
    # stats become per-core partials summed in the consumer.
    nc_mm = 2 if (steps % 2 == 0 and steps >= 2) else 1
    spc = steps // nc_mm
    nc_b = 2 if (N % 2 == 0 and N >= 2) else 1
    npc = N // nc_b

    # ---- activations: NCHW -> NHWC, channel-pad to 128 lanes, bf16 in HBM ----
    x_nhwc = jnp.transpose(x_nchw, (0, 2, 3, 1))
    x_flat = _pad_to(x_nhwc, (N, H, W, Cp)).astype(jnp.bfloat16).reshape(M, Cp)

    # ---- weights: pad + cast to bf16 for the MXU ------------------------------
    w_red_p = _pad_to(jnp.transpose(w_red[:, :, 0, 0], (1, 0)),
                      (Cp, DCp)).astype(jnp.bfloat16)
    w_exp_p = _pad_to(jnp.transpose(w_exp[:, :, 0, 0], (1, 0)),
                      (DCp, Cp)).astype(jnp.bfloat16)

    # Grouped 3x3 weights (DC, D, 3, 3) -> block-diagonal (3, 3, DCp, DCp).
    wc = jnp.transpose(w_conv, (2, 3, 1, 0))              # (3, 3, D, DC)
    w_bd = jnp.zeros((3, 3, DCp, DCp), jnp.float32)
    for g in range(cardinality):
        w_bd = w_bd.at[:, :, g * D:(g + 1) * D, g * D:(g + 1) * D].set(
            wc[:, :, :, g * D:(g + 1) * D])
    w_bd = w_bd.astype(jnp.bfloat16)

    def bn_params(gamma, beta, cpad):
        gp = jnp.pad(gamma.astype(jnp.float32), (0, cpad - gamma.shape[0]),
                     constant_values=1.0).reshape(1, cpad)
        bp = jnp.pad(beta.astype(jnp.float32),
                     (0, cpad - beta.shape[0])).reshape(1, cpad)
        return gp, bp

    g1, b1 = bn_params(params["gamma1"], params["beta1"], DCp)
    g2, b2 = bn_params(params["gamma2"], params["beta2"], DCp)
    g3, b3 = bn_params(params["gamma3"], params["beta3"], Cp)

    def resident(shape):
        return pl.BlockSpec(shape, lambda *_: (0,) * len(shape))

    cp_pipe = pltpu.CompilerParams(dimension_semantics=("parallel", "arbitrary"),
                                   vmem_limit_bytes=VMEM_LIMIT)
    cp_par = pltpu.CompilerParams(dimension_semantics=("parallel",),
                                  vmem_limit_bytes=VMEM_LIMIT)

    # ---- A: 1x1 reduce conv + stats1 ----------------------------------------
    y1_raw, stats1 = pl.pallas_call(
        _conv1x1_stats_kernel,
        out_shape=(jax.ShapeDtypeStruct((M, DCp), jnp.bfloat16),
                   jax.ShapeDtypeStruct((nc_mm, 2, DCp), jnp.float32)),
        grid=(nc_mm, spc),
        in_specs=[pl.BlockSpec((tm, Cp), lambda c, i: (c * spc + i, 0)),
                  resident((Cp, DCp))],
        out_specs=(pl.BlockSpec((tm, DCp), lambda c, i: (c * spc + i, 0)),
                   pl.BlockSpec((1, 2, DCp), lambda c, i: (c, 0, 0))),
        compiler_params=cp_pipe,
        cost_estimate=pl.CostEstimate(
            flops=2 * M * Cp * DCp, transcendentals=0,
            bytes_accessed=2 * M * (Cp + DCp) + 2 * Cp * DCp),
    )(x_flat, w_red_p)

    # ---- B: BN1 + ReLU + grouped 3x3 conv + stats2 (grid over N) -------------
    y2_raw, stats2 = pl.pallas_call(
        functools.partial(_bn_relu_gconv3x3_stats_kernel, count=M, padded_w=Wp),
        out_shape=(jax.ShapeDtypeStruct((N, H, W, DCp), jnp.bfloat16),
                   jax.ShapeDtypeStruct((nc_b, 2, DCp), jnp.float32)),
        grid=(nc_b, npc),
        in_specs=[pl.BlockSpec((1, H, W, DCp), lambda c, n: (c * npc + n, 0, 0, 0)),
                  resident((nc_mm, 2, DCp)),
                  resident((1, DCp)),
                  resident((1, DCp)),
                  resident((3, 3, DCp, DCp))],
        out_specs=(pl.BlockSpec((1, H, W, DCp), lambda c, n: (c * npc + n, 0, 0, 0)),
                   pl.BlockSpec((1, 2, DCp), lambda c, n: (c, 0, 0))),
        scratch_shapes=[pltpu.VMEM(((H + 3) * Wp, DCp), jnp.bfloat16),
                        pltpu.VMEM((H * Wp, DCp), jnp.float32)],
        compiler_params=cp_pipe,
        cost_estimate=pl.CostEstimate(
            flops=2 * 9 * N * H * Wp * DCp * DCp, transcendentals=int(DCp),
            bytes_accessed=4 * M * DCp + 18 * DCp * DCp),
    )(y1_raw.reshape(N, H, W, DCp), stats1, g1, b1, w_bd)

    # ---- C: BN2 + ReLU + 1x1 expand conv + stats3 -----------------------------
    y3_raw, stats3 = pl.pallas_call(
        functools.partial(_bn_relu_conv1x1_stats_kernel, count=M),
        out_shape=(jax.ShapeDtypeStruct((M, Cp), jnp.bfloat16),
                   jax.ShapeDtypeStruct((nc_mm, 2, Cp), jnp.float32)),
        grid=(nc_mm, spc),
        in_specs=[pl.BlockSpec((tm, DCp), lambda c, i: (c * spc + i, 0)),
                  resident((nc_b, 2, DCp)),
                  resident((1, DCp)),
                  resident((1, DCp)),
                  resident((DCp, Cp))],
        out_specs=(pl.BlockSpec((tm, Cp), lambda c, i: (c * spc + i, 0)),
                   pl.BlockSpec((1, 2, Cp), lambda c, i: (c, 0, 0))),
        compiler_params=cp_pipe,
        cost_estimate=pl.CostEstimate(
            flops=2 * M * DCp * Cp, transcendentals=int(DCp),
            bytes_accessed=2 * M * (DCp + Cp) + 2 * DCp * Cp),
    )(y2_raw.reshape(M, DCp), stats2, g2, b2, w_exp_p)

    # ---- D: BN3 + residual add + ReLU ("parallel") ----------------------------
    out_flat = pl.pallas_call(
        functools.partial(_bn_residual_relu_kernel, count=M),
        out_shape=jax.ShapeDtypeStruct((M, Cp), jnp.float32),
        grid=(steps,),
        in_specs=[pl.BlockSpec((tm, Cp), lambda i: (i, 0)),
                  pl.BlockSpec((tm, Cp), lambda i: (i, 0)),
                  resident((nc_mm, 2, Cp)),
                  resident((1, Cp)),
                  resident((1, Cp))],
        out_specs=pl.BlockSpec((tm, Cp), lambda i: (i, 0)),
        compiler_params=cp_par,
        cost_estimate=pl.CostEstimate(
            flops=4 * M * Cp, transcendentals=int(Cp),
            bytes_accessed=8 * M * Cp),
    )(y3_raw, x_flat, stats3, g3, b3)

    out = out_flat.reshape(N, H, W, Cp)[:, :, :, :Cout]
    return jnp.transpose(out, (0, 3, 1, 2))                      # back to NCHW


# ---------------------------------------------------------------------------
# Pure-JAX f32 reference (NCHW, lax convs) for correctness checking.
# ---------------------------------------------------------------------------
def _bn_train_nchw(y, gamma, beta):
    mean = jnp.mean(y, axis=(0, 2, 3), keepdims=True)
    var = jnp.mean((y - mean) ** 2, axis=(0, 2, 3), keepdims=True)
    return ((y - mean) * jax.lax.rsqrt(var + EPS)
            * gamma.reshape(1, -1, 1, 1) + beta.reshape(1, -1, 1, 1))


def reference(x, params, cardinality):
    dn = ("NCHW", "OIHW", "NCHW")
    hi = jax.lax.Precision.HIGHEST
    y = jax.lax.conv_general_dilated(x, params["w_reduce"], (1, 1), "VALID",
                                     dimension_numbers=dn, precision=hi)
    y = jax.nn.relu(_bn_train_nchw(y, params["gamma1"], params["beta1"]))
    y = jax.lax.conv_general_dilated(y, params["w_conv"], (1, 1),
                                     ((1, 1), (1, 1)), dimension_numbers=dn,
                                     feature_group_count=cardinality,
                                     precision=hi)
    y = jax.nn.relu(_bn_train_nchw(y, params["gamma2"], params["beta2"]))
    y = jax.lax.conv_general_dilated(y, params["w_expand"], (1, 1), "VALID",
                                     dimension_numbers=dn, precision=hi)
    y = _bn_train_nchw(y, params["gamma3"], params["beta3"])
    return jax.nn.relu(x + y)


# ---------------------------------------------------------------------------
if __name__ == "__main__":
    key = jax.random.PRNGKey(0)

    # Module config: planes=8, cardinality=4, base_width=64, stride=1.
    N, H, W = 2, 16, 16
    planes, cardinality, base_width = 8, 4, 64
    inplanes = planes * 4                                   # residual add valid
    D = int(math.floor(planes * (base_width / 64.0)))       # = 8
    DC = D * cardinality                                    # = 32
    Cout = planes * 4                                       # = 32

    ks = jax.random.split(key, 10)
    params = dict(
        w_reduce=0.1 * jax.random.normal(ks[0], (DC, inplanes, 1, 1), jnp.float32),
        gamma1=1.0 + 0.1 * jax.random.normal(ks[1], (DC,), jnp.float32),
        beta1=0.1 * jax.random.normal(ks[2], (DC,), jnp.float32),
        w_conv=0.1 * jax.random.normal(ks[3], (DC, D, 3, 3), jnp.float32),
        gamma2=1.0 + 0.1 * jax.random.normal(ks[4], (DC,), jnp.float32),
        beta2=0.1 * jax.random.normal(ks[5], (DC,), jnp.float32),
        w_expand=0.1 * jax.random.normal(ks[6], (Cout, DC, 1, 1), jnp.float32),
        gamma3=1.0 + 0.1 * jax.random.normal(ks[7], (Cout,), jnp.float32),
        beta3=0.1 * jax.random.normal(ks[8], (Cout,), jnp.float32),
    )
    x = jax.random.normal(ks[9], (N, inplanes, H, W), jnp.float32)

    fwd = jax.jit(functools.partial(resnext_bottleneck, cardinality=cardinality))
    out = jax.block_until_ready(fwd(x, params))

    ref = reference(x, params, cardinality)
    max_err = float(jnp.max(jnp.abs(out - ref)))
    assert out.shape == (N, Cout, H, W), out.shape
    # bf16 MXU operands + bf16 HBM intermediates -> tolerance reflects bf16
    # rounding of unit-scale BN'd activations (stats stay f32-accumulated).
    assert jnp.allclose(out, ref, atol=1e-1, rtol=1e-1), f"max_err={max_err}"

    print("KERNEL_OK")
</pallas_src>

<mosaic_0001>
module attributes {stable_mosaic.version = 11 : i64} {
  func.func @_conv1x1_stats_kernel(%arg0: i32, %arg1: i32, %arg2: memref<512x128xbf16, #tpu.memory_space<vmem>>, %arg3: memref<128x128xbf16, #tpu.memory_space<vmem>>, %arg4: memref<512x128xbf16, #tpu.memory_space<vmem>>, %arg5: memref<1x2x128xf32, #tpu.memory_space<vmem>>) attributes {dimension_semantics = [#tpu.dimension_semantics<parallel>, #tpu.dimension_semantics<arbitrary>], iteration_bounds = array<i64: 1, 1>, scalar_prefetch = 0 : i64, scratch_operands = 0 : i64, tpu.core_type = #tpu.core_type<tc>, window_params = [{transform_indices = @transform_0, window_bounds = array<i64: 512, 128>}, {pipeline_mode = #tpu.pipeline_mode<synchronous>, transform_indices = @transform_1, window_bounds = array<i64: 128, 128>}, {transform_indices = @transform_2, window_bounds = array<i64: 512, 128>}, {transform_indices = @transform_3, window_bounds = array<i64: 1, 2, 128>}]} {
    %c0_i32 = arith.constant 0 : i32
    %0 = arith.cmpi eq, %arg1, %c0_i32 : i32
    %1 = arith.extui %0 : i1 to i32
    %c0_i32_0 = arith.constant 0 : i32
    %2 = arith.cmpi ne, %1, %c0_i32_0 : i32
    scf.if %2 {
      %cst_19 = arith.constant 0.000000e+00 : f32
      %25 = vector.broadcast %cst_19 : f32 to vector<1x2x128xf32>
      %c0_20 = arith.constant 0 : index
      %c0_21 = arith.constant 0 : index
      %c0_22 = arith.constant 0 : index
      %26 = vector.load %arg5[%c0_20, %c0_21, %c0_22] : memref<1x2x128xf32, #tpu.memory_space<vmem>>, vector<1x2x128xf32>
      tpu.vector_store %arg5[%c0_20, %c0_21, %c0_22], %25 {strides = array<i32>} : memref<1x2x128xf32, #tpu.memory_space<vmem>>, vector<1x2x128xf32>,
    } else {
    }
    %c0 = arith.constant 0 : index
    %c0_1 = arith.constant 0 : index
    %3 = vector.load %arg2[%c0, %c0_1] : memref<512x128xbf16, #tpu.memory_space<vmem>>, vector<512x128xbf16>
    %c0_2 = arith.constant 0 : index
    %c0_3 = arith.constant 0 : index
    %4 = vector.load %arg3[%c0_2, %c0_3] : memref<128x128xbf16, #tpu.memory_space<vmem>>, vector<128x128xbf16>
    %cst = arith.constant dense<0.000000e+00> : vector<512x128xf32>
    %5 = tpu.matmul %3, %4, %cst {dimension_numbers = #tpu.dot_dimension_numbers<[1], [0], [0], [1], [0, 0, 1, 1], [], []>} : vector<512x128xbf16>, vector<128x128xbf16>, vector<512x128xf32> -> vector<512x128xf32>
    %6 = arith.truncf %5 : vector<512x128xf32> to vector<512x128xbf16>
    %c0_4 = arith.constant 0 : index
    %c0_5 = arith.constant 0 : index
    %7 = vector.load %arg4[%c0_4, %c0_5] : memref<512x128xbf16, #tpu.memory_space<vmem>>, vector<512x128xbf16>
    tpu.vector_store %arg4[%c0_4, %c0_5], %6 {strides = array<i32>} : memref<512x128xbf16, #tpu.memory_space<vmem>>, vector<512x128xbf16>,
    %c0_6 = arith.constant 0 : index
    %c0_7 = arith.constant 0 : index
    %c0_8 = arith.constant 0 : index
    %8 = vector.load %arg5[%c0_6, %c0_7, %c0_8] : memref<1x2x128xf32, #tpu.memory_space<vmem>>, vector<1x1x128xf32>
    %9 = vector.shape_cast %8 : vector<1x1x128xf32> to vector<1x128xf32>
    %cst_9 = arith.constant dense<0.000000e+00> : vector<128xf32>
    %10 = vector.multi_reduction <add>, %5, %cst_9 [0] : vector<512x128xf32> to vector<128xf32>
    %11 = vector.shape_cast %10 : vector<128xf32> to vector<1x128xf32>
    %12 = arith.addf %9, %11 : vector<1x128xf32>
    %c0_10 = arith.constant 0 : index
    %c0_11 = arith.constant 0 : index
    %c0_12 = arith.constant 0 : index
    %13 = vector.load %arg5[%c0_10, %c0_11, %c0_12] : memref<1x2x128xf32, #tpu.memory_space<vmem>>, vector<1x1x128xf32>
    %14 = vector.shape_cast %13 : vector<1x1x128xf32> to vector<1x128xf32>
    %15 = vector.shape_cast %12 : vector<1x128xf32> to vector<1x1x128xf32>
    tpu.vector_store %arg5[%c0_10, %c0_11, %c0_12], %15 {strides = array<i32>} : memref<1x2x128xf32, #tpu.memory_space<vmem>>, vector<1x1x128xf32>,
    %c0_13 = arith.constant 0 : index
    %c1 = arith.constant 1 : index
    %c0_14 = arith.constant 0 : index
    %16 = vector.load %arg5[%c0_13, %c1, %c0_14] : memref<1x2x128xf32, #tpu.memory_space<vmem>>, vector<1x1x128xf32>
    %17 = vector.shape_cast %16 : vector<1x1x128xf32> to vector<1x128xf32>
    %18 = arith.mulf %5, %5 : vector<512x128xf32>
    %cst_15 = arith.constant dense<0.000000e+00> : vector<128xf32>
    %19 = vector.multi_reduction <add>, %18, %cst_15 [0] : vector<512x128xf32> to vector<128xf32>
    %20 = vector.shape_cast %19 : vector<128xf32> to vector<1x128xf32>
    %21 = arith.addf %17, %20 : vector<1x128xf32>
    %c0_16 = arith.constant 0 : index
    %c1_17 = arith.constant 1 : index
    %c0_18 = arith.constant 0 : index
    %22 = vector.load %arg5[%c0_16, %c1_17, %c0_18] : memref<1x2x128xf32, #tpu.memory_space<vmem>>, vector<1x1x128xf32>
    %23 = vector.shape_cast %22 : vector<1x1x128xf32> to vector<1x128xf32>
    %24 = vector.shape_cast %21 : vector<1x128xf32> to vector<1x1x128xf32>
    tpu.vector_store %arg5[%c0_16, %c1_17, %c0_18], %24 {strides = array<i32>} : memref<1x2x128xf32, #tpu.memory_space<vmem>>, vector<1x1x128xf32>,
    return
  }
  func.func @transform_0(%arg0: i32, %arg1: i32) -> (i32, i32) {
    %c1_i32 = arith.constant 1 : i32
    %0 = arith.muli %arg0, %c1_i32 : i32
    %1 = arith.addi %0, %arg1 : i32
    %c0_i32 = arith.constant 0 : i32
    %c0_i32_0 = arith.constant 0 : i32
    return %1, %c0_i32 : i32, i32
  }
  func.func @transform_1(%arg0: i32, %arg1: i32) -> (i32, i32) {
    %c0_i32 = arith.constant 0 : i32
    %c0_i32_0 = arith.constant 0 : i32
    %c0_i32_1 = arith.constant 0 : i32
    return %c0_i32, %c0_i32_0 : i32, i32
  }
  func.func @transform_2(%arg0: i32, %arg1: i32) -> (i32, i32) {
    %c1_i32 = arith.constant 1 : i32
    %0 = arith.muli %arg0, %c1_i32 : i32
    %1 = arith.addi %0, %arg1 : i32
    %c0_i32 = arith.constant 0 : i32
    %c0_i32_0 = arith.constant 0 : i32
    return %1, %c0_i32 : i32, i32
  }
  func.func @transform_3(%arg0: i32, %arg1: i32) -> (i32, i32, i32) {
    %c0_i32 = arith.constant 0 : i32
    %c0_i32_0 = arith.constant 0 : i32
    %c0_i32_1 = arith.constant 0 : i32
    return %arg0, %c0_i32, %c0_i32_0 : i32, i32, i32
  }
}

module attributes {stable_mosaic.version = 11 : i64} {
  func.func @_bn_residual_relu_kernel(%arg0: i32, %arg1: memref<512x128xbf16, #tpu.memory_space<vmem>>, %arg2: memref<512x128xbf16, #tpu.memory_space<vmem>>, %arg3: memref<1x2x128xf32, #tpu.memory_space<vmem>>, %arg4: memref<1x128xf32, #tpu.memory_space<vmem>>, %arg5: memref<1x128xf32, #tpu.memory_space<vmem>>, %arg6: memref<512x128xf32, #tpu.memory_space<vmem>>) attributes {dimension_semantics = [#tpu.dimension_semantics<parallel>], iteration_bounds = array<i64: 1>, scalar_prefetch = 0 : i64, scratch_operands = 0 : i64, tpu.core_type = #tpu.core_type<tc>, window_params = [{transform_indices = @transform_0, window_bounds = array<i64: 512, 128>}, {transform_indices = @transform_1, window_bounds = array<i64: 512, 128>}, {pipeline_mode = #tpu.pipeline_mode<synchronous>, transform_indices = @transform_2, window_bounds = array<i64: 1, 2, 128>}, {pipeline_mode = #tpu.pipeline_mode<synchronous>, transform_indices = @transform_3, window_bounds = array<i64: 1, 128>}, {pipeline_mode = #tpu.pipeline_mode<synchronous>, transform_indices = @transform_4, window_bounds = array<i64: 1, 128>}, {transform_indices = @transform_5, window_bounds = array<i64: 512, 128>}]} {
    %c0 = arith.constant 0 : index
    %c0_0 = arith.constant 0 : index
    %c0_1 = arith.constant 0 : index
    %0 = vector.load %arg3[%c0, %c0_0, %c0_1] : memref<1x2x128xf32, #tpu.memory_space<vmem>>, vector<1x2x128xf32>
    %cst = arith.constant dense<0.000000e+00> : vector<2x128xf32>
    %1 = vector.multi_reduction <add>, %0, %cst [0] : vector<1x2x128xf32> to vector<2x128xf32>
    %c0_2 = arith.constant 0 : index
    %c0_3 = arith.constant 0 : index
    %2 = vector.load %arg4[%c0_2, %c0_3] : memref<1x128xf32, #tpu.memory_space<vmem>>, vector<1x128xf32>
    %c0_4 = arith.constant 0 : index
    %c0_5 = arith.constant 0 : index
    %3 = vector.load %arg5[%c0_4, %c0_5] : memref<1x128xf32, #tpu.memory_space<vmem>>, vector<1x128xf32>
    %4 = vector.extract_strided_slice %1 {offsets = [0, 0], sizes = [1, 128], strides = [1, 1]} : vector<2x128xf32> to vector<1x128xf32>
    %cst_6 = arith.constant 5.120000e+02 : f32
    %5 = vector.broadcast %cst_6 : f32 to vector<1x128xf32>
    %6 = arith.divf %4, %5 : vector<1x128xf32>
    %7 = vector.extract_strided_slice %1 {offsets = [1, 0], sizes = [1, 128], strides = [1, 1]} : vector<2x128xf32> to vector<1x128xf32>
    %cst_7 = arith.constant 5.120000e+02 : f32
    %8 = vector.broadcast %cst_7 : f32 to vector<1x128xf32>
    %9 = arith.divf %7, %8 : vector<1x128xf32>
    %10 = arith.mulf %6, %6 : vector<1x128xf32>
    %11 = arith.subf %9, %10 : vector<1x128xf32>
    %cst_8 = arith.constant 0.000000e+00 : f32
    %12 = vector.broadcast %cst_8 : f32 to vector<1x128xf32>
    %13 = arith.maximumf %11, %12 : vector<1x128xf32>
    %cst_9 = arith.constant 9.99999974E-6 : f32
    %14 = vector.broadcast %cst_9 : f32 to vector<1x128xf32>
    %15 = arith.addf %13, %14 : vector<1x128xf32>
    %16 = math.rsqrt %15 : vector<1x128xf32>
    %17 = arith.mulf %2, %16 : vector<1x128xf32>
    %18 = arith.mulf %6, %17 : vector<1x128xf32>
    %19 = arith.subf %3, %18 : vector<1x128xf32>
    %c0_10 = arith.constant 0 : index
    %c0_11 = arith.constant 0 : index
    %20 = vector.load %arg2[%c0_10, %c0_11] : memref<512x128xbf16, #tpu.memory_space<vmem>>, vector<512x128xbf16>
    %21 = arith.extf %20 : vector<512x128xbf16> to vector<512x128xf32>
    %c0_12 = arith.constant 0 : index
    %c0_13 = arith.constant 0 : index
    %22 = vector.load %arg1[%c0_12, %c0_13] : memref<512x128xbf16, #tpu.memory_space<vmem>>, vector<512x128xbf16>
    %23 = arith.extf %22 : vector<512x128xbf16> to vector<512x128xf32>
    %24 = vector.broadcast %17 : vector<1x128xf32> to vector<512x128xf32>
    %25 = arith.mulf %23, %24 : vector<512x128xf32>
    %26 = arith.addf %21, %25 : vector<512x128xf32>
    %27 = vector.broadcast %19 : vector<1x128xf32> to vector<512x128xf32>
    %28 = arith.addf %26, %27 : vector<512x128xf32>
    %cst_14 = arith.constant 0.000000e+00 : f32
    %29 = vector.broadcast %cst_14 : f32 to vector<512x128xf32>
    %30 = arith.maximumf %28, %29 : vector<512x128xf32>
    %c0_15 = arith.constant 0 : index
    %c0_16 = arith.constant 0 : index
    %31 = vector.load %arg6[%c0_15, %c0_16] : memref<512x128xf32, #tpu.memory_space<vmem>>, vector<512x128xf32>
    tpu.vector_store %arg6[%c0_15, %c0_16], %30 {strides = array<i32>} : memref<512x128xf32, #tpu.memory_space<vmem>>, vector<512x128xf32>,
    return
  }
  func.func @transform_0(%arg0: i32) -> (i32, i32) {
    %c0_i32 = arith.constant 0 : i32
    %c0_i32_0 = arith.constant 0 : i32
    return %arg0, %c0_i32 : i32, i32
  }
  func.func @transform_1(%arg0: i32) -> (i32, i32) {
    %c0_i32 = arith.constant 0 : i32
    %c0_i32_0 = arith.constant 0 : i32
    return %arg0, %c0_i32 : i32, i32
  }
  func.func @transform_2(%arg0: i32) -> (i32, i32, i32) {
    %c0_i32 = arith.constant 0 : i32
    %c0_i32_0 = arith.constant 0 : i32
    %c0_i32_1 = arith.constant 0 : i32
    %c0_i32_2 = arith.constant 0 : i32
    return %c0_i32, %c0_i32_0, %c0_i32_1 : i32, i32, i32
  }
  func.func @transform_3(%arg0: i32) -> (i32, i32) {
    %c0_i32 = arith.constant 0 : i32
    %c0_i32_0 = arith.constant 0 : i32
    %c0_i32_1 = arith.constant 0 : i32
    return %c0_i32, %c0_i32_0 : i32, i32
  }
  func.func @transform_4(%arg0: i32) -> (i32, i32) {
    %c0_i32 = arith.constant 0 : i32
    %c0_i32_0 = arith.constant 0 : i32
    %c0_i32_1 = arith.constant 0 : i32
    return %c0_i32, %c0_i32_0 : i32, i32
  }
  func.func @transform_5(%arg0: i32) -> (i32, i32) {
    %c0_i32 = arith.constant 0 : i32
    %c0_i32_0 = arith.constant 0 : i32
    return %arg0, %c0_i32 : i32, i32
  }
}

module attributes {stable_mosaic.version = 11 : i64} {
  func.func @_bn_relu_gconv3x3_stats_kernel(%arg0: i32, %arg1: i32, %arg2: memref<1x16x16x128xbf16, #tpu.memory_space<vmem>>, %arg3: memref<1x2x128xf32, #tpu.memory_space<vmem>>, %arg4: memref<1x128xf32, #tpu.memory_space<vmem>>, %arg5: memref<1x128xf32, #tpu.memory_space<vmem>>, %arg6: memref<3x3x128x128xbf16, #tpu.memory_space<vmem>>, %arg7: memref<1x16x16x128xbf16, #tpu.memory_space<vmem>>, %arg8: memref<1x2x128xf32, #tpu.memory_space<vmem>>, %arg9: memref<456x128xbf16, #tpu.memory_space<vmem>>, %arg10: memref<384x128xf32, #tpu.memory_space<vmem>>) attributes {dimension_semantics = [#tpu.dimension_semantics<parallel>, #tpu.dimension_semantics<arbitrary>], iteration_bounds = array<i64: 2, 1>, scalar_prefetch = 0 : i64, scratch_operands = 2 : i64, tpu.core_type = #tpu.core_type<tc>, window_params = [{transform_indices = @transform_0, window_bounds = array<i64: 1, 16, 16, 128>}, {pipeline_mode = #tpu.pipeline_mode<synchronous>, transform_indices = @transform_1, window_bounds = array<i64: 1, 2, 128>}, {pipeline_mode = #tpu.pipeline_mode<synchronous>, transform_indices = @transform_2, window_bounds = array<i64: 1, 128>}, {pipeline_mode = #tpu.pipeline_mode<synchronous>, transform_indices = @transform_3, window_bounds = array<i64: 1, 128>}, {pipeline_mode = #tpu.pipeline_mode<synchronous>, transform_indices = @transform_4, window_bounds = array<i64: 3, 3, 128, 128>}, {transform_indices = @transform_5, window_bounds = array<i64: 1, 16, 16, 128>}, {transform_indices = @transform_6, window_bounds = array<i64: 1, 2, 128>}]} {
    %c0_i32 = arith.constant 0 : i32
    %0 = arith.cmpi eq, %arg1, %c0_i32 : i32
    %1 = arith.extui %0 : i1 to i32
    %c0_i32_0 = arith.constant 0 : i32
    %2 = arith.cmpi ne, %1, %c0_i32_0 : i32
    scf.if %2 {
      %cst_143 = arith.constant 0.000000e+00 : f32
      %169 = vector.broadcast %cst_143 : f32 to vector<1x2x128xf32>
      %c0_144 = arith.constant 0 : index
      %c0_145 = arith.constant 0 : index
      %c0_146 = arith.constant 0 : index
      %170 = vector.load %arg8[%c0_144, %c0_145, %c0_146] : memref<1x2x128xf32, #tpu.memory_space<vmem>>, vector<1x2x128xf32>
      tpu.vector_store %arg8[%c0_144, %c0_145, %c0_146], %169 {strides = array<i32>} : memref<1x2x128xf32, #tpu.memory_space<vmem>>, vector<1x2x128xf32>,
      %cst_147 = arith.constant 0.000000e+00 : bf16
      %171 = vector.broadcast %cst_147 : bf16 to vector<456x128xbf16>
      %c0_148 = arith.constant 0 : index
      %c0_149 = arith.constant 0 : index
      %172 = vector.load %arg9[%c0_148, %c0_149] : memref<456x128xbf16, #tpu.memory_space<vmem>>, vector<456x128xbf16>
      tpu.vector_store %arg9[%c0_148, %c0_149], %171 {strides = array<i32>} : memref<456x128xbf16, #tpu.memory_space<vmem>>, vector<456x128xbf16>,
    } else {
    }
    %c0 = arith.constant 0 : index
    %c0_1 = arith.constant 0 : index
    %c0_2 = arith.constant 0 : index
    %3 = vector.load %arg3[%c0, %c0_1, %c0_2] : memref<1x2x128xf32, #tpu.memory_space<vmem>>, vector<1x2x128xf32>
    %cst = arith.constant dense<0.000000e+00> : vector<2x128xf32>
    %4 = vector.multi_reduction <add>, %3, %cst [0] : vector<1x2x128xf32> to vector<2x128xf32>
    %c0_3 = arith.constant 0 : index
    %c0_4 = arith.constant 0 : index
    %5 = vector.load %arg4[%c0_3, %c0_4] : memref<1x128xf32, #tpu.memory_space<vmem>>, vector<1x128xf32>
    %c0_5 = arith.constant 0 : index
    %c0_6 = arith.constant 0 : index
    %6 = vector.load %arg5[%c0_5, %c0_6] : memref<1x128xf32, #tpu.memory_space<vmem>>, vector<1x128xf32>
    %7 = vector.extract_strided_slice %4 {offsets = [0, 0], sizes = [1, 128], strides = [1, 1]} : vector<2x128xf32> to vector<1x128xf32>
    %cst_7 = arith.constant 5.120000e+02 : f32
    %8 = vector.broadcast %cst_7 : f32 to vector<1x128xf32>
    %9 = arith.divf %7, %8 : vector<1x128xf32>
    %10 = vector.extract_strided_slice %4 {offsets = [1, 0], sizes = [1, 128], strides = [1, 1]} : vector<2x128xf32> to vector<1x128xf32>
    %cst_8 = arith.constant 5.120000e+02 : f32
    %11 = vector.broadcast %cst_8 : f32 to vector<1x128xf32>
    %12 = arith.divf %10, %11 : vector<1x128xf32>
    %13 = arith.mulf %9, %9 : vector<1x128xf32>
    %14 = arith.subf %12, %13 : vector<1x128xf32>
    %cst_9 = arith.constant 0.000000e+00 : f32
    %15 = vector.broadcast %cst_9 : f32 to vector<1x128xf32>
    %16 = arith.maximumf %14, %15 : vector<1x128xf32>
    %cst_10 = arith.constant 9.99999974E-6 : f32
    %17 = vector.broadcast %cst_10 : f32 to vector<1x128xf32>
    %18 = arith.addf %16, %17 : vector<1x128xf32>
    %19 = math.rsqrt %18 : vector<1x128xf32>
    %20 = arith.mulf %5, %19 : vector<1x128xf32>
    %21 = arith.mulf %9, %20 : vector<1x128xf32>
    %22 = arith.subf %6, %21 : vector<1x128xf32>
    %c0_11 = arith.constant 0 : index
    %c0_12 = arith.constant 0 : index
    %c0_13 = arith.constant 0 : index
    %c0_14 = arith.constant 0 : index
    %23 = vector.load %arg2[%c0_11, %c0_12, %c0_13, %c0_14] : memref<1x16x16x128xbf16, #tpu.memory_space<vmem>>, vector<1x16x16x128xbf16>
    %24 = vector.shape_cast %23 : vector<1x16x16x128xbf16> to vector<16x16x128xbf16>
    %25 = arith.extf %24 : vector<16x16x128xbf16> to vector<16x16x128xf32>
    %26 = vector.shape_cast %20 : vector<1x128xf32> to vector<1x1x128xf32>
    %27 = vector.broadcast %26 : vector<1x1x128xf32> to vector<16x16x128xf32>
    %28 = arith.mulf %25, %27 : vector<16x16x128xf32>
    %29 = vector.shape_cast %22 : vector<1x128xf32> to vector<1x1x128xf32>
    %30 = vector.broadcast %29 : vector<1x1x128xf32> to vector<16x16x128xf32>
    %31 = arith.addf %28, %30 : vector<16x16x128xf32>
    %cst_15 = arith.constant 0.000000e+00 : f32
    %32 = vector.broadcast %cst_15 : f32 to vector<16x16x128xf32>
    %33 = arith.maximumf %31, %32 : vector<16x16x128xf32>
    %34 = arith.truncf %33 : vector<16x16x128xf32> to vector<16x16x128xbf16>
    %35 = vector.extract_strided_slice %34 {offsets = [0, 0, 0], sizes = [1, 16, 128], strides = [1, 1, 1]} : vector<16x16x128xbf16> to vector<1x16x128xbf16>
    %36 = vector.shape_cast %35 : vector<1x16x128xbf16> to vector<16x128xbf16>
    %c25 = arith.constant 25 : index
    %c0_16 = arith.constant 0 : index
    %37 = vector.load %arg9[%c25, %c0_16] : memref<456x128xbf16, #tpu.memory_space<vmem>>, vector<16x128xbf16>
    tpu.vector_store %arg9[%c25, %c0_16], %36 {strides = array<i32>} : memref<456x128xbf16, #tpu.memory_space<vmem>>, vector<16x128xbf16>,
    %38 = vector.extract_strided_slice %34 {offsets = [1, 0, 0], sizes = [1, 16, 128], strides = [1, 1, 1]} : vector<16x16x128xbf16> to vector<1x16x128xbf16>
    %39 = vector.shape_cast %38 : vector<1x16x128xbf16> to vector<16x128xbf16>
    %c49 = arith.constant 49 : index
    %c0_17 = arith.constant 0 : index
    %40 = vector.load %arg9[%c49, %c0_17] : memref<456x128xbf16, #tpu.memory_space<vmem>>, vector<16x128xbf16>
    tpu.vector_store %arg9[%c49, %c0_17], %39 {strides = array<i32>} : memref<456x128xbf16, #tpu.memory_space<vmem>>, vector<16x128xbf16>,
    %41 = vector.extract_strided_slice %34 {offsets = [2, 0, 0], sizes = [1, 16, 128], strides = [1, 1, 1]} : vector<16x16x128xbf16> to vector<1x16x128xbf16>
    %42 = vector.shape_cast %41 : vector<1x16x128xbf16> to vector<16x128xbf16>
    %c73 = arith.constant 73 : index
    %c0_18 = arith.constant 0 : index
    %43 = vector.load %arg9[%c73, %c0_18] : memref<456x128xbf16, #tpu.memory_space<vmem>>, vector<16x128xbf16>
    tpu.vector_store %arg9[%c73, %c0_18], %42 {strides = array<i32>} : memref<456x128xbf16, #tpu.memory_space<vmem>>, vector<16x128xbf16>,
    %44 = vector.extract_strided_slice %34 {offsets = [3, 0, 0], sizes = [1, 16, 128], strides = [1, 1, 1]} : vector<16x16x128xbf16> to vector<1x16x128xbf16>
    %45 = vector.shape_cast %44 : vector<1x16x128xbf16> to vector<16x128xbf16>
    %c97 = arith.constant 97 : index
    %c0_19 = arith.constant 0 : index
    %46 = vector.load %arg9[%c97, %c0_19] : memref<456x128xbf16, #tpu.memory_space<vmem>>, vector<16x128xbf16>
    tpu.vector_store %arg9[%c97, %c0_19], %45 {strides = array<i32>} : memref<456x128xbf16, #tpu.memory_space<vmem>>, vector<16x128xbf16>,
    %47 = vector.extract_strided_slice %34 {offsets = [4, 0, 0], sizes = [1, 16, 128], strides = [1, 1, 1]} : vector<16x16x128xbf16> to vector<1x16x128xbf16>
    %48 = vector.shape_cast %47 : vector<1x16x128xbf16> to vector<16x128xbf16>
    %c121 = arith.constant 121 : index
    %c0_20 = arith.constant 0 : index
    %49 = vector.load %arg9[%c121, %c0_20] : memref<456x128xbf16, #tpu.memory_space<vmem>>, vector<16x128xbf16>
    tpu.vector_store %arg9[%c121, %c0_20], %48 {strides = array<i32>} : memref<456x128xbf16, #tpu.memory_space<vmem>>, vector<16x128xbf16>,
    %50 = vector.extract_strided_slice %34 {offsets = [5, 0, 0], sizes = [1, 16, 128], strides = [1, 1, 1]} : vector<16x16x128xbf16> to vector<1x16x128xbf16>
    %51 = vector.shape_cast %50 : vector<1x16x128xbf16> to vector<16x128xbf16>
    %c145 = arith.constant 145 : index
    %c0_21 = arith.constant 0 : index
    %52 = vector.load %arg9[%c145, %c0_21] : memref<456x128xbf16, #tpu.memory_space<vmem>>, vector<16x128xbf16>
    tpu.vector_store %arg9[%c145, %c0_21], %51 {strides = array<i32>} : memref<456x128xbf16, #tpu.memory_space<vmem>>, vector<16x128xbf16>,
    %53 = vector.extract_strided_slice %34 {offsets = [6, 0, 0], sizes = [1, 16, 128], strides = [1, 1, 1]} : vector<16x16x128xbf16> to vector<1x16x128xbf16>
    %54 = vector.shape_cast %53 : vector<1x16x128xbf16> to vector<16x128xbf16>
    %c169 = arith.constant 169 : index
    %c0_22 = arith.constant 0 : index
    %55 = vector.load %arg9[%c169, %c0_22] : memref<456x128xbf16, #tpu.memory_space<vmem>>, vector<16x128xbf16>
    tpu.vector_store %arg9[%c169, %c0_22], %54 {strides = array<i32>} : memref<456x128xbf16, #tpu.memory_space<vmem>>, vector<16x128xbf16>,
    %56 = vector.extract_strided_slice %34 {offsets = [7, 0, 0], sizes = [1, 16, 128], strides = [1, 1, 1]} : vector<16x16x128xbf16> to vector<1x16x128xbf16>
    %57 = vector.shape_cast %56 : vector<1x16x128xbf16> to vector<16x128xbf16>
    %c193 = arith.constant 193 : index
    %c0_23 = arith.constant 0 : index
    %58 = vector.load %arg9[%c193, %c0_23] : memref<456x128xbf16, #tpu.memory_space<vmem>>, vector<16x128xbf16>
    tpu.vector_store %arg9[%c193, %c0_23], %57 {strides = array<i32>} : memref<456x128xbf16, #tpu.memory_space<vmem>>, vector<16x128xbf16>,
    %59 = vector.extract_strided_slice %34 {offsets = [8, 0, 0], sizes = [1, 16, 128], strides = [1, 1, 1]} : vector<16x16x128xbf16> to vector<1x16x128xbf16>
    %60 = vector.shape_cast %59 : vector<1x16x128xbf16> to vector<16x128xbf16>
    %c217 = arith.constant 217 : index
    %c0_24 = arith.constant 0 : index
    %61 = vector.load %arg9[%c217, %c0_24] : memref<456x128xbf16, #tpu.memory_space<vmem>>, vector<16x128xbf16>
    tpu.vector_store %arg9[%c217, %c0_24], %60 {strides = array<i32>} : memref<456x128xbf16, #tpu.memory_space<vmem>>, vector<16x128xbf16>,
    %62 = vector.extract_strided_slice %34 {offsets = [9, 0, 0], sizes = [1, 16, 128], strides = [1, 1, 1]} : vector<16x16x128xbf16> to vector<1x16x128xbf16>
    %63 = vector.shape_cast %62 : vector<1x16x128xbf16> to vector<16x128xbf16>
    %c241 = arith.constant 241 : index
    %c0_25 = arith.constant 0 : index
    %64 = vector.load %arg9[%c241, %c0_25] : memref<456x128xbf16, #tpu.memory_space<vmem>>, vector<16x128xbf16>
    tpu.vector_store %arg9[%c241, %c0_25], %63 {strides = array<i32>} : memref<456x128xbf16, #tpu.memory_space<vmem>>, vector<16x128xbf16>,
    %65 = vector.extract_strided_slice %34 {offsets = [10, 0, 0], sizes = [1, 16, 128], strides = [1, 1, 1]} : vector<16x16x128xbf16> to vector<1x16x128xbf16>
    %66 = vector.shape_cast %65 : vector<1x16x128xbf16> to vector<16x128xbf16>
    %c265 = arith.constant 265 : index
    %c0_26 = arith.constant 0 : index
    %67 = vector.load %arg9[%c265, %c0_26] : memref<456x128xbf16, #tpu.memory_space<vmem>>, vector<16x128xbf16>
    tpu.vector_store %arg9[%c265, %c0_26], %66 {strides = array<i32>} : memref<456x128xbf16, #tpu.memory_space<vmem>>, vector<16x128xbf16>,
    %68 = vector.extract_strided_slice %34 {offsets = [11, 0, 0], sizes = [1, 16, 128], strides = [1, 1, 1]} : vector<16x16x128xbf16> to vector<1x16x128xbf16>
    %69 = vector.shape_cast %68 : vector<1x16x128xbf16> to vector<16x128xbf16>
    %c289 = arith.constant 289 : index
    %c0_27 = arith.constant 0 : index
    %70 = vector.load %arg9[%c289, %c0_27] : memref<456x128xbf16, #tpu.memory_space<vmem>>, vector<16x128xbf16>
    tpu.vector_store %arg9[%c289, %c0_27], %69 {strides = array<i32>} : memref<456x128xbf16, #tpu.memory_space<vmem>>, vector<16x128xbf16>,
    %71 = vector.extract_strided_slice %34 {offsets = [12, 0, 0], sizes = [1, 16, 128], strides = [1, 1, 1]} : vector<16x16x128xbf16> to vector<1x16x128xbf16>
    %72 = vector.shape_cast %71 : vector<1x16x128xbf16> to vector<16x128xbf16>
    %c313 = arith.constant 313 : index
    %c0_28 = arith.constant 0 : index
    %73 = vector.load %arg9[%c313, %c0_28] : memref<456x128xbf16, #tpu.memory_space<vmem>>, vector<16x128xbf16>
    tpu.vector_store %arg9[%c313, %c0_28], %72 {strides = array<i32>} : memref<456x128xbf16, #tpu.memory_space<vmem>>, vector<16x128xbf16>,
    %74 = vector.extract_strided_slice %34 {offsets = [13, 0, 0], sizes = [1, 16, 128], strides = [1, 1, 1]} : vector<16x16x128xbf16> to vector<1x16x128xbf16>
    %75 = vector.shape_cast %74 : vector<1x16x128xbf16> to vector<16x128xbf16>
    %c337 = arith.constant 337 : index
    %c0_29 = arith.constant 0 : index
    %76 = vector.load %arg9[%c337, %c0_29] : memref<456x128xbf16, #tpu.memory_space<vmem>>, vector<16x128xbf16>
    tpu.vector_store %arg9[%c337, %c0_29], %75 {strides = array<i32>} : memref<456x128xbf16, #tpu.memory_space<vmem>>, vector<16x128xbf16>,
    %77 = vector.extract_strided_slice %34 {offsets = [14, 0, 0], sizes = [1, 16, 128], strides = [1, 1, 1]} : vector<16x16x128xbf16> to vector<1x16x128xbf16>
    %78 = vector.shape_cast %77 : vector<1x16x128xbf16> to vector<16x128xbf16>
    %c361 = arith.constant 361 : index
    %c0_30 = arith.constant 0 : index
    %79 = vector.load %arg9[%c361, %c0_30] : memref<456x128xbf16, #tpu.memory_space<vmem>>, vector<16x128xbf16>
    tpu.vector_store %arg9[%c361, %c0_30], %78 {strides = array<i32>} : memref<456x128xbf16, #tpu.memory_space<vmem>>, vector<16x128xbf16>,
    %80 = vector.extract_strided_slice %34 {offsets = [15, 0, 0], sizes = [1, 16, 128], strides = [1, 1, 1]} : vector<16x16x128xbf16> to vector<1x16x128xbf16>
    %81 = vector.shape_cast %80 : vector<1x16x128xbf16> to vector<16x128xbf16>
    %c385 = arith.constant 385 : index
    %c0_31 = arith.constant 0 : index
    %82 = vector.load %arg9[%c385, %c0_31] : memref<456x128xbf16, #tpu.memory_space<vmem>>, vector<16x128xbf16>
    tpu.vector_store %arg9[%c385, %c0_31], %81 {strides = array<i32>} : memref<456x128xbf16, #tpu.memory_space<vmem>>, vector<16x128xbf16>,
    %c0_32 = arith.constant 0 : index
    %c0_33 = arith.constant 0 : index
    %83 = vector.load %arg9[%c0_32, %c0_33] : memref<456x128xbf16, #tpu.memory_space<vmem>>, vector<384x128xbf16>
    %c0_34 = arith.constant 0 : index
    %c0_35 = arith.constant 0 : index
    %c0_36 = arith.constant 0 : index
    %c0_37 = arith.constant 0 : index
    %84 = vector.load %arg6[%c0_34, %c0_35, %c0_36, %c0_37] : memref<3x3x128x128xbf16, #tpu.memory_space<vmem>>, vector<1x1x128x128xbf16>
    %85 = vector.shape_cast %84 : vector<1x1x128x128xbf16> to vector<128x128xbf16>
    %cst_38 = arith.constant dense<0.000000e+00> : vector<384x128xf32>
    %86 = tpu.matmul %83, %85, %cst_38 {dimension_numbers = #tpu.dot_dimension_numbers<[1], [0], [0], [1], [0, 0, 1, 1], [], []>} : vector<384x128xbf16>, vector<128x128xbf16>, vector<384x128xf32> -> vector<384x128xf32>
    %c0_39 = arith.constant 0 : index
    %c0_40 = arith.constant 0 : index
    %87 = vector.load %arg10[%c0_39, %c0_40] : memref<384x128xf32, #tpu.memory_space<vmem>>, vector<384x128xf32>
    tpu.vector_store %arg10[%c0_39, %c0_40], %86 {strides = array<i32>} : memref<384x128xf32, #tpu.memory_space<vmem>>, vector<384x128xf32>,
    %c1 = arith.constant 1 : index
    %c0_41 = arith.constant 0 : index
    %88 = vector.load %arg9[%c1, %c0_41] : memref<456x128xbf16, #tpu.memory_space<vmem>>, vector<384x128xbf16>
    %c0_42 = arith.constant 0 : index
    %c1_43 = arith.constant 1 : index
    %c0_44 = arith.constant 0 : index
    %c0_45 = arith.constant 0 : index
    %89 = vector.load %arg6[%c0_42, %c1_43, %c0_44, %c0_45] : memref<3x3x128x128xbf16, #tpu.memory_space<vmem>>, vector<1x1x128x128xbf16>
    %90 = vector.shape_cast %89 : vector<1x1x128x128xbf16> to vector<128x128xbf16>
    %cst_46 = arith.constant dense<0.000000e+00> : vector<384x128xf32>
    %91 = tpu.matmul %88, %90, %cst_46 {dimension_numbers = #tpu.dot_dimension_numbers<[1], [0], [0], [1], [0, 0, 1, 1], [], []>} : vector<384x128xbf16>, vector<128x128xbf16>, vector<384x128xf32> -> vector<384x128xf32>
    %c0_47 = arith.constant 0 : index
    %c0_48 = arith.constant 0 : index
    %92 = vector.load %arg10[%c0_47, %c0_48] : memref<384x128xf32, #tpu.memory_space<vmem>>, vector<384x128xf32>
    %93 = arith.addf %92, %91 : vector<384x128xf32>
    %c0_49 = arith.constant 0 : index
    %c0_50 = arith.constant 0 : index
    %94 = vector.load %arg10[%c0_49, %c0_50] : memref<384x128xf32, #tpu.memory_space<vmem>>, vector<384x128xf32>
    tpu.vector_store %arg10[%c0_49, %c0_50], %93 {strides = array<i32>} : memref<384x128xf32, #tpu.memory_space<vmem>>, vector<384x128xf32>,
    %c2 = arith.constant 2 : index
    %c0_51 = arith.constant 0 : index
    %95 = vector.load %arg9[%c2, %c0_51] : memref<456x128xbf16, #tpu.memory_space<vmem>>, vector<384x128xbf16>
    %c0_52 = arith.constant 0 : index
    %c2_53 = arith.constant 2 : index
    %c0_54 = arith.constant 0 : index
    %c0_55 = arith.constant 0 : index
    %96 = vector.load %arg6[%c0_52, %c2_53, %c0_54, %c0_55] : memref<3x3x128x128xbf16, #tpu.memory_space<vmem>>, vector<1x1x128x128xbf16>
    %97 = vector.shape_cast %96 : vector<1x1x128x128xbf16> to vector<128x128xbf16>
    %cst_56 = arith.constant dense<0.000000e+00> : vector<384x128xf32>
    %98 = tpu.matmul %95, %97, %cst_56 {dimension_numbers = #tpu.dot_dimension_numbers<[1], [0], [0], [1], [0, 0, 1, 1], [], []>} : vector<384x128xbf16>, vector<128x128xbf16>, vector<384x128xf32> -> vector<384x128xf32>
    %c0_57 = arith.constant 0 : index
    %c0_58 = arith.constant 0 : index
    %99 = vector.load %arg10[%c0_57, %c0_58] : memref<384x128xf32, #tpu.memory_space<vmem>>, vector<384x128xf32>
    %100 = arith.addf %99, %98 : vector<384x128xf32>
    %c0_59 = arith.constant 0 : index
    %c0_60 = arith.constant 0 : index
    %101 = vector.load %arg10[%c0_59, %c0_60] : memref<384x128xf32, #tpu.memory_space<vmem>>, vector<384x128xf32>
    tpu.vector_store %arg10[%c0_59, %c0_60], %100 {strides = array<i32>} : memref<384x128xf32, #tpu.memory_space<vmem>>, vector<384x128xf32>,
    %c24 = arith.constant 24 : index
    %c0_61 = arith.constant 0 : index
    %102 = vector.load %arg9[%c24, %c0_61] : memref<456x128xbf16, #tpu.memory_space<vmem>>, vector<384x128xbf16>
    %c1_62 = arith.constant 1 : index
    %c0_63 = arith.constant 0 : index
    %c0_64 = arith.constant 0 : index
    %c0_65 = arith.constant 0 : index
    %103 = vector.load %arg6[%c1_62, %c0_63, %c0_64, %c0_65] : memref<3x3x128x128xbf16, #tpu.memory_space<vmem>>, vector<1x1x128x128xbf16>
    %104 = vector.shape_cast %103 : vector<1x1x128x128xbf16> to vector<128x128xbf16>
    %cst_66 = arith.constant dense<0.000000e+00> : vector<384x128xf32>
    %105 = tpu.matmul %102, %104, %cst_66 {dimension_numbers = #tpu.dot_dimension_numbers<[1], [0], [0], [1], [0, 0, 1, 1], [], []>} : vector<384x128xbf16>, vector<128x128xbf16>, vector<384x128xf32> -> vector<384x128xf32>
    %c0_67 = arith.constant 0 : index
    %c0_68 = arith.constant 0 : index
    %106 = vector.load %arg10[%c0_67, %c0_68] : memref<384x128xf32, #tpu.memory_space<vmem>>, vector<384x128xf32>
    %107 = arith.addf %106, %105 : vector<384x128xf32>
    %c0_69 = arith.constant 0 : index
    %c0_70 = arith.constant 0 : index
    %108 = vector.load %arg10[%c0_69, %c0_70] : memref<384x128xf32, #tpu.memory_space<vmem>>, vector<384x128xf32>
    tpu.vector_store %arg10[%c0_69, %c0_70], %107 {strides = array<i32>} : memref<384x128xf32, #tpu.memory_space<vmem>>, vector<384x128xf32>,
    %c25_71 = arith.constant 25 : index
    %c0_72 = arith.constant 0 : index
    %109 = vector.load %arg9[%c25_71, %c0_72] : memref<456x128xbf16, #tpu.memory_space<vmem>>, vector<384x128xbf16>
    %c1_73 = arith.constant 1 : index
    %c1_74 = arith.constant 1 : index
    %c0_75 = arith.constant 0 : index
    %c0_76 = arith.constant 0 : index
    %110 = vector.load %arg6[%c1_73, %c1_74, %c0_75, %c0_76] : memref<3x3x128x128xbf16, #tpu.memory_space<vmem>>, vector<1x1x128x128xbf16>
    %111 = vector.shape_cast %110 : vector<1x1x128x128xbf16> to vector<128x128xbf16>
    %cst_77 = arith.constant dense<0.000000e+00> : vector<384x128xf32>
    %112 = tpu.matmul %109, %111, %cst_77 {dimension_numbers = #tpu.dot_dimension_numbers<[1], [0], [0], [1], [0, 0, 1, 1], [], []>} : vector<384x128xbf16>, vector<128x128xbf16>, vector<384x128xf32> -> vector<384x128xf32>
    %c0_78 = arith.constant 0 : index
    %c0_79 = arith.constant 0 : index
    %113 = vector.load %arg10[%c0_78, %c0_79] : memref<384x128xf32, #tpu.memory_space<vmem>>, vector<384x128xf32>
    %114 = arith.addf %113, %112 : vector<384x128xf32>
    %c0_80 = arith.constant 0 : index
    %c0_81 = arith.constant 0 : index
    %115 = vector.load %arg10[%c0_80, %c0_81] : memref<384x128xf32, #tpu.memory_space<vmem>>, vector<384x128xf32>
    tpu.vector_store %arg10[%c0_80, %c0_81], %114 {strides = array<i32>} : memref<384x128xf32, #tpu.memory_space<vmem>>, vector<384x128xf32>,
    %c26 = arith.constant 26 : index
    %c0_82 = arith.constant 0 : index
    %116 = vector.load %arg9[%c26, %c0_82] : memref<456x128xbf16, #tpu.memory_space<vmem>>, vector<384x128xbf16>
    %c1_83 = arith.constant 1 : index
    %c2_84 = arith.constant 2 : index
    %c0_85 = arith.constant 0 : index
    %c0_86 = arith.constant 0 : index
    %117 = vector.load %arg6[%c1_83, %c2_84, %c0_85, %c0_86] : memref<3x3x128x128xbf16, #tpu.memory_space<vmem>>, vector<1x1x128x128xbf16>
    %118 = vector.shape_cast %117 : vector<1x1x128x128xbf16> to vector<128x128xbf16>
    %cst_87 = arith.constant dense<0.000000e+00> : vector<384x128xf32>
    %119 = tpu.matmul %116, %118, %cst_87 {dimension_numbers = #tpu.dot_dimension_numbers<[1], [0], [0], [1], [0, 0, 1, 1], [], []>} : vector<384x128xbf16>, vector<128x128xbf16>, vector<384x128xf32> -> vector<384x128xf32>
    %c0_88 = arith.constant 0 : index
    %c0_89 = arith.constant 0 : index
    %120 = vector.load %arg10[%c0_88, %c0_89] : memref<384x128xf32, #tpu.memory_space<vmem>>, vector<384x128xf32>
    %121 = arith.addf %120, %119 : vector<384x128xf32>
    %c0_90 = arith.constant 0 : index
    %c0_91 = arith.constant 0 : index
    %122 = vector.load %arg10[%c0_90, %c0_91] : memref<384x128xf32, #tpu.memory_space<vmem>>, vector<384x128xf32>
    tpu.vector_store %arg10[%c0_90, %c0_91], %121 {strides = array<i32>} : memref<384x128xf32, #tpu.memory_space<vmem>>, vector<384x128xf32>,
    %c48 = arith.constant 48 : index
    %c0_92 = arith.constant 0 : index
    %123 = vector.load %arg9[%c48, %c0_92] : memref<456x128xbf16, #tpu.memory_space<vmem>>, vector<384x128xbf16>
    %c2_93 = arith.constant 2 : index
    %c0_94 = arith.constant 0 : index
    %c0_95 = arith.constant 0 : index
    %c0_96 = arith.constant 0 : index
    %124 = vector.load %arg6[%c2_93, %c0_94, %c0_95, %c0_96] : memref<3x3x128x128xbf16, #tpu.memory_space<vmem>>, vector<1x1x128x128xbf16>
    %125 = vector.shape_cast %124 : vector<1x1x128x128xbf16> to vector<128x128xbf16>
    %cst_97 = arith.constant dense<0.000000e+00> : vector<384x128xf32>
    %126 = tpu.matmul %123, %125, %cst_97 {dimension_numbers = #tpu.dot_dimension_numbers<[1], [0], [0], [1], [0, 0, 1, 1], [], []>} : vector<384x128xbf16>, vector<128x128xbf16>, vector<384x128xf32> -> vector<384x128xf32>
    %c0_98 = arith.constant 0 : index
    %c0_99 = arith.constant 0 : index
    %127 = vector.load %arg10[%c0_98, %c0_99] : memref<384x128xf32, #tpu.memory_space<vmem>>, vector<384x128xf32>
    %128 = arith.addf %127, %126 : vector<384x128xf32>
    %c0_100 = arith.constant 0 : index
    %c0_101 = arith.constant 0 : index
    %129 = vector.load %arg10[%c0_100, %c0_101] : memref<384x128xf32, #tpu.memory_space<vmem>>, vector<384x128xf32>
    tpu.vector_store %arg10[%c0_100, %c0_101], %128 {strides = array<i32>} : memref<384x128xf32, #tpu.memory_space<vmem>>, vector<384x128xf32>,
    %c49_102 = arith.constant 49 : index
    %c0_103 = arith.constant 0 : index
    %130 = vector.load %arg9[%c49_102, %c0_103] : memref<456x128xbf16, #tpu.memory_space<vmem>>, vector<384x128xbf16>
    %c2_104 = arith.constant 2 : index
    %c1_105 = arith.constant 1 : index
    %c0_106 = arith.constant 0 : index
    %c0_107 = arith.constant 0 : index
    %131 = vector.load %arg6[%c2_104, %c1_105, %c0_106, %c0_107] : memref<3x3x128x128xbf16, #tpu.memory_space<vmem>>, vector<1x1x128x128xbf16>
    %132 = vector.shape_cast %131 : vector<1x1x128x128xbf16> to vector<128x128xbf16>
    %cst_108 = arith.constant dense<0.000000e+00> : vector<384x128xf32>
    %133 = tpu.matmul %130, %132, %cst_108 {dimension_numbers = #tpu.dot_dimension_numbers<[1], [0], [0], [1], [0, 0, 1, 1], [], []>} : vector<384x128xbf16>, vector<128x128xbf16>, vector<384x128xf32> -> vector<384x128xf32>
    %c0_109 = arith.constant 0 : index
    %c0_110 = arith.constant 0 : index
    %134 = vector.load %arg10[%c0_109, %c0_110] : memref<384x128xf32, #tpu.memory_space<vmem>>, vector<384x128xf32>
    %135 = arith.addf %134, %133 : vector<384x128xf32>
    %c0_111 = arith.constant 0 : index
    %c0_112 = arith.constant 0 : index
    %136 = vector.load %arg10[%c0_111, %c0_112] : memref<384x128xf32, #tpu.memory_space<vmem>>, vector<384x128xf32>
    tpu.vector_store %arg10[%c0_111, %c0_112], %135 {strides = array<i32>} : memref<384x128xf32, #tpu.memory_space<vmem>>, vector<384x128xf32>,
    %c50 = arith.constant 50 : index
    %c0_113 = arith.constant 0 : index
    %137 = vector.load %arg9[%c50, %c0_113] : memref<456x128xbf16, #tpu.memory_space<vmem>>, vector<384x128xbf16>
    %c2_114 = arith.constant 2 : index
    %c2_115 = arith.constant 2 : index
    %c0_116 = arith.constant 0 : index
    %c0_117 = arith.constant 0 : index
    %138 = vector.load %arg6[%c2_114, %c2_115, %c0_116, %c0_117] : memref<3x3x128x128xbf16, #tpu.memory_space<vmem>>, vector<1x1x128x128xbf16>
    %139 = vector.shape_cast %138 : vector<1x1x128x128xbf16> to vector<128x128xbf16>
    %cst_118 = arith.constant dense<0.000000e+00> : vector<384x128xf32>
    %140 = tpu.matmul %137, %139, %cst_118 {dimension_numbers = #tpu.dot_dimension_numbers<[1], [0], [0], [1], [0, 0, 1, 1], [], []>} : vector<384x128xbf16>, vector<128x128xbf16>, vector<384x128xf32> -> vector<384x128xf32>
    %c0_119 = arith.constant 0 : index
    %c0_120 = arith.constant 0 : index
    %141 = vector.load %arg10[%c0_119, %c0_120] : memref<384x128xf32, #tpu.memory_space<vmem>>, vector<384x128xf32>
    %142 = arith.addf %141, %140 : vector<384x128xf32>
    %c0_121 = arith.constant 0 : index
    %c0_122 = arith.constant 0 : index
    %143 = vector.load %arg10[%c0_121, %c0_122] : memref<384x128xf32, #tpu.memory_space<vmem>>, vector<384x128xf32>
    tpu.vector_store %arg10[%c0_121, %c0_122], %142 {strides = array<i32>} : memref<384x128xf32, #tpu.memory_space<vmem>>, vector<384x128xf32>,
    %c0_123 = arith.constant 0 : index
    %c0_124 = arith.constant 0 : index
    %144 = vector.load %arg10[%c0_123, %c0_124] : memref<384x128xf32, #tpu.memory_space<vmem>>, vector<384x128xf32>
    %145 = vector.shape_cast %144 : vector<384x128xf32> to vector<16x24x128xf32>
    %146 = vector.extract_strided_slice %145 {offsets = [0, 0, 0], sizes = [16, 16, 128], strides = [1, 1, 1]} : vector<16x24x128xf32> to vector<16x16x128xf32>
    %147 = arith.truncf %146 : vector<16x16x128xf32> to vector<16x16x128xbf16>
    %c0_125 = arith.constant 0 : index
    %c0_126 = arith.constant 0 : index
    %c0_127 = arith.constant 0 : index
    %c0_128 = arith.constant 0 : index
    %148 = vector.load %arg7[%c0_125, %c0_126, %c0_127, %c0_128] : memref<1x16x16x128xbf16, #tpu.memory_space<vmem>>, vector<1x16x16x128xbf16>
    %149 = vector.shape_cast %148 : vector<1x16x16x128xbf16> to vector<16x16x128xbf16>
    %150 = vector.shape_cast %147 : vector<16x16x128xbf16> to vector<1x16x16x128xbf16>
    tpu.vector_store %arg7[%c0_125, %c0_126, %c0_127, %c0_128], %150 {strides = array<i32>} : memref<1x16x16x128xbf16, #tpu.memory_space<vmem>>, vector<1x16x16x128xbf16>,
    %151 = vector.shape_cast %146 : vector<16x16x128xf32> to vector<256x128xf32>
    %c0_129 = arith.constant 0 : index
    %c0_130 = arith.constant 0 : index
    %c0_131 = arith.constant 0 : index
    %152 = vector.load %arg8[%c0_129, %c0_130, %c0_131] : memref<1x2x128xf32, #tpu.memory_space<vmem>>, vector<1x1x128xf32>
    %153 = vector.shape_cast %152 : vector<1x1x128xf32> to vector<1x128xf32>
    %cst_132 = arith.constant dense<0.000000e+00> : vector<128xf32>
    %154 = vector.multi_reduction <add>, %151, %cst_132 [0] : vector<256x128xf32> to vector<128xf32>
    %155 = vector.shape_cast %154 : vector<128xf32> to vector<1x128xf32>
    %156 = arith.addf %153, %155 : vector<1x128xf32>
    %c0_133 = arith.constant 0 : index
    %c0_134 = arith.constant 0 : index
    %c0_135 = arith.constant 0 : index
    %157 = vector.load %arg8[%c0_133, %c0_134, %c0_135] : memref<1x2x128xf32, #tpu.memory_space<vmem>>, vector<1x1x128xf32>
    %158 = vector.shape_cast %157 : vector<1x1x128xf32> to vector<1x128xf32>
    %159 = vector.shape_cast %156 : vector<1x128xf32> to vector<1x1x128xf32>
    tpu.vector_store %arg8[%c0_133, %c0_134, %c0_135], %159 {strides = array<i32>} : memref<1x2x128xf32, #tpu.memory_space<vmem>>, vector<1x1x128xf32>,
    %c0_136 = arith.constant 0 : index
    %c1_137 = arith.constant 1 : index
    %c0_138 = arith.constant 0 : index
    %160 = vector.load %arg8[%c0_136, %c1_137, %c0_138] : memref<1x2x128xf32, #tpu.memory_space<vmem>>, vector<1x1x128xf32>
    %161 = vector.shape_cast %160 : vector<1x1x128xf32> to vector<1x128xf32>
    %162 = arith.mulf %151, %151 : vector<256x128xf32>
    %cst_139 = arith.constant dense<0.000000e+00> : vector<128xf32>
    %163 = vector.multi_reduction <add>, %162, %cst_139 [0] : vector<256x128xf32> to vector<128xf32>
    %164 = vector.shape_cast %163 : vector<128xf32> to vector<1x128xf32>
    %165 = arith.addf %161, %164 : vector<1x128xf32>
    %c0_140 = arith.constant 0 : index
    %c1_141 = arith.constant 1 : index
    %c0_142 = arith.constant 0 : index
    %166 = vector.load %arg8[%c0_140, %c1_141, %c0_142] : memref<1x2x128xf32, #tpu.memory_space<vmem>>, vector<1x1x128xf32>
    %167 = vector.shape_cast %166 : vector<1x1x128xf32> to vector<1x128xf32>
    %168 = vector.shape_cast %165 : vector<1x128xf32> to vector<1x1x128xf32>
    tpu.vector_store %arg8[%c0_140, %c1_141, %c0_142], %168 {strides = array<i32>} : memref<1x2x128xf32, #tpu.memory_space<vmem>>, vector<1x1x128xf32>,
    return
  }
  func.func @transform_0(%arg0: i32, %arg1: i32) -> (i32, i32, i32, i32) {
    %c1_i32 = arith.constant 1 : i32
    %0 = arith.muli %arg0, %c1_i32 : i32
    %1 = arith.addi %0, %arg1 : i32
    %c0_i32 = arith.constant 0 : i32
    %c0_i32_0 = arith.constant 0 : i32
    %c0_i32_1 = arith.constant 0 : i32
    %c0_i32_2 = arith.constant 0 : i32
    return %1, %c0_i32, %c0_i32_0, %c0_i32_1 : i32, i32, i32, i32
  }
  func.func @transform_1(%arg0: i32, %arg1: i32) -> (i32, i32, i32) {
    %c0_i32 = arith.constant 0 : i32
    %c0_i32_0 = arith.constant 0 : i32
    %c0_i32_1 = arith.constant 0 : i32
    %c0_i32_2 = arith.constant 0 : i32
    return %c0_i32, %c0_i32_0, %c0_i32_1 : i32, i32, i32
  }
  func.func @transform_2(%arg0: i32, %arg1: i32) -> (i32, i32) {
    %c0_i32 = arith.constant 0 : i32
    %c0_i32_0 = arith.constant 0 : i32
    %c0_i32_1 = arith.constant 0 : i32
    return %c0_i32, %c0_i32_0 : i32, i32
  }
  func.func @transform_3(%arg0: i32, %arg1: i32) -> (i32, i32) {
    %c0_i32 = arith.constant 0 : i32
    %c0_i32_0 = arith.constant 0 : i32
    %c0_i32_1 = arith.constant 0 : i32
    return %c0_i32, %c0_i32_0 : i32, i32
  }
  func.func @transform_4(%arg0: i32, %arg1: i32) -> (i32, i32, i32, i32) {
    %c0_i32 = arith.constant 0 : i32
    %c0_i32_0 = arith.constant 0 : i32
    %c0_i32_1 = arith.constant 0 : i32
    %c0_i32_2 = arith.constant 0 : i32
    %c0_i32_3 = arith.constant 0 : i32
    return %c0_i32, %c0_i32_0, %c0_i32_1, %c0_i32_2 : i32, i32, i32, i32
  }
  func.func @transform_5(%arg0: i32, %arg1: i32) -> (i32, i32, i32, i32) {
    %c1_i32 = arith.constant 1 : i32
    %0 = arith.muli %arg0, %c1_i32 : i32
    %1 = arith.addi %0, %arg1 : i32
    %c0_i32 = arith.constant 0 : i32
    %c0_i32_0 = arith.constant 0 : i32
    %c0_i32_1 = arith.constant 0 : i32
    %c0_i32_2 = arith.constant 0 : i32
    return %1, %c0_i32, %c0_i32_0, %c0_i32_1 : i32, i32, i32, i32
  }
  func.func @transform_6(%arg0: i32, %arg1: i32) -> (i32, i32, i32) {
    %c0_i32 = arith.constant 0 : i32
    %c0_i32_0 = arith.constant 0 : i32
    %c0_i32_1 = arith.constant 0 : i32
    return %arg0, %c0_i32, %c0_i32_0 : i32, i32, i32
  }
}

module attributes {stable_mosaic.version = 11 : i64} {
  func.func @_bn_relu_conv1x1_stats_kernel(%arg0: i32, %arg1: i32, %arg2: memref<512x128xbf16, #tpu.memory_space<vmem>>, %arg3: memref<2x2x128xf32, #tpu.memory_space<vmem>>, %arg4: memref<1x128xf32, #tpu.memory_space<vmem>>, %arg5: memref<1x128xf32, #tpu.memory_space<vmem>>, %arg6: memref<128x128xbf16, #tpu.memory_space<vmem>>, %arg7: memref<512x128xbf16, #tpu.memory_space<vmem>>, %arg8: memref<1x2x128xf32, #tpu.memory_space<vmem>>) attributes {dimension_semantics = [#tpu.dimension_semantics<parallel>, #tpu.dimension_semantics<arbitrary>], iteration_bounds = array<i64: 1, 1>, scalar_prefetch = 0 : i64, scratch_operands = 0 : i64, tpu.core_type = #tpu.core_type<tc>, window_params = [{transform_indices = @transform_0, window_bounds = array<i64: 512, 128>}, {pipeline_mode = #tpu.pipeline_mode<synchronous>, transform_indices = @transform_1, window_bounds = array<i64: 2, 2, 128>}, {pipeline_mode = #tpu.pipeline_mode<synchronous>, transform_indices = @transform_2, window_bounds = array<i64: 1, 128>}, {pipeline_mode = #tpu.pipeline_mode<synchronous>, transform_indices = @transform_3, window_bounds = array<i64: 1, 128>}, {pipeline_mode = #tpu.pipeline_mode<synchronous>, transform_indices = @transform_4, window_bounds = array<i64: 128, 128>}, {transform_indices = @transform_5, window_bounds = array<i64: 512, 128>}, {transform_indices = @transform_6, window_bounds = array<i64: 1, 2, 128>}]} {
    %c0_i32 = arith.constant 0 : i32
    %0 = arith.cmpi eq, %arg1, %c0_i32 : i32
    %1 = arith.extui %0 : i1 to i32
    %c0_i32_0 = arith.constant 0 : i32
    %2 = arith.cmpi ne, %1, %c0_i32_0 : i32
    scf.if %2 {
      %cst_32 = arith.constant 0.000000e+00 : f32
      %53 = vector.broadcast %cst_32 : f32 to vector<1x2x128xf32>
      %c0_33 = arith.constant 0 : index
      %c0_34 = arith.constant 0 : index
      %c0_35 = arith.constant 0 : index
      %54 = vector.load %arg8[%c0_33, %c0_34, %c0_35] : memref<1x2x128xf32, #tpu.memory_space<vmem>>, vector<1x2x128xf32>
      tpu.vector_store %arg8[%c0_33, %c0_34, %c0_35], %53 {strides = array<i32>} : memref<1x2x128xf32, #tpu.memory_space<vmem>>, vector<1x2x128xf32>,
    } else {
    }
    %c0 = arith.constant 0 : index
    %c0_1 = arith.constant 0 : index
    %c0_2 = arith.constant 0 : index
    %3 = vector.load %arg3[%c0, %c0_1, %c0_2] : memref<2x2x128xf32, #tpu.memory_space<vmem>>, vector<2x2x128xf32>
    %cst = arith.constant dense<0.000000e+00> : vector<2x128xf32>
    %4 = vector.multi_reduction <add>, %3, %cst [0] : vector<2x2x128xf32> to vector<2x128xf32>
    %c0_3 = arith.constant 0 : index
    %c0_4 = arith.constant 0 : index
    %5 = vector.load %arg4[%c0_3, %c0_4] : memref<1x128xf32, #tpu.memory_space<vmem>>, vector<1x128xf32>
    %c0_5 = arith.constant 0 : index
    %c0_6 = arith.constant 0 : index
    %6 = vector.load %arg5[%c0_5, %c0_6] : memref<1x128xf32, #tpu.memory_space<vmem>>, vector<1x128xf32>
    %7 = vector.extract_strided_slice %4 {offsets = [0, 0], sizes = [1, 128], strides = [1, 1]} : vector<2x128xf32> to vector<1x128xf32>
    %cst_7 = arith.constant 5.120000e+02 : f32
    %8 = vector.broadcast %cst_7 : f32 to vector<1x128xf32>
    %9 = arith.divf %7, %8 : vector<1x128xf32>
    %10 = vector.extract_strided_slice %4 {offsets = [1, 0], sizes = [1, 128], strides = [1, 1]} : vector<2x128xf32> to vector<1x128xf32>
    %cst_8 = arith.constant 5.120000e+02 : f32
    %11 = vector.broadcast %cst_8 : f32 to vector<1x128xf32>
    %12 = arith.divf %10, %11 : vector<1x128xf32>
    %13 = arith.mulf %9, %9 : vector<1x128xf32>
    %14 = arith.subf %12, %13 : vector<1x128xf32>
    %cst_9 = arith.constant 0.000000e+00 : f32
    %15 = vector.broadcast %cst_9 : f32 to vector<1x128xf32>
    %16 = arith.maximumf %14, %15 : vector<1x128xf32>
    %cst_10 = arith.constant 9.99999974E-6 : f32
    %17 = vector.broadcast %cst_10 : f32 to vector<1x128xf32>
    %18 = arith.addf %16, %17 : vector<1x128xf32>
    %19 = math.rsqrt %18 : vector<1x128xf32>
    %20 = arith.mulf %5, %19 : vector<1x128xf32>
    %21 = arith.mulf %9, %20 : vector<1x128xf32>
    %22 = arith.subf %6, %21 : vector<1x128xf32>
    %c0_11 = arith.constant 0 : index
    %c0_12 = arith.constant 0 : index
    %23 = vector.load %arg2[%c0_11, %c0_12] : memref<512x128xbf16, #tpu.memory_space<vmem>>, vector<512x128xbf16>
    %24 = arith.extf %23 : vector<512x128xbf16> to vector<512x128xf32>
    %25 = vector.broadcast %20 : vector<1x128xf32> to vector<512x128xf32>
    %26 = arith.mulf %24, %25 : vector<512x128xf32>
    %27 = vector.broadcast %22 : vector<1x128xf32> to vector<512x128xf32>
    %28 = arith.addf %26, %27 : vector<512x128xf32>
    %cst_13 = arith.constant 0.000000e+00 : f32
    %29 = vector.broadcast %cst_13 : f32 to vector<512x128xf32>
    %30 = arith.maximumf %28, %29 : vector<512x128xf32>
    %31 = arith.truncf %30 : vector<512x128xf32> to vector<512x128xbf16>
    %c0_14 = arith.constant 0 : index
    %c0_15 = arith.constant 0 : index
    %32 = vector.load %arg6[%c0_14, %c0_15] : memref<128x128xbf16, #tpu.memory_space<vmem>>, vector<128x128xbf16>
    %cst_16 = arith.constant dense<0.000000e+00> : vector<512x128xf32>
    %33 = tpu.matmul %31, %32, %cst_16 {dimension_numbers = #tpu.dot_dimension_numbers<[1], [0], [0], [1], [0, 0, 1, 1], [], []>} : vector<512x128xbf16>, vector<128x128xbf16>, vector<512x128xf32> -> vector<512x128xf32>
    %34 = arith.truncf %33 : vector<512x128xf32> to vector<512x128xbf16>
    %c0_17 = arith.constant 0 : index
    %c0_18 = arith.constant 0 : index
    %35 = vector.load %arg7[%c0_17, %c0_18] : memref<512x128xbf16, #tpu.memory_space<vmem>>, vector<512x128xbf16>
    tpu.vector_store %arg7[%c0_17, %c0_18], %34 {strides = array<i32>} : memref<512x128xbf16, #tpu.memory_space<vmem>>, vector<512x128xbf16>,
    %c0_19 = arith.constant 0 : index
    %c0_20 = arith.constant 0 : index
    %c0_21 = arith.constant 0 : index
    %36 = vector.load %arg8[%c0_19, %c0_20, %c0_21] : memref<1x2x128xf32, #tpu.memory_space<vmem>>, vector<1x1x128xf32>
    %37 = vector.shape_cast %36 : vector<1x1x128xf32> to vector<1x128xf32>
    %cst_22 = arith.constant dense<0.000000e+00> : vector<128xf32>
    %38 = vector.multi_reduction <add>, %33, %cst_22 [0] : vector<512x128xf32> to vector<128xf32>
    %39 = vector.shape_cast %38 : vector<128xf32> to vector<1x128xf32>
    %40 = arith.addf %37, %39 : vector<1x128xf32>
    %c0_23 = arith.constant 0 : index
    %c0_24 = arith.constant 0 : index
    %c0_25 = arith.constant 0 : index
    %41 = vector.load %arg8[%c0_23, %c0_24, %c0_25] : memref<1x2x128xf32, #tpu.memory_space<vmem>>, vector<1x1x128xf32>
    %42 = vector.shape_cast %41 : vector<1x1x128xf32> to vector<1x128xf32>
    %43 = vector.shape_cast %40 : vector<1x128xf32> to vector<1x1x128xf32>
    tpu.vector_store %arg8[%c0_23, %c0_24, %c0_25], %43 {strides = array<i32>} : memref<1x2x128xf32, #tpu.memory_space<vmem>>, vector<1x1x128xf32>,
    %c0_26 = arith.constant 0 : index
    %c1 = arith.constant 1 : index
    %c0_27 = arith.constant 0 : index
    %44 = vector.load %arg8[%c0_26, %c1, %c0_27] : memref<1x2x128xf32, #tpu.memory_space<vmem>>, vector<1x1x128xf32>
    %45 = vector.shape_cast %44 : vector<1x1x128xf32> to vector<1x128xf32>
    %46 = arith.mulf %33, %33 : vector<512x128xf32>
    %cst_28 = arith.constant dense<0.000000e+00> : vector<128xf32>
    %47 = vector.multi_reduction <add>, %46, %cst_28 [0] : vector<512x128xf32> to vector<128xf32>
    %48 = vector.shape_cast %47 : vector<128xf32> to vector<1x128xf32>
    %49 = arith.addf %45, %48 : vector<1x128xf32>
    %c0_29 = arith.constant 0 : index
    %c1_30 = arith.constant 1 : index
    %c0_31 = arith.constant 0 : index
    %50 = vector.load %arg8[%c0_29, %c1_30, %c0_31] : memref<1x2x128xf32, #tpu.memory_space<vmem>>, vector<1x1x128xf32>
    %51 = vector.shape_cast %50 : vector<1x1x128xf32> to vector<1x128xf32>
    %52 = vector.shape_cast %49 : vector<1x128xf32> to vector<1x1x128xf32>
    tpu.vector_store %arg8[%c0_29, %c1_30, %c0_31], %52 {strides = array<i32>} : memref<1x2x128xf32, #tpu.memory_space<vmem>>, vector<1x1x128xf32>,
    return
  }
  func.func @transform_0(%arg0: i32, %arg1: i32) -> (i32, i32) {
    %c1_i32 = arith.constant 1 : i32
    %0 = arith.muli %arg0, %c1_i32 : i32
    %1 = arith.addi %0, %arg1 : i32
    %c0_i32 = arith.constant 0 : i32
    %c0_i32_0 = arith.constant 0 : i32
    return %1, %c0_i32 : i32, i32
  }
  func.func @transform_1(%arg0: i32, %arg1: i32) -> (i32, i32, i32) {
    %c0_i32 = arith.constant 0 : i32
    %c0_i32_0 = arith.constant 0 : i32
    %c0_i32_1 = arith.constant 0 : i32
    %c0_i32_2 = arith.constant 0 : i32
    return %c0_i32, %c0_i32_0, %c0_i32_1 : i32, i32, i32
  }
  func.func @transform_2(%arg0: i32, %arg1: i32) -> (i32, i32) {
    %c0_i32 = arith.constant 0 : i32
    %c0_i32_0 = arith.constant 0 : i32
    %c0_i32_1 = arith.constant 0 : i32
    return %c0_i32, %c0_i32_0 : i32, i32
  }
  func.func @transform_3(%arg0: i32, %arg1: i32) -> (i32, i32) {
    %c0_i32 = arith.constant 0 : i32
    %c0_i32_0 = arith.constant 0 : i32
    %c0_i32_1 = arith.constant 0 : i32
    return %c0_i32, %c0_i32_0 : i32, i32
  }
  func.func @transform_4(%arg0: i32, %arg1: i32) -> (i32, i32) {
    %c0_i32 = arith.constant 0 : i32
    %c0_i32_0 = arith.constant 0 : i32
    %c0_i32_1 = arith.constant 0 : i32
    return %c0_i32, %c0_i32_0 : i32, i32
  }
  func.func @transform_5(%arg0: i32, %arg1: i32) -> (i32, i32) {
    %c1_i32 = arith.constant 1 : i32
    %0 = arith.muli %arg0, %c1_i32 : i32
    %1 = arith.addi %0, %arg1 : i32
    %c0_i32 = arith.constant 0 : i32
    %c0_i32_0 = arith.constant 0 : i32
    return %1, %c0_i32 : i32, i32
  }
  func.func @transform_6(%arg0: i32, %arg1: i32) -> (i32, i32, i32) {
    %c0_i32 = arith.constant 0 : i32
    %c0_i32_0 = arith.constant 0 : i32
    %c0_i32_1 = arith.constant 0 : i32
    return %arg0, %c0_i32, %c0_i32_0 : i32, i32, i32
  }
}

</mosaic_0001>

<llo_original>
// kernel: resnext_bottleneck.4
$region0: #{resnext_bottleneck.4}
  #allocation0 [shape = 'u32[]', space=smem, size = 0x4, offset = 0x4, fixed_abs, tag = 'smem constant byte address 0x4 - core index']
  #allocation1 [shape = 'u32[144,128]{1,0:T(1,128)}', space=vmem, size = 0x12000, scoped, tag = 'internal scratch']
  %s0 = inlined_call_operand.vmem [shape: bf16[512,128], index: 0, kind: input, shape index: {}]
  %s1 = inlined_call_operand.vmem [shape: bf16[128,128], index: 1, kind: input, shape index: {}]
  %s2 = inlined_call_operand.vmem [shape: bf16[512,128], index: 2, kind: output, shape index: {0}]
  %s3 = inlined_call_operand.vmem [shape: f32[1,2,128], index: 3, kind: output, shape index: {1}]
  %4 = xla_tuple %s2, %s3
  %s5 = sld [smem:[#allocation0]]
  $region30: #{resnext_bottleneck.4} parent=0
    _
  %s7 = ssub.s32 1, %s5
  %s8 = scalar_select 0, %s7, %s5
  // Predicated region
  $region2: #{resnext_bottleneck.4} parent=0 // pred_check
    _
  $region3: #{resnext_bottleneck.4} parent=0 // pred_check_branch
    %10 = sbr.rel (0) target = $region5
  $region4: #{resnext_bottleneck.4} parent=0 // pred_region
    %s11 = sadd.s32 0, 0
    %s12 = smul.u32 64, %s11
    %p13 = scmp.lt.s32.totalorder %s12, 63
    %s14 = scalar_select %p13, %s12, 63
    %s15 = smul.addr %s14, 4
    %s16 = scalar_lea.vmem %s0, %s15
    %s17 = sadd.s32 0, 0
    %s18 = smul.u32 64, %s17
  $region5: #{resnext_bottleneck.4} parent=0 // pred_fallthru
    _
  // Predicated region
  $region6: #{resnext_bottleneck.4} parent=0 // pred_check
    _
  $region7: #{resnext_bottleneck.4} parent=0 // pred_check_branch
    %20 = sbr.rel (0) target = $region9
  $region8: #{resnext_bottleneck.4} parent=0 // pred_region
    _
  $region9: #{resnext_bottleneck.4} parent=0 // pred_fallthru
    _
  %s21 = sadd.s32 0, 0
  %s22 = smul.u32 64, %s21
  %p23 = scmp.lt.s32.totalorder %s22, 63
  %s24 = scalar_select %p23, %s22, 63
  %s25 = smul.addr %s24, 4
  %s26 = scalar_lea.vmem %s0, %s25
  %s27 = sadd.s32 0, 0
  %s28 = smul.u32 64, %s27
  %p29 = scmp.lt.s32.totalorder %s28, 63
  %s30 = scalar_select %p29, %s28, 63
  %s31 = smul.addr %s30, 4
  %s32 = scalar_lea.vmem %s2, %s31
  %s33 = sadd.s32 0, 0
  %s34 = smul.u32 64, %s33
  %p35 = scmp.lt.s32.totalorder %s34, 63
  %s36 = scalar_select %p35, %s34, 63
  %s37 = smul.addr %s36, 4
  %s38 = scalar_lea.vmem %s0, %s37
  %s39 = sadd.s32 0, 0
  %s40 = smul.u32 64, %s39
  %s41 = sadd.s32 0, 0
  %s42 = smul.u32 64, %s41
  %p43 = scmp.lt.s32.totalorder %s42, 63
  %s44 = scalar_select %p43, %s42, 63
  %s45 = smul.addr %s44, 4
  %s46 = scalar_lea.vmem %s2, %s45
  %s47 = sadd.s32 0, 0
  %s48 = smul.u32 64, %s47
  %p50 = scmp.eq.s32.totalorder 0, 0
  // Predicated region
  $region10: #{resnext_bottleneck.4} parent=0 // pred_check
    %p51 = pneg %p50
  $region11: #{resnext_bottleneck.4} parent=0 // pred_check_branch
    %53 = sbr.rel (%p51) target = $region13
  $region12: #{resnext_bottleneck.4} parent=0 // pred_region
    %54 = vst [vmem:[%s3] sm:$0x3] 0.0
  $region13: #{resnext_bottleneck.4} parent=0 // pred_fallthru
    _
  %v55 = vld [vmem:[%s38] sm:$0xf]
  %v56 = vld [vmem:[%s38 + $0x4] sm:$0xf]
  %v57 = vld [vmem:[%s38 + $0x8] sm:$0xf]
  %v58 = vld [vmem:[%s38 + $0xc] sm:$0xf]
  %v59 = vld [vmem:[%s38 + $0x10] sm:$0xf]
  %v60 = vld [vmem:[%s38 + $0x14] sm:$0xf]
  %v61 = vld [vmem:[%s38 + $0x18] sm:$0xf]
  %v62 = vld [vmem:[%s38 + $0x1c] sm:$0xf]
  %v63 = vld [vmem:[%s38 + $0x20] sm:$0xf]
  %v64 = vld [vmem:[%s38 + $0x24] sm:$0xf]
  %v65 = vld [vmem:[%s38 + $0x28] sm:$0xf]
  %v66 = vld [vmem:[%s38 + $0x2c] sm:$0xf]
  %v67 = vld [vmem:[%s38 + $0x30] sm:$0xf]
  %v68 = vld [vmem:[%s38 + $0x34] sm:$0xf]
  %v69 = vld [vmem:[%s38 + $0x38] sm:$0xf]
  %v70 = vld [vmem:[%s38 + $0x3c] sm:$0xf]
  %v71 = vld [vmem:[%s38 + $0x40] sm:$0xf]
  %v72 = vld [vmem:[%s38 + $0x44] sm:$0xf]
  %v73 = vld [vmem:[%s38 + $0x48] sm:$0xf]
  %v74 = vld [vmem:[%s38 + $0x4c] sm:$0xf]
  %v75 = vld [vmem:[%s38 + $0x50] sm:$0xf]
  %v76 = vld [vmem:[%s38 + $0x54] sm:$0xf]
  %v77 = vld [vmem:[%s38 + $0x58] sm:$0xf]
  %v78 = vld [vmem:[%s38 + $0x5c] sm:$0xf]
  %v79 = vld [vmem:[%s38 + $0x60] sm:$0xf]
  %v80 = vld [vmem:[%s38 + $0x64] sm:$0xf]
  %v81 = vld [vmem:[%s38 + $0x68] sm:$0xf]
  %v82 = vld [vmem:[%s38 + $0x6c] sm:$0xf]
  %v83 = vld [vmem:[%s38 + $0x70] sm:$0xf]
  %v84 = vld [vmem:[%s38 + $0x74] sm:$0xf]
  %v85 = vld [vmem:[%s38 + $0x78] sm:$0xf]
  %v86 = vld [vmem:[%s38 + $0x7c] sm:$0xf]
  %v87 = vld [vmem:[%s38 + $0x80] sm:$0xf]
  %v88 = vld [vmem:[%s38 + $0x84] sm:$0xf]
  %v89 = vld [vmem:[%s38 + $0x88] sm:$0xf]
  %v90 = vld [vmem:[%s38 + $0x8c] sm:$0xf]
  %v91 = vld [vmem:[%s38 + $0x90] sm:$0xf]
  %v92 = vld [vmem:[%s38 + $0x94] sm:$0xf]
  %v93 = vld [vmem:[%s38 + $0x98] sm:$0xf]
  %v94 = vld [vmem:[%s38 + $0x9c] sm:$0xf]
  %v95 = vld [vmem:[%s38 + $0xa0] sm:$0xf]
  %v96 = vld [vmem:[%s38 + $0xa4] sm:$0xf]
  %v97 = vld [vmem:[%s38 + $0xa8] sm:$0xf]
  %v98 = vld [vmem:[%s38 + $0xac] sm:$0xf]
  %v99 = vld [vmem:[%s38 + $0xb0] sm:$0xf]
  %v100 = vld [vmem:[%s38 + $0xb4] sm:$0xf]
  %v101 = vld [vmem:[%s38 + $0xb8] sm:$0xf]
  %v102 = vld [vmem:[%s38 + $0xbc] sm:$0xf]
  %v103 = vld [vmem:[%s38 + $0xc0] sm:$0xf]
  %v104 = vld [vmem:[%s38 + $0xc4] sm:$0xf]
  %v105 = vld [vmem:[%s38 + $0xc8] sm:$0xf]
  %v106 = vld [vmem:[%s38 + $0xcc] sm:$0xf]
  %v107 = vld [vmem:[%s38 + $0xd0] sm:$0xf]
  %v108 = vld [vmem:[%s38 + $0xd4] sm:$0xf]
  %v109 = vld [vmem:[%s38 + $0xd8] sm:$0xf]
  %v110 = vld [vmem:[%s38 + $0xdc] sm:$0xf]
  %v111 = vld [vmem:[%s38 + $0xe0] sm:$0xf]
  %v112 = vld [vmem:[%s38 + $0xe4] sm:$0xf]
  %v113 = vld [vmem:[%s38 + $0xe8] sm:$0xf]
  %v114 = vld [vmem:[%s38 + $0xec] sm:$0xf]
  %v115 = vld [vmem:[%s38 + $0xf0] sm:$0xf]
  %v116 = vld [vmem:[%s38 + $0xf4] sm:$0xf]
  %v117 = vld [vmem:[%s38 + $0xf8] sm:$0xf]
  %v118 = vld [vmem:[%s38 + $0xfc] sm:$0xf]
  %v119 = vld [vmem:[%s1] sm:$0xf]
  %v120 = vld [vmem:[%s1 + $0x4] sm:$0xf]
  %v121 = vld [vmem:[%s1 + $0x8] sm:$0xf]
  %v122 = vld [vmem:[%s1 + $0xc] sm:$0xf]
  %v123 = vld [vmem:[%s1 + $0x10] sm:$0xf]
  %v124 = vld [vmem:[%s1 + $0x14] sm:$0xf]
  %v125 = vld [vmem:[%s1 + $0x18] sm:$0xf]
  %v126 = vld [vmem:[%s1 + $0x1c] sm:$0xf]
  %v127 = vld [vmem:[%s1 + $0x20] sm:$0xf]
  %v128 = vld [vmem:[%s1 + $0x24] sm:$0xf]
  %v129 = vld [vmem:[%s1 + $0x28] sm:$0xf]
  %v130 = vld [vmem:[%s1 + $0x2c] sm:$0xf]
  %v131 = vld [vmem:[%s1 + $0x30] sm:$0xf]
  %v132 = vld [vmem:[%s1 + $0x34] sm:$0xf]
  %v133 = vld [vmem:[%s1 + $0x38] sm:$0xf]
  %v134 = vld [vmem:[%s1 + $0x3c] sm:$0xf]
  %v199 = vunpack.c.l.b16 %v55
  %v200 = vunpack.c.l.b16 %v56
  %v201 = vunpack.c.l.b16 %v57
  %v202 = vunpack.c.l.b16 %v58
  %v203 = vunpack.c.l.b16 %v59
  %v204 = vunpack.c.l.b16 %v60
  %v205 = vunpack.c.l.b16 %v61
  %v206 = vunpack.c.l.b16 %v62
  %v207 = vunpack.c.l.b16 %v63
  %v208 = vunpack.c.l.b16 %v64
  %v209 = vunpack.c.l.b16 %v65
  %v210 = vunpack.c.l.b16 %v66
  %v211 = vunpack.c.l.b16 %v67
  %v212 = vunpack.c.l.b16 %v68
  %v213 = vunpack.c.l.b16 %v69
  %v214 = vunpack.c.l.b16 %v70
  %v215 = vunpack.c.l.b16 %v71
  %v216 = vunpack.c.l.b16 %v72
  %v217 = vunpack.c.l.b16 %v73
  %v218 = vunpack.c.l.b16 %v74
  %v219 = vunpack.c.l.b16 %v75
  %v220 = vunpack.c.l.b16 %v76
  %v221 = vunpack.c.l.b16 %v77
  %v222 = vunpack.c.l.b16 %v78
  %v223 = vunpack.c.l.b16 %v79
  %v224 = vunpack.c.l.b16 %v80
  %v225 = vunpack.c.l.b16 %v81
  %v226 = vunpack.c.l.b16 %v82
  %v227 = vunpack.c.l.b16 %v83
  %v228 = vunpack.c.l.b16 %v84
  %v229 = vunpack.c.l.b16 %v85
  %v230 = vunpack.c.l.b16 %v86
  %v231 = vunpack.c.l.b16 %v87
  %v232 = vunpack.c.l.b16 %v88
  %v233 = vunpack.c.l.b16 %v89
  %v234 = vunpack.c.l.b16 %v90
  %v235 = vunpack.c.l.b16 %v91
  %v236 = vunpack.c.l.b16 %v92
  %v237 = vunpack.c.l.b16 %v93
  %v238 = vunpack.c.l.b16 %v94
  %v239 = vunpack.c.l.b16 %v95
  %v240 = vunpack.c.l.b16 %v96
  %v241 = vunpack.c.l.b16 %v97
  %v242 = vunpack.c.l.b16 %v98
  %v243 = vunpack.c.l.b16 %v99
  %v244 = vunpack.c.l.b16 %v100
  %v245 = vunpack.c.l.b16 %v101
  %v246 = vunpack.c.l.b16 %v102
  %v247 = vunpack.c.l.b16 %v103
  %v248 = vunpack.c.l.b16 %v104
  %v249 = vunpack.c.l.b16 %v105
  %v250 = vunpack.c.l.b16 %v106
  %v251 = vunpack.c.l.b16 %v107
  %v252 = vunpack.c.l.b16 %v108
  %v253 = vunpack.c.l.b16 %v109
  %v254 = vunpack.c.l.b16 %v110
  %v255 = vunpack.c.l.b16 %v111
  %v256 = vunpack.c.l.b16 %v112
  %v257 = vunpack.c.l.b16 %v113
  %v258 = vunpack.c.l.b16 %v114
  %v259 = vunpack.c.l.b16 %v115
  %v260 = vunpack.c.l.b16 %v116
  %v261 = vunpack.c.l.b16 %v117
  %v262 = vunpack.c.l.b16 %v118
  %v263 = vpack.c.b16 %v200, %v199
  %v264 = vpack.c.b16 %v202, %v201
  %v265 = vpack.c.b16 %v204, %v203
  %v266 = vpack.c.b16 %v206, %v205
  %v267 = vpack.c.b16 %v208, %v207
  %v268 = vpack.c.b16 %v210, %v209
  %v269 = vpack.c.b16 %v212, %v211
  %v270 = vpack.c.b16 %v214, %v213
  %v271 = vpack.c.b16 %v216, %v215
  %v272 = vpack.c.b16 %v218, %v217
  %v273 = vpack.c.b16 %v220, %v219
  %v274 = vpack.c.b16 %v222, %v221
  %v275 = vpack.c.b16 %v224, %v223
  %v276 = vpack.c.b16 %v226, %v225
  %v277 = vpack.c.b16 %v228, %v227
  %v278 = vpack.c.b16 %v230, %v229
  %v279 = vpack.c.b16 %v232, %v231
  %v280 = vpack.c.b16 %v234, %v233
  %v281 = vpack.c.b16 %v236, %v235
  %v282 = vpack.c.b16 %v238, %v237
  %v283 = vpack.c.b16 %v240, %v239
  %v284 = vpack.c.b16 %v242, %v241
  %v285 = vpack.c.b16 %v244, %v243
  %v286 = vpack.c.b16 %v246, %v245
  %v287 = vpack.c.b16 %v248, %v247
  %v288 = vpack.c.b16 %v250, %v249
  %v289 = vpack.c.b16 %v252, %v251
  %v290 = vpack.c.b16 %v254, %v253
  %v291 = vpack.c.b16 %v256, %v255
  %v292 = vpack.c.b16 %v258, %v257
  %v293 = vpack.c.b16 %v260, %v259
  %v294 = vpack.c.b16 %v262, %v261
  %v343 = vunpack.c.l.b16 %v119
  %v344 = vunpack.c.l.b16 %v120
  %v345 = vunpack.c.l.b16 %v121
  %v346 = vunpack.c.l.b16 %v122
  %v347 = vunpack.c.l.b16 %v123
  %v348 = vunpack.c.l.b16 %v124
  %v349 = vunpack.c.l.b16 %v125
  %v350 = vunpack.c.l.b16 %v126
  %v351 = vunpack.c.l.b16 %v127
  %v352 = vunpack.c.l.b16 %v128
  %v353 = vunpack.c.l.b16 %v129
  %v354 = vunpack.c.l.b16 %v130
  %v355 = vunpack.c.l.b16 %v131
  %v356 = vunpack.c.l.b16 %v132
  %v357 = vunpack.c.l.b16 %v133
  %v358 = vunpack.c.l.b16 %v134
  %v359 = vpack.c.b16 %v344, %v343
  %v360 = vpack.c.b16 %v346, %v345
  %v361 = vpack.c.b16 %v348, %v347
  %v362 = vpack.c.b16 %v350, %v349
  %v363 = vpack.c.b16 %v352, %v351
  %v364 = vpack.c.b16 %v354, %v353
  %v365 = vpack.c.b16 %v356, %v355
  %v366 = vpack.c.b16 %v358, %v357
  %375 = vmatprep.subr.bf16.mxu0 0
  %376 = vmatpush1.bf16.msra.mxu0 %v366
  %377 = vmatprep.subr.bf16.mxu0 0
  %378 = vmatpush1.bf16.msra.mxu0 %v365
  %379 = vmatprep.subr.bf16.mxu0 0
  %380 = vmatpush1.bf16.msra.mxu0 %v364
  %381 = vmatprep.subr.bf16.mxu0 0
  %382 = vmatpush1.bf16.msra.mxu0 %v363
  %383 = vmatprep.subr.bf16.mxu0 0
  %384 = vmatpush1.bf16.msra.mxu0 %v362
  %385 = vmatprep.subr.bf16.mxu0 0
  %386 = vmatpush1.bf16.msra.mxu0 %v361
  %387 = vmatprep.subr.bf16.mxu0 0
  %388 = vmatpush1.bf16.msra.mxu0 %v360
  %389 = vmatprep.subr.bf16.mxu0 0
  %390 = vmatpush1.bf16.msra.mxu0 %v359
  %391 = vmatprep.subr.bf16.mxu0 0
  %392 = vmatpush2.bf16.msra.mxu0 0
  %393 = vmatprep.subr.bf16.mxu0 0
  %394 = vmatpush2.bf16.msra.mxu0 0
  %395 = vmatprep.subr.bf16.mxu0 0
  %396 = vmatpush2.bf16.msra.mxu0 0
  %397 = vmatprep.subr.bf16.mxu0 0
  %398 = vmatpush2.bf16.msra.mxu0 0
  %399 = vmatprep.subr.bf16.mxu0 0
  %400 = vmatpush2.bf16.msra.mxu0 0
  %401 = vmatprep.subr.bf16.mxu0 0
  %402 = vmatpush2.bf16.msra.mxu0 0
  %403 = vmatprep.subr.bf16.mxu0 0
  %404 = vmatpush2.bf16.msra.mxu0 0
  %405 = vmatprep.subr.bf16.mxu0 0
  %406 = vmatpush2.bf16.msra.mxu0 0
  %407 = vmatprep.mubr.bf16.mxu0 0
  %408 = vmatmul.mubr.bf16.gmra.mxu0 %v263
  %v409 = vpop.f32.mrf.mxu0
  %v410 = vadd.f32 0.0, %v409
  %v411 = vpop.f32.mrf.mxu0
  %v412 = vpop.f32.mrf.mxu0
  %v413 = vadd.f32 0.0, %v412
  %v414 = vpop.f32.mrf.mxu0
  %415 = vmatprep.mubr.bf16.mxu0 0
  %416 = vmatmul.mubr.bf16.gmra.mxu0 %v264
  %v417 = vpop.f32.mrf.mxu0
  %v418 = vadd.f32 0.0, %v417
  %v419 = vpop.f32.mrf.mxu0
  %v420 = vpop.f32.mrf.mxu0
  %v421 = vadd.f32 0.0, %v420
  %v422 = vpop.f32.mrf.mxu0
  %423 = vmatprep.mubr.bf16.mxu0 0
  %424 = vmatmul.mubr.bf16.gmra.mxu0 %v265
  %v425 = vpop.f32.mrf.mxu0
  %v426 = vadd.f32 0.0, %v425
  %v427 = vpop.f32.mrf.mxu0
  %v428 = vpop.f32.mrf.mxu0
  %v429 = vadd.f32 0.0, %v428
  %v430 = vpop.f32.mrf.mxu0
  %431 = vmatprep.mubr.bf16.mxu0 0
  %432 = vmatmul.mubr.bf16.gmra.mxu0 %v266
  %v433 = vpop.f32.mrf.mxu0
  %v434 = vadd.f32 0.0, %v433
  %v435 = vpop.f32.mrf.mxu0
  %v436 = vpop.f32.mrf.mxu0
  %v437 = vadd.f32 0.0, %v436
  %v438 = vpop.f32.mrf.mxu0
  %439 = vmatprep.mubr.bf16.mxu0 0
  %440 = vmatmul.mubr.bf16.gmra.mxu0 %v267
  %v441 = vpop.f32.mrf.mxu0
  %v442 = vadd.f32 0.0, %v441
  %v443 = vpop.f32.mrf.mxu0
  %v444 = vpop.f32.mrf.mxu0
  %v445 = vadd.f32 0.0, %v444
  %v446 = vpop.f32.mrf.mxu0
  %447 = vmatprep.mubr.bf16.mxu0 0
  %448 = vmatmul.mubr.bf16.gmra.mxu0 %v268
  %v449 = vpop.f32.mrf.mxu0
  %v450 = vadd.f32 0.0, %v449
  %v451 = vpop.f32.mrf.mxu0
  %v452 = vpop.f32.mrf.mxu0
  %v453 = vadd.f32 0.0, %v452
  %v454 = vpop.f32.mrf.mxu0
  %455 = vmatprep.mubr.bf16.mxu0 0
  %456 = vmatmul.mubr.bf16.gmra.mxu0 %v269
  %v457 = vpop.f32.mrf.mxu0
  %v458 = vadd.f32 0.0, %v457
  %v459 = vpop.f32.mrf.mxu0
  %v460 = vpop.f32.mrf.mxu0
  %v461 = vadd.f32 0.0, %v460
  %v462 = vpop.f32.mrf.mxu0
  %463 = vmatprep.mubr.bf16.mxu0 0
  %464 = vmatmul.mubr.bf16.gmra.mxu0 %v270
  %v465 = vpop.f32.mrf.mxu0
  %v466 = vadd.f32 0.0, %v465
  %v467 = vpop.f32.mrf.mxu0
  %v468 = vpop.f32.mrf.mxu0
  %v469 = vadd.f32 0.0, %v468
  %v470 = vpop.f32.mrf.mxu0
  %471 = vmatprep.mubr.bf16.mxu0 0
  %472 = vmatmul.mubr.bf16.gmra.mxu0 %v271
  %v473 = vpop.f32.mrf.mxu0
  %v474 = vadd.f32 0.0, %v473
  %v475 = vpop.f32.mrf.mxu0
  %v476 = vpop.f32.mrf.mxu0
  %v477 = vadd.f32 0.0, %v476
  %v478 = vpop.f32.mrf.mxu0
  %479 = vmatprep.mubr.bf16.mxu0 0
  %480 = vmatmul.mubr.bf16.gmra.mxu0 %v272
  %v481 = vpop.f32.mrf.mxu0
  %v482 = vadd.f32 0.0, %v481
  %v483 = vpop.f32.mrf.mxu0
  %v484 = vpop.f32.mrf.mxu0
  %v485 = vadd.f32 0.0, %v484
  %v486 = vpop.f32.mrf.mxu0
  %487 = vmatprep.mubr.bf16.mxu0 0
  %488 = vmatmul.mubr.bf16.gmra.mxu0 %v273
  %v489 = vpop.f32.mrf.mxu0
  %v490 = vadd.f32 0.0, %v489
  %v491 = vpop.f32.mrf.mxu0
  %v492 = vpop.f32.mrf.mxu0
  %v493 = vadd.f32 0.0, %v492
  %v494 = vpop.f32.mrf.mxu0
  %495 = vmatprep.mubr.bf16.mxu0 0
  %496 = vmatmul.mubr.bf16.gmra.mxu0 %v274
  %v497 = vpop.f32.mrf.mxu0
  %v498 = vadd.f32 0.0, %v497
  %v499 = vpop.f32.mrf.mxu0
  %v500 = vpop.f32.mrf.mxu0
  %v501 = vadd.f32 0.0, %v500
  %v502 = vpop.f32.mrf.mxu0
  %503 = vmatprep.mubr.bf16.mxu0 0
  %504 = vmatmul.mubr.bf16.gmra.mxu0 %v275
  %v505 = vpop.f32.mrf.mxu0
  %v506 = vadd.f32 0.0, %v505
  %v507 = vpop.f32.mrf.mxu0
  %v508 = vpop.f32.mrf.mxu0
  %v509 = vadd.f32 0.0, %v508
  %v510 = vpop.f32.mrf.mxu0
  %511 = vmatprep.mubr.bf16.mxu0 0
  %512 = vmatmul.mubr.bf16.gmra.mxu0 %v276
  %v513 = vpop.f32.mrf.mxu0
  %v514 = vadd.f32 0.0, %v513
  %v515 = vpop.f32.mrf.mxu0
  %v516 = vpop.f32.mrf.mxu0
  %v517 = vadd.f32 0.0, %v516
  %v518 = vpop.f32.mrf.mxu0
  %519 = vmatprep.mubr.bf16.mxu0 0
  %520 = vmatmul.mubr.bf16.gmra.mxu0 %v277
  %v521 = vpop.f32.mrf.mxu0
  %v522 = vadd.f32 0.0, %v521
  %v523 = vpop.f32.mrf.mxu0
  %v524 = vpop.f32.mrf.mxu0
  %v525 = vadd.f32 0.0, %v524
  %v526 = vpop.f32.mrf.mxu0
  %527 = vmatprep.mubr.bf16.mxu0 0
  %528 = vmatmul.mubr.bf16.gmra.mxu0 %v278
  %v529 = vpop.f32.mrf.mxu0
  %v530 = vadd.f32 0.0, %v529
  %v531 = vpop.f32.mrf.mxu0
  %v532 = vpop.f32.mrf.mxu0
  %v533 = vadd.f32 0.0, %v532
  %v534 = vpop.f32.mrf.mxu0
  %535 = vmatprep.mubr.bf16.mxu0 0
  %536 = vmatmul.mubr.bf16.gmra.mxu0 %v279
  %v537 = vpop.f32.mrf.mxu0
  %v538 = vadd.f32 0.0, %v537
  %v539 = vpop.f32.mrf.mxu0
  %v540 = vpop.f32.mrf.mxu0
  %v541 = vadd.f32 0.0, %v540
  %v542 = vpop.f32.mrf.mxu0
  %543 = vmatprep.mubr.bf16.mxu0 0
  %544 = vmatmul.mubr.bf16.gmra.mxu0 %v280
  %v545 = vpop.f32.mrf.mxu0
  %v546 = vadd.f32 0.0, %v545
  %v547 = vpop.f32.mrf.mxu0
  %v548 = vpop.f32.mrf.mxu0
  %v549 = vadd.f32 0.0, %v548
  %v550 = vpop.f32.mrf.mxu0
  %551 = vmatprep.mubr.bf16.mxu0 0
  %552 = vmatmul.mubr.bf16.gmra.mxu0 %v281
  %v553 = vpop.f32.mrf.mxu0
  %v554 = vadd.f32 0.0, %v553
  %v555 = vpop.f32.mrf.mxu0
  %v556 = vpop.f32.mrf.mxu0
  %v557 = vadd.f32 0.0, %v556
  %v558 = vpop.f32.mrf.mxu0
  %559 = vmatprep.mubr.bf16.mxu0 0
  %560 = vmatmul.mubr.bf16.gmra.mxu0 %v282
  %v561 = vpop.f32.mrf.mxu0
  %v562 = vadd.f32 0.0, %v561
  %v563 = vpop.f32.mrf.mxu0
  %v564 = vpop.f32.mrf.mxu0
  %v565 = vadd.f32 0.0, %v564
  %v566 = vpop.f32.mrf.mxu0
  %567 = vmatprep.mubr.bf16.mxu0 0
  %568 = vmatmul.mubr.bf16.gmra.mxu0 %v283
  %v569 = vpop.f32.mrf.mxu0
  %v570 = vadd.f32 0.0, %v569
  %v571 = vpop.f32.mrf.mxu0
  %v572 = vpop.f32.mrf.mxu0
  %v573 = vadd.f32 0.0, %v572
  %v574 = vpop.f32.mrf.mxu0
  %575 = vmatprep.mubr.bf16.mxu0 0
  %576 = vmatmul.mubr.bf16.gmra.mxu0 %v284
  %v577 = vpop.f32.mrf.mxu0
  %v578 = vadd.f32 0.0, %v577
  %v579 = vpop.f32.mrf.mxu0
  %v580 = vpop.f32.mrf.mxu0
  %v581 = vadd.f32 0.0, %v580
  %v582 = vpop.f32.mrf.mxu0
  %583 = vmatprep.mubr.bf16.mxu0 0
  %584 = vmatmul.mubr.bf16.gmra.mxu0 %v285
  %v585 = vpop.f32.mrf.mxu0
  %v586 = vadd.f32 0.0, %v585
  %v587 = vpop.f32.mrf.mxu0
  %v588 = vpop.f32.mrf.mxu0
  %v589 = vadd.f32 0.0, %v588
  %v590 = vpop.f32.mrf.mxu0
  %591 = vmatprep.mubr.bf16.mxu0 0
  %592 = vmatmul.mubr.bf16.gmra.mxu0 %v286
  %v593 = vpop.f32.mrf.mxu0
  %v594 = vadd.f32 0.0, %v593
  %v595 = vpop.f32.mrf.mxu0
  %v596 = vpop.f32.mrf.mxu0
  %v597 = vadd.f32 0.0, %v596
  %v598 = vpop.f32.mrf.mxu0
  %599 = vmatprep.mubr.bf16.mxu0 0
  %600 = vmatmul.mubr.bf16.gmra.mxu0 %v287
  %v601 = vpop.f32.mrf.mxu0
  %v602 = vadd.f32 0.0, %v601
  %v603 = vpop.f32.mrf.mxu0
  %v604 = vpop.f32.mrf.mxu0
  %v605 = vadd.f32 0.0, %v604
  %v606 = vpop.f32.mrf.mxu0
  %607 = vmatprep.mubr.bf16.mxu0 0
  %608 = vmatmul.mubr.bf16.gmra.mxu0 %v288
  %v609 = vpop.f32.mrf.mxu0
  %v610 = vadd.f32 0.0, %v609
  %v611 = vpop.f32.mrf.mxu0
  %v612 = vpop.f32.mrf.mxu0
  %v613 = vadd.f32 0.0, %v612
  %v614 = vpop.f32.mrf.mxu0
  %615 = vmatprep.mubr.bf16.mxu0 0
  %616 = vmatmul.mubr.bf16.gmra.mxu0 %v289
  %v617 = vpop.f32.mrf.mxu0
  %v618 = vadd.f32 0.0, %v617
  %v619 = vpop.f32.mrf.mxu0
  %v620 = vpop.f32.mrf.mxu0
  %v621 = vadd.f32 0.0, %v620
  %v622 = vpop.f32.mrf.mxu0
  %623 = vmatprep.mubr.bf16.mxu0 0
  %624 = vmatmul.mubr.bf16.gmra.mxu0 %v290
  %v625 = vpop.f32.mrf.mxu0
  %v626 = vadd.f32 0.0, %v625
  %v627 = vpop.f32.mrf.mxu0
  %v628 = vpop.f32.mrf.mxu0
  %v629 = vadd.f32 0.0, %v628
  %v630 = vpop.f32.mrf.mxu0
  %631 = vmatprep.mubr.bf16.mxu0 0
  %632 = vmatmul.mubr.bf16.gmra.mxu0 %v291
  %v633 = vpop.f32.mrf.mxu0
  %v634 = vadd.f32 0.0, %v633
  %v635 = vpop.f32.mrf.mxu0
  %v636 = vpop.f32.mrf.mxu0
  %v637 = vadd.f32 0.0, %v636
  %v638 = vpop.f32.mrf.mxu0
  %639 = vmatprep.mubr.bf16.mxu0 0
  %640 = vmatmul.mubr.bf16.gmra.mxu0 %v292
  %v641 = vpop.f32.mrf.mxu0
  %v642 = vadd.f32 0.0, %v641
  %v643 = vpop.f32.mrf.mxu0
  %v644 = vpop.f32.mrf.mxu0
  %v645 = vadd.f32 0.0, %v644
  %v646 = vpop.f32.mrf.mxu0
  %647 = vmatprep.mubr.bf16.mxu0 0
  %648 = vmatmul.mubr.bf16.gmra.mxu0 %v293
  %v649 = vpop.f32.mrf.mxu0
  %v650 = vadd.f32 0.0, %v649
  %v651 = vpop.f32.mrf.mxu0
  %v652 = vpop.f32.mrf.mxu0
  %v653 = vadd.f32 0.0, %v652
  %v654 = vpop.f32.mrf.mxu0
  %655 = vmatprep.mubr.bf16.mxu0 0
  %656 = vmatmul.mubr.bf16.gmra.mxu0 %v294
  %v657 = vpop.f32.mrf.mxu0
  %v658 = vadd.f32 0.0, %v657
  %v659 = vpop.f32.mrf.mxu0
  %v660 = vpop.f32.mrf.mxu0
  %v661 = vadd.f32 0.0, %v660
  %v662 = vpop.f32.mrf.mxu0
  %663 = vdwg.mxu0
  %v664 = vpack.c.bf16 %v413, %v410
  %v665 = vpack.c.bf16 %v421, %v418
  %v666 = vpack.c.bf16 %v429, %v426
  %v667 = vpack.c.bf16 %v437, %v434
  %v668 = vpack.c.bf16 %v445, %v442
  %v669 = vpack.c.bf16 %v453, %v450
  %v670 = vpack.c.bf16 %v461, %v458
  %v671 = vpack.c.bf16 %v469, %v466
  %v672 = vpack.c.bf16 %v477, %v474
  %v673 = vpack.c.bf16 %v485, %v482
  %v674 = vpack.c.bf16 %v493, %v490
  %v675 = vpack.c.bf16 %v501, %v498
  %v676 = vpack.c.bf16 %v509, %v506
  %v677 = vpack.c.bf16 %v517, %v514
  %v678 = vpack.c.bf16 %v525, %v522
  %v679 = vpack.c.bf16 %v533, %v530
  %v680 = vpack.c.bf16 %v541, %v538
  %v681 = vpack.c.bf16 %v549, %v546
  %v682 = vpack.c.bf16 %v557, %v554
  %v683 = vpack.c.bf16 %v565, %v562
  %v684 = vpack.c.bf16 %v573, %v570
  %v685 = vpack.c.bf16 %v581, %v578
  %v686 = vpack.c.bf16 %v589, %v586
  %v687 = vpack.c.bf16 %v597, %v594
  %v688 = vpack.c.bf16 %v605, %v602
  %v689 = vpack.c.bf16 %v613, %v610
  %v690 = vpack.c.bf16 %v621, %v618
  %v691 = vpack.c.bf16 %v629, %v626
  %v692 = vpack.c.bf16 %v637, %v634
  %v693 = vpack.c.bf16 %v645, %v642
  %v694 = vpack.c.bf16 %v653, %v650
  %v695 = vpack.c.bf16 %v661, %v658
  %v728 = vunpack.c.l.b16 %v664
  %v729 = vunpack.c.h.b16 %v664
  %v730 = vunpack.c.l.b16 %v665
  %v731 = vunpack.c.h.b16 %v665
  %v732 = vunpack.c.l.b16 %v666
  %v733 = vunpack.c.h.b16 %v666
  %v734 = vunpack.c.l.b16 %v667
  %v735 = vunpack.c.h.b16 %v667
  %v736 = vunpack.c.l.b16 %v668
  %v737 = vunpack.c.h.b16 %v668
  %v738 = vunpack.c.l.b16 %v669
  %v739 = vunpack.c.h.b16 %v669
  %v740 = vunpack.c.l.b16 %v670
  %v741 = vunpack.c.h.b16 %v670
  %v742 = vunpack.c.l.b16 %v671
  %v743 = vunpack.c.h.b16 %v671
  %v744 = vunpack.c.l.b16 %v672
  %v745 = vunpack.c.h.b16 %v672
  %v746 = vunpack.c.l.b16 %v673
  %v747 = vunpack.c.h.b16 %v673
  %v748 = vunpack.c.l.b16 %v674
  %v749 = vunpack.c.h.b16 %v674
  %v750 = vunpack.c.l.b16 %v675
  %v751 = vunpack.c.h.b16 %v675
  %v752 = vunpack.c.l.b16 %v676
  %v753 = vunpack.c.h.b16 %v676
  %v754 = vunpack.c.l.b16 %v677
  %v755 = vunpack.c.h.b16 %v677
  %v756 = vunpack.c.l.b16 %v678
  %v757 = vunpack.c.h.b16 %v678
  %v758 = vunpack.c.l.b16 %v679
  %v759 = vunpack.c.h.b16 %v679
  %v760 = vunpack.c.l.b16 %v680
  %v761 = vunpack.c.h.b16 %v680
  %v762 = vunpack.c.l.b16 %v681
  %v763 = vunpack.c.h.b16 %v681
  %v764 = vunpack.c.l.b16 %v682
  %v765 = vunpack.c.h.b16 %v682
  %v766 = vunpack.c.l.b16 %v683
  %v767 = vunpack.c.h.b16 %v683
  %v768 = vunpack.c.l.b16 %v684
  %v769 = vunpack.c.h.b16 %v684
  %v770 = vunpack.c.l.b16 %v685
  %v771 = vunpack.c.h.b16 %v685
  %v772 = vunpack.c.l.b16 %v686
  %v773 = vunpack.c.h.b16 %v686
  %v774 = vunpack.c.l.b16 %v687
  %v775 = vunpack.c.h.b16 %v687
  %v776 = vunpack.c.l.b16 %v688
  %v777 = vunpack.c.h.b16 %v688
  %v778 = vunpack.c.l.b16 %v689
  %v779 = vunpack.c.h.b16 %v689
  %v780 = vunpack.c.l.b16 %v690
  %v781 = vunpack.c.h.b16 %v690
  %v782 = vunpack.c.l.b16 %v691
  %v783 = vunpack.c.h.b16 %v691
  %v784 = vunpack.c.l.b16 %v692
  %v785 = vunpack.c.h.b16 %v692
  %v786 = vunpack.c.l.b16 %v693
  %v787 = vunpack.c.h.b16 %v693
  %v788 = vunpack.c.l.b16 %v694
  %v789 = vunpack.c.h.b16 %v694
  %v790 = vunpack.c.l.b16 %v695
  %v791 = vunpack.c.h.b16 %v695
  %v792 = vpack.c.b16 %v728, %v728
  %v793 = vpack.c.b16 %v729, %v729
  %v794 = vpack.c.b16 %v730, %v730
  %v795 = vpack.c.b16 %v731, %v731
  %v796 = vpack.c.b16 %v732, %v732
  %v797 = vpack.c.b16 %v733, %v733
  %v798 = vpack.c.b16 %v734, %v734
  %v799 = vpack.c.b16 %v735, %v735
  %v800 = vpack.c.b16 %v736, %v736
  %v801 = vpack.c.b16 %v737, %v737
  %v802 = vpack.c.b16 %v738, %v738
  %v803 = vpack.c.b16 %v739, %v739
  %v804 = vpack.c.b16 %v740, %v740
  %v805 = vpack.c.b16 %v741, %v741
  %v806 = vpack.c.b16 %v742, %v742
  %v807 = vpack.c.b16 %v743, %v743
  %v808 = vpack.c.b16 %v744, %v744
  %v809 = vpack.c.b16 %v745, %v745
  %v810 = vpack.c.b16 %v746, %v746
  %v811 = vpack.c.b16 %v747, %v747
  %v812 = vpack.c.b16 %v748, %v748
  %v813 = vpack.c.b16 %v749, %v749
  %v814 = vpack.c.b16 %v750, %v750
  %v815 = vpack.c.b16 %v751, %v751
  %v816 = vpack.c.b16 %v752, %v752
  %v817 = vpack.c.b16 %v753, %v753
  %v818 = vpack.c.b16 %v754, %v754
  %v819 = vpack.c.b16 %v755, %v755
  %v820 = vpack.c.b16 %v756, %v756
  %v821 = vpack.c.b16 %v757, %v757
  %v822 = vpack.c.b16 %v758, %v758
  %v823 = vpack.c.b16 %v759, %v759
  %v824 = vpack.c.b16 %v760, %v760
  %v825 = vpack.c.b16 %v761, %v761
  %v826 = vpack.c.b16 %v762, %v762
  %v827 = vpack.c.b16 %v763, %v763
  %v828 = vpack.c.b16 %v764, %v764
  %v829 = vpack.c.b16 %v765, %v765
  %v830 = vpack.c.b16 %v766, %v766
  %v831 = vpack.c.b16 %v767, %v767
  %v832 = vpack.c.b16 %v768, %v768
  %v833 = vpack.c.b16 %v769, %v769
  %v834 = vpack.c.b16 %v770, %v770
  %v835 = vpack.c.b16 %v771, %v771
  %v836 = vpack.c.b16 %v772, %v772
  %v837 = vpack.c.b16 %v773, %v773
  %v838 = vpack.c.b16 %v774, %v774
  %v839 = vpack.c.b16 %v775, %v775
  %v840 = vpack.c.b16 %v776, %v776
  %v841 = vpack.c.b16 %v777, %v777
  %v842 = vpack.c.b16 %v778, %v778
  %v843 = vpack.c.b16 %v779, %v779
  %v844 = vpack.c.b16 %v780, %v780
  %v845 = vpack.c.b16 %v781, %v781
  %v846 = vpack.c.b16 %v782, %v782
  %v847 = vpack.c.b16 %v783, %v783
  %v848 = vpack.c.b16 %v784, %v784
  %v849 = vpack.c.b16 %v785, %v785
  %v850 = vpack.c.b16 %v786, %v786
  %v851 = vpack.c.b16 %v787, %v787
  %v852 = vpack.c.b16 %v788, %v788
  %v853 = vpack.c.b16 %v789, %v789
  %v854 = vpack.c.b16 %v790, %v790
  %v855 = vpack.c.b16 %v791, %v791
  %920 = vst [vmem:[%s46] sm:$0xf] %v792
  %921 = vst [vmem:[%s46 + $0x4] sm:$0xf] %v793
  %922 = vst [vmem:[%s46 + $0x8] sm:$0xf] %v794
  %923 = vst [vmem:[%s46 + $0xc] sm:$0xf] %v795
  %924 = vst [vmem:[%s46 + $0x10] sm:$0xf] %v796
  %925 = vst [vmem:[%s46 + $0x14] sm:$0xf] %v797
  %926 = vst [vmem:[%s46 + $0x18] sm:$0xf] %v798
  %927 = vst [vmem:[%s46 + $0x1c] sm:$0xf] %v799
  %928 = vst [vmem:[%s46 + $0x20] sm:$0xf] %v800
  %929 = vst [vmem:[%s46 + $0x24] sm:$0xf] %v801
  %930 = vst [vmem:[%s46 + $0x28] sm:$0xf] %v802
  %931 = vst [vmem:[%s46 + $0x2c] sm:$0xf] %v803
  %932 = vst [vmem:[%s46 + $0x30] sm:$0xf] %v804
  %933 = vst [vmem:[%s46 + $0x34] sm:$0xf] %v805
  %934 = vst [vmem:[%s46 + $0x38] sm:$0xf] %v806
  %935 = vst [vmem:[%s46 + $0x3c] sm:$0xf] %v807
  %936 = vst [vmem:[%s46 + $0x40] sm:$0xf] %v808
  %937 = vst [vmem:[%s46 + $0x44] sm:$0xf] %v809
  %938 = vst [vmem:[%s46 + $0x48] sm:$0xf] %v810
  %939 = vst [vmem:[%s46 + $0x4c] sm:$0xf] %v811
  %940 = vst [vmem:[%s46 + $0x50] sm:$0xf] %v812
  %941 = vst [vmem:[%s46 + $0x54] sm:$0xf] %v813
  %942 = vst [vmem:[%s46 + $0x58] sm:$0xf] %v814
  %943 = vst [vmem:[%s46 + $0x5c] sm:$0xf] %v815
  %944 = vst [vmem:[%s46 + $0x60] sm:$0xf] %v816
  %945 = vst [vmem:[%s46 + $0x64] sm:$0xf] %v817
  %946 = vst [vmem:[%s46 + $0x68] sm:$0xf] %v818
  %947 = vst [vmem:[%s46 + $0x6c] sm:$0xf] %v819
  %948 = vst [vmem:[%s46 + $0x70] sm:$0xf] %v820
  %949 = vst [vmem:[%s46 + $0x74] sm:$0xf] %v821
  %950 = vst [vmem:[%s46 + $0x78] sm:$0xf] %v822
  %951 = vst [vmem:[%s46 + $0x7c] sm:$0xf] %v823
  %952 = vst [vmem:[%s46 + $0x80] sm:$0xf] %v824
  %953 = vst [vmem:[%s46 + $0x84] sm:$0xf] %v825
  %954 = vst [vmem:[%s46 + $0x88] sm:$0xf] %v826
  %955 = vst [vmem:[%s46 + $0x8c] sm:$0xf] %v827
  %956 = vst [vmem:[%s46 + $0x90] sm:$0xf] %v828
  %957 = vst [vmem:[%s46 + $0x94] sm:$0xf] %v829
  %958 = vst [vmem:[%s46 + $0x98] sm:$0xf] %v830
  %959 = vst [vmem:[%s46 + $0x9c] sm:$0xf] %v831
  %960 = vst [vmem:[%s46 + $0xa0] sm:$0xf] %v832
  %961 = vst [vmem:[%s46 + $0xa4] sm:$0xf] %v833
  %962 = vst [vmem:[%s46 + $0xa8] sm:$0xf] %v834
  %963 = vst [vmem:[%s46 + $0xac] sm:$0xf] %v835
  %964 = vst [vmem:[%s46 + $0xb0] sm:$0xf] %v836
  %965 = vst [vmem:[%s46 + $0xb4] sm:$0xf] %v837
  %966 = vst [vmem:[%s46 + $0xb8] sm:$0xf] %v838
  %967 = vst [vmem:[%s46 + $0xbc] sm:$0xf] %v839
  %968 = vst [vmem:[%s46 + $0xc0] sm:$0xf] %v840
  %969 = vst [vmem:[%s46 + $0xc4] sm:$0xf] %v841
  %970 = vst [vmem:[%s46 + $0xc8] sm:$0xf] %v842
  %971 = vst [vmem:[%s46 + $0xcc] sm:$0xf] %v843
  %972 = vst [vmem:[%s46 + $0xd0] sm:$0xf] %v844
  %973 = vst [vmem:[%s46 + $0xd4] sm:$0xf] %v845
  %974 = vst [vmem:[%s46 + $0xd8] sm:$0xf] %v846
  %975 = vst [vmem:[%s46 + $0xdc] sm:$0xf] %v847
  %976 = vst [vmem:[%s46 + $0xe0] sm:$0xf] %v848
  %977 = vst [vmem:[%s46 + $0xe4] sm:$0xf] %v849
  %978 = vst [vmem:[%s46 + $0xe8] sm:$0xf] %v850
  %979 = vst [vmem:[%s46 + $0xec] sm:$0xf] %v851
  %980 = vst [vmem:[%s46 + $0xf0] sm:$0xf] %v852
  %981 = vst [vmem:[%s46 + $0xf4] sm:$0xf] %v853
  %982 = vst [vmem:[%s46 + $0xf8] sm:$0xf] %v854
  %983 = vst [vmem:[%s46 + $0xfc] sm:$0xf] %v855
  %v984 = vld [vmem:[%s3] sm:$0x1]
  %v985 = vadd.f32 %v410, %v413
  %v986 = vadd.f32 %v985, %v418
  %v987 = vadd.f32 %v986, %v421
  %v988 = vadd.f32 %v987, %v426
  %v989 = vadd.f32 %v988, %v429
  %v990 = vadd.f32 %v989, %v434
  %v991 = vadd.f32 %v990, %v437
  %v992 = vadd.f32 %v991, %v442
  %v993 = vadd.f32 %v992, %v445
  %v994 = vadd.f32 %v993, %v450
  %v995 = vadd.f32 %v994, %v453
  %v996 = vadd.f32 %v995, %v458
  %v997 = vadd.f32 %v996, %v461
  %v998 = vadd.f32 %v997, %v466
  %v999 = vadd.f32 %v998, %v469
  %v1000 = vadd.f32 %v999, %v474
  %v1001 = vadd.f32 %v1000, %v477
  %v1002 = vadd.f32 %v1001, %v482
  %v1003 = vadd.f32 %v1002, %v485
  %v1004 = vadd.f32 %v1003, %v490
  %v1005 = vadd.f32 %v1004, %v493
  %v1006 = vadd.f32 %v1005, %v498
  %v1007 = vadd.f32 %v1006, %v501
  %v1008 = vadd.f32 %v1007, %v506
  %v1009 = vadd.f32 %v1008, %v509
  %v1010 = vadd.f32 %v1009, %v514
  %v1011 = vadd.f32 %v1010, %v517
  %v1012 = vadd.f32 %v1011, %v522
  %v1013 = vadd.f32 %v1012, %v525
  %v1014 = vadd.f32 %v1013, %v530
  %v1015 = vadd.f32 %v1014, %v533
  %v1016 = vadd.f32 %v1015, %v538
  %v1017 = vadd.f32 %v1016, %v541
  %v1018 = vadd.f32 %v1017, %v546
  %v1019 = vadd.f32 %v1018, %v549
  %v1020 = vadd.f32 %v1019, %v554
  %v1021 = vadd.f32 %v1020, %v557
  %v1022 = vadd.f32 %v1021, %v562
  %v1023 = vadd.f32 %v1022, %v565
  %v1024 = vadd.f32 %v1023, %v570
  %v1025 = vadd.f32 %v1024, %v573
  %v1026 = vadd.f32 %v1025, %v578
  %v1027 = vadd.f32 %v1026, %v581
  %v1028 = vadd.f32 %v1027, %v586
  %v1029 = vadd.f32 %v1028, %v589
  %v1030 = vadd.f32 %v1029, %v594
  %v1031 = vadd.f32 %v1030, %v597
  %v1032 = vadd.f32 %v1031, %v602
  %v1033 = vadd.f32 %v1032, %v605
  %v1034 = vadd.f32 %v1033, %v610
  %v1035 = vadd.f32 %v1034, %v613
  %v1036 = vadd.f32 %v1035, %v618
  %v1037 = vadd.f32 %v1036, %v621
  %v1038 = vadd.f32 %v1037, %v626
  %v1039 = vadd.f32 %v1038, %v629
  %v1040 = vadd.f32 %v1039, %v634
  %v1041 = vadd.f32 %v1040, %v637
  %v1042 = vadd.f32 %v1041, %v642
  %v1043 = vadd.f32 %v1042, %v645
  %v1044 = vadd.f32 %v1043, %v650
  %v1045 = vadd.f32 %v1044, %v653
  %v1046 = vadd.f32 %v1045, %v658
  %v1047 = vadd.f32 %v1046, %v661
  %v1048 = vrot.slane %v1047, 4
  %v1049 = vadd.f32 %v1047, %v1048
  %v1050 = vrot.slane %v1049, 2
  %v1051 = vadd.f32 %v1049, %v1050
  %v1052 = vrot.slane %v1051, 1
  %v1053 = vadd.f32 %v1051, %v1052
  %v1054 = vadd.f32 %v984, %v1053
  %1055 = vst [vmem:[%s3] sm:$0x1] %v1054
  %v1056 = vld [vmem:[%s3 + $0x1] sm:$0x1]
  %v1057 = vmul.f32 %v410, %v410
  %v1058 = vmul.f32 %v413, %v413
  %v1059 = vmul.f32 %v418, %v418
  %v1060 = vmul.f32 %v421, %v421
  %v1061 = vmul.f32 %v426, %v426
  %v1062 = vmul.f32 %v429, %v429
  %v1063 = vmul.f32 %v434, %v434
  %v1064 = vmul.f32 %v437, %v437
  %v1065 = vmul.f32 %v442, %v442
  %v1066 = vmul.f32 %v445, %v445
  %v1067 = vmul.f32 %v450, %v450
  %v1068 = vmul.f32 %v453, %v453
  %v1069 = vmul.f32 %v458, %v458
  %v1070 = vmul.f32 %v461, %v461
  %v1071 = vmul.f32 %v466, %v466
  %v1072 = vmul.f32 %v469, %v469
  %v1073 = vmul.f32 %v474, %v474
  %v1074 = vmul.f32 %v477, %v477
  %v1075 = vmul.f32 %v482, %v482
  %v1076 = vmul.f32 %v485, %v485
  %v1077 = vmul.f32 %v490, %v490
  %v1078 = vmul.f32 %v493, %v493
  %v1079 = vmul.f32 %v498, %v498
  %v1080 = vmul.f32 %v501, %v501
  %v1081 = vmul.f32 %v506, %v506
  %v1082 = vmul.f32 %v509, %v509
  %v1083 = vmul.f32 %v514, %v514
  %v1084 = vmul.f32 %v517, %v517
  %v1085 = vmul.f32 %v522, %v522
  %v1086 = vmul.f32 %v525, %v525
  %v1087 = vmul.f32 %v530, %v530
  %v1088 = vmul.f32 %v533, %v533
  %v1089 = vmul.f32 %v538, %v538
  %v1090 = vmul.f32 %v541, %v541
  %v1091 = vmul.f32 %v546, %v546
  %v1092 = vmul.f32 %v549, %v549
  %v1093 = vmul.f32 %v554, %v554
  %v1094 = vmul.f32 %v557, %v557
  %v1095 = vmul.f32 %v562, %v562
  %v1096 = vmul.f32 %v565, %v565
  %v1097 = vmul.f32 %v570, %v570
  %v1098 = vmul.f32 %v573, %v573
  %v1099 = vmul.f32 %v578, %v578
  %v1100 = vmul.f32 %v581, %v581
  %v1101 = vmul.f32 %v586, %v586
  %v1102 = vmul.f32 %v589, %v589
  %v1103 = vmul.f32 %v594, %v594
  %v1104 = vmul.f32 %v597, %v597
  %v1105 = vmul.f32 %v602, %v602
  %v1106 = vmul.f32 %v605, %v605
  %v1107 = vmul.f32 %v610, %v610
  %v1108 = vmul.f32 %v613, %v613
  %v1109 = vmul.f32 %v618, %v618
  %v1110 = vmul.f32 %v621, %v621
  %v1111 = vmul.f32 %v626, %v626
  %v1112 = vmul.f32 %v629, %v629
  %v1113 = vmul.f32 %v634, %v634
  %v1114 = vmul.f32 %v637, %v637
  %v1115 = vmul.f32 %v642, %v642
  %v1116 = vmul.f32 %v645, %v645
  %v1117 = vmul.f32 %v650, %v650
  %v1118 = vmul.f32 %v653, %v653
  %v1119 = vmul.f32 %v658, %v658
  %v1120 = vmul.f32 %v661, %v661
  %v1121 = vadd.f32 %v1057, %v1058
  %v1122 = vadd.f32 %v1121, %v1059
  %v1123 = vadd.f32 %v1122, %v1060
  %v1124 = vadd.f32 %v1123, %v1061
  %v1125 = vadd.f32 %v1124, %v1062
  %v1126 = vadd.f32 %v1125, %v1063
  %v1127 = vadd.f32 %v1126, %v1064
  %v1128 = vadd.f32 %v1127, %v1065
  %v1129 = vadd.f32 %v1128, %v1066
  %v1130 = vadd.f32 %v1129, %v1067
  %v1131 = vadd.f32 %v1130, %v1068
  %v1132 = vadd.f32 %v1131, %v1069
  %v1133 = vadd.f32 %v1132, %v1070
  %v1134 = vadd.f32 %v1133, %v1071
  %v1135 = vadd.f32 %v1134, %v1072
  %v1136 = vadd.f32 %v1135, %v1073
  %v1137 = vadd.f32 %v1136, %v1074
  %v1138 = vadd.f32 %v1137, %v1075
  %v1139 = vadd.f32 %v1138, %v1076
  %v1140 = vadd.f32 %v1139, %v1077
  %v1141 = vadd.f32 %v1140, %v1078
  %v1142 = vadd.f32 %v1141, %v1079
  %v1143 = vadd.f32 %v1142, %v1080
  %v1144 = vadd.f32 %v1143, %v1081
  %v1145 = vadd.f32 %v1144, %v1082
  %v1146 = vadd.f32 %v1145, %v1083
  %v1147 = vadd.f32 %v1146, %v1084
  %v1148 = vadd.f32 %v1147, %v1085
  %v1149 = vadd.f32 %v1148, %v1086
  %v1150 = vadd.f32 %v1149, %v1087
  %v1151 = vadd.f32 %v1150, %v1088
  %v1152 = vadd.f32 %v1151, %v1089
  %v1153 = vadd.f32 %v1152, %v1090
  %v1154 = vadd.f32 %v1153, %v1091
  %v1155 = vadd.f32 %v1154, %v1092
  %v1156 = vadd.f32 %v1155, %v1093
  %v1157 = vadd.f32 %v1156, %v1094
  %v1158 = vadd.f32 %v1157, %v1095
  %v1159 = vadd.f32 %v1158, %v1096
  %v1160 = vadd.f32 %v1159, %v1097
  %v1161 = vadd.f32 %v1160, %v1098
  %v1162 = vadd.f32 %v1161, %v1099
  %v1163 = vadd.f32 %v1162, %v1100
  %v1164 = vadd.f32 %v1163, %v1101
  %v1165 = vadd.f32 %v1164, %v1102
  %v1166 = vadd.f32 %v1165, %v1103
  %v1167 = vadd.f32 %v1166, %v1104
  %v1168 = vadd.f32 %v1167, %v1105
  %v1169 = vadd.f32 %v1168, %v1106
  %v1170 = vadd.f32 %v1169, %v1107
  %v1171 = vadd.f32 %v1170, %v1108
  %v1172 = vadd.f32 %v1171, %v1109
  %v1173 = vadd.f32 %v1172, %v1110
  %v1174 = vadd.f32 %v1173, %v1111
  %v1175 = vadd.f32 %v1174, %v1112
  %v1176 = vadd.f32 %v1175, %v1113
  %v1177 = vadd.f32 %v1176, %v1114
  %v1178 = vadd.f32 %v1177, %v1115
  %v1179 = vadd.f32 %v1178, %v1116
  %v1180 = vadd.f32 %v1179, %v1117
  %v1181 = vadd.f32 %v1180, %v1118
  %v1182 = vadd.f32 %v1181, %v1119
  %v1183 = vadd.f32 %v1182, %v1120
  %v1184 = vrot.slane %v1183, 4
  %v1185 = vadd.f32 %v1183, %v1184
  %v1186 = vrot.slane %v1185, 2
  %v1187 = vadd.f32 %v1185, %v1186
  %v1188 = vrot.slane %v1187, 1
  %v1189 = vadd.f32 %v1187, %v1188
  %v1190 = vadd.f32 %v1056, %v1189
  %1191 = vst [vmem:[%s3 + $0x1] sm:$0x1] %v1190
  %s1192 = sadd.s32 0, 0
  %s1193 = smul.u32 64, %s1192
  %p1194 = scmp.lt.s32.totalorder %s1193, 63
  %s1195 = scalar_select %p1194, %s1193, 63
  %s1196 = smul.addr %s1195, 4
  %s1197 = scalar_lea.vmem %s2, %s1196
  // Predicated region
  $region14: #{resnext_bottleneck.4} parent=0 // pred_check
    _
  $region15: #{resnext_bottleneck.4} parent=0 // pred_check_branch
    %1199 = sbr.rel (0) target = $region17
  $region16: #{resnext_bottleneck.4} parent=0 // pred_region
    %s1200 = sadd.s32 0, 0
    %s1201 = smul.u32 64, %s1200
  $region17: #{resnext_bottleneck.4} parent=0 // pred_fallthru
    _
  // Predicated region
  $region18: #{resnext_bottleneck.4} parent=0 // pred_check
    _
  $region19: #{resnext_bottleneck.4} parent=0 // pred_check_branch
    %1203 = sbr.rel (0) target = $region21
  $region20: #{resnext_bottleneck.4} parent=0 // pred_region
    _
  $region21: #{resnext_bottleneck.4} parent=0 // pred_fallthru
    _
  // Predicated region
  $region22: #{resnext_bottleneck.4} parent=0 // pred_check
    _
  $region23: #{resnext_bottleneck.4} parent=0 // pred_check_branch
    %1205 = sbr.rel (0) target = $region25
  $region24: #{resnext_bottleneck.4} parent=0 // pred_region
    %s1206 = sadd.s32 0, 0
    %s1207 = smul.u32 64, %s1206
    %p1208 = scmp.lt.s32.totalorder %s1207, 63
    %s1209 = scalar_select %p1208, %s1207, 63
    %s1210 = smul.addr %s1209, 4
    %s1211 = scalar_lea.vmem %s2, %s1210
  $region25: #{resnext_bottleneck.4} parent=0 // pred_fallthru
    _
  // Predicated region
  $region26: #{resnext_bottleneck.4} parent=0 // pred_check
    _
  $region27: #{resnext_bottleneck.4} parent=0 // pred_check_branch
    %1213 = sbr.rel (0) target = $region29
  $region28: #{resnext_bottleneck.4} parent=0 // pred_region
    _
  $region29: #{resnext_bottleneck.4} parent=0 // pred_fallthru
    _

// kernel: resnext_bottleneck.7
$region0: #{resnext_bottleneck.7}
  #allocation0 [shape = 'u32[]', space=smem, size = 0x4, offset = 0x4, fixed_abs, tag = 'smem constant byte address 0x4 - core index']
  #allocation1 [shape = 'u32[144,128]{1,0:T(1,128)}', space=vmem, size = 0x12000, scoped, tag = 'internal scratch']
  %s0 = inlined_call_operand.vmem [shape: bf16[512,128], index: 0, kind: input, shape index: {}]
  %s1 = inlined_call_operand.vmem [shape: bf16[512,128], index: 1, kind: input, shape index: {}]
  %s2 = inlined_call_operand.vmem [shape: f32[1,2,128], index: 2, kind: input, shape index: {}]
  %s3 = inlined_call_operand.vmem [shape: f32[1,128], index: 3, kind: input, shape index: {}]
  %s4 = inlined_call_operand.vmem [shape: f32[1,128], index: 4, kind: input, shape index: {}]
  %s5 = inlined_call_operand.vmem [shape: f32[512,128], index: 5, kind: output, shape index: {}]
  %s6 = sld [smem:[#allocation0]]
  $region30: #{resnext_bottleneck.7} parent=0
    _
  %s8 = ssub.s32 1, %s6
  %s9 = scalar_select 0, %s8, %s6
  // Predicated region
  $region2: #{resnext_bottleneck.7} parent=0 // pred_check
    _
  $region3: #{resnext_bottleneck.7} parent=0 // pred_check_branch
    %11 = sbr.rel (0) target = $region5
  $region4: #{resnext_bottleneck.7} parent=0 // pred_region
    _
  $region5: #{resnext_bottleneck.7} parent=0 // pred_fallthru
    _
  // Predicated region
  $region6: #{resnext_bottleneck.7} parent=0 // pred_check
    _
  $region7: #{resnext_bottleneck.7} parent=0 // pred_check_branch
    %13 = sbr.rel (0) target = $region9
  $region8: #{resnext_bottleneck.7} parent=0 // pred_region
    _
  $region9: #{resnext_bottleneck.7} parent=0 // pred_fallthru
    _
  // Predicated region
  $region10: #{resnext_bottleneck.7} parent=0 // pred_check
    _
  $region11: #{resnext_bottleneck.7} parent=0 // pred_check_branch
    %15 = sbr.rel (0) target = $region13
  $region12: #{resnext_bottleneck.7} parent=0 // pred_region
    _
  $region13: #{resnext_bottleneck.7} parent=0 // pred_fallthru
    _
  // Predicated region
  $region14: #{resnext_bottleneck.7} parent=0 // pred_check
    _
  $region15: #{resnext_bottleneck.7} parent=0 // pred_check_branch
    %17 = sbr.rel (0) target = $region17
  $region16: #{resnext_bottleneck.7} parent=0 // pred_region
    _
  $region17: #{resnext_bottleneck.7} parent=0 // pred_fallthru
    _
  // Predicated region
  $region18: #{resnext_bottleneck.7} parent=0 // pred_check
    _
  $region19: #{resnext_bottleneck.7} parent=0 // pred_check_branch
    %19 = sbr.rel (0) target = $region21
  $region20: #{resnext_bottleneck.7} parent=0 // pred_region
    _
  $region21: #{resnext_bottleneck.7} parent=0 // pred_fallthru
    _
  %v20 = vld [vmem:[%s2] sm:$0x3]
  %v21 = vadd.f32 %v20, 0.0
  %v22 = vld [vmem:[%s3] sm:$0x1]
  %v23 = vld [vmem:[%s4] sm:$0x1]
  %v24 = vrcp.pop 512.0
  %v25 = vmul.f32 %v21, %v24
  %v26 = vmul.f32 %v25, %v25
  %v28 = vrot.slane %v26, 7
  %v30 = vsub.f32 %v25, %v28
  %v31 = vmax.f32 %v30, 0.0
  %v32 = vadd.f32 %v31, 1e-05
  %v33 = vrsqrt.pop %v32
  %v36 = vunpack.c.l.s4 1966171168
  %v37 = vunpack.c.0.s8 %v36
  %v38 = vlaneseq
  %v39 = vshrl.u32 %v38, 7
  %v40 = vsub.s32 %v37, %v39
  %v41 = vrot.slane %v33, %v40
  %v42 = vcombine.high %v41, %v41
  %v44 = vunpack.c.l.s4 1966171168
  %v45 = vunpack.c.0.s8 %v44
  %v46 = vlaneseq
  %v47 = vshrl.u32 %v46, 7
  %v48 = vsub.s32 %v45, %v47
  %v49 = vrot.slane %v42, %v48
  %v51 = vmul.f32 %v22, %v49
  %v52 = vmul.f32 %v25, %v51
  %v53 = vsub.f32 %v23, %v52
  %v54 = vld [vmem:[%s1] sm:$0xf]
  %v55 = vld [vmem:[%s1 + $0x4] sm:$0xf]
  %v56 = vld [vmem:[%s1 + $0x8] sm:$0xf]
  %v57 = vld [vmem:[%s1 + $0xc] sm:$0xf]
  %v58 = vld [vmem:[%s1 + $0x10] sm:$0xf]
  %v59 = vld [vmem:[%s1 + $0x14] sm:$0xf]
  %v60 = vld [vmem:[%s1 + $0x18] sm:$0xf]
  %v61 = vld [vmem:[%s1 + $0x1c] sm:$0xf]
  %v62 = vld [vmem:[%s1 + $0x20] sm:$0xf]
  %v63 = vld [vmem:[%s1 + $0x24] sm:$0xf]
  %v64 = vld [vmem:[%s1 + $0x28] sm:$0xf]
  %v65 = vld [vmem:[%s1 + $0x2c] sm:$0xf]
  %v66 = vld [vmem:[%s1 + $0x30] sm:$0xf]
  %v67 = vld [vmem:[%s1 + $0x34] sm:$0xf]
  %v68 = vld [vmem:[%s1 + $0x38] sm:$0xf]
  %v69 = vld [vmem:[%s1 + $0x3c] sm:$0xf]
  %v70 = vld [vmem:[%s1 + $0x40] sm:$0xf]
  %v71 = vld [vmem:[%s1 + $0x44] sm:$0xf]
  %v72 = vld [vmem:[%s1 + $0x48] sm:$0xf]
  %v73 = vld [vmem:[%s1 + $0x4c] sm:$0xf]
  %v74 = vld [vmem:[%s1 + $0x50] sm:$0xf]
  %v75 = vld [vmem:[%s1 + $0x54] sm:$0xf]
  %v76 = vld [vmem:[%s1 + $0x58] sm:$0xf]
  %v77 = vld [vmem:[%s1 + $0x5c] sm:$0xf]
  %v78 = vld [vmem:[%s1 + $0x60] sm:$0xf]
  %v79 = vld [vmem:[%s1 + $0x64] sm:$0xf]
  %v80 = vld [vmem:[%s1 + $0x68] sm:$0xf]
  %v81 = vld [vmem:[%s1 + $0x6c] sm:$0xf]
  %v82 = vld [vmem:[%s1 + $0x70] sm:$0xf]
  %v83 = vld [vmem:[%s1 + $0x74] sm:$0xf]
  %v84 = vld [vmem:[%s1 + $0x78] sm:$0xf]
  %v85 = vld [vmem:[%s1 + $0x7c] sm:$0xf]
  %v86 = vld [vmem:[%s1 + $0x80] sm:$0xf]
  %v87 = vld [vmem:[%s1 + $0x84] sm:$0xf]
  %v88 = vld [vmem:[%s1 + $0x88] sm:$0xf]
  %v89 = vld [vmem:[%s1 + $0x8c] sm:$0xf]
  %v90 = vld [vmem:[%s1 + $0x90] sm:$0xf]
  %v91 = vld [vmem:[%s1 + $0x94] sm:$0xf]
  %v92 = vld [vmem:[%s1 + $0x98] sm:$0xf]
  %v93 = vld [vmem:[%s1 + $0x9c] sm:$0xf]
  %v94 = vld [vmem:[%s1 + $0xa0] sm:$0xf]
  %v95 = vld [vmem:[%s1 + $0xa4] sm:$0xf]
  %v96 = vld [vmem:[%s1 + $0xa8] sm:$0xf]
  %v97 = vld [vmem:[%s1 + $0xac] sm:$0xf]
  %v98 = vld [vmem:[%s1 + $0xb0] sm:$0xf]
  %v99 = vld [vmem:[%s1 + $0xb4] sm:$0xf]
  %v100 = vld [vmem:[%s1 + $0xb8] sm:$0xf]
  %v101 = vld [vmem:[%s1 + $0xbc] sm:$0xf]
  %v102 = vld [vmem:[%s1 + $0xc0] sm:$0xf]
  %v103 = vld [vmem:[%s1 + $0xc4] sm:$0xf]
  %v104 = vld [vmem:[%s1 + $0xc8] sm:$0xf]
  %v105 = vld [vmem:[%s1 + $0xcc] sm:$0xf]
  %v106 = vld [vmem:[%s1 + $0xd0] sm:$0xf]
  %v107 = vld [vmem:[%s1 + $0xd4] sm:$0xf]
  %v108 = vld [vmem:[%s1 + $0xd8] sm:$0xf]
  %v109 = vld [vmem:[%s1 + $0xdc] sm:$0xf]
  %v110 = vld [vmem:[%s1 + $0xe0] sm:$0xf]
  %v111 = vld [vmem:[%s1 + $0xe4] sm:$0xf]
  %v112 = vld [vmem:[%s1 + $0xe8] sm:$0xf]
  %v113 = vld [vmem:[%s1 + $0xec] sm:$0xf]
  %v114 = vld [vmem:[%s1 + $0xf0] sm:$0xf]
  %v115 = vld [vmem:[%s1 + $0xf4] sm:$0xf]
  %v116 = vld [vmem:[%s1 + $0xf8] sm:$0xf]
  %v117 = vld [vmem:[%s1 + $0xfc] sm:$0xf]
  %v118 = vunpack.c.l.bf16 %v54
  %v119 = vunpack.c.l.bf16 %v55
  %v120 = vunpack.c.l.bf16 %v56
  %v121 = vunpack.c.l.bf16 %v57
  %v122 = vunpack.c.l.bf16 %v58
  %v123 = vunpack.c.l.bf16 %v59
  %v124 = vunpack.c.l.bf16 %v60
  %v125 = vunpack.c.l.bf16 %v61
  %v126 = vunpack.c.l.bf16 %v62
  %v127 = vunpack.c.l.bf16 %v63
  %v128 = vunpack.c.l.bf16 %v64
  %v129 = vunpack.c.l.bf16 %v65
  %v130 = vunpack.c.l.bf16 %v66
  %v131 = vunpack.c.l.bf16 %v67
  %v132 = vunpack.c.l.bf16 %v68
  %v133 = vunpack.c.l.bf16 %v69
  %v134 = vunpack.c.l.bf16 %v70
  %v135 = vunpack.c.l.bf16 %v71
  %v136 = vunpack.c.l.bf16 %v72
  %v137 = vunpack.c.l.bf16 %v73
  %v138 = vunpack.c.l.bf16 %v74
  %v139 = vunpack.c.l.bf16 %v75
  %v140 = vunpack.c.l.bf16 %v76
  %v141 = vunpack.c.l.bf16 %v77
  %v142 = vunpack.c.l.bf16 %v78
  %v143 = vunpack.c.l.bf16 %v79
  %v144 = vunpack.c.l.bf16 %v80
  %v145 = vunpack.c.l.bf16 %v81
  %v146 = vunpack.c.l.bf16 %v82
  %v147 = vunpack.c.l.bf16 %v83
  %v148 = vunpack.c.l.bf16 %v84
  %v149 = vunpack.c.l.bf16 %v85
  %v150 = vunpack.c.l.bf16 %v86
  %v151 = vunpack.c.l.bf16 %v87
  %v152 = vunpack.c.l.bf16 %v88
  %v153 = vunpack.c.l.bf16 %v89
  %v154 = vunpack.c.l.bf16 %v90
  %v155 = vunpack.c.l.bf16 %v91
  %v156 = vunpack.c.l.bf16 %v92
  %v157 = vunpack.c.l.bf16 %v93
  %v158 = vunpack.c.l.bf16 %v94
  %v159 = vunpack.c.l.bf16 %v95
  %v160 = vunpack.c.l.bf16 %v96
  %v161 = vunpack.c.l.bf16 %v97
  %v162 = vunpack.c.l.bf16 %v98
  %v163 = vunpack.c.l.bf16 %v99
  %v164 = vunpack.c.l.bf16 %v100
  %v165 = vunpack.c.l.bf16 %v101
  %v166 = vunpack.c.l.bf16 %v102
  %v167 = vunpack.c.l.bf16 %v103
  %v168 = vunpack.c.l.bf16 %v104
  %v169 = vunpack.c.l.bf16 %v105
  %v170 = vunpack.c.l.bf16 %v106
  %v171 = vunpack.c.l.bf16 %v107
  %v172 = vunpack.c.l.bf16 %v108
  %v173 = vunpack.c.l.bf16 %v109
  %v174 = vunpack.c.l.bf16 %v110
  %v175 = vunpack.c.l.bf16 %v111
  %v176 = vunpack.c.l.bf16 %v112
  %v177 = vunpack.c.l.bf16 %v113
  %v178 = vunpack.c.l.bf16 %v114
  %v179 = vunpack.c.l.bf16 %v115
  %v180 = vunpack.c.l.bf16 %v116
  %v181 = vunpack.c.l.bf16 %v117
  %v182 = vld [vmem:[%s0] sm:$0xf]
  %v183 = vld [vmem:[%s0 + $0x4] sm:$0xf]
  %v184 = vld [vmem:[%s0 + $0x8] sm:$0xf]
  %v185 = vld [vmem:[%s0 + $0xc] sm:$0xf]
  %v186 = vld [vmem:[%s0 + $0x10] sm:$0xf]
  %v187 = vld [vmem:[%s0 + $0x14] sm:$0xf]
  %v188 = vld [vmem:[%s0 + $0x18] sm:$0xf]
  %v189 = vld [vmem:[%s0 + $0x1c] sm:$0xf]
  %v190 = vld [vmem:[%s0 + $0x20] sm:$0xf]
  %v191 = vld [vmem:[%s0 + $0x24] sm:$0xf]
  %v192 = vld [vmem:[%s0 + $0x28] sm:$0xf]
  %v193 = vld [vmem:[%s0 + $0x2c] sm:$0xf]
  %v194 = vld [vmem:[%s0 + $0x30] sm:$0xf]
  %v195 = vld [vmem:[%s0 + $0x34] sm:$0xf]
  %v196 = vld [vmem:[%s0 + $0x38] sm:$0xf]
  %v197 = vld [vmem:[%s0 + $0x3c] sm:$0xf]
  %v198 = vld [vmem:[%s0 + $0x40] sm:$0xf]
  %v199 = vld [vmem:[%s0 + $0x44] sm:$0xf]
  %v200 = vld [vmem:[%s0 + $0x48] sm:$0xf]
  %v201 = vld [vmem:[%s0 + $0x4c] sm:$0xf]
  %v202 = vld [vmem:[%s0 + $0x50] sm:$0xf]
  %v203 = vld [vmem:[%s0 + $0x54] sm:$0xf]
  %v204 = vld [vmem:[%s0 + $0x58] sm:$0xf]
  %v205 = vld [vmem:[%s0 + $0x5c] sm:$0xf]
  %v206 = vld [vmem:[%s0 + $0x60] sm:$0xf]
  %v207 = vld [vmem:[%s0 + $0x64] sm:$0xf]
  %v208 = vld [vmem:[%s0 + $0x68] sm:$0xf]
  %v209 = vld [vmem:[%s0 + $0x6c] sm:$0xf]
  %v210 = vld [vmem:[%s0 + $0x70] sm:$0xf]
  %v211 = vld [vmem:[%s0 + $0x74] sm:$0xf]
  %v212 = vld [vmem:[%s0 + $0x78] sm:$0xf]
  %v213 = vld [vmem:[%s0 + $0x7c] sm:$0xf]
  %v214 = vld [vmem:[%s0 + $0x80] sm:$0xf]
  %v215 = vld [vmem:[%s0 + $0x84] sm:$0xf]
  %v216 = vld [vmem:[%s0 + $0x88] sm:$0xf]
  %v217 = vld [vmem:[%s0 + $0x8c] sm:$0xf]
  %v218 = vld [vmem:[%s0 + $0x90] sm:$0xf]
  %v219 = vld [vmem:[%s0 + $0x94] sm:$0xf]
  %v220 = vld [vmem:[%s0 + $0x98] sm:$0xf]
  %v221 = vld [vmem:[%s0 + $0x9c] sm:$0xf]
  %v222 = vld [vmem:[%s0 + $0xa0] sm:$0xf]
  %v223 = vld [vmem:[%s0 + $0xa4] sm:$0xf]
  %v224 = vld [vmem:[%s0 + $0xa8] sm:$0xf]
  %v225 = vld [vmem:[%s0 + $0xac] sm:$0xf]
  %v226 = vld [vmem:[%s0 + $0xb0] sm:$0xf]
  %v227 = vld [vmem:[%s0 + $0xb4] sm:$0xf]
  %v228 = vld [vmem:[%s0 + $0xb8] sm:$0xf]
  %v229 = vld [vmem:[%s0 + $0xbc] sm:$0xf]
  %v230 = vld [vmem:[%s0 + $0xc0] sm:$0xf]
  %v231 = vld [vmem:[%s0 + $0xc4] sm:$0xf]
  %v232 = vld [vmem:[%s0 + $0xc8] sm:$0xf]
  %v233 = vld [vmem:[%s0 + $0xcc] sm:$0xf]
  %v234 = vld [vmem:[%s0 + $0xd0] sm:$0xf]
  %v235 = vld [vmem:[%s0 + $0xd4] sm:$0xf]
  %v236 = vld [vmem:[%s0 + $0xd8] sm:$0xf]
  %v237 = vld [vmem:[%s0 + $0xdc] sm:$0xf]
  %v238 = vld [vmem:[%s0 + $0xe0] sm:$0xf]
  %v239 = vld [vmem:[%s0 + $0xe4] sm:$0xf]
  %v240 = vld [vmem:[%s0 + $0xe8] sm:$0xf]
  %v241 = vld [vmem:[%s0 + $0xec] sm:$0xf]
  %v242 = vld [vmem:[%s0 + $0xf0] sm:$0xf]
  %v243 = vld [vmem:[%s0 + $0xf4] sm:$0xf]
  %v244 = vld [vmem:[%s0 + $0xf8] sm:$0xf]
  %v245 = vld [vmem:[%s0 + $0xfc] sm:$0xf]
  %v246 = vunpack.c.l.bf16 %v182
  %v247 = vunpack.c.l.bf16 %v183
  %v248 = vunpack.c.l.bf16 %v184
  %v249 = vunpack.c.l.bf16 %v185
  %v250 = vunpack.c.l.bf16 %v186
  %v251 = vunpack.c.l.bf16 %v187
  %v252 = vunpack.c.l.bf16 %v188
  %v253 = vunpack.c.l.bf16 %v189
  %v254 = vunpack.c.l.bf16 %v190
  %v255 = vunpack.c.l.bf16 %v191
  %v256 = vunpack.c.l.bf16 %v192
  %v257 = vunpack.c.l.bf16 %v193
  %v258 = vunpack.c.l.bf16 %v194
  %v259 = vunpack.c.l.bf16 %v195
  %v260 = vunpack.c.l.bf16 %v196
  %v261 = vunpack.c.l.bf16 %v197
  %v262 = vunpack.c.l.bf16 %v198
  %v263 = vunpack.c.l.bf16 %v199
  %v264 = vunpack.c.l.bf16 %v200
  %v265 = vunpack.c.l.bf16 %v201
  %v266 = vunpack.c.l.bf16 %v202
  %v267 = vunpack.c.l.bf16 %v203
  %v268 = vunpack.c.l.bf16 %v204
  %v269 = vunpack.c.l.bf16 %v205
  %v270 = vunpack.c.l.bf16 %v206
  %v271 = vunpack.c.l.bf16 %v207
  %v272 = vunpack.c.l.bf16 %v208
  %v273 = vunpack.c.l.bf16 %v209
  %v274 = vunpack.c.l.bf16 %v210
  %v275 = vunpack.c.l.bf16 %v211
  %v276 = vunpack.c.l.bf16 %v212
  %v277 = vunpack.c.l.bf16 %v213
  %v278 = vunpack.c.l.bf16 %v214
  %v279 = vunpack.c.l.bf16 %v215
  %v280 = vunpack.c.l.bf16 %v216
  %v281 = vunpack.c.l.bf16 %v217
  %v282 = vunpack.c.l.bf16 %v218
  %v283 = vunpack.c.l.bf16 %v219
  %v284 = vunpack.c.l.bf16 %v220
  %v285 = vunpack.c.l.bf16 %v221
  %v286 = vunpack.c.l.bf16 %v222
  %v287 = vunpack.c.l.bf16 %v223
  %v288 = vunpack.c.l.bf16 %v224
  %v289 = vunpack.c.l.bf16 %v225
  %v290 = vunpack.c.l.bf16 %v226
  %v291 = vunpack.c.l.bf16 %v227
  %v292 = vunpack.c.l.bf16 %v228
  %v293 = vunpack.c.l.bf16 %v229
  %v294 = vunpack.c.l.bf16 %v230
  %v295 = vunpack.c.l.bf16 %v231
  %v296 = vunpack.c.l.bf16 %v232
  %v297 = vunpack.c.l.bf16 %v233
  %v298 = vunpack.c.l.bf16 %v234
  %v299 = vunpack.c.l.bf16 %v235
  %v300 = vunpack.c.l.bf16 %v236
  %v301 = vunpack.c.l.bf16 %v237
  %v302 = vunpack.c.l.bf16 %v238
  %v303 = vunpack.c.l.bf16 %v239
  %v304 = vunpack.c.l.bf16 %v240
  %v305 = vunpack.c.l.bf16 %v241
  %v306 = vunpack.c.l.bf16 %v242
  %v307 = vunpack.c.l.bf16 %v243
  %v308 = vunpack.c.l.bf16 %v244
  %v309 = vunpack.c.l.bf16 %v245
  %v311 = vlaneseq
  %v312 = vshrl.u32 %v311, 7
  %v313 = vsub.s32 0, %v312
  %v314 = vrot.slane %v51, %v313
  %v316 = vmul.f32 %v246, %v314
  %v317 = vmul.f32 %v247, %v314
  %v318 = vmul.f32 %v248, %v314
  %v319 = vmul.f32 %v249, %v314
  %v320 = vmul.f32 %v250, %v314
  %v321 = vmul.f32 %v251, %v314
  %v322 = vmul.f32 %v252, %v314
  %v323 = vmul.f32 %v253, %v314
  %v324 = vmul.f32 %v254, %v314
  %v325 = vmul.f32 %v255, %v314
  %v326 = vmul.f32 %v256, %v314
  %v327 = vmul.f32 %v257, %v314
  %v328 = vmul.f32 %v258, %v314
  %v329 = vmul.f32 %v259, %v314
  %v330 = vmul.f32 %v260, %v314
  %v331 = vmul.f32 %v261, %v314
  %v332 = vmul.f32 %v262, %v314
  %v333 = vmul.f32 %v263, %v314
  %v334 = vmul.f32 %v264, %v314
  %v335 = vmul.f32 %v265, %v314
  %v336 = vmul.f32 %v266, %v314
  %v337 = vmul.f32 %v267, %v314
  %v338 = vmul.f32 %v268, %v314
  %v339 = vmul.f32 %v269, %v314
  %v340 = vmul.f32 %v270, %v314
  %v341 = vmul.f32 %v271, %v314
  %v342 = vmul.f32 %v272, %v314
  %v343 = vmul.f32 %v273, %v314
  %v344 = vmul.f32 %v274, %v314
  %v345 = vmul.f32 %v275, %v314
  %v346 = vmul.f32 %v276, %v314
  %v347 = vmul.f32 %v277, %v314
  %v348 = vmul.f32 %v278, %v314
  %v349 = vmul.f32 %v279, %v314
  %v350 = vmul.f32 %v280, %v314
  %v351 = vmul.f32 %v281, %v314
  %v352 = vmul.f32 %v282, %v314
  %v353 = vmul.f32 %v283, %v314
  %v354 = vmul.f32 %v284, %v314
  %v355 = vmul.f32 %v285, %v314
  %v356 = vmul.f32 %v286, %v314
  %v357 = vmul.f32 %v287, %v314
  %v358 = vmul.f32 %v288, %v314
  %v359 = vmul.f32 %v289, %v314
  %v360 = vmul.f32 %v290, %v314
  %v361 = vmul.f32 %v291, %v314
  %v362 = vmul.f32 %v292, %v314
  %v363 = vmul.f32 %v293, %v314
  %v364 = vmul.f32 %v294, %v314
  %v365 = vmul.f32 %v295, %v314
  %v366 = vmul.f32 %v296, %v314
  %v367 = vmul.f32 %v297, %v314
  %v368 = vmul.f32 %v298, %v314
  %v369 = vmul.f32 %v299, %v314
  %v370 = vmul.f32 %v300, %v314
  %v371 = vmul.f32 %v301, %v314
  %v372 = vmul.f32 %v302, %v314
  %v373 = vmul.f32 %v303, %v314
  %v374 = vmul.f32 %v304, %v314
  %v375 = vmul.f32 %v305, %v314
  %v376 = vmul.f32 %v306, %v314
  %v377 = vmul.f32 %v307, %v314
  %v378 = vmul.f32 %v308, %v314
  %v379 = vmul.f32 %v309, %v314
  %v380 = vadd.f32 %v118, %v316
  %v381 = vadd.f32 %v119, %v317
  %v382 = vadd.f32 %v120, %v318
  %v383 = vadd.f32 %v121, %v319
  %v384 = vadd.f32 %v122, %v320
  %v385 = vadd.f32 %v123, %v321
  %v386 = vadd.f32 %v124, %v322
  %v387 = vadd.f32 %v125, %v323
  %v388 = vadd.f32 %v126, %v324
  %v389 = vadd.f32 %v127, %v325
  %v390 = vadd.f32 %v128, %v326
  %v391 = vadd.f32 %v129, %v327
  %v392 = vadd.f32 %v130, %v328
  %v393 = vadd.f32 %v131, %v329
  %v394 = vadd.f32 %v132, %v330
  %v395 = vadd.f32 %v133, %v331
  %v396 = vadd.f32 %v134, %v332
  %v397 = vadd.f32 %v135, %v333
  %v398 = vadd.f32 %v136, %v334
  %v399 = vadd.f32 %v137, %v335
  %v400 = vadd.f32 %v138, %v336
  %v401 = vadd.f32 %v139, %v337
  %v402 = vadd.f32 %v140, %v338
  %v403 = vadd.f32 %v141, %v339
  %v404 = vadd.f32 %v142, %v340
  %v405 = vadd.f32 %v143, %v341
  %v406 = vadd.f32 %v144, %v342
  %v407 = vadd.f32 %v145, %v343
  %v408 = vadd.f32 %v146, %v344
  %v409 = vadd.f32 %v147, %v345
  %v410 = vadd.f32 %v148, %v346
  %v411 = vadd.f32 %v149, %v347
  %v412 = vadd.f32 %v150, %v348
  %v413 = vadd.f32 %v151, %v349
  %v414 = vadd.f32 %v152, %v350
  %v415 = vadd.f32 %v153, %v351
  %v416 = vadd.f32 %v154, %v352
  %v417 = vadd.f32 %v155, %v353
  %v418 = vadd.f32 %v156, %v354
  %v419 = vadd.f32 %v157, %v355
  %v420 = vadd.f32 %v158, %v356
  %v421 = vadd.f32 %v159, %v357
  %v422 = vadd.f32 %v160, %v358
  %v423 = vadd.f32 %v161, %v359
  %v424 = vadd.f32 %v162, %v360
  %v425 = vadd.f32 %v163, %v361
  %v426 = vadd.f32 %v164, %v362
  %v427 = vadd.f32 %v165, %v363
  %v428 = vadd.f32 %v166, %v364
  %v429 = vadd.f32 %v167, %v365
  %v430 = vadd.f32 %v168, %v366
  %v431 = vadd.f32 %v169, %v367
  %v432 = vadd.f32 %v170, %v368
  %v433 = vadd.f32 %v171, %v369
  %v434 = vadd.f32 %v172, %v370
  %v435 = vadd.f32 %v173, %v371
  %v436 = vadd.f32 %v174, %v372
  %v437 = vadd.f32 %v175, %v373
  %v438 = vadd.f32 %v176, %v374
  %v439 = vadd.f32 %v177, %v375
  %v440 = vadd.f32 %v178, %v376
  %v441 = vadd.f32 %v179, %v377
  %v442 = vadd.f32 %v180, %v378
  %v443 = vadd.f32 %v181, %v379
  %v445 = vlaneseq
  %v446 = vshrl.u32 %v445, 7
  %v447 = vsub.s32 0, %v446
  %v448 = vrot.slane %v53, %v447
  %v450 = vadd.f32 %v380, %v448
  %v451 = vadd.f32 %v381, %v448
  %v452 = vadd.f32 %v382, %v448
  %v453 = vadd.f32 %v383, %v448
  %v454 = vadd.f32 %v384, %v448
  %v455 = vadd.f32 %v385, %v448
  %v456 = vadd.f32 %v386, %v448
  %v457 = vadd.f32 %v387, %v448
  %v458 = vadd.f32 %v388, %v448
  %v459 = vadd.f32 %v389, %v448
  %v460 = vadd.f32 %v390, %v448
  %v461 = vadd.f32 %v391, %v448
  %v462 = vadd.f32 %v392, %v448
  %v463 = vadd.f32 %v393, %v448
  %v464 = vadd.f32 %v394, %v448
  %v465 = vadd.f32 %v395, %v448
  %v466 = vadd.f32 %v396, %v448
  %v467 = vadd.f32 %v397, %v448
  %v468 = vadd.f32 %v398, %v448
  %v469 = vadd.f32 %v399, %v448
  %v470 = vadd.f32 %v400, %v448
  %v471 = vadd.f32 %v401, %v448
  %v472 = vadd.f32 %v402, %v448
  %v473 = vadd.f32 %v403, %v448
  %v474 = vadd.f32 %v404, %v448
  %v475 = vadd.f32 %v405, %v448
  %v476 = vadd.f32 %v406, %v448
  %v477 = vadd.f32 %v407, %v448
  %v478 = vadd.f32 %v408, %v448
  %v479 = vadd.f32 %v409, %v448
  %v480 = vadd.f32 %v410, %v448
  %v481 = vadd.f32 %v411, %v448
  %v482 = vadd.f32 %v412, %v448
  %v483 = vadd.f32 %v413, %v448
  %v484 = vadd.f32 %v414, %v448
  %v485 = vadd.f32 %v415, %v448
  %v486 = vadd.f32 %v416, %v448
  %v487 = vadd.f32 %v417, %v448
  %v488 = vadd.f32 %v418, %v448
  %v489 = vadd.f32 %v419, %v448
  %v490 = vadd.f32 %v420, %v448
  %v491 = vadd.f32 %v421, %v448
  %v492 = vadd.f32 %v422, %v448
  %v493 = vadd.f32 %v423, %v448
  %v494 = vadd.f32 %v424, %v448
  %v495 = vadd.f32 %v425, %v448
  %v496 = vadd.f32 %v426, %v448
  %v497 = vadd.f32 %v427, %v448
  %v498 = vadd.f32 %v428, %v448
  %v499 = vadd.f32 %v429, %v448
  %v500 = vadd.f32 %v430, %v448
  %v501 = vadd.f32 %v431, %v448
  %v502 = vadd.f32 %v432, %v448
  %v503 = vadd.f32 %v433, %v448
  %v504 = vadd.f32 %v434, %v448
  %v505 = vadd.f32 %v435, %v448
  %v506 = vadd.f32 %v436, %v448
  %v507 = vadd.f32 %v437, %v448
  %v508 = vadd.f32 %v438, %v448
  %v509 = vadd.f32 %v439, %v448
  %v510 = vadd.f32 %v440, %v448
  %v511 = vadd.f32 %v441, %v448
  %v512 = vadd.f32 %v442, %v448
  %v513 = vadd.f32 %v443, %v448
  %v514 = vmax.f32 %v450, 0.0
  %v515 = vmax.f32 %v451, 0.0
  %v516 = vmax.f32 %v452, 0.0
  %v517 = vmax.f32 %v453, 0.0
  %v518 = vmax.f32 %v454, 0.0
  %v519 = vmax.f32 %v455, 0.0
  %v520 = vmax.f32 %v456, 0.0
  %v521 = vmax.f32 %v457, 0.0
  %v522 = vmax.f32 %v458, 0.0
  %v523 = vmax.f32 %v459, 0.0
  %v524 = vmax.f32 %v460, 0.0
  %v525 = vmax.f32 %v461, 0.0
  %v526 = vmax.f32 %v462, 0.0
  %v527 = vmax.f32 %v463, 0.0
  %v528 = vmax.f32 %v464, 0.0
  %v529 = vmax.f32 %v465, 0.0
  %v530 = vmax.f32 %v466, 0.0
  %v531 = vmax.f32 %v467, 0.0
  %v532 = vmax.f32 %v468, 0.0
  %v533 = vmax.f32 %v469, 0.0
  %v534 = vmax.f32 %v470, 0.0
  %v535 = vmax.f32 %v471, 0.0
  %v536 = vmax.f32 %v472, 0.0
  %v537 = vmax.f32 %v473, 0.0
  %v538 = vmax.f32 %v474, 0.0
  %v539 = vmax.f32 %v475, 0.0
  %v540 = vmax.f32 %v476, 0.0
  %v541 = vmax.f32 %v477, 0.0
  %v542 = vmax.f32 %v478, 0.0
  %v543 = vmax.f32 %v479, 0.0
  %v544 = vmax.f32 %v480, 0.0
  %v545 = vmax.f32 %v481, 0.0
  %v546 = vmax.f32 %v482, 0.0
  %v547 = vmax.f32 %v483, 0.0
  %v548 = vmax.f32 %v484, 0.0
  %v549 = vmax.f32 %v485, 0.0
  %v550 = vmax.f32 %v486, 0.0
  %v551 = vmax.f32 %v487, 0.0
  %v552 = vmax.f32 %v488, 0.0
  %v553 = vmax.f32 %v489, 0.0
  %v554 = vmax.f32 %v490, 0.0
  %v555 = vmax.f32 %v491, 0.0
  %v556 = vmax.f32 %v492, 0.0
  %v557 = vmax.f32 %v493, 0.0
  %v558 = vmax.f32 %v494, 0.0
  %v559 = vmax.f32 %v495, 0.0
  %v560 = vmax.f32 %v496, 0.0
  %v561 = vmax.f32 %v497, 0.0
  %v562 = vmax.f32 %v498, 0.0
  %v563 = vmax.f32 %v499, 0.0
  %v564 = vmax.f32 %v500, 0.0
  %v565 = vmax.f32 %v501, 0.0
  %v566 = vmax.f32 %v502, 0.0
  %v567 = vmax.f32 %v503, 0.0
  %v568 = vmax.f32 %v504, 0.0
  %v569 = vmax.f32 %v505, 0.0
  %v570 = vmax.f32 %v506, 0.0
  %v571 = vmax.f32 %v507, 0.0
  %v572 = vmax.f32 %v508, 0.0
  %v573 = vmax.f32 %v509, 0.0
  %v574 = vmax.f32 %v510, 0.0
  %v575 = vmax.f32 %v511, 0.0
  %v576 = vmax.f32 %v512, 0.0
  %v577 = vmax.f32 %v513, 0.0
  %578 = vst [vmem:[%s5] sm:$0xff] %v514
  %579 = vst [vmem:[%s5 + $0x8] sm:$0xff] %v515
  %580 = vst [vmem:[%s5 + $0x10] sm:$0xff] %v516
  %581 = vst [vmem:[%s5 + $0x18] sm:$0xff] %v517
  %582 = vst [vmem:[%s5 + $0x20] sm:$0xff] %v518
  %583 = vst [vmem:[%s5 + $0x28] sm:$0xff] %v519
  %584 = vst [vmem:[%s5 + $0x30] sm:$0xff] %v520
  %585 = vst [vmem:[%s5 + $0x38] sm:$0xff] %v521
  %586 = vst [vmem:[%s5 + $0x40] sm:$0xff] %v522
  %587 = vst [vmem:[%s5 + $0x48] sm:$0xff] %v523
  %588 = vst [vmem:[%s5 + $0x50] sm:$0xff] %v524
  %589 = vst [vmem:[%s5 + $0x58] sm:$0xff] %v525
  %590 = vst [vmem:[%s5 + $0x60] sm:$0xff] %v526
  %591 = vst [vmem:[%s5 + $0x68] sm:$0xff] %v527
  %592 = vst [vmem:[%s5 + $0x70] sm:$0xff] %v528
  %593 = vst [vmem:[%s5 + $0x78] sm:$0xff] %v529
  %594 = vst [vmem:[%s5 + $0x80] sm:$0xff] %v530
  %595 = vst [vmem:[%s5 + $0x88] sm:$0xff] %v531
  %596 = vst [vmem:[%s5 + $0x90] sm:$0xff] %v532
  %597 = vst [vmem:[%s5 + $0x98] sm:$0xff] %v533
  %598 = vst [vmem:[%s5 + $0xa0] sm:$0xff] %v534
  %599 = vst [vmem:[%s5 + $0xa8] sm:$0xff] %v535
  %600 = vst [vmem:[%s5 + $0xb0] sm:$0xff] %v536
  %601 = vst [vmem:[%s5 + $0xb8] sm:$0xff] %v537
  %602 = vst [vmem:[%s5 + $0xc0] sm:$0xff] %v538
  %603 = vst [vmem:[%s5 + $0xc8] sm:$0xff] %v539
  %604 = vst [vmem:[%s5 + $0xd0] sm:$0xff] %v540
  %605 = vst [vmem:[%s5 + $0xd8] sm:$0xff] %v541
  %606 = vst [vmem:[%s5 + $0xe0] sm:$0xff] %v542
  %607 = vst [vmem:[%s5 + $0xe8] sm:$0xff] %v543
  %608 = vst [vmem:[%s5 + $0xf0] sm:$0xff] %v544
  %609 = vst [vmem:[%s5 + $0xf8] sm:$0xff] %v545
  %610 = vst [vmem:[%s5 + $0x100] sm:$0xff] %v546
  %611 = vst [vmem:[%s5 + $0x108] sm:$0xff] %v547
  %612 = vst [vmem:[%s5 + $0x110] sm:$0xff] %v548
  %613 = vst [vmem:[%s5 + $0x118] sm:$0xff] %v549
  %614 = vst [vmem:[%s5 + $0x120] sm:$0xff] %v550
  %615 = vst [vmem:[%s5 + $0x128] sm:$0xff] %v551
  %616 = vst [vmem:[%s5 + $0x130] sm:$0xff] %v552
  %617 = vst [vmem:[%s5 + $0x138] sm:$0xff] %v553
  %618 = vst [vmem:[%s5 + $0x140] sm:$0xff] %v554
  %619 = vst [vmem:[%s5 + $0x148] sm:$0xff] %v555
  %620 = vst [vmem:[%s5 + $0x150] sm:$0xff] %v556
  %621 = vst [vmem:[%s5 + $0x158] sm:$0xff] %v557
  %622 = vst [vmem:[%s5 + $0x160] sm:$0xff] %v558
  %623 = vst [vmem:[%s5 + $0x168] sm:$0xff] %v559
  %624 = vst [vmem:[%s5 + $0x170] sm:$0xff] %v560
  %625 = vst [vmem:[%s5 + $0x178] sm:$0xff] %v561
  %626 = vst [vmem:[%s5 + $0x180] sm:$0xff] %v562
  %627 = vst [vmem:[%s5 + $0x188] sm:$0xff] %v563
  %628 = vst [vmem:[%s5 + $0x190] sm:$0xff] %v564
  %629 = vst [vmem:[%s5 + $0x198] sm:$0xff] %v565
  %630 = vst [vmem:[%s5 + $0x1a0] sm:$0xff] %v566
  %631 = vst [vmem:[%s5 + $0x1a8] sm:$0xff] %v567
  %632 = vst [vmem:[%s5 + $0x1b0] sm:$0xff] %v568
  %633 = vst [vmem:[%s5 + $0x1b8] sm:$0xff] %v569
  %634 = vst [vmem:[%s5 + $0x1c0] sm:$0xff] %v570
  %635 = vst [vmem:[%s5 + $0x1c8] sm:$0xff] %v571
  %636 = vst [vmem:[%s5 + $0x1d0] sm:$0xff] %v572
  %637 = vst [vmem:[%s5 + $0x1d8] sm:$0xff] %v573
  %638 = vst [vmem:[%s5 + $0x1e0] sm:$0xff] %v574
  %639 = vst [vmem:[%s5 + $0x1e8] sm:$0xff] %v575
  %640 = vst [vmem:[%s5 + $0x1f0] sm:$0xff] %v576
  %641 = vst [vmem:[%s5 + $0x1f8] sm:$0xff] %v577
  // Predicated region
  $region22: #{resnext_bottleneck.7} parent=0 // pred_check
    _
  $region23: #{resnext_bottleneck.7} parent=0 // pred_check_branch
    %643 = sbr.rel (0) target = $region25
  $region24: #{resnext_bottleneck.7} parent=0 // pred_region
    _
  $region25: #{resnext_bottleneck.7} parent=0 // pred_fallthru
    _
  // Predicated region
  $region26: #{resnext_bottleneck.7} parent=0 // pred_check
    _
  $region27: #{resnext_bottleneck.7} parent=0 // pred_check_branch
    %645 = sbr.rel (0) target = $region29
  $region28: #{resnext_bottleneck.7} parent=0 // pred_region
    _
  $region29: #{resnext_bottleneck.7} parent=0 // pred_fallthru
    _

// kernel: resnext_bottleneck.6
$region0: #{resnext_bottleneck.6}
  #allocation0 [shape = 'u32[]', space=smem, size = 0x4, offset = 0x4, fixed_abs, tag = 'smem constant byte address 0x4 - core index']
  #allocation1 [shape = 'u32[144,128]{1,0:T(1,128)}', space=vmem, size = 0x12000, scoped, tag = 'internal scratch']
  %s0 = inlined_call_operand.vmem [shape: bf16[512,128], index: 0, kind: input, shape index: {}]
  %s1 = inlined_call_operand.vmem [shape: f32[2,2,128], index: 1, kind: input, shape index: {}]
  %s2 = inlined_call_operand.vmem [shape: f32[1,128], index: 2, kind: input, shape index: {}]
  %s3 = inlined_call_operand.vmem [shape: f32[1,128], index: 3, kind: input, shape index: {}]
  %s4 = inlined_call_operand.vmem [shape: bf16[128,128], index: 4, kind: input, shape index: {}]
  %s5 = inlined_call_operand.vmem [shape: bf16[512,128], index: 5, kind: output, shape index: {0}]
  %s6 = inlined_call_operand.vmem [shape: f32[1,2,128], index: 6, kind: output, shape index: {1}]
  %7 = xla_tuple %s5, %s6
  %s8 = sld [smem:[#allocation0]]
  $region42: #{resnext_bottleneck.6} parent=0
    _
  %s10 = ssub.s32 1, %s8
  %s11 = scalar_select 0, %s10, %s8
  // Predicated region
  $region2: #{resnext_bottleneck.6} parent=0 // pred_check
    _
  $region3: #{resnext_bottleneck.6} parent=0 // pred_check_branch
    %13 = sbr.rel (0) target = $region5
  $region4: #{resnext_bottleneck.6} parent=0 // pred_region
    %s14 = sadd.s32 0, 0
    %s15 = smul.u32 64, %s14
    %p16 = scmp.lt.s32.totalorder %s15, 63
    %s17 = scalar_select %p16, %s15, 63
    %s18 = smul.addr %s17, 4
    %s19 = scalar_lea.vmem %s0, %s18
    %s20 = sadd.s32 0, 0
    %s21 = smul.u32 64, %s20
  $region5: #{resnext_bottleneck.6} parent=0 // pred_fallthru
    _
  // Predicated region
  $region6: #{resnext_bottleneck.6} parent=0 // pred_check
    _
  $region7: #{resnext_bottleneck.6} parent=0 // pred_check_branch
    %23 = sbr.rel (0) target = $region9
  $region8: #{resnext_bottleneck.6} parent=0 // pred_region
    _
  $region9: #{resnext_bottleneck.6} parent=0 // pred_fallthru
    _
  // Predicated region
  $region10: #{resnext_bottleneck.6} parent=0 // pred_check
    _
  $region11: #{resnext_bottleneck.6} parent=0 // pred_check_branch
    %25 = sbr.rel (0) target = $region13
  $region12: #{resnext_bottleneck.6} parent=0 // pred_region
    _
  $region13: #{resnext_bottleneck.6} parent=0 // pred_fallthru
    _
  // Predicated region
  $region14: #{resnext_bottleneck.6} parent=0 // pred_check
    _
  $region15: #{resnext_bottleneck.6} parent=0 // pred_check_branch
    %27 = sbr.rel (0) target = $region17
  $region16: #{resnext_bottleneck.6} parent=0 // pred_region
    _
  $region17: #{resnext_bottleneck.6} parent=0 // pred_fallthru
    _
  // Predicated region
  $region18: #{resnext_bottleneck.6} parent=0 // pred_check
    _
  $region19: #{resnext_bottleneck.6} parent=0 // pred_check_branch
    %29 = sbr.rel (0) target = $region21
  $region20: #{resnext_bottleneck.6} parent=0 // pred_region
    _
  $region21: #{resnext_bottleneck.6} parent=0 // pred_fallthru
    _
  %s30 = sadd.s32 0, 0
  %s31 = smul.u32 64, %s30
  %p32 = scmp.lt.s32.totalorder %s31, 63
  %s33 = scalar_select %p32, %s31, 63
  %s34 = smul.addr %s33, 4
  %s35 = scalar_lea.vmem %s0, %s34
  %s36 = sadd.s32 0, 0
  %s37 = smul.u32 64, %s36
  %p38 = scmp.lt.s32.totalorder %s37, 63
  %s39 = scalar_select %p38, %s37, 63
  %s40 = smul.addr %s39, 4
  %s41 = scalar_lea.vmem %s5, %s40
  %s42 = sadd.s32 0, 0
  %s43 = smul.u32 64, %s42
  %p44 = scmp.lt.s32.totalorder %s43, 63
  %s45 = scalar_select %p44, %s43, 63
  %s46 = smul.addr %s45, 4
  %s47 = scalar_lea.vmem %s0, %s46
  %s48 = sadd.s32 0, 0
  %s49 = smul.u32 64, %s48
  %s50 = sadd.s32 0, 0
  %s51 = smul.u32 64, %s50
  %p52 = scmp.lt.s32.totalorder %s51, 63
  %s53 = scalar_select %p52, %s51, 63
  %s54 = smul.addr %s53, 4
  %s55 = scalar_lea.vmem %s5, %s54
  %s56 = sadd.s32 0, 0
  %s57 = smul.u32 64, %s56
  %p59 = scmp.eq.s32.totalorder 0, 0
  // Predicated region
  $region22: #{resnext_bottleneck.6} parent=0 // pred_check
    %p60 = pneg %p59
  $region23: #{resnext_bottleneck.6} parent=0 // pred_check_branch
    %62 = sbr.rel (%p60) target = $region25
  $region24: #{resnext_bottleneck.6} parent=0 // pred_region
    %63 = vst [vmem:[%s6] sm:$0x3] 0.0
  $region25: #{resnext_bottleneck.6} parent=0 // pred_fallthru
    _
  %v64 = vld [vmem:[%s1] sm:$0x3]
  %v65 = vld [vmem:[%s1 + $0x2] sm:$0x3]
  %vm66 = vcmask 1041408
  %v67 = vsel %vm66, %v64, 0.0
  %v68 = vsel %vm66, %v65, 0.0
  %v69 = vadd.f32 %v67, %v68
  %v70 = vld [vmem:[%s2] sm:$0x1]
  %v71 = vld [vmem:[%s3] sm:$0x1]
  %v72 = vrcp.pop 512.0
  %v73 = vmul.f32 %v69, %v72
  %v74 = vmul.f32 %v73, %v73
  %v76 = vrot.slane %v74, 7
  %v78 = vsub.f32 %v73, %v76
  %v79 = vmax.f32 %v78, 0.0
  %v80 = vadd.f32 %v79, 1e-05
  %v81 = vrsqrt.pop %v80
  %v84 = vunpack.c.l.s4 1966171168
  %v85 = vunpack.c.0.s8 %v84
  %v86 = vlaneseq
  %v87 = vshrl.u32 %v86, 7
  %v88 = vsub.s32 %v85, %v87
  %v89 = vrot.slane %v81, %v88
  %v90 = vcombine.high %v89, %v89
  %v92 = vunpack.c.l.s4 1966171168
  %v93 = vunpack.c.0.s8 %v92
  %v94 = vlaneseq
  %v95 = vshrl.u32 %v94, 7
  %v96 = vsub.s32 %v93, %v95
  %v97 = vrot.slane %v90, %v96
  %v99 = vmul.f32 %v70, %v97
  %v100 = vmul.f32 %v73, %v99
  %v101 = vsub.f32 %v71, %v100
  %v102 = vld [vmem:[%s47] sm:$0xf]
  %v103 = vld [vmem:[%s47 + $0x4] sm:$0xf]
  %v104 = vld [vmem:[%s47 + $0x8] sm:$0xf]
  %v105 = vld [vmem:[%s47 + $0xc] sm:$0xf]
  %v106 = vld [vmem:[%s47 + $0x10] sm:$0xf]
  %v107 = vld [vmem:[%s47 + $0x14] sm:$0xf]
  %v108 = vld [vmem:[%s47 + $0x18] sm:$0xf]
  %v109 = vld [vmem:[%s47 + $0x1c] sm:$0xf]
  %v110 = vld [vmem:[%s47 + $0x20] sm:$0xf]
  %v111 = vld [vmem:[%s47 + $0x24] sm:$0xf]
  %v112 = vld [vmem:[%s47 + $0x28] sm:$0xf]
  %v113 = vld [vmem:[%s47 + $0x2c] sm:$0xf]
  %v114 = vld [vmem:[%s47 + $0x30] sm:$0xf]
  %v115 = vld [vmem:[%s47 + $0x34] sm:$0xf]
  %v116 = vld [vmem:[%s47 + $0x38] sm:$0xf]
  %v117 = vld [vmem:[%s47 + $0x3c] sm:$0xf]
  %v118 = vld [vmem:[%s47 + $0x40] sm:$0xf]
  %v119 = vld [vmem:[%s47 + $0x44] sm:$0xf]
  %v120 = vld [vmem:[%s47 + $0x48] sm:$0xf]
  %v121 = vld [vmem:[%s47 + $0x4c] sm:$0xf]
  %v122 = vld [vmem:[%s47 + $0x50] sm:$0xf]
  %v123 = vld [vmem:[%s47 + $0x54] sm:$0xf]
  %v124 = vld [vmem:[%s47 + $0x58] sm:$0xf]
  %v125 = vld [vmem:[%s47 + $0x5c] sm:$0xf]
  %v126 = vld [vmem:[%s47 + $0x60] sm:$0xf]
  %v127 = vld [vmem:[%s47 + $0x64] sm:$0xf]
  %v128 = vld [vmem:[%s47 + $0x68] sm:$0xf]
  %v129 = vld [vmem:[%s47 + $0x6c] sm:$0xf]
  %v130 = vld [vmem:[%s47 + $0x70] sm:$0xf]
  %v131 = vld [vmem:[%s47 + $0x74] sm:$0xf]
  %v132 = vld [vmem:[%s47 + $0x78] sm:$0xf]
  %v133 = vld [vmem:[%s47 + $0x7c] sm:$0xf]
  %v134 = vld [vmem:[%s47 + $0x80] sm:$0xf]
  %v135 = vld [vmem:[%s47 + $0x84] sm:$0xf]
  %v136 = vld [vmem:[%s47 + $0x88] sm:$0xf]
  %v137 = vld [vmem:[%s47 + $0x8c] sm:$0xf]
  %v138 = vld [vmem:[%s47 + $0x90] sm:$0xf]
  %v139 = vld [vmem:[%s47 + $0x94] sm:$0xf]
  %v140 = vld [vmem:[%s47 + $0x98] sm:$0xf]
  %v141 = vld [vmem:[%s47 + $0x9c] sm:$0xf]
  %v142 = vld [vmem:[%s47 + $0xa0] sm:$0xf]
  %v143 = vld [vmem:[%s47 + $0xa4] sm:$0xf]
  %v144 = vld [vmem:[%s47 + $0xa8] sm:$0xf]
  %v145 = vld [vmem:[%s47 + $0xac] sm:$0xf]
  %v146 = vld [vmem:[%s47 + $0xb0] sm:$0xf]
  %v147 = vld [vmem:[%s47 + $0xb4] sm:$0xf]
  %v148 = vld [vmem:[%s47 + $0xb8] sm:$0xf]
  %v149 = vld [vmem:[%s47 + $0xbc] sm:$0xf]
  %v150 = vld [vmem:[%s47 + $0xc0] sm:$0xf]
  %v151 = vld [vmem:[%s47 + $0xc4] sm:$0xf]
  %v152 = vld [vmem:[%s47 + $0xc8] sm:$0xf]
  %v153 = vld [vmem:[%s47 + $0xcc] sm:$0xf]
  %v154 = vld [vmem:[%s47 + $0xd0] sm:$0xf]
  %v155 = vld [vmem:[%s47 + $0xd4] sm:$0xf]
  %v156 = vld [vmem:[%s47 + $0xd8] sm:$0xf]
  %v157 = vld [vmem:[%s47 + $0xdc] sm:$0xf]
  %v158 = vld [vmem:[%s47 + $0xe0] sm:$0xf]
  %v159 = vld [vmem:[%s47 + $0xe4] sm:$0xf]
  %v160 = vld [vmem:[%s47 + $0xe8] sm:$0xf]
  %v161 = vld [vmem:[%s47 + $0xec] sm:$0xf]
  %v162 = vld [vmem:[%s47 + $0xf0] sm:$0xf]
  %v163 = vld [vmem:[%s47 + $0xf4] sm:$0xf]
  %v164 = vld [vmem:[%s47 + $0xf8] sm:$0xf]
  %v165 = vld [vmem:[%s47 + $0xfc] sm:$0xf]
  %v166 = vunpack.c.l.bf16 %v102
  %v167 = vunpack.c.l.bf16 %v103
  %v168 = vunpack.c.l.bf16 %v104
  %v169 = vunpack.c.l.bf16 %v105
  %v170 = vunpack.c.l.bf16 %v106
  %v171 = vunpack.c.l.bf16 %v107
  %v172 = vunpack.c.l.bf16 %v108
  %v173 = vunpack.c.l.bf16 %v109
  %v174 = vunpack.c.l.bf16 %v110
  %v175 = vunpack.c.l.bf16 %v111
  %v176 = vunpack.c.l.bf16 %v112
  %v177 = vunpack.c.l.bf16 %v113
  %v178 = vunpack.c.l.bf16 %v114
  %v179 = vunpack.c.l.bf16 %v115
  %v180 = vunpack.c.l.bf16 %v116
  %v181 = vunpack.c.l.bf16 %v117
  %v182 = vunpack.c.l.bf16 %v118
  %v183 = vunpack.c.l.bf16 %v119
  %v184 = vunpack.c.l.bf16 %v120
  %v185 = vunpack.c.l.bf16 %v121
  %v186 = vunpack.c.l.bf16 %v122
  %v187 = vunpack.c.l.bf16 %v123
  %v188 = vunpack.c.l.bf16 %v124
  %v189 = vunpack.c.l.bf16 %v125
  %v190 = vunpack.c.l.bf16 %v126
  %v191 = vunpack.c.l.bf16 %v127
  %v192 = vunpack.c.l.bf16 %v128
  %v193 = vunpack.c.l.bf16 %v129
  %v194 = vunpack.c.l.bf16 %v130
  %v195 = vunpack.c.l.bf16 %v131
  %v196 = vunpack.c.l.bf16 %v132
  %v197 = vunpack.c.l.bf16 %v133
  %v198 = vunpack.c.l.bf16 %v134
  %v199 = vunpack.c.l.bf16 %v135
  %v200 = vunpack.c.l.bf16 %v136
  %v201 = vunpack.c.l.bf16 %v137
  %v202 = vunpack.c.l.bf16 %v138
  %v203 = vunpack.c.l.bf16 %v139
  %v204 = vunpack.c.l.bf16 %v140
  %v205 = vunpack.c.l.bf16 %v141
  %v206 = vunpack.c.l.bf16 %v142
  %v207 = vunpack.c.l.bf16 %v143
  %v208 = vunpack.c.l.bf16 %v144
  %v209 = vunpack.c.l.bf16 %v145
  %v210 = vunpack.c.l.bf16 %v146
  %v211 = vunpack.c.l.bf16 %v147
  %v212 = vunpack.c.l.bf16 %v148
  %v213 = vunpack.c.l.bf16 %v149
  %v214 = vunpack.c.l.bf16 %v150
  %v215 = vunpack.c.l.bf16 %v151
  %v216 = vunpack.c.l.bf16 %v152
  %v217 = vunpack.c.l.bf16 %v153
  %v218 = vunpack.c.l.bf16 %v154
  %v219 = vunpack.c.l.bf16 %v155
  %v220 = vunpack.c.l.bf16 %v156
  %v221 = vunpack.c.l.bf16 %v157
  %v222 = vunpack.c.l.bf16 %v158
  %v223 = vunpack.c.l.bf16 %v159
  %v224 = vunpack.c.l.bf16 %v160
  %v225 = vunpack.c.l.bf16 %v161
  %v226 = vunpack.c.l.bf16 %v162
  %v227 = vunpack.c.l.bf16 %v163
  %v228 = vunpack.c.l.bf16 %v164
  %v229 = vunpack.c.l.bf16 %v165
  %v231 = vlaneseq
  %v232 = vshrl.u32 %v231, 7
  %v233 = vsub.s32 0, %v232
  %v234 = vrot.slane %v99, %v233
  %v236 = vmul.f32 %v166, %v234
  %v237 = vmul.f32 %v167, %v234
  %v238 = vmul.f32 %v168, %v234
  %v239 = vmul.f32 %v169, %v234
  %v240 = vmul.f32 %v170, %v234
  %v241 = vmul.f32 %v171, %v234
  %v242 = vmul.f32 %v172, %v234
  %v243 = vmul.f32 %v173, %v234
  %v244 = vmul.f32 %v174, %v234
  %v245 = vmul.f32 %v175, %v234
  %v246 = vmul.f32 %v176, %v234
  %v247 = vmul.f32 %v177, %v234
  %v248 = vmul.f32 %v178, %v234
  %v249 = vmul.f32 %v179, %v234
  %v250 = vmul.f32 %v180, %v234
  %v251 = vmul.f32 %v181, %v234
  %v252 = vmul.f32 %v182, %v234
  %v253 = vmul.f32 %v183, %v234
  %v254 = vmul.f32 %v184, %v234
  %v255 = vmul.f32 %v185, %v234
  %v256 = vmul.f32 %v186, %v234
  %v257 = vmul.f32 %v187, %v234
  %v258 = vmul.f32 %v188, %v234
  %v259 = vmul.f32 %v189, %v234
  %v260 = vmul.f32 %v190, %v234
  %v261 = vmul.f32 %v191, %v234
  %v262 = vmul.f32 %v192, %v234
  %v263 = vmul.f32 %v193, %v234
  %v264 = vmul.f32 %v194, %v234
  %v265 = vmul.f32 %v195, %v234
  %v266 = vmul.f32 %v196, %v234
  %v267 = vmul.f32 %v197, %v234
  %v268 = vmul.f32 %v198, %v234
  %v269 = vmul.f32 %v199, %v234
  %v270 = vmul.f32 %v200, %v234
  %v271 = vmul.f32 %v201, %v234
  %v272 = vmul.f32 %v202, %v234
  %v273 = vmul.f32 %v203, %v234
  %v274 = vmul.f32 %v204, %v234
  %v275 = vmul.f32 %v205, %v234
  %v276 = vmul.f32 %v206, %v234
  %v277 = vmul.f32 %v207, %v234
  %v278 = vmul.f32 %v208, %v234
  %v279 = vmul.f32 %v209, %v234
  %v280 = vmul.f32 %v210, %v234
  %v281 = vmul.f32 %v211, %v234
  %v282 = vmul.f32 %v212, %v234
  %v283 = vmul.f32 %v213, %v234
  %v284 = vmul.f32 %v214, %v234
  %v285 = vmul.f32 %v215, %v234
  %v286 = vmul.f32 %v216, %v234
  %v287 = vmul.f32 %v217, %v234
  %v288 = vmul.f32 %v218, %v234
  %v289 = vmul.f32 %v219, %v234
  %v290 = vmul.f32 %v220, %v234
  %v291 = vmul.f32 %v221, %v234
  %v292 = vmul.f32 %v222, %v234
  %v293 = vmul.f32 %v223, %v234
  %v294 = vmul.f32 %v224, %v234
  %v295 = vmul.f32 %v225, %v234
  %v296 = vmul.f32 %v226, %v234
  %v297 = vmul.f32 %v227, %v234
  %v298 = vmul.f32 %v228, %v234
  %v299 = vmul.f32 %v229, %v234
  %v301 = vlaneseq
  %v302 = vshrl.u32 %v301, 7
  %v303 = vsub.s32 0, %v302
  %v304 = vrot.slane %v101, %v303
  %v306 = vadd.f32 %v236, %v304
  %v307 = vadd.f32 %v237, %v304
  %v308 = vadd.f32 %v238, %v304
  %v309 = vadd.f32 %v239, %v304
  %v310 = vadd.f32 %v240, %v304
  %v311 = vadd.f32 %v241, %v304
  %v312 = vadd.f32 %v242, %v304
  %v313 = vadd.f32 %v243, %v304
  %v314 = vadd.f32 %v244, %v304
  %v315 = vadd.f32 %v245, %v304
  %v316 = vadd.f32 %v246, %v304
  %v317 = vadd.f32 %v247, %v304
  %v318 = vadd.f32 %v248, %v304
  %v319 = vadd.f32 %v249, %v304
  %v320 = vadd.f32 %v250, %v304
  %v321 = vadd.f32 %v251, %v304
  %v322 = vadd.f32 %v252, %v304
  %v323 = vadd.f32 %v253, %v304
  %v324 = vadd.f32 %v254, %v304
  %v325 = vadd.f32 %v255, %v304
  %v326 = vadd.f32 %v256, %v304
  %v327 = vadd.f32 %v257, %v304
  %v328 = vadd.f32 %v258, %v304
  %v329 = vadd.f32 %v259, %v304
  %v330 = vadd.f32 %v260, %v304
  %v331 = vadd.f32 %v261, %v304
  %v332 = vadd.f32 %v262, %v304
  %v333 = vadd.f32 %v263, %v304
  %v334 = vadd.f32 %v264, %v304
  %v335 = vadd.f32 %v265, %v304
  %v336 = vadd.f32 %v266, %v304
  %v337 = vadd.f32 %v267, %v304
  %v338 = vadd.f32 %v268, %v304
  %v339 = vadd.f32 %v269, %v304
  %v340 = vadd.f32 %v270, %v304
  %v341 = vadd.f32 %v271, %v304
  %v342 = vadd.f32 %v272, %v304
  %v343 = vadd.f32 %v273, %v304
  %v344 = vadd.f32 %v274, %v304
  %v345 = vadd.f32 %v275, %v304
  %v346 = vadd.f32 %v276, %v304
  %v347 = vadd.f32 %v277, %v304
  %v348 = vadd.f32 %v278, %v304
  %v349 = vadd.f32 %v279, %v304
  %v350 = vadd.f32 %v280, %v304
  %v351 = vadd.f32 %v281, %v304
  %v352 = vadd.f32 %v282, %v304
  %v353 = vadd.f32 %v283, %v304
  %v354 = vadd.f32 %v284, %v304
  %v355 = vadd.f32 %v285, %v304
  %v356 = vadd.f32 %v286, %v304
  %v357 = vadd.f32 %v287, %v304
  %v358 = vadd.f32 %v288, %v304
  %v359 = vadd.f32 %v289, %v304
  %v360 = vadd.f32 %v290, %v304
  %v361 = vadd.f32 %v291, %v304
  %v362 = vadd.f32 %v292, %v304
  %v363 = vadd.f32 %v293, %v304
  %v364 = vadd.f32 %v294, %v304
  %v365 = vadd.f32 %v295, %v304
  %v366 = vadd.f32 %v296, %v304
  %v367 = vadd.f32 %v297, %v304
  %v368 = vadd.f32 %v298, %v304
  %v369 = vadd.f32 %v299, %v304
  %v370 = vmax.f32 %v306, 0.0
  %v371 = vmax.f32 %v307, 0.0
  %v372 = vmax.f32 %v308, 0.0
  %v373 = vmax.f32 %v309, 0.0
  %v374 = vmax.f32 %v310, 0.0
  %v375 = vmax.f32 %v311, 0.0
  %v376 = vmax.f32 %v312, 0.0
  %v377 = vmax.f32 %v313, 0.0
  %v378 = vmax.f32 %v314, 0.0
  %v379 = vmax.f32 %v315, 0.0
  %v380 = vmax.f32 %v316, 0.0
  %v381 = vmax.f32 %v317, 0.0
  %v382 = vmax.f32 %v318, 0.0
  %v383 = vmax.f32 %v319, 0.0
  %v384 = vmax.f32 %v320, 0.0
  %v385 = vmax.f32 %v321, 0.0
  %v386 = vmax.f32 %v322, 0.0
  %v387 = vmax.f32 %v323, 0.0
  %v388 = vmax.f32 %v324, 0.0
  %v389 = vmax.f32 %v325, 0.0
  %v390 = vmax.f32 %v326, 0.0
  %v391 = vmax.f32 %v327, 0.0
  %v392 = vmax.f32 %v328, 0.0
  %v393 = vmax.f32 %v329, 0.0
  %v394 = vmax.f32 %v330, 0.0
  %v395 = vmax.f32 %v331, 0.0
  %v396 = vmax.f32 %v332, 0.0
  %v397 = vmax.f32 %v333, 0.0
  %v398 = vmax.f32 %v334, 0.0
  %v399 = vmax.f32 %v335, 0.0
  %v400 = vmax.f32 %v336, 0.0
  %v401 = vmax.f32 %v337, 0.0
  %v402 = vmax.f32 %v338, 0.0
  %v403 = vmax.f32 %v339, 0.0
  %v404 = vmax.f32 %v340, 0.0
  %v405 = vmax.f32 %v341, 0.0
  %v406 = vmax.f32 %v342, 0.0
  %v407 = vmax.f32 %v343, 0.0
  %v408 = vmax.f32 %v344, 0.0
  %v409 = vmax.f32 %v345, 0.0
  %v410 = vmax.f32 %v346, 0.0
  %v411 = vmax.f32 %v347, 0.0
  %v412 = vmax.f32 %v348, 0.0
  %v413 = vmax.f32 %v349, 0.0
  %v414 = vmax.f32 %v350, 0.0
  %v415 = vmax.f32 %v351, 0.0
  %v416 = vmax.f32 %v352, 0.0
  %v417 = vmax.f32 %v353, 0.0
  %v418 = vmax.f32 %v354, 0.0
  %v419 = vmax.f32 %v355, 0.0
  %v420 = vmax.f32 %v356, 0.0
  %v421 = vmax.f32 %v357, 0.0
  %v422 = vmax.f32 %v358, 0.0
  %v423 = vmax.f32 %v359, 0.0
  %v424 = vmax.f32 %v360, 0.0
  %v425 = vmax.f32 %v361, 0.0
  %v426 = vmax.f32 %v362, 0.0
  %v427 = vmax.f32 %v363, 0.0
  %v428 = vmax.f32 %v364, 0.0
  %v429 = vmax.f32 %v365, 0.0
  %v430 = vmax.f32 %v366, 0.0
  %v431 = vmax.f32 %v367, 0.0
  %v432 = vmax.f32 %v368, 0.0
  %v433 = vmax.f32 %v369, 0.0
  %v434 = vpack.c.bf16 %v371, %v370
  %v435 = vpack.c.bf16 %v373, %v372
  %v436 = vpack.c.bf16 %v375, %v374
  %v437 = vpack.c.bf16 %v377, %v376
  %v438 = vpack.c.bf16 %v379, %v378
  %v439 = vpack.c.bf16 %v381, %v380
  %v440 = vpack.c.bf16 %v383, %v382
  %v441 = vpack.c.bf16 %v385, %v384
  %v442 = vpack.c.bf16 %v387, %v386
  %v443 = vpack.c.bf16 %v389, %v388
  %v444 = vpack.c.bf16 %v391, %v390
  %v445 = vpack.c.bf16 %v393, %v392
  %v446 = vpack.c.bf16 %v395, %v394
  %v447 = vpack.c.bf16 %v397, %v396
  %v448 = vpack.c.bf16 %v399, %v398
  %v449 = vpack.c.bf16 %v401, %v400
  %v450 = vpack.c.bf16 %v403, %v402
  %v451 = vpack.c.bf16 %v405, %v404
  %v452 = vpack.c.bf16 %v407, %v406
  %v453 = vpack.c.bf16 %v409, %v408
  %v454 = vpack.c.bf16 %v411, %v410
  %v455 = vpack.c.bf16 %v413, %v412
  %v456 = vpack.c.bf16 %v415, %v414
  %v457 = vpack.c.bf16 %v417, %v416
  %v458 = vpack.c.bf16 %v419, %v418
  %v459 = vpack.c.bf16 %v421, %v420
  %v460 = vpack.c.bf16 %v423, %v422
  %v461 = vpack.c.bf16 %v425, %v424
  %v462 = vpack.c.bf16 %v427, %v426
  %v463 = vpack.c.bf16 %v429, %v428
  %v464 = vpack.c.bf16 %v431, %v430
  %v465 = vpack.c.bf16 %v433, %v432
  %v466 = vld [vmem:[%s4] sm:$0xf]
  %v467 = vld [vmem:[%s4 + $0x4] sm:$0xf]
  %v468 = vld [vmem:[%s4 + $0x8] sm:$0xf]
  %v469 = vld [vmem:[%s4 + $0xc] sm:$0xf]
  %v470 = vld [vmem:[%s4 + $0x10] sm:$0xf]
  %v471 = vld [vmem:[%s4 + $0x14] sm:$0xf]
  %v472 = vld [vmem:[%s4 + $0x18] sm:$0xf]
  %v473 = vld [vmem:[%s4 + $0x1c] sm:$0xf]
  %v474 = vld [vmem:[%s4 + $0x20] sm:$0xf]
  %v475 = vld [vmem:[%s4 + $0x24] sm:$0xf]
  %v476 = vld [vmem:[%s4 + $0x28] sm:$0xf]
  %v477 = vld [vmem:[%s4 + $0x2c] sm:$0xf]
  %v478 = vld [vmem:[%s4 + $0x30] sm:$0xf]
  %v479 = vld [vmem:[%s4 + $0x34] sm:$0xf]
  %v480 = vld [vmem:[%s4 + $0x38] sm:$0xf]
  %v481 = vld [vmem:[%s4 + $0x3c] sm:$0xf]
  %v498 = vunpack.c.l.b16 %v466
  %v499 = vunpack.c.l.b16 %v467
  %v500 = vunpack.c.l.b16 %v468
  %v501 = vunpack.c.l.b16 %v469
  %v502 = vunpack.c.l.b16 %v470
  %v503 = vunpack.c.l.b16 %v471
  %v504 = vunpack.c.l.b16 %v472
  %v505 = vunpack.c.l.b16 %v473
  %v506 = vunpack.c.l.b16 %v474
  %v507 = vunpack.c.l.b16 %v475
  %v508 = vunpack.c.l.b16 %v476
  %v509 = vunpack.c.l.b16 %v477
  %v510 = vunpack.c.l.b16 %v478
  %v511 = vunpack.c.l.b16 %v479
  %v512 = vunpack.c.l.b16 %v480
  %v513 = vunpack.c.l.b16 %v481
  %v514 = vpack.c.b16 %v499, %v498
  %v515 = vpack.c.b16 %v501, %v500
  %v516 = vpack.c.b16 %v503, %v502
  %v517 = vpack.c.b16 %v505, %v504
  %v518 = vpack.c.b16 %v507, %v506
  %v519 = vpack.c.b16 %v509, %v508
  %v520 = vpack.c.b16 %v511, %v510
  %v521 = vpack.c.b16 %v513, %v512
  %530 = vmatprep.subr.bf16.mxu0 0
  %531 = vmatpush1.bf16.msra.mxu0 %v521
  %532 = vmatprep.subr.bf16.mxu0 0
  %533 = vmatpush1.bf16.msra.mxu0 %v520
  %534 = vmatprep.subr.bf16.mxu0 0
  %535 = vmatpush1.bf16.msra.mxu0 %v519
  %536 = vmatprep.subr.bf16.mxu0 0
  %537 = vmatpush1.bf16.msra.mxu0 %v518
  %538 = vmatprep.subr.bf16.mxu0 0
  %539 = vmatpush1.bf16.msra.mxu0 %v517
  %540 = vmatprep.subr.bf16.mxu0 0
  %541 = vmatpush1.bf16.msra.mxu0 %v516
  %542 = vmatprep.subr.bf16.mxu0 0
  %543 = vmatpush1.bf16.msra.mxu0 %v515
  %544 = vmatprep.subr.bf16.mxu0 0
  %545 = vmatpush1.bf16.msra.mxu0 %v514
  %546 = vmatprep.subr.bf16.mxu0 0
  %547 = vmatpush2.bf16.msra.mxu0 0
  %548 = vmatprep.subr.bf16.mxu0 0
  %549 = vmatpush2.bf16.msra.mxu0 0
  %550 = vmatprep.subr.bf16.mxu0 0
  %551 = vmatpush2.bf16.msra.mxu0 0
  %552 = vmatprep.subr.bf16.mxu0 0
  %553 = vmatpush2.bf16.msra.mxu0 0
  %554 = vmatprep.subr.bf16.mxu0 0
  %555 = vmatpush2.bf16.msra.mxu0 0
  %556 = vmatprep.subr.bf16.mxu0 0
  %557 = vmatpush2.bf16.msra.mxu0 0
  %558 = vmatprep.subr.bf16.mxu0 0
  %559 = vmatpush2.bf16.msra.mxu0 0
  %560 = vmatprep.subr.bf16.mxu0 0
  %561 = vmatpush2.bf16.msra.mxu0 0
  %562 = vmatprep.mubr.bf16.mxu0 0
  %563 = vmatmul.mubr.bf16.gmra.mxu0 %v434
  %v564 = vpop.f32.mrf.mxu0
  %v565 = vadd.f32 0.0, %v564
  %v566 = vpop.f32.mrf.mxu0
  %v567 = vpop.f32.mrf.mxu0
  %v568 = vadd.f32 0.0, %v567
  %v569 = vpop.f32.mrf.mxu0
  %570 = vmatprep.mubr.bf16.mxu0 0
  %571 = vmatmul.mubr.bf16.gmra.mxu0 %v435
  %v572 = vpop.f32.mrf.mxu0
  %v573 = vadd.f32 0.0, %v572
  %v574 = vpop.f32.mrf.mxu0
  %v575 = vpop.f32.mrf.mxu0
  %v576 = vadd.f32 0.0, %v575
  %v577 = vpop.f32.mrf.mxu0
  %578 = vmatprep.mubr.bf16.mxu0 0
  %579 = vmatmul.mubr.bf16.gmra.mxu0 %v436
  %v580 = vpop.f32.mrf.mxu0
  %v581 = vadd.f32 0.0, %v580
  %v582 = vpop.f32.mrf.mxu0
  %v583 = vpop.f32.mrf.mxu0
  %v584 = vadd.f32 0.0, %v583
  %v585 = vpop.f32.mrf.mxu0
  %586 = vmatprep.mubr.bf16.mxu0 0
  %587 = vmatmul.mubr.bf16.gmra.mxu0 %v437
  %v588 = vpop.f32.mrf.mxu0
  %v589 = vadd.f32 0.0, %v588
  %v590 = vpop.f32.mrf.mxu0
  %v591 = vpop.f32.mrf.mxu0
  %v592 = vadd.f32 0.0, %v591
  %v593 = vpop.f32.mrf.mxu0
  %594 = vmatprep.mubr.bf16.mxu0 0
  %595 = vmatmul.mubr.bf16.gmra.mxu0 %v438
  %v596 = vpop.f32.mrf.mxu0
  %v597 = vadd.f32 0.0, %v596
  %v598 = vpop.f32.mrf.mxu0
  %v599 = vpop.f32.mrf.mxu0
  %v600 = vadd.f32 0.0, %v599
  %v601 = vpop.f32.mrf.mxu0
  %602 = vmatprep.mubr.bf16.mxu0 0
  %603 = vmatmul.mubr.bf16.gmra.mxu0 %v439
  %v604 = vpop.f32.mrf.mxu0
  %v605 = vadd.f32 0.0, %v604
  %v606 = vpop.f32.mrf.mxu0
  %v607 = vpop.f32.mrf.mxu0
  %v608 = vadd.f32 0.0, %v607
  %v609 = vpop.f32.mrf.mxu0
  %610 = vmatprep.mubr.bf16.mxu0 0
  %611 = vmatmul.mubr.bf16.gmra.mxu0 %v440
  %v612 = vpop.f32.mrf.mxu0
  %v613 = vadd.f32 0.0, %v612
  %v614 = vpop.f32.mrf.mxu0
  %v615 = vpop.f32.mrf.mxu0
  %v616 = vadd.f32 0.0, %v615
  %v617 = vpop.f32.mrf.mxu0
  %618 = vmatprep.mubr.bf16.mxu0 0
  %619 = vmatmul.mubr.bf16.gmra.mxu0 %v441
  %v620 = vpop.f32.mrf.mxu0
  %v621 = vadd.f32 0.0, %v620
  %v622 = vpop.f32.mrf.mxu0
  %v623 = vpop.f32.mrf.mxu0
  %v624 = vadd.f32 0.0, %v623
  %v625 = vpop.f32.mrf.mxu0
  %626 = vmatprep.mubr.bf16.mxu0 0
  %627 = vmatmul.mubr.bf16.gmra.mxu0 %v442
  %v628 = vpop.f32.mrf.mxu0
  %v629 = vadd.f32 0.0, %v628
  %v630 = vpop.f32.mrf.mxu0
  %v631 = vpop.f32.mrf.mxu0
  %v632 = vadd.f32 0.0, %v631
  %v633 = vpop.f32.mrf.mxu0
  %634 = vmatprep.mubr.bf16.mxu0 0
  %635 = vmatmul.mubr.bf16.gmra.mxu0 %v443
  %v636 = vpop.f32.mrf.mxu0
  %v637 = vadd.f32 0.0, %v636
  %v638 = vpop.f32.mrf.mxu0
  %v639 = vpop.f32.mrf.mxu0
  %v640 = vadd.f32 0.0, %v639
  %v641 = vpop.f32.mrf.mxu0
  %642 = vmatprep.mubr.bf16.mxu0 0
  %643 = vmatmul.mubr.bf16.gmra.mxu0 %v444
  %v644 = vpop.f32.mrf.mxu0
  %v645 = vadd.f32 0.0, %v644
  %v646 = vpop.f32.mrf.mxu0
  %v647 = vpop.f32.mrf.mxu0
  %v648 = vadd.f32 0.0, %v647
  %v649 = vpop.f32.mrf.mxu0
  %650 = vmatprep.mubr.bf16.mxu0 0
  %651 = vmatmul.mubr.bf16.gmra.mxu0 %v445
  %v652 = vpop.f32.mrf.mxu0
  %v653 = vadd.f32 0.0, %v652
  %v654 = vpop.f32.mrf.mxu0
  %v655 = vpop.f32.mrf.mxu0
  %v656 = vadd.f32 0.0, %v655
  %v657 = vpop.f32.mrf.mxu0
  %658 = vmatprep.mubr.bf16.mxu0 0
  %659 = vmatmul.mubr.bf16.gmra.mxu0 %v446
  %v660 = vpop.f32.mrf.mxu0
  %v661 = vadd.f32 0.0, %v660
  %v662 = vpop.f32.mrf.mxu0
  %v663 = vpop.f32.mrf.mxu0
  %v664 = vadd.f32 0.0, %v663
  %v665 = vpop.f32.mrf.mxu0
  %666 = vmatprep.mubr.bf16.mxu0 0
  %667 = vmatmul.mubr.bf16.gmra.mxu0 %v447
  %v668 = vpop.f32.mrf.mxu0
  %v669 = vadd.f32 0.0, %v668
  %v670 = vpop.f32.mrf.mxu0
  %v671 = vpop.f32.mrf.mxu0
  %v672 = vadd.f32 0.0, %v671
  %v673 = vpop.f32.mrf.mxu0
  %674 = vmatprep.mubr.bf16.mxu0 0
  %675 = vmatmul.mubr.bf16.gmra.mxu0 %v448
  %v676 = vpop.f32.mrf.mxu0
  %v677 = vadd.f32 0.0, %v676
  %v678 = vpop.f32.mrf.mxu0
  %v679 = vpop.f32.mrf.mxu0
  %v680 = vadd.f32 0.0, %v679
  %v681 = vpop.f32.mrf.mxu0
  %682 = vmatprep.mubr.bf16.mxu0 0
  %683 = vmatmul.mubr.bf16.gmra.mxu0 %v449
  %v684 = vpop.f32.mrf.mxu0
  %v685 = vadd.f32 0.0, %v684
  %v686 = vpop.f32.mrf.mxu0
  %v687 = vpop.f32.mrf.mxu0
  %v688 = vadd.f32 0.0, %v687
  %v689 = vpop.f32.mrf.mxu0
  %690 = vmatprep.mubr.bf16.mxu0 0
  %691 = vmatmul.mubr.bf16.gmra.mxu0 %v450
  %v692 = vpop.f32.mrf.mxu0
  %v693 = vadd.f32 0.0, %v692
  %v694 = vpop.f32.mrf.mxu0
  %v695 = vpop.f32.mrf.mxu0
  %v696 = vadd.f32 0.0, %v695
  %v697 = vpop.f32.mrf.mxu0
  %698 = vmatprep.mubr.bf16.mxu0 0
  %699 = vmatmul.mubr.bf16.gmra.mxu0 %v451
  %v700 = vpop.f32.mrf.mxu0
  %v701 = vadd.f32 0.0, %v700
  %v702 = vpop.f32.mrf.mxu0
  %v703 = vpop.f32.mrf.mxu0
  %v704 = vadd.f32 0.0, %v703
  %v705 = vpop.f32.mrf.mxu0
  %706 = vmatprep.mubr.bf16.mxu0 0
  %707 = vmatmul.mubr.bf16.gmra.mxu0 %v452
  %v708 = vpop.f32.mrf.mxu0
  %v709 = vadd.f32 0.0, %v708
  %v710 = vpop.f32.mrf.mxu0
  %v711 = vpop.f32.mrf.mxu0
  %v712 = vadd.f32 0.0, %v711
  %v713 = vpop.f32.mrf.mxu0
  %714 = vmatprep.mubr.bf16.mxu0 0
  %715 = vmatmul.mubr.bf16.gmra.mxu0 %v453
  %v716 = vpop.f32.mrf.mxu0
  %v717 = vadd.f32 0.0, %v716
  %v718 = vpop.f32.mrf.mxu0
  %v719 = vpop.f32.mrf.mxu0
  %v720 = vadd.f32 0.0, %v719
  %v721 = vpop.f32.mrf.mxu0
  %722 = vmatprep.mubr.bf16.mxu0 0
  %723 = vmatmul.mubr.bf16.gmra.mxu0 %v454
  %v724 = vpop.f32.mrf.mxu0
  %v725 = vadd.f32 0.0, %v724
  %v726 = vpop.f32.mrf.mxu0
  %v727 = vpop.f32.mrf.mxu0
  %v728 = vadd.f32 0.0, %v727
  %v729 = vpop.f32.mrf.mxu0
  %730 = vmatprep.mubr.bf16.mxu0 0
  %731 = vmatmul.mubr.bf16.gmra.mxu0 %v455
  %v732 = vpop.f32.mrf.mxu0
  %v733 = vadd.f32 0.0, %v732
  %v734 = vpop.f32.mrf.mxu0
  %v735 = vpop.f32.mrf.mxu0
  %v736 = vadd.f32 0.0, %v735
  %v737 = vpop.f32.mrf.mxu0
  %738 = vmatprep.mubr.bf16.mxu0 0
  %739 = vmatmul.mubr.bf16.gmra.mxu0 %v456
  %v740 = vpop.f32.mrf.mxu0
  %v741 = vadd.f32 0.0, %v740
  %v742 = vpop.f32.mrf.mxu0
  %v743 = vpop.f32.mrf.mxu0
  %v744 = vadd.f32 0.0, %v743
  %v745 = vpop.f32.mrf.mxu0
  %746 = vmatprep.mubr.bf16.mxu0 0
  %747 = vmatmul.mubr.bf16.gmra.mxu0 %v457
  %v748 = vpop.f32.mrf.mxu0
  %v749 = vadd.f32 0.0, %v748
  %v750 = vpop.f32.mrf.mxu0
  %v751 = vpop.f32.mrf.mxu0
  %v752 = vadd.f32 0.0, %v751
  %v753 = vpop.f32.mrf.mxu0
  %754 = vmatprep.mubr.bf16.mxu0 0
  %755 = vmatmul.mubr.bf16.gmra.mxu0 %v458
  %v756 = vpop.f32.mrf.mxu0
  %v757 = vadd.f32 0.0, %v756
  %v758 = vpop.f32.mrf.mxu0
  %v759 = vpop.f32.mrf.mxu0
  %v760 = vadd.f32 0.0, %v759
  %v761 = vpop.f32.mrf.mxu0
  %762 = vmatprep.mubr.bf16.mxu0 0
  %763 = vmatmul.mubr.bf16.gmra.mxu0 %v459
  %v764 = vpop.f32.mrf.mxu0
  %v765 = vadd.f32 0.0, %v764
  %v766 = vpop.f32.mrf.mxu0
  %v767 = vpop.f32.mrf.mxu0
  %v768 = vadd.f32 0.0, %v767
  %v769 = vpop.f32.mrf.mxu0
  %770 = vmatprep.mubr.bf16.mxu0 0
  %771 = vmatmul.mubr.bf16.gmra.mxu0 %v460
  %v772 = vpop.f32.mrf.mxu0
  %v773 = vadd.f32 0.0, %v772
  %v774 = vpop.f32.mrf.mxu0
  %v775 = vpop.f32.mrf.mxu0
  %v776 = vadd.f32 0.0, %v775
  %v777 = vpop.f32.mrf.mxu0
  %778 = vmatprep.mubr.bf16.mxu0 0
  %779 = vmatmul.mubr.bf16.gmra.mxu0 %v461
  %v780 = vpop.f32.mrf.mxu0
  %v781 = vadd.f32 0.0, %v780
  %v782 = vpop.f32.mrf.mxu0
  %v783 = vpop.f32.mrf.mxu0
  %v784 = vadd.f32 0.0, %v783
  %v785 = vpop.f32.mrf.mxu0
  %786 = vmatprep.mubr.bf16.mxu0 0
  %787 = vmatmul.mubr.bf16.gmra.mxu0 %v462
  %v788 = vpop.f32.mrf.mxu0
  %v789 = vadd.f32 0.0, %v788
  %v790 = vpop.f32.mrf.mxu0
  %v791 = vpop.f32.mrf.mxu0
  %v792 = vadd.f32 0.0, %v791
  %v793 = vpop.f32.mrf.mxu0
  %794 = vmatprep.mubr.bf16.mxu0 0
  %795 = vmatmul.mubr.bf16.gmra.mxu0 %v463
  %v796 = vpop.f32.mrf.mxu0
  %v797 = vadd.f32 0.0, %v796
  %v798 = vpop.f32.mrf.mxu0
  %v799 = vpop.f32.mrf.mxu0
  %v800 = vadd.f32 0.0, %v799
  %v801 = vpop.f32.mrf.mxu0
  %802 = vmatprep.mubr.bf16.mxu0 0
  %803 = vmatmul.mubr.bf16.gmra.mxu0 %v464
  %v804 = vpop.f32.mrf.mxu0
  %v805 = vadd.f32 0.0, %v804
  %v806 = vpop.f32.mrf.mxu0
  %v807 = vpop.f32.mrf.mxu0
  %v808 = vadd.f32 0.0, %v807
  %v809 = vpop.f32.mrf.mxu0
  %810 = vmatprep.mubr.bf16.mxu0 0
  %811 = vmatmul.mubr.bf16.gmra.mxu0 %v465
  %v812 = vpop.f32.mrf.mxu0
  %v813 = vadd.f32 0.0, %v812
  %v814 = vpop.f32.mrf.mxu0
  %v815 = vpop.f32.mrf.mxu0
  %v816 = vadd.f32 0.0, %v815
  %v817 = vpop.f32.mrf.mxu0
  %818 = vdwg.mxu0
  %v819 = vpack.c.bf16 %v568, %v565
  %v820 = vpack.c.bf16 %v576, %v573
  %v821 = vpack.c.bf16 %v584, %v581
  %v822 = vpack.c.bf16 %v592, %v589
  %v823 = vpack.c.bf16 %v600, %v597
  %v824 = vpack.c.bf16 %v608, %v605
  %v825 = vpack.c.bf16 %v616, %v613
  %v826 = vpack.c.bf16 %v624, %v621
  %v827 = vpack.c.bf16 %v632, %v629
  %v828 = vpack.c.bf16 %v640, %v637
  %v829 = vpack.c.bf16 %v648, %v645
  %v830 = vpack.c.bf16 %v656, %v653
  %v831 = vpack.c.bf16 %v664, %v661
  %v832 = vpack.c.bf16 %v672, %v669
  %v833 = vpack.c.bf16 %v680, %v677
  %v834 = vpack.c.bf16 %v688, %v685
  %v835 = vpack.c.bf16 %v696, %v693
  %v836 = vpack.c.bf16 %v704, %v701
  %v837 = vpack.c.bf16 %v712, %v709
  %v838 = vpack.c.bf16 %v720, %v717
  %v839 = vpack.c.bf16 %v728, %v725
  %v840 = vpack.c.bf16 %v736, %v733
  %v841 = vpack.c.bf16 %v744, %v741
  %v842 = vpack.c.bf16 %v752, %v749
  %v843 = vpack.c.bf16 %v760, %v757
  %v844 = vpack.c.bf16 %v768, %v765
  %v845 = vpack.c.bf16 %v776, %v773
  %v846 = vpack.c.bf16 %v784, %v781
  %v847 = vpack.c.bf16 %v792, %v789
  %v848 = vpack.c.bf16 %v800, %v797
  %v849 = vpack.c.bf16 %v808, %v805
  %v850 = vpack.c.bf16 %v816, %v813
  %v883 = vunpack.c.l.b16 %v819
  %v884 = vunpack.c.h.b16 %v819
  %v885 = vunpack.c.l.b16 %v820
  %v886 = vunpack.c.h.b16 %v820
  %v887 = vunpack.c.l.b16 %v821
  %v888 = vunpack.c.h.b16 %v821
  %v889 = vunpack.c.l.b16 %v822
  %v890 = vunpack.c.h.b16 %v822
  %v891 = vunpack.c.l.b16 %v823
  %v892 = vunpack.c.h.b16 %v823
  %v893 = vunpack.c.l.b16 %v824
  %v894 = vunpack.c.h.b16 %v824
  %v895 = vunpack.c.l.b16 %v825
  %v896 = vunpack.c.h.b16 %v825
  %v897 = vunpack.c.l.b16 %v826
  %v898 = vunpack.c.h.b16 %v826
  %v899 = vunpack.c.l.b16 %v827
  %v900 = vunpack.c.h.b16 %v827
  %v901 = vunpack.c.l.b16 %v828
  %v902 = vunpack.c.h.b16 %v828
  %v903 = vunpack.c.l.b16 %v829
  %v904 = vunpack.c.h.b16 %v829
  %v905 = vunpack.c.l.b16 %v830
  %v906 = vunpack.c.h.b16 %v830
  %v907 = vunpack.c.l.b16 %v831
  %v908 = vunpack.c.h.b16 %v831
  %v909 = vunpack.c.l.b16 %v832
  %v910 = vunpack.c.h.b16 %v832
  %v911 = vunpack.c.l.b16 %v833
  %v912 = vunpack.c.h.b16 %v833
  %v913 = vunpack.c.l.b16 %v834
  %v914 = vunpack.c.h.b16 %v834
  %v915 = vunpack.c.l.b16 %v835
  %v916 = vunpack.c.h.b16 %v835
  %v917 = vunpack.c.l.b16 %v836
  %v918 = vunpack.c.h.b16 %v836
  %v919 = vunpack.c.l.b16 %v837
  %v920 = vunpack.c.h.b16 %v837
  %v921 = vunpack.c.l.b16 %v838
  %v922 = vunpack.c.h.b16 %v838
  %v923 = vunpack.c.l.b16 %v839
  %v924 = vunpack.c.h.b16 %v839
  %v925 = vunpack.c.l.b16 %v840
  %v926 = vunpack.c.h.b16 %v840
  %v927 = vunpack.c.l.b16 %v841
  %v928 = vunpack.c.h.b16 %v841
  %v929 = vunpack.c.l.b16 %v842
  %v930 = vunpack.c.h.b16 %v842
  %v931 = vunpack.c.l.b16 %v843
  %v932 = vunpack.c.h.b16 %v843
  %v933 = vunpack.c.l.b16 %v844
  %v934 = vunpack.c.h.b16 %v844
  %v935 = vunpack.c.l.b16 %v845
  %v936 = vunpack.c.h.b16 %v845
  %v937 = vunpack.c.l.b16 %v846
  %v938 = vunpack.c.h.b16 %v846
  %v939 = vunpack.c.l.b16 %v847
  %v940 = vunpack.c.h.b16 %v847
  %v941 = vunpack.c.l.b16 %v848
  %v942 = vunpack.c.h.b16 %v848
  %v943 = vunpack.c.l.b16 %v849
  %v944 = vunpack.c.h.b16 %v849
  %v945 = vunpack.c.l.b16 %v850
  %v946 = vunpack.c.h.b16 %v850
  %v947 = vpack.c.b16 %v883, %v883
  %v948 = vpack.c.b16 %v884, %v884
  %v949 = vpack.c.b16 %v885, %v885
  %v950 = vpack.c.b16 %v886, %v886
  %v951 = vpack.c.b16 %v887, %v887
  %v952 = vpack.c.b16 %v888, %v888
  %v953 = vpack.c.b16 %v889, %v889
  %v954 = vpack.c.b16 %v890, %v890
  %v955 = vpack.c.b16 %v891, %v891
  %v956 = vpack.c.b16 %v892, %v892
  %v957 = vpack.c.b16 %v893, %v893
  %v958 = vpack.c.b16 %v894, %v894
  %v959 = vpack.c.b16 %v895, %v895
  %v960 = vpack.c.b16 %v896, %v896
  %v961 = vpack.c.b16 %v897, %v897
  %v962 = vpack.c.b16 %v898, %v898
  %v963 = vpack.c.b16 %v899, %v899
  %v964 = vpack.c.b16 %v900, %v900
  %v965 = vpack.c.b16 %v901, %v901
  %v966 = vpack.c.b16 %v902, %v902
  %v967 = vpack.c.b16 %v903, %v903
  %v968 = vpack.c.b16 %v904, %v904
  %v969 = vpack.c.b16 %v905, %v905
  %v970 = vpack.c.b16 %v906, %v906
  %v971 = vpack.c.b16 %v907, %v907
  %v972 = vpack.c.b16 %v908, %v908
  %v973 = vpack.c.b16 %v909, %v909
  %v974 = vpack.c.b16 %v910, %v910
  %v975 = vpack.c.b16 %v911, %v911
  %v976 = vpack.c.b16 %v912, %v912
  %v977 = vpack.c.b16 %v913, %v913
  %v978 = vpack.c.b16 %v914, %v914
  %v979 = vpack.c.b16 %v915, %v915
  %v980 = vpack.c.b16 %v916, %v916
  %v981 = vpack.c.b16 %v917, %v917
  %v982 = vpack.c.b16 %v918, %v918
  %v983 = vpack.c.b16 %v919, %v919
  %v984 = vpack.c.b16 %v920, %v920
  %v985 = vpack.c.b16 %v921, %v921
  %v986 = vpack.c.b16 %v922, %v922
  %v987 = vpack.c.b16 %v923, %v923
  %v988 = vpack.c.b16 %v924, %v924
  %v989 = vpack.c.b16 %v925, %v925
  %v990 = vpack.c.b16 %v926, %v926
  %v991 = vpack.c.b16 %v927, %v927
  %v992 = vpack.c.b16 %v928, %v928
  %v993 = vpack.c.b16 %v929, %v929
  %v994 = vpack.c.b16 %v930, %v930
  %v995 = vpack.c.b16 %v931, %v931
  %v996 = vpack.c.b16 %v932, %v932
  %v997 = vpack.c.b16 %v933, %v933
  %v998 = vpack.c.b16 %v934, %v934
  %v999 = vpack.c.b16 %v935, %v935
  %v1000 = vpack.c.b16 %v936, %v936
  %v1001 = vpack.c.b16 %v937, %v937
  %v1002 = vpack.c.b16 %v938, %v938
  %v1003 = vpack.c.b16 %v939, %v939
  %v1004 = vpack.c.b16 %v940, %v940
  %v1005 = vpack.c.b16 %v941, %v941
  %v1006 = vpack.c.b16 %v942, %v942
  %v1007 = vpack.c.b16 %v943, %v943
  %v1008 = vpack.c.b16 %v944, %v944
  %v1009 = vpack.c.b16 %v945, %v945
  %v1010 = vpack.c.b16 %v946, %v946
  %1075 = vst [vmem:[%s55] sm:$0xf] %v947
  %1076 = vst [vmem:[%s55 + $0x4] sm:$0xf] %v948
  %1077 = vst [vmem:[%s55 + $0x8] sm:$0xf] %v949
  %1078 = vst [vmem:[%s55 + $0xc] sm:$0xf] %v950
  %1079 = vst [vmem:[%s55 + $0x10] sm:$0xf] %v951
  %1080 = vst [vmem:[%s55 + $0x14] sm:$0xf] %v952
  %1081 = vst [vmem:[%s55 + $0x18] sm:$0xf] %v953
  %1082 = vst [vmem:[%s55 + $0x1c] sm:$0xf] %v954
  %1083 = vst [vmem:[%s55 + $0x20] sm:$0xf] %v955
  %1084 = vst [vmem:[%s55 + $0x24] sm:$0xf] %v956
  %1085 = vst [vmem:[%s55 + $0x28] sm:$0xf] %v957
  %1086 = vst [vmem:[%s55 + $0x2c] sm:$0xf] %v958
  %1087 = vst [vmem:[%s55 + $0x30] sm:$0xf] %v959
  %1088 = vst [vmem:[%s55 + $0x34] sm:$0xf] %v960
  %1089 = vst [vmem:[%s55 + $0x38] sm:$0xf] %v961
  %1090 = vst [vmem:[%s55 + $0x3c] sm:$0xf] %v962
  %1091 = vst [vmem:[%s55 + $0x40] sm:$0xf] %v963
  %1092 = vst [vmem:[%s55 + $0x44] sm:$0xf] %v964
  %1093 = vst [vmem:[%s55 + $0x48] sm:$0xf] %v965
  %1094 = vst [vmem:[%s55 + $0x4c] sm:$0xf] %v966
  %1095 = vst [vmem:[%s55 + $0x50] sm:$0xf] %v967
  %1096 = vst [vmem:[%s55 + $0x54] sm:$0xf] %v968
  %1097 = vst [vmem:[%s55 + $0x58] sm:$0xf] %v969
  %1098 = vst [vmem:[%s55 + $0x5c] sm:$0xf] %v970
  %1099 = vst [vmem:[%s55 + $0x60] sm:$0xf] %v971
  %1100 = vst [vmem:[%s55 + $0x64] sm:$0xf] %v972
  %1101 = vst [vmem:[%s55 + $0x68] sm:$0xf] %v973
  %1102 = vst [vmem:[%s55 + $0x6c] sm:$0xf] %v974
  %1103 = vst [vmem:[%s55 + $0x70] sm:$0xf] %v975
  %1104 = vst [vmem:[%s55 + $0x74] sm:$0xf] %v976
  %1105 = vst [vmem:[%s55 + $0x78] sm:$0xf] %v977
  %1106 = vst [vmem:[%s55 + $0x7c] sm:$0xf] %v978
  %1107 = vst [vmem:[%s55 + $0x80] sm:$0xf] %v979
  %1108 = vst [vmem:[%s55 + $0x84] sm:$0xf] %v980
  %1109 = vst [vmem:[%s55 + $0x88] sm:$0xf] %v981
  %1110 = vst [vmem:[%s55 + $0x8c] sm:$0xf] %v982
  %1111 = vst [vmem:[%s55 + $0x90] sm:$0xf] %v983
  %1112 = vst [vmem:[%s55 + $0x94] sm:$0xf] %v984
  %1113 = vst [vmem:[%s55 + $0x98] sm:$0xf] %v985
  %1114 = vst [vmem:[%s55 + $0x9c] sm:$0xf] %v986
  %1115 = vst [vmem:[%s55 + $0xa0] sm:$0xf] %v987
  %1116 = vst [vmem:[%s55 + $0xa4] sm:$0xf] %v988
  %1117 = vst [vmem:[%s55 + $0xa8] sm:$0xf] %v989
  %1118 = vst [vmem:[%s55 + $0xac] sm:$0xf] %v990
  %1119 = vst [vmem:[%s55 + $0xb0] sm:$0xf] %v991
  %1120 = vst [vmem:[%s55 + $0xb4] sm:$0xf] %v992
  %1121 = vst [vmem:[%s55 + $0xb8] sm:$0xf] %v993
  %1122 = vst [vmem:[%s55 + $0xbc] sm:$0xf] %v994
  %1123 = vst [vmem:[%s55 + $0xc0] sm:$0xf] %v995
  %1124 = vst [vmem:[%s55 + $0xc4] sm:$0xf] %v996
  %1125 = vst [vmem:[%s55 + $0xc8] sm:$0xf] %v997
  %1126 = vst [vmem:[%s55 + $0xcc] sm:$0xf] %v998
  %1127 = vst [vmem:[%s55 + $0xd0] sm:$0xf] %v999
  %1128 = vst [vmem:[%s55 + $0xd4] sm:$0xf] %v1000
  %1129 = vst [vmem:[%s55 + $0xd8] sm:$0xf] %v1001
  %1130 = vst [vmem:[%s55 + $0xdc] sm:$0xf] %v1002
  %1131 = vst [vmem:[%s55 + $0xe0] sm:$0xf] %v1003
  %1132 = vst [vmem:[%s55 + $0xe4] sm:$0xf] %v1004
  %1133 = vst [vmem:[%s55 + $0xe8] sm:$0xf] %v1005
  %1134 = vst [vmem:[%s55 + $0xec] sm:$0xf] %v1006
  %1135 = vst [vmem:[%s55 + $0xf0] sm:$0xf] %v1007
  %1136 = vst [vmem:[%s55 + $0xf4] sm:$0xf] %v1008
  %1137 = vst [vmem:[%s55 + $0xf8] sm:$0xf] %v1009
  %1138 = vst [vmem:[%s55 + $0xfc] sm:$0xf] %v1010
  %v1139 = vld [vmem:[%s6] sm:$0x1]
  %v1140 = vadd.f32 %v565, %v568
  %v1141 = vadd.f32 %v1140, %v573
  %v1142 = vadd.f32 %v1141, %v576
  %v1143 = vadd.f32 %v1142, %v581
  %v1144 = vadd.f32 %v1143, %v584
  %v1145 = vadd.f32 %v1144, %v589
  %v1146 = vadd.f32 %v1145, %v592
  %v1147 = vadd.f32 %v1146, %v597
  %v1148 = vadd.f32 %v1147, %v600
  %v1149 = vadd.f32 %v1148, %v605
  %v1150 = vadd.f32 %v1149, %v608
  %v1151 = vadd.f32 %v1150, %v613
  %v1152 = vadd.f32 %v1151, %v616
  %v1153 = vadd.f32 %v1152, %v621
  %v1154 = vadd.f32 %v1153, %v624
  %v1155 = vadd.f32 %v1154, %v629
  %v1156 = vadd.f32 %v1155, %v632
  %v1157 = vadd.f32 %v1156, %v637
  %v1158 = vadd.f32 %v1157, %v640
  %v1159 = vadd.f32 %v1158, %v645
  %v1160 = vadd.f32 %v1159, %v648
  %v1161 = vadd.f32 %v1160, %v653
  %v1162 = vadd.f32 %v1161, %v656
  %v1163 = vadd.f32 %v1162, %v661
  %v1164 = vadd.f32 %v1163, %v664
  %v1165 = vadd.f32 %v1164, %v669
  %v1166 = vadd.f32 %v1165, %v672
  %v1167 = vadd.f32 %v1166, %v677
  %v1168 = vadd.f32 %v1167, %v680
  %v1169 = vadd.f32 %v1168, %v685
  %v1170 = vadd.f32 %v1169, %v688
  %v1171 = vadd.f32 %v1170, %v693
  %v1172 = vadd.f32 %v1171, %v696
  %v1173 = vadd.f32 %v1172, %v701
  %v1174 = vadd.f32 %v1173, %v704
  %v1175 = vadd.f32 %v1174, %v709
  %v1176 = vadd.f32 %v1175, %v712
  %v1177 = vadd.f32 %v1176, %v717
  %v1178 = vadd.f32 %v1177, %v720
  %v1179 = vadd.f32 %v1178, %v725
  %v1180 = vadd.f32 %v1179, %v728
  %v1181 = vadd.f32 %v1180, %v733
  %v1182 = vadd.f32 %v1181, %v736
  %v1183 = vadd.f32 %v1182, %v741
  %v1184 = vadd.f32 %v1183, %v744
  %v1185 = vadd.f32 %v1184, %v749
  %v1186 = vadd.f32 %v1185, %v752
  %v1187 = vadd.f32 %v1186, %v757
  %v1188 = vadd.f32 %v1187, %v760
  %v1189 = vadd.f32 %v1188, %v765
  %v1190 = vadd.f32 %v1189, %v768
  %v1191 = vadd.f32 %v1190, %v773
  %v1192 = vadd.f32 %v1191, %v776
  %v1193 = vadd.f32 %v1192, %v781
  %v1194 = vadd.f32 %v1193, %v784
  %v1195 = vadd.f32 %v1194, %v789
  %v1196 = vadd.f32 %v1195, %v792
  %v1197 = vadd.f32 %v1196, %v797
  %v1198 = vadd.f32 %v1197, %v800
  %v1199 = vadd.f32 %v1198, %v805
  %v1200 = vadd.f32 %v1199, %v808
  %v1201 = vadd.f32 %v1200, %v813
  %v1202 = vadd.f32 %v1201, %v816
  %v1203 = vrot.slane %v1202, 4
  %v1204 = vadd.f32 %v1202, %v1203
  %v1205 = vrot.slane %v1204, 2
  %v1206 = vadd.f32 %v1204, %v1205
  %v1207 = vrot.slane %v1206, 1
  %v1208 = vadd.f32 %v1206, %v1207
  %v1209 = vadd.f32 %v1139, %v1208
  %1210 = vst [vmem:[%s6] sm:$0x1] %v1209
  %v1211 = vld [vmem:[%s6 + $0x1] sm:$0x1]
  %v1212 = vmul.f32 %v565, %v565
  %v1213 = vmul.f32 %v568, %v568
  %v1214 = vmul.f32 %v573, %v573
  %v1215 = vmul.f32 %v576, %v576
  %v1216 = vmul.f32 %v581, %v581
  %v1217 = vmul.f32 %v584, %v584
  %v1218 = vmul.f32 %v589, %v589
  %v1219 = vmul.f32 %v592, %v592
  %v1220 = vmul.f32 %v597, %v597
  %v1221 = vmul.f32 %v600, %v600
  %v1222 = vmul.f32 %v605, %v605
  %v1223 = vmul.f32 %v608, %v608
  %v1224 = vmul.f32 %v613, %v613
  %v1225 = vmul.f32 %v616, %v616
  %v1226 = vmul.f32 %v621, %v621
  %v1227 = vmul.f32 %v624, %v624
  %v1228 = vmul.f32 %v629, %v629
  %v1229 = vmul.f32 %v632, %v632
  %v1230 = vmul.f32 %v637, %v637
  %v1231 = vmul.f32 %v640, %v640
  %v1232 = vmul.f32 %v645, %v645
  %v1233 = vmul.f32 %v648, %v648
  %v1234 = vmul.f32 %v653, %v653
  %v1235 = vmul.f32 %v656, %v656
  %v1236 = vmul.f32 %v661, %v661
  %v1237 = vmul.f32 %v664, %v664
  %v1238 = vmul.f32 %v669, %v669
  %v1239 = vmul.f32 %v672, %v672
  %v1240 = vmul.f32 %v677, %v677
  %v1241 = vmul.f32 %v680, %v680
  %v1242 = vmul.f32 %v685, %v685
  %v1243 = vmul.f32 %v688, %v688
  %v1244 = vmul.f32 %v693, %v693
  %v1245 = vmul.f32 %v696, %v696
  %v1246 = vmul.f32 %v701, %v701
  %v1247 = vmul.f32 %v704, %v704
  %v1248 = vmul.f32 %v709, %v709
  %v1249 = vmul.f32 %v712, %v712
  %v1250 = vmul.f32 %v717, %v717
  %v1251 = vmul.f32 %v720, %v720
  %v1252 = vmul.f32 %v725, %v725
  %v1253 = vmul.f32 %v728, %v728
  %v1254 = vmul.f32 %v733, %v733
  %v1255 = vmul.f32 %v736, %v736
  %v1256 = vmul.f32 %v741, %v741
  %v1257 = vmul.f32 %v744, %v744
  %v1258 = vmul.f32 %v749, %v749
  %v1259 = vmul.f32 %v752, %v752
  %v1260 = vmul.f32 %v757, %v757
  %v1261 = vmul.f32 %v760, %v760
  %v1262 = vmul.f32 %v765, %v765
  %v1263 = vmul.f32 %v768, %v768
  %v1264 = vmul.f32 %v773, %v773
  %v1265 = vmul.f32 %v776, %v776
  %v1266 = vmul.f32 %v781, %v781
  %v1267 = vmul.f32 %v784, %v784
  %v1268 = vmul.f32 %v789, %v789
  %v1269 = vmul.f32 %v792, %v792
  %v1270 = vmul.f32 %v797, %v797
  %v1271 = vmul.f32 %v800, %v800
  %v1272 = vmul.f32 %v805, %v805
  %v1273 = vmul.f32 %v808, %v808
  %v1274 = vmul.f32 %v813, %v813
  %v1275 = vmul.f32 %v816, %v816
  %v1276 = vadd.f32 %v1212, %v1213
  %v1277 = vadd.f32 %v1276, %v1214
  %v1278 = vadd.f32 %v1277, %v1215
  %v1279 = vadd.f32 %v1278, %v1216
  %v1280 = vadd.f32 %v1279, %v1217
  %v1281 = vadd.f32 %v1280, %v1218
  %v1282 = vadd.f32 %v1281, %v1219
  %v1283 = vadd.f32 %v1282, %v1220
  %v1284 = vadd.f32 %v1283, %v1221
  %v1285 = vadd.f32 %v1284, %v1222
  %v1286 = vadd.f32 %v1285, %v1223
  %v1287 = vadd.f32 %v1286, %v1224
  %v1288 = vadd.f32 %v1287, %v1225
  %v1289 = vadd.f32 %v1288, %v1226
  %v1290 = vadd.f32 %v1289, %v1227
  %v1291 = vadd.f32 %v1290, %v1228
  %v1292 = vadd.f32 %v1291, %v1229
  %v1293 = vadd.f32 %v1292, %v1230
  %v1294 = vadd.f32 %v1293, %v1231
  %v1295 = vadd.f32 %v1294, %v1232
  %v1296 = vadd.f32 %v1295, %v1233
  %v1297 = vadd.f32 %v1296, %v1234
  %v1298 = vadd.f32 %v1297, %v1235
  %v1299 = vadd.f32 %v1298, %v1236
  %v1300 = vadd.f32 %v1299, %v1237
  %v1301 = vadd.f32 %v1300, %v1238
  %v1302 = vadd.f32 %v1301, %v1239
  %v1303 = vadd.f32 %v1302, %v1240
  %v1304 = vadd.f32 %v1303, %v1241
  %v1305 = vadd.f32 %v1304, %v1242
  %v1306 = vadd.f32 %v1305, %v1243
  %v1307 = vadd.f32 %v1306, %v1244
  %v1308 = vadd.f32 %v1307, %v1245
  %v1309 = vadd.f32 %v1308, %v1246
  %v1310 = vadd.f32 %v1309, %v1247
  %v1311 = vadd.f32 %v1310, %v1248
  %v1312 = vadd.f32 %v1311, %v1249
  %v1313 = vadd.f32 %v1312, %v1250
  %v1314 = vadd.f32 %v1313, %v1251
  %v1315 = vadd.f32 %v1314, %v1252
  %v1316 = vadd.f32 %v1315, %v1253
  %v1317 = vadd.f32 %v1316, %v1254
  %v1318 = vadd.f32 %v1317, %v1255
  %v1319 = vadd.f32 %v1318, %v1256
  %v1320 = vadd.f32 %v1319, %v1257
  %v1321 = vadd.f32 %v1320, %v1258
  %v1322 = vadd.f32 %v1321, %v1259
  %v1323 = vadd.f32 %v1322, %v1260
  %v1324 = vadd.f32 %v1323, %v1261
  %v1325 = vadd.f32 %v1324, %v1262
  %v1326 = vadd.f32 %v1325, %v1263
  %v1327 = vadd.f32 %v1326, %v1264
  %v1328 = vadd.f32 %v1327, %v1265
  %v1329 = vadd.f32 %v1328, %v1266
  %v1330 = vadd.f32 %v1329, %v1267
  %v1331 = vadd.f32 %v1330, %v1268
  %v1332 = vadd.f32 %v1331, %v1269
  %v1333 = vadd.f32 %v1332, %v1270
  %v1334 = vadd.f32 %v1333, %v1271
  %v1335 = vadd.f32 %v1334, %v1272
  %v1336 = vadd.f32 %v1335, %v1273
  %v1337 = vadd.f32 %v1336, %v1274
  %v1338 = vadd.f32 %v1337, %v1275
  %v1339 = vrot.slane %v1338, 4
  %v1340 = vadd.f32 %v1338, %v1339
  %v1341 = vrot.slane %v1340, 2
  %v1342 = vadd.f32 %v1340, %v1341
  %v1343 = vrot.slane %v1342, 1
  %v1344 = vadd.f32 %v1342, %v1343
  %v1345 = vadd.f32 %v1211, %v1344
  %1346 = vst [vmem:[%s6 + $0x1] sm:$0x1] %v1345
  %s1347 = sadd.s32 0, 0
  %s1348 = smul.u32 64, %s1347
  %p1349 = scmp.lt.s32.totalorder %s1348, 63
  %s1350 = scalar_select %p1349, %s1348, 63
  %s1351 = smul.addr %s1350, 4
  %s1352 = scalar_lea.vmem %s5, %s1351
  // Predicated region
  $region26: #{resnext_bottleneck.6} parent=0 // pred_check
    _
  $region27: #{resnext_bottleneck.6} parent=0 // pred_check_branch
    %1354 = sbr.rel (0) target = $region29
  $region28: #{resnext_bottleneck.6} parent=0 // pred_region
    %s1355 = sadd.s32 0, 0
    %s1356 = smul.u32 64, %s1355
  $region29: #{resnext_bottleneck.6} parent=0 // pred_fallthru
    _
  // Predicated region
  $region30: #{resnext_bottleneck.6} parent=0 // pred_check
    _
  $region31: #{resnext_bottleneck.6} parent=0 // pred_check_branch
    %1358 = sbr.rel (0) target = $region33
  $region32: #{resnext_bottleneck.6} parent=0 // pred_region
    _
  $region33: #{resnext_bottleneck.6} parent=0 // pred_fallthru
    _
  // Predicated region
  $region34: #{resnext_bottleneck.6} parent=0 // pred_check
    _
  $region35: #{resnext_bottleneck.6} parent=0 // pred_check_branch
    %1360 = sbr.rel (0) target = $region37
  $region36: #{resnext_bottleneck.6} parent=0 // pred_region
    %s1361 = sadd.s32 0, 0
    %s1362 = smul.u32 64, %s1361
    %p1363 = scmp.lt.s32.totalorder %s1362, 63
    %s1364 = scalar_select %p1363, %s1362, 63
    %s1365 = smul.addr %s1364, 4
    %s1366 = scalar_lea.vmem %s5, %s1365
  $region37: #{resnext_bottleneck.6} parent=0 // pred_fallthru
    _
  // Predicated region
  $region38: #{resnext_bottleneck.6} parent=0 // pred_check
    _
  $region39: #{resnext_bottleneck.6} parent=0 // pred_check_branch
    %1368 = sbr.rel (0) target = $region41
  $region40: #{resnext_bottleneck.6} parent=0 // pred_region
    _
  $region41: #{resnext_bottleneck.6} parent=0 // pred_fallthru
    _

// kernel: resnext_bottleneck.5
$region0: #{resnext_bottleneck.5}
  #allocation0 [shape = 'u32[]', space=smem, size = 0x4, offset = 0x4, fixed_abs, tag = 'smem constant byte address 0x4 - core index']
  #allocation1 [shape = 'u32[144,128]{1,0:T(1,128)}', space=vmem, size = 0x12000, scoped, tag = 'internal scratch']
  #allocation2 [shape = 'bf16[456,128]{1,0:T(8,128)(2,1)}', space=vmem, size = 0x1c800, scoped, tag = 'scratch operand']
  #allocation3 [shape = 'f32[384,128]{1,0:T(8,128)}', space=vmem, size = 0x30000, scoped, tag = 'scratch operand']
  %s0 = inlined_call_operand.vmem [shape: bf16[2,16,16,128], index: 0, kind: input, shape index: {}]
  %s1 = inlined_call_operand.vmem [shape: f32[1,2,128], index: 1, kind: input, shape index: {}]
  %s2 = inlined_call_operand.vmem [shape: f32[1,128], index: 2, kind: input, shape index: {}]
  %s3 = inlined_call_operand.vmem [shape: f32[1,128], index: 3, kind: input, shape index: {}]
  %s4 = inlined_call_operand.vmem [shape: bf16[3,3,128,128], index: 4, kind: input, shape index: {}]
  %s5 = inlined_call_operand.vmem [shape: bf16[2,16,16,128], index: 5, kind: output, shape index: {0}]
  %s6 = inlined_call_operand.vmem [shape: f32[2,2,128], index: 6, kind: output, shape index: {1}]
  %7 = xla_tuple %s5, %s6
  %s8 = sld [smem:[#allocation0]]
  $region65: #{resnext_bottleneck.5} parent=0
    _
  %s10 = ssub.s32 1, %s8
  %s11 = scalar_select 0, %s10, %s8
  loop: start=0, step=1, limit=4
  $region2: #{resnext_bottleneck.5} parent=0 // loop_pre_header
    _
  $region3: #{resnext_bottleneck.5} parent=0 // loop_header
    %s13 = sphi 0, %s17
    %p14 = scmp.ge.s32.totalorder %s13, 4
    %s20 = sphi 0, %s32
    %s21 = sphi 0, %s28
    %s22 = sphi 0, %s20
    %s23 = sphi 0, %s21
    %s24 = sphi 0, %s22
    %s25 = sphi 0, %s23
    %s37 = sphi 0, %s39
    %s40 = sphi 0, %s37
    %s41 = sphi 0, %s40
    %s57 = sphi 0, %s41
    %s61 = sphi 0, %s61
    %s63 = sphi 0, %s61
    %s64 = sphi 0, %s63
    %s78 = sphi 0, %s64
    %s82 = sphi 0, %s82
    %s84 = sphi 0, %s82
    %s85 = sphi 0, %s84
    %s99 = sphi 0, %s85
    %s103 = sphi 0, %s103
    %s105 = sphi 0, %s103
    %s106 = sphi 0, %s105
    %s120 = sphi 0, %s106
    %s124 = sphi 0, %s124
    %s126 = sphi 0, %s124
    %s127 = sphi 0, %s126
    %s141 = sphi 0, %s127
    %s149 = sphi 0, %s151
    %s152 = sphi 0, %s149
    %s153 = sphi 0, %s152
    %s169 = sphi 0, %s153
    %s175 = sphi 0, %s177
    %s178 = sphi 0, %s175
    %s179 = sphi 0, %s178
    %s195 = sphi 0, %s179
  $region4: #{resnext_bottleneck.5} parent=0 // loop_header_branch
    %16 = sbr.rel (%p14) target = $region8
  $region5: #{resnext_bottleneck.5} parent=0 // loop_body
    %s18 = ssub.s32 %s13, 1
    %s19 = ssub.s32 %s13, 2
    %s26 = sadd.s32 1, %s21
    %p27 = scmp.ge.s32.totalorder %s26, 1
    %s28 = scalar_select %p27, 0, %s26
    %s29 = sadd.s32 1, %s20
    %s30 = scalar_select %p27, %s29, %s20
    %p31 = scmp.ge.s32.totalorder %s30, 2
    %s32 = scalar_select %p31, 0, %s30
    %s33 = sadd.s32 %s20, %s21
    %s34 = sadd.s32 %s32, %s28
    %s35 = ssub.s32 %s33, %s34
    %p36 = scmp.eq.s32.totalorder %s35, 0
    %s38 = sadd.s32 %s37, 1
    %s39 = scalar_select %p36, %s37, %s38
    %p42 = pneg %p36
    %p43 = scmp.eq.s32.totalorder %s13, 1
    %p44 = por %p42, %p43
    %p45 = scmp.ne.s32.totalorder %s37, %s40
    %p46 = scmp.eq.s32.totalorder %s13, 0
    %p47 = por %p45, %p46
    %p48 = scmp.ne.s32.totalorder %s37, %s40
    %p49 = scmp.eq.s32.totalorder %s18, 1
    %p50 = por %p48, %p49
    %p51 = scmp.ne.s32.totalorder %s40, %s41
    %p52 = scmp.eq.s32.totalorder %s18, 0
    %p53 = por %p51, %p52
    %p54 = scmp.ne.s32.totalorder %s40, %s41
    %p55 = scmp.eq.s32.totalorder %s19, 1
    %p56 = por %p54, %p55
    %p58 = scmp.ne.s32.totalorder %s41, %s57
    %p59 = scmp.eq.s32.totalorder %s19, 0
    %p60 = por %p58, %p59
    %s62 = sadd.s32 %s61, 1
    %p65 = scmp.eq.s32.totalorder %s13, 1
    %p66 = scmp.ne.s32.totalorder %s61, %s63
    %p67 = scmp.eq.s32.totalorder %s13, 0
    %p68 = por %p66, %p67
    %p69 = scmp.ne.s32.totalorder %s61, %s63
    %p70 = scmp.eq.s32.totalorder %s18, 1
    %p71 = por %p69, %p70
    %p72 = scmp.ne.s32.totalorder %s63, %s64
    %p73 = scmp.eq.s32.totalorder %s18, 0
    %p74 = por %p72, %p73
    %p75 = scmp.ne.s32.totalorder %s63, %s64
    %p76 = scmp.eq.s32.totalorder %s19, 1
    %p77 = por %p75, %p76
    %p79 = scmp.ne.s32.totalorder %s64, %s78
    %p80 = scmp.eq.s32.totalorder %s19, 0
    %p81 = por %p79, %p80
    %s83 = sadd.s32 %s82, 1
    %p86 = scmp.eq.s32.totalorder %s13, 1
    %p87 = scmp.ne.s32.totalorder %s82, %s84
    %p88 = scmp.eq.s32.totalorder %s13, 0
    %p89 = por %p87, %p88
    %p90 = scmp.ne.s32.totalorder %s82, %s84
    %p91 = scmp.eq.s32.totalorder %s18, 1
    %p92 = por %p90, %p91
    %p93 = scmp.ne.s32.totalorder %s84, %s85
    %p94 = scmp.eq.s32.totalorder %s18, 0
    %p95 = por %p93, %p94
    %p96 = scmp.ne.s32.totalorder %s84, %s85
    %p97 = scmp.eq.s32.totalorder %s19, 1
    %p98 = por %p96, %p97
    %p100 = scmp.ne.s32.totalorder %s85, %s99
    %p101 = scmp.eq.s32.totalorder %s19, 0
    %p102 = por %p100, %p101
    %s104 = sadd.s32 %s103, 1
    %p107 = scmp.eq.s32.totalorder %s13, 1
    %p108 = scmp.ne.s32.totalorder %s103, %s105
    %p109 = scmp.eq.s32.totalorder %s13, 0
    %p110 = por %p108, %p109
    %p111 = scmp.ne.s32.totalorder %s103, %s105
    %p112 = scmp.eq.s32.totalorder %s18, 1
    %p113 = por %p111, %p112
    %p114 = scmp.ne.s32.totalorder %s105, %s106
    %p115 = scmp.eq.s32.totalorder %s18, 0
    %p116 = por %p114, %p115
    %p117 = scmp.ne.s32.totalorder %s105, %s106
    %p118 = scmp.eq.s32.totalorder %s19, 1
    %p119 = por %p117, %p118
    %p121 = scmp.ne.s32.totalorder %s106, %s120
    %p122 = scmp.eq.s32.totalorder %s19, 0
    %p123 = por %p121, %p122
    %s125 = sadd.s32 %s124, 1
    %p128 = scmp.eq.s32.totalorder %s13, 1
    %p129 = scmp.ne.s32.totalorder %s124, %s126
    %p130 = scmp.eq.s32.totalorder %s13, 0
    %p131 = por %p129, %p130
    %p132 = scmp.ne.s32.totalorder %s124, %s126
    %p133 = scmp.eq.s32.totalorder %s18, 1
    %p134 = por %p132, %p133
    %p135 = scmp.ne.s32.totalorder %s126, %s127
    %p136 = scmp.eq.s32.totalorder %s18, 0
    %p137 = por %p135, %p136
    %p138 = scmp.ne.s32.totalorder %s126, %s127
    %p139 = scmp.eq.s32.totalorder %s19, 1
    %p140 = por %p138, %p139
    %p142 = scmp.ne.s32.totalorder %s127, %s141
    %p143 = scmp.eq.s32.totalorder %s19, 0
    %p144 = por %p142, %p143
    %s145 = sadd.s32 %s20, %s21
    %s146 = sadd.s32 %s32, %s28
    %s147 = ssub.s32 %s145, %s146
    %p148 = scmp.eq.s32.totalorder %s147, 0
    %s150 = sadd.s32 %s149, 1
    %s151 = scalar_select %p148, %s149, %s150
    %p154 = pneg %p148
    %p155 = scmp.eq.s32.totalorder %s13, 1
    %p156 = por %p154, %p155
    %p157 = scmp.ne.s32.totalorder %s149, %s152
    %p158 = scmp.eq.s32.totalorder %s13, 0
    %p159 = por %p157, %p158
    %p160 = scmp.ne.s32.totalorder %s149, %s152
    %p161 = scmp.eq.s32.totalorder %s18, 1
    %p162 = por %p160, %p161
    %p163 = scmp.ne.s32.totalorder %s152, %s153
    %p164 = scmp.eq.s32.totalorder %s18, 0
    %p165 = por %p163, %p164
    %p166 = scmp.ne.s32.totalorder %s152, %s153
    %p167 = scmp.eq.s32.totalorder %s19, 1
    %p168 = por %p166, %p167
    %p170 = scmp.ne.s32.totalorder %s153, %s169
    %p171 = scmp.eq.s32.totalorder %s19, 0
    %p172 = por %p170, %p171
    %s173 = ssub.s32 %s20, %s32
    %p174 = scmp.eq.s32.totalorder %s173, 0
    %s176 = sadd.s32 %s175, 1
    %s177 = scalar_select %p174, %s175, %s176
    %p180 = pneg %p174
    %p181 = scmp.eq.s32.totalorder %s13, 1
    %p182 = por %p180, %p181
    %p183 = scmp.ne.s32.totalorder %s175, %s178
    %p184 = scmp.eq.s32.totalorder %s13, 0
    %p185 = por %p183, %p184
    %p186 = scmp.ne.s32.totalorder %s175, %s178
    %p187 = scmp.eq.s32.totalorder %s18, 1
    %p188 = por %p186, %p187
    %p189 = scmp.ne.s32.totalorder %s178, %s179
    %p190 = scmp.eq.s32.totalorder %s18, 0
    %p191 = por %p189, %p190
    %p192 = scmp.ne.s32.totalorder %s178, %s179
    %p193 = scmp.eq.s32.totalorder %s19, 1
    %p194 = por %p192, %p193
    %p196 = scmp.ne.s32.totalorder %s179, %s195
    %p197 = scmp.eq.s32.totalorder %s19, 0
    %p198 = por %p196, %p197
    %p199 = scmp.le.s32.totalorder 1, %s13
    %p200 = scmp.lt.s32.totalorder %s13, 3
    %p201 = pnand %p199, %p200
    %p202 = pneg %p201
    // Predicated region
    $region9: #{resnext_bottleneck.5} parent=5 // pred_check
      _
    $region10: #{resnext_bottleneck.5} parent=5 // pred_check_branch
      %204 = sbr.rel (%p201) target = $region12
    $region11: #{resnext_bottleneck.5} parent=5 // pred_region
      %s205 = ssub.s32 %s13, 1
      // Predicated region
      $region13: #{resnext_bottleneck.5} parent=11 // pred_check
        %p206 = pneg %p74
      $region14: #{resnext_bottleneck.5} parent=11 // pred_check_branch
        %208 = sbr.rel (%p206) target = $region16
      $region15: #{resnext_bottleneck.5} parent=11 // pred_region
        _
      $region16: #{resnext_bottleneck.5} parent=11 // pred_fallthru
        _
      // Predicated region
      $region17: #{resnext_bottleneck.5} parent=11 // pred_check
        %p209 = pneg %p95
      $region18: #{resnext_bottleneck.5} parent=11 // pred_check_branch
        %211 = sbr.rel (%p209) target = $region20
      $region19: #{resnext_bottleneck.5} parent=11 // pred_region
        _
      $region20: #{resnext_bottleneck.5} parent=11 // pred_fallthru
        _
      // Predicated region
      $region21: #{resnext_bottleneck.5} parent=11 // pred_check
        %p212 = pneg %p116
      $region22: #{resnext_bottleneck.5} parent=11 // pred_check_branch
        %214 = sbr.rel (%p212) target = $region24
      $region23: #{resnext_bottleneck.5} parent=11 // pred_region
        _
      $region24: #{resnext_bottleneck.5} parent=11 // pred_fallthru
        _
      // Predicated region
      $region25: #{resnext_bottleneck.5} parent=11 // pred_check
        %p215 = pneg %p137
      $region26: #{resnext_bottleneck.5} parent=11 // pred_check_branch
        %217 = sbr.rel (%p215) target = $region28
      $region27: #{resnext_bottleneck.5} parent=11 // pred_region
        _
      $region28: #{resnext_bottleneck.5} parent=11 // pred_fallthru
        _
    $region12: #{resnext_bottleneck.5} parent=5 // pred_fallthru
      _
    %p218 = scmp.lt.s32.totalorder %s13, 2
    // Predicated region
    $region29: #{resnext_bottleneck.5} parent=5 // pred_check
      %p219 = pneg %p218
    $region30: #{resnext_bottleneck.5} parent=5 // pred_check_branch
      %221 = sbr.rel (%p219) target = $region32
    $region31: #{resnext_bottleneck.5} parent=5 // pred_region
      // Predicated region
      $region33: #{resnext_bottleneck.5} parent=31 // pred_check
        %p222 = pneg %p47
      $region34: #{resnext_bottleneck.5} parent=31 // pred_check_branch
        %224 = sbr.rel (%p222) target = $region36
      $region35: #{resnext_bottleneck.5} parent=31 // pred_region
        %s225 = sadd.s32 %s20, %s21
        %p226 = scmp.lt.s32.totalorder %s225, 1
        %s227 = scalar_select %p226, %s225, 1
        %s228 = smul.addr %s227, 32
        %s229 = smul.addr %s228, 4
        %s230 = scalar_lea.vmem %s0, %s229
        %s231 = sadd.s32 %s20, %s21
      $region36: #{resnext_bottleneck.5} parent=31 // pred_fallthru
        _
    $region32: #{resnext_bottleneck.5} parent=5 // pred_fallthru
      _
    %p232 = scmp.le.s32.totalorder 1, %s13
    %p233 = scmp.lt.s32.totalorder %s13, 3
    %p234 = pnand %p232, %p233
    %p235 = pneg %p234
    // Predicated region
    $region37: #{resnext_bottleneck.5} parent=5 // pred_check
      _
    $region38: #{resnext_bottleneck.5} parent=5 // pred_check_branch
      %237 = sbr.rel (%p234) target = $region40
    $region39: #{resnext_bottleneck.5} parent=5 // pred_region
      %s238 = ssub.s32 %s13, 1
      %s239 = sadd.s32 %s22, %s23
      %p240 = scmp.lt.s32.totalorder %s239, 1
      %s241 = scalar_select %p240, %s239, 1
      %s242 = smul.addr %s241, 32
      %s243 = smul.addr %s242, 4
      %s244 = scalar_lea.vmem %s0, %s243
      %p245 = pneg %p53
      %p246 = pneg %p50
      %p247 = pneg %p74
      %p248 = pneg %p71
      %p249 = pneg %p95
      %p250 = pneg %p92
      %p251 = pneg %p116
      %p252 = pneg %p113
      %p253 = pneg %p137
      %p254 = pneg %p134
      %p255 = pneg %p165
      %p256 = pneg %p162
      %s257 = sadd.s32 %s22, %s23
      %p258 = scmp.lt.s32.totalorder %s257, 1
      %s259 = scalar_select %p258, %s257, 1
      %s260 = smul.addr %s259, 32
      %s261 = smul.addr %s260, 4
      %s262 = scalar_lea.vmem %s5, %s261
      %p263 = pneg %p191
      %p264 = pneg %p188
      %p265 = scmp.lt.s32.totalorder %s22, 1
      %s266 = scalar_select %p265, %s22, 1
      %s267 = smul.addr %s266, 2
      %s268 = scalar_lea.vmem %s6, %s267
      %s269 = sadd.s32 %s22, %s23
      %p270 = scmp.lt.s32.totalorder %s269, 1
      %s271 = scalar_select %p270, %s269, 1
      %s272 = smul.addr %s271, 32
      %s273 = smul.addr %s272, 4
      %s274 = scalar_lea.vmem %s0, %s273
      %s275 = sadd.s32 %s22, %s23
      %s276 = sadd.s32 %s22, %s23
      %p277 = scmp.lt.s32.totalorder %s276, 1
      %s278 = scalar_select %p277, %s276, 1
      %s279 = smul.addr %s278, 32
      %s280 = smul.addr %s279, 4
      %s281 = scalar_lea.vmem %s5, %s280
      %s282 = sadd.s32 %s22, %s23
      %p283 = scmp.lt.s32.totalorder %s22, 1
      %s284 = scalar_select %p283, %s22, 1
      %s285 = smul.addr %s284, 2
      %s286 = scalar_lea.vmem %s6, %s285
      %p288 = scmp.eq.s32.totalorder %s23, 0
      // Predicated region
      $region41: #{resnext_bottleneck.5} parent=39 // pred_check
        %p289 = pneg %p288
      $region42: #{resnext_bottleneck.5} parent=39 // pred_check_branch
        %291 = sbr.rel (%p289) target = $region44
      $region43: #{resnext_bottleneck.5} parent=39 // pred_region
        %292 = vst [vmem:[%s286] sm:$0x3] 0.0
        %293 = vst [vmem:[#allocation2] sm:$0xf] 0
        %294 = vst [vmem:[#allocation2 + $0x4] sm:$0xf] 0
        %295 = vst [vmem:[#allocation2 + $0x8] sm:$0xf] 0
        %296 = vst [vmem:[#allocation2 + $0xc] sm:$0xf] 0
        %297 = vst [vmem:[#allocation2 + $0x10] sm:$0xf] 0
        %298 = vst [vmem:[#allocation2 + $0x14] sm:$0xf] 0
        %299 = vst [vmem:[#allocation2 + $0x18] sm:$0xf] 0
        %300 = vst [vmem:[#allocation2 + $0x1c] sm:$0xf] 0
        %301 = vst [vmem:[#allocation2 + $0x20] sm:$0xf] 0
        %302 = vst [vmem:[#allocation2 + $0x24] sm:$0xf] 0
        %303 = vst [vmem:[#allocation2 + $0x28] sm:$0xf] 0
        %304 = vst [vmem:[#allocation2 + $0x2c] sm:$0xf] 0
        %305 = vst [vmem:[#allocation2 + $0x30] sm:$0xf] 0
        %306 = vst [vmem:[#allocation2 + $0x34] sm:$0xf] 0
        %307 = vst [vmem:[#allocation2 + $0x38] sm:$0xf] 0
        %308 = vst [vmem:[#allocation2 + $0x3c] sm:$0xf] 0
        %309 = vst [vmem:[#allocation2 + $0x40] sm:$0xf] 0
        %310 = vst [vmem:[#allocation2 + $0x44] sm:$0xf] 0
        %311 = vst [vmem:[#allocation2 + $0x48] sm:$0xf] 0
        %312 = vst [vmem:[#allocation2 + $0x4c] sm:$0xf] 0
        %313 = vst [vmem:[#allocation2 + $0x50] sm:$0xf] 0
        %314 = vst [vmem:[#allocation2 + $0x54] sm:$0xf] 0
        %315 = vst [vmem:[#allocation2 + $0x58] sm:$0xf] 0
        %316 = vst [vmem:[#allocation2 + $0x5c] sm:$0xf] 0
        %317 = vst [vmem:[#allocation2 + $0x60] sm:$0xf] 0
        %318 = vst [vmem:[#allocation2 + $0x64] sm:$0xf] 0
        %319 = vst [vmem:[#allocation2 + $0x68] sm:$0xf] 0
        %320 = vst [vmem:[#allocation2 + $0x6c] sm:$0xf] 0
        %321 = vst [vmem:[#allocation2 + $0x70] sm:$0xf] 0
        %322 = vst [vmem:[#allocation2 + $0x74] sm:$0xf] 0
        %323 = vst [vmem:[#allocation2 + $0x78] sm:$0xf] 0
        %324 = vst [vmem:[#allocation2 + $0x7c] sm:$0xf] 0
        %325 = vst [vmem:[#allocation2 + $0x80] sm:$0xf] 0
        %326 = vst [vmem:[#allocation2 + $0x84] sm:$0xf] 0
        %327 = vst [vmem:[#allocation2 + $0x88] sm:$0xf] 0
        %328 = vst [vmem:[#allocation2 + $0x8c] sm:$0xf] 0
        %329 = vst [vmem:[#allocation2 + $0x90] sm:$0xf] 0
        %330 = vst [vmem:[#allocation2 + $0x94] sm:$0xf] 0
        %331 = vst [vmem:[#allocation2 + $0x98] sm:$0xf] 0
        %332 = vst [vmem:[#allocation2 + $0x9c] sm:$0xf] 0
        %333 = vst [vmem:[#allocation2 + $0xa0] sm:$0xf] 0
        %334 = vst [vmem:[#allocation2 + $0xa4] sm:$0xf] 0
        %335 = vst [vmem:[#allocation2 + $0xa8] sm:$0xf] 0
        %336 = vst [vmem:[#allocation2 + $0xac] sm:$0xf] 0
        %337 = vst [vmem:[#allocation2 + $0xb0] sm:$0xf] 0
        %338 = vst [vmem:[#allocation2 + $0xb4] sm:$0xf] 0
        %339 = vst [vmem:[#allocation2 + $0xb8] sm:$0xf] 0
        %340 = vst [vmem:[#allocation2 + $0xbc] sm:$0xf] 0
        %341 = vst [vmem:[#allocation2 + $0xc0] sm:$0xf] 0
        %342 = vst [vmem:[#allocation2 + $0xc4] sm:$0xf] 0
        %343 = vst [vmem:[#allocation2 + $0xc8] sm:$0xf] 0
        %344 = vst [vmem:[#allocation2 + $0xcc] sm:$0xf] 0
        %345 = vst [vmem:[#allocation2 + $0xd0] sm:$0xf] 0
        %346 = vst [vmem:[#allocation2 + $0xd4] sm:$0xf] 0
        %347 = vst [vmem:[#allocation2 + $0xd8] sm:$0xf] 0
        %348 = vst [vmem:[#allocation2 + $0xdc] sm:$0xf] 0
        %349 = vst [vmem:[#allocation2 + $0xe0] sm:$0xf] 0
      $region44: #{resnext_bottleneck.5} parent=39 // pred_fallthru
        _
      %v350 = vld [vmem:[%s1] sm:$0x3]
      %v351 = vadd.f32 %v350, 0.0
      %v352 = vld [vmem:[%s2] sm:$0x1]
      %v353 = vld [vmem:[%s3] sm:$0x1]
      %v354 = vrcp.pop 512.0
      %v355 = vmul.f32 %v351, %v354
      %v356 = vmul.f32 %v355, %v355
      %v358 = vrot.slane %v356, 7
      %v360 = vsub.f32 %v355, %v358
      %v361 = vmax.f32 %v360, 0.0
      %v362 = vadd.f32 %v361, 1e-05
      %v363 = vrsqrt.pop %v362
      %v366 = vunpack.c.l.s4 1966171168
      %v367 = vunpack.c.0.s8 %v366
      %v368 = vlaneseq
      %v369 = vshrl.u32 %v368, 7
      %v370 = vsub.s32 %v367, %v369
      %v371 = vrot.slane %v363, %v370
      %v372 = vcombine.high %v371, %v371
      %v374 = vunpack.c.l.s4 1966171168
      %v375 = vunpack.c.0.s8 %v374
      %v376 = vlaneseq
      %v377 = vshrl.u32 %v376, 7
      %v378 = vsub.s32 %v375, %v377
      %v379 = vrot.slane %v372, %v378
      %v381 = vmul.f32 %v352, %v379
      %v382 = vmul.f32 %v355, %v381
      %v383 = vsub.f32 %v353, %v382
      %v384 = vld [vmem:[%s274] sm:$0xf]
      %v385 = vld [vmem:[%s274 + $0x4] sm:$0xf]
      %v386 = vld [vmem:[%s274 + $0x8] sm:$0xf]
      %v387 = vld [vmem:[%s274 + $0xc] sm:$0xf]
      %v388 = vld [vmem:[%s274 + $0x10] sm:$0xf]
      %v389 = vld [vmem:[%s274 + $0x14] sm:$0xf]
      %v390 = vld [vmem:[%s274 + $0x18] sm:$0xf]
      %v391 = vld [vmem:[%s274 + $0x1c] sm:$0xf]
      %v392 = vld [vmem:[%s274 + $0x20] sm:$0xf]
      %v393 = vld [vmem:[%s274 + $0x24] sm:$0xf]
      %v394 = vld [vmem:[%s274 + $0x28] sm:$0xf]
      %v395 = vld [vmem:[%s274 + $0x2c] sm:$0xf]
      %v396 = vld [vmem:[%s274 + $0x30] sm:$0xf]
      %v397 = vld [vmem:[%s274 + $0x34] sm:$0xf]
      %v398 = vld [vmem:[%s274 + $0x38] sm:$0xf]
      %v399 = vld [vmem:[%s274 + $0x3c] sm:$0xf]
      %v400 = vld [vmem:[%s274 + $0x40] sm:$0xf]
      %v401 = vld [vmem:[%s274 + $0x44] sm:$0xf]
      %v402 = vld [vmem:[%s274 + $0x48] sm:$0xf]
      %v403 = vld [vmem:[%s274 + $0x4c] sm:$0xf]
      %v404 = vld [vmem:[%s274 + $0x50] sm:$0xf]
      %v405 = vld [vmem:[%s274 + $0x54] sm:$0xf]
      %v406 = vld [vmem:[%s274 + $0x58] sm:$0xf]
      %v407 = vld [vmem:[%s274 + $0x5c] sm:$0xf]
      %v408 = vld [vmem:[%s274 + $0x60] sm:$0xf]
      %v409 = vld [vmem:[%s274 + $0x64] sm:$0xf]
      %v410 = vld [vmem:[%s274 + $0x68] sm:$0xf]
      %v411 = vld [vmem:[%s274 + $0x6c] sm:$0xf]
      %v412 = vld [vmem:[%s274 + $0x70] sm:$0xf]
      %v413 = vld [vmem:[%s274 + $0x74] sm:$0xf]
      %v414 = vld [vmem:[%s274 + $0x78] sm:$0xf]
      %v415 = vld [vmem:[%s274 + $0x7c] sm:$0xf]
      %v416 = vunpack.c.l.bf16 %v384
      %v417 = vunpack.c.l.bf16 %v385
      %v418 = vunpack.c.l.bf16 %v386
      %v419 = vunpack.c.l.bf16 %v387
      %v420 = vunpack.c.l.bf16 %v388
      %v421 = vunpack.c.l.bf16 %v389
      %v422 = vunpack.c.l.bf16 %v390
      %v423 = vunpack.c.l.bf16 %v391
      %v424 = vunpack.c.l.bf16 %v392
      %v425 = vunpack.c.l.bf16 %v393
      %v426 = vunpack.c.l.bf16 %v394
      %v427 = vunpack.c.l.bf16 %v395
      %v428 = vunpack.c.l.bf16 %v396
      %v429 = vunpack.c.l.bf16 %v397
      %v430 = vunpack.c.l.bf16 %v398
      %v431 = vunpack.c.l.bf16 %v399
      %v432 = vunpack.c.l.bf16 %v400
      %v433 = vunpack.c.l.bf16 %v401
      %v434 = vunpack.c.l.bf16 %v402
      %v435 = vunpack.c.l.bf16 %v403
      %v436 = vunpack.c.l.bf16 %v404
      %v437 = vunpack.c.l.bf16 %v405
      %v438 = vunpack.c.l.bf16 %v406
      %v439 = vunpack.c.l.bf16 %v407
      %v440 = vunpack.c.l.bf16 %v408
      %v441 = vunpack.c.l.bf16 %v409
      %v442 = vunpack.c.l.bf16 %v410
      %v443 = vunpack.c.l.bf16 %v411
      %v444 = vunpack.c.l.bf16 %v412
      %v445 = vunpack.c.l.bf16 %v413
      %v446 = vunpack.c.l.bf16 %v414
      %v447 = vunpack.c.l.bf16 %v415
      %v449 = vlaneseq
      %v450 = vshrl.u32 %v449, 7
      %v451 = vsub.s32 0, %v450
      %v452 = vrot.slane %v381, %v451
      %v454 = vmul.f32 %v416, %v452
      %v455 = vmul.f32 %v417, %v452
      %v456 = vmul.f32 %v418, %v452
      %v457 = vmul.f32 %v419, %v452
      %v458 = vmul.f32 %v420, %v452
      %v459 = vmul.f32 %v421, %v452
      %v460 = vmul.f32 %v422, %v452
      %v461 = vmul.f32 %v423, %v452
      %v462 = vmul.f32 %v424, %v452
      %v463 = vmul.f32 %v425, %v452
      %v464 = vmul.f32 %v426, %v452
      %v465 = vmul.f32 %v427, %v452
      %v466 = vmul.f32 %v428, %v452
      %v467 = vmul.f32 %v429, %v452
      %v468 = vmul.f32 %v430, %v452
      %v469 = vmul.f32 %v431, %v452
      %v470 = vmul.f32 %v432, %v452
      %v471 = vmul.f32 %v433, %v452
      %v472 = vmul.f32 %v434, %v452
      %v473 = vmul.f32 %v435, %v452
      %v474 = vmul.f32 %v436, %v452
      %v475 = vmul.f32 %v437, %v452
      %v476 = vmul.f32 %v438, %v452
      %v477 = vmul.f32 %v439, %v452
      %v478 = vmul.f32 %v440, %v452
      %v479 = vmul.f32 %v441, %v452
      %v480 = vmul.f32 %v442, %v452
      %v481 = vmul.f32 %v443, %v452
      %v482 = vmul.f32 %v444, %v452
      %v483 = vmul.f32 %v445, %v452
      %v484 = vmul.f32 %v446, %v452
      %v485 = vmul.f32 %v447, %v452
      %v487 = vlaneseq
      %v488 = vshrl.u32 %v487, 7
      %v489 = vsub.s32 0, %v488
      %v490 = vrot.slane %v383, %v489
      %v492 = vadd.f32 %v454, %v490
      %v493 = vadd.f32 %v455, %v490
      %v494 = vadd.f32 %v456, %v490
      %v495 = vadd.f32 %v457, %v490
      %v496 = vadd.f32 %v458, %v490
      %v497 = vadd.f32 %v459, %v490
      %v498 = vadd.f32 %v460, %v490
      %v499 = vadd.f32 %v461, %v490
      %v500 = vadd.f32 %v462, %v490
      %v501 = vadd.f32 %v463, %v490
      %v502 = vadd.f32 %v464, %v490
      %v503 = vadd.f32 %v465, %v490
      %v504 = vadd.f32 %v466, %v490
      %v505 = vadd.f32 %v467, %v490
      %v506 = vadd.f32 %v468, %v490
      %v507 = vadd.f32 %v469, %v490
      %v508 = vadd.f32 %v470, %v490
      %v509 = vadd.f32 %v471, %v490
      %v510 = vadd.f32 %v472, %v490
      %v511 = vadd.f32 %v473, %v490
      %v512 = vadd.f32 %v474, %v490
      %v513 = vadd.f32 %v475, %v490
      %v514 = vadd.f32 %v476, %v490
      %v515 = vadd.f32 %v477, %v490
      %v516 = vadd.f32 %v478, %v490
      %v517 = vadd.f32 %v479, %v490
      %v518 = vadd.f32 %v480, %v490
      %v519 = vadd.f32 %v481, %v490
      %v520 = vadd.f32 %v482, %v490
      %v521 = vadd.f32 %v483, %v490
      %v522 = vadd.f32 %v484, %v490
      %v523 = vadd.f32 %v485, %v490
      %v524 = vmax.f32 %v492, 0.0
      %v525 = vmax.f32 %v493, 0.0
      %v526 = vmax.f32 %v494, 0.0
      %v527 = vmax.f32 %v495, 0.0
      %v528 = vmax.f32 %v496, 0.0
      %v529 = vmax.f32 %v497, 0.0
      %v530 = vmax.f32 %v498, 0.0
      %v531 = vmax.f32 %v499, 0.0
      %v532 = vmax.f32 %v500, 0.0
      %v533 = vmax.f32 %v501, 0.0
      %v534 = vmax.f32 %v502, 0.0
      %v535 = vmax.f32 %v503, 0.0
      %v536 = vmax.f32 %v504, 0.0
      %v537 = vmax.f32 %v505, 0.0
      %v538 = vmax.f32 %v506, 0.0
      %v539 = vmax.f32 %v507, 0.0
      %v540 = vmax.f32 %v508, 0.0
      %v541 = vmax.f32 %v509, 0.0
      %v542 = vmax.f32 %v510, 0.0
      %v543 = vmax.f32 %v511, 0.0
      %v544 = vmax.f32 %v512, 0.0
      %v545 = vmax.f32 %v513, 0.0
      %v546 = vmax.f32 %v514, 0.0
      %v547 = vmax.f32 %v515, 0.0
      %v548 = vmax.f32 %v516, 0.0
      %v549 = vmax.f32 %v517, 0.0
      %v550 = vmax.f32 %v518, 0.0
      %v551 = vmax.f32 %v519, 0.0
      %v552 = vmax.f32 %v520, 0.0
      %v553 = vmax.f32 %v521, 0.0
      %v554 = vmax.f32 %v522, 0.0
      %v555 = vmax.f32 %v523, 0.0
      %v556 = vpack.c.bf16 %v525, %v524
      %v557 = vpack.c.bf16 %v527, %v526
      %v558 = vpack.c.bf16 %v529, %v528
      %v559 = vpack.c.bf16 %v531, %v530
      %v560 = vpack.c.bf16 %v533, %v532
      %v561 = vpack.c.bf16 %v535, %v534
      %v562 = vpack.c.bf16 %v537, %v536
      %v563 = vpack.c.bf16 %v539, %v538
      %v564 = vpack.c.bf16 %v541, %v540
      %v565 = vpack.c.bf16 %v543, %v542
      %v566 = vpack.c.bf16 %v545, %v544
      %v567 = vpack.c.bf16 %v547, %v546
      %v568 = vpack.c.bf16 %v549, %v548
      %v569 = vpack.c.bf16 %v551, %v550
      %v570 = vpack.c.bf16 %v553, %v552
      %v571 = vpack.c.bf16 %v555, %v554
      %v573 = vunpack.c.l.b16 %v556
      %v574 = vunpack.c.h.b16 %v556
      %v575 = vpack.c.b16 %v573, %v573
      %v576 = vpack.c.b16 %v574, %v574
      %vm577 = vsmask.f32 256
      %vm578 = vsmask.f32 4368
      %vm579 = vmor %vm577, %vm578
      %v581 = vshrl.u32 %v575, 16
      %v583 = vrot.slane %v581, 7
      %v584 = vshll.u32 %v575, 16
      %v586 = vor.u32 %v583, %v584
      %v587 = vrot.slane %v583, 4
      %v589 = vshrl.u32 %v576, 16
      %v591 = vrot.slane %v589, 7
      %v592 = vshll.u32 %v576, 16
      %v594 = vor.u32 %v591, %v592
      %v595 = vsel %vm579, %v587, %v594
      %v596 = vrot.slane %v591, 4
      %vm600 = vcmask 1043456
      %vm601 = vsmask.f32 7938
      %vm602 = vmand %vm600, %vm601
      %v603 = vld [vmem:[#allocation2 + $0xc] sm:$0xf]
      %v604 = vsel %vm602, %v586, %v603
      %605 = vst [vmem:[#allocation2 + $0xc] sm:$0xf] %v604
      %606 = vst [vmem:[#allocation2 + $0x10] sm:$0xf] %v595
      %vm607 = vcmask 1040384
      %vm608 = vmand %vm607, %vm577
      %v609 = vld [vmem:[#allocation2 + $0x14] sm:$0x1]
      %v610 = vsel %vm608, %v596, %v609
      %611 = vst [vmem:[#allocation2 + $0x14] sm:$0x1] %v610
      %v613 = vunpack.c.l.b16 %v557
      %v614 = vunpack.c.h.b16 %v557
      %v615 = vpack.c.b16 %v613, %v613
      %v616 = vpack.c.b16 %v614, %v614
      %v618 = vshrl.u32 %v615, 16
      %v620 = vrot.slane %v618, 7
      %v621 = vshll.u32 %v615, 16
      %v623 = vor.u32 %v620, %v621
      %v624 = vrot.slane %v620, 4
      %v626 = vshrl.u32 %v616, 16
      %v628 = vrot.slane %v626, 7
      %v629 = vshll.u32 %v616, 16
      %v631 = vor.u32 %v628, %v629
      %v632 = vsel %vm579, %v624, %v631
      %v633 = vrot.slane %v628, 4
      %v637 = vld [vmem:[#allocation2 + $0x18] sm:$0xf]
      %v638 = vsel %vm602, %v623, %v637
      %639 = vst [vmem:[#allocation2 + $0x18] sm:$0xf] %v638
      %640 = vst [vmem:[#allocation2 + $0x1c] sm:$0xf] %v632
      %v641 = vld [vmem:[#allocation2 + $0x20] sm:$0x1]
      %v642 = vsel %vm608, %v633, %v641
      %643 = vst [vmem:[#allocation2 + $0x20] sm:$0x1] %v642
      %v645 = vunpack.c.l.b16 %v558
      %v646 = vunpack.c.h.b16 %v558
      %v647 = vpack.c.b16 %v645, %v645
      %v648 = vpack.c.b16 %v646, %v646
      %v650 = vshrl.u32 %v647, 16
      %v652 = vrot.slane %v650, 7
      %v653 = vshll.u32 %v647, 16
      %v655 = vor.u32 %v652, %v653
      %v656 = vrot.slane %v652, 4
      %v658 = vshrl.u32 %v648, 16
      %v660 = vrot.slane %v658, 7
      %v661 = vshll.u32 %v648, 16
      %v663 = vor.u32 %v660, %v661
      %v664 = vsel %vm579, %v656, %v663
      %v665 = vrot.slane %v660, 4
      %v669 = vld [vmem:[#allocation2 + $0x24] sm:$0xf]
      %v670 = vsel %vm602, %v655, %v669
      %671 = vst [vmem:[#allocation2 + $0x24] sm:$0xf] %v670
      %672 = vst [vmem:[#allocation2 + $0x28] sm:$0xf] %v664
      %v673 = vld [vmem:[#allocation2 + $0x2c] sm:$0x1]
      %v674 = vsel %vm608, %v665, %v673
      %675 = vst [vmem:[#allocation2 + $0x2c] sm:$0x1] %v674
      %v677 = vunpack.c.l.b16 %v559
      %v678 = vunpack.c.h.b16 %v559
      %v679 = vpack.c.b16 %v677, %v677
      %v680 = vpack.c.b16 %v678, %v678
      %v682 = vshrl.u32 %v679, 16
      %v684 = vrot.slane %v682, 7
      %v685 = vshll.u32 %v679, 16
      %v687 = vor.u32 %v684, %v685
      %v688 = vrot.slane %v684, 4
      %v690 = vshrl.u32 %v680, 16
      %v692 = vrot.slane %v690, 7
      %v693 = vshll.u32 %v680, 16
      %v695 = vor.u32 %v692, %v693
      %v696 = vsel %vm579, %v688, %v695
      %v697 = vrot.slane %v692, 4
      %v701 = vld [vmem:[#allocation2 + $0x30] sm:$0xf]
      %v702 = vsel %vm602, %v687, %v701
      %703 = vst [vmem:[#allocation2 + $0x30] sm:$0xf] %v702
      %704 = vst [vmem:[#allocation2 + $0x34] sm:$0xf] %v696
      %v705 = vld [vmem:[#allocation2 + $0x38] sm:$0x1]
      %v706 = vsel %vm608, %v697, %v705
      %707 = vst [vmem:[#allocation2 + $0x38] sm:$0x1] %v706
      %v709 = vunpack.c.l.b16 %v560
      %v710 = vunpack.c.h.b16 %v560
      %v711 = vpack.c.b16 %v709, %v709
      %v712 = vpack.c.b16 %v710, %v710
      %v714 = vshrl.u32 %v711, 16
      %v716 = vrot.slane %v714, 7
      %v717 = vshll.u32 %v711, 16
      %v719 = vor.u32 %v716, %v717
      %v720 = vrot.slane %v716, 4
      %v722 = vshrl.u32 %v712, 16
      %v724 = vrot.slane %v722, 7
      %v725 = vshll.u32 %v712, 16
      %v727 = vor.u32 %v724, %v725
      %v728 = vsel %vm579, %v720, %v727
      %v729 = vrot.slane %v724, 4
      %v733 = vld [vmem:[#allocation2 + $0x3c] sm:$0xf]
      %v734 = vsel %vm602, %v719, %v733
      %735 = vst [vmem:[#allocation2 + $0x3c] sm:$0xf] %v734
      %736 = vst [vmem:[#allocation2 + $0x40] sm:$0xf] %v728
      %v737 = vld [vmem:[#allocation2 + $0x44] sm:$0x1]
      %v738 = vsel %vm608, %v729, %v737
      %739 = vst [vmem:[#allocation2 + $0x44] sm:$0x1] %v738
      %v741 = vunpack.c.l.b16 %v561
      %v742 = vunpack.c.h.b16 %v561
      %v743 = vpack.c.b16 %v741, %v741
      %v744 = vpack.c.b16 %v742, %v742
      %v746 = vshrl.u32 %v743, 16
      %v748 = vrot.slane %v746, 7
      %v749 = vshll.u32 %v743, 16
      %v751 = vor.u32 %v748, %v749
      %v752 = vrot.slane %v748, 4
      %v754 = vshrl.u32 %v744, 16
      %v756 = vrot.slane %v754, 7
      %v757 = vshll.u32 %v744, 16
      %v759 = vor.u32 %v756, %v757
      %v760 = vsel %vm579, %v752, %v759
      %v761 = vrot.slane %v756, 4
      %v765 = vld [vmem:[#allocation2 + $0x48] sm:$0xf]
      %v766 = vsel %vm602, %v751, %v765
      %767 = vst [vmem:[#allocation2 + $0x48] sm:$0xf] %v766
      %768 = vst [vmem:[#allocation2 + $0x4c] sm:$0xf] %v760
      %v769 = vld [vmem:[#allocation2 + $0x50] sm:$0x1]
      %v770 = vsel %vm608, %v761, %v769
      %771 = vst [vmem:[#allocation2 + $0x50] sm:$0x1] %v770
      %v773 = vunpack.c.l.b16 %v562
      %v774 = vunpack.c.h.b16 %v562
      %v775 = vpack.c.b16 %v773, %v773
      %v776 = vpack.c.b16 %v774, %v774
      %v778 = vshrl.u32 %v775, 16
      %v780 = vrot.slane %v778, 7
      %v781 = vshll.u32 %v775, 16
      %v783 = vor.u32 %v780, %v781
      %v784 = vrot.slane %v780, 4
      %v786 = vshrl.u32 %v776, 16
      %v788 = vrot.slane %v786, 7
      %v789 = vshll.u32 %v776, 16
      %v791 = vor.u32 %v788, %v789
      %v792 = vsel %vm579, %v784, %v791
      %v793 = vrot.slane %v788, 4
      %v797 = vld [vmem:[#allocation2 + $0x54] sm:$0xf]
      %v798 = vsel %vm602, %v783, %v797
      %799 = vst [vmem:[#allocation2 + $0x54] sm:$0xf] %v798
      %800 = vst [vmem:[#allocation2 + $0x58] sm:$0xf] %v792
      %v801 = vld [vmem:[#allocation2 + $0x5c] sm:$0x1]
      %v802 = vsel %vm608, %v793, %v801
      %803 = vst [vmem:[#allocation2 + $0x5c] sm:$0x1] %v802
      %v805 = vunpack.c.l.b16 %v563
      %v806 = vunpack.c.h.b16 %v563
      %v807 = vpack.c.b16 %v805, %v805
      %v808 = vpack.c.b16 %v806, %v806
      %v810 = vshrl.u32 %v807, 16
      %v812 = vrot.slane %v810, 7
      %v813 = vshll.u32 %v807, 16
      %v815 = vor.u32 %v812, %v813
      %v816 = vrot.slane %v812, 4
      %v818 = vshrl.u32 %v808, 16
      %v820 = vrot.slane %v818, 7
      %v821 = vshll.u32 %v808, 16
      %v823 = vor.u32 %v820, %v821
      %v824 = vsel %vm579, %v816, %v823
      %v825 = vrot.slane %v820, 4
      %v829 = vld [vmem:[#allocation2 + $0x60] sm:$0xf]
      %v830 = vsel %vm602, %v815, %v829
      %831 = vst [vmem:[#allocation2 + $0x60] sm:$0xf] %v830
      %832 = vst [vmem:[#allocation2 + $0x64] sm:$0xf] %v824
      %v833 = vld [vmem:[#allocation2 + $0x68] sm:$0x1]
      %v834 = vsel %vm608, %v825, %v833
      %835 = vst [vmem:[#allocation2 + $0x68] sm:$0x1] %v834
      %v837 = vunpack.c.l.b16 %v564
      %v838 = vunpack.c.h.b16 %v564
      %v839 = vpack.c.b16 %v837, %v837
      %v840 = vpack.c.b16 %v838, %v838
      %v842 = vshrl.u32 %v839, 16
      %v844 = vrot.slane %v842, 7
      %v845 = vshll.u32 %v839, 16
      %v847 = vor.u32 %v844, %v845
      %v848 = vrot.slane %v844, 4
      %v850 = vshrl.u32 %v840, 16
      %v852 = vrot.slane %v850, 7
      %v853 = vshll.u32 %v840, 16
      %v855 = vor.u32 %v852, %v853
      %v856 = vsel %vm579, %v848, %v855
      %v857 = vrot.slane %v852, 4
      %v861 = vld [vmem:[#allocation2 + $0x6c] sm:$0xf]
      %v862 = vsel %vm602, %v847, %v861
      %863 = vst [vmem:[#allocation2 + $0x6c] sm:$0xf] %v862
      %864 = vst [vmem:[#allocation2 + $0x70] sm:$0xf] %v856
      %v865 = vld [vmem:[#allocation2 + $0x74] sm:$0x1]
      %v866 = vsel %vm608, %v857, %v865
      %867 = vst [vmem:[#allocation2 + $0x74] sm:$0x1] %v866
      %v869 = vunpack.c.l.b16 %v565
      %v870 = vunpack.c.h.b16 %v565
      %v871 = vpack.c.b16 %v869, %v869
      %v872 = vpack.c.b16 %v870, %v870
      %v874 = vshrl.u32 %v871, 16
      %v876 = vrot.slane %v874, 7
      %v877 = vshll.u32 %v871, 16
      %v879 = vor.u32 %v876, %v877
      %v880 = vrot.slane %v876, 4
      %v882 = vshrl.u32 %v872, 16
      %v884 = vrot.slane %v882, 7
      %v885 = vshll.u32 %v872, 16
      %v887 = vor.u32 %v884, %v885
      %v888 = vsel %vm579, %v880, %v887
      %v889 = vrot.slane %v884, 4
      %v893 = vld [vmem:[#allocation2 + $0x78] sm:$0xf]
      %v894 = vsel %vm602, %v879, %v893
      %895 = vst [vmem:[#allocation2 + $0x78] sm:$0xf] %v894
      %896 = vst [vmem:[#allocation2 + $0x7c] sm:$0xf] %v888
      %v897 = vld [vmem:[#allocation2 + $0x80] sm:$0x1]
      %v898 = vsel %vm608, %v889, %v897
      %899 = vst [vmem:[#allocation2 + $0x80] sm:$0x1] %v898
      %v901 = vunpack.c.l.b16 %v566
      %v902 = vunpack.c.h.b16 %v566
      %v903 = vpack.c.b16 %v901, %v901
      %v904 = vpack.c.b16 %v902, %v902
      %v906 = vshrl.u32 %v903, 16
      %v908 = vrot.slane %v906, 7
      %v909 = vshll.u32 %v903, 16
      %v911 = vor.u32 %v908, %v909
      %v912 = vrot.slane %v908, 4
      %v914 = vshrl.u32 %v904, 16
      %v916 = vrot.slane %v914, 7
      %v917 = vshll.u32 %v904, 16
      %v919 = vor.u32 %v916, %v917
      %v920 = vsel %vm579, %v912, %v919
      %v921 = vrot.slane %v916, 4
      %v925 = vld [vmem:[#allocation2 + $0x84] sm:$0xf]
      %v926 = vsel %vm602, %v911, %v925
      %927 = vst [vmem:[#allocation2 + $0x84] sm:$0xf] %v926
      %928 = vst [vmem:[#allocation2 + $0x88] sm:$0xf] %v920
      %v929 = vld [vmem:[#allocation2 + $0x8c] sm:$0x1]
      %v930 = vsel %vm608, %v921, %v929
      %931 = vst [vmem:[#allocation2 + $0x8c] sm:$0x1] %v930
      %v933 = vunpack.c.l.b16 %v567
      %v934 = vunpack.c.h.b16 %v567
      %v935 = vpack.c.b16 %v933, %v933
      %v936 = vpack.c.b16 %v934, %v934
      %v938 = vshrl.u32 %v935, 16
      %v940 = vrot.slane %v938, 7
      %v941 = vshll.u32 %v935, 16
      %v943 = vor.u32 %v940, %v941
      %v944 = vrot.slane %v940, 4
      %v946 = vshrl.u32 %v936, 16
      %v948 = vrot.slane %v946, 7
      %v949 = vshll.u32 %v936, 16
      %v951 = vor.u32 %v948, %v949
      %v952 = vsel %vm579, %v944, %v951
      %v953 = vrot.slane %v948, 4
      %v957 = vld [vmem:[#allocation2 + $0x90] sm:$0xf]
      %v958 = vsel %vm602, %v943, %v957
      %959 = vst [vmem:[#allocation2 + $0x90] sm:$0xf] %v958
      %960 = vst [vmem:[#allocation2 + $0x94] sm:$0xf] %v952
      %v961 = vld [vmem:[#allocation2 + $0x98] sm:$0x1]
      %v962 = vsel %vm608, %v953, %v961
      %963 = vst [vmem:[#allocation2 + $0x98] sm:$0x1] %v962
      %v965 = vunpack.c.l.b16 %v568
      %v966 = vunpack.c.h.b16 %v568
      %v967 = vpack.c.b16 %v965, %v965
      %v968 = vpack.c.b16 %v966, %v966
      %v970 = vshrl.u32 %v967, 16
      %v972 = vrot.slane %v970, 7
      %v973 = vshll.u32 %v967, 16
      %v975 = vor.u32 %v972, %v973
      %v976 = vrot.slane %v972, 4
      %v978 = vshrl.u32 %v968, 16
      %v980 = vrot.slane %v978, 7
      %v981 = vshll.u32 %v968, 16
      %v983 = vor.u32 %v980, %v981
      %v984 = vsel %vm579, %v976, %v983
      %v985 = vrot.slane %v980, 4
      %v989 = vld [vmem:[#allocation2 + $0x9c] sm:$0xf]
      %v990 = vsel %vm602, %v975, %v989
      %991 = vst [vmem:[#allocation2 + $0x9c] sm:$0xf] %v990
      %992 = vst [vmem:[#allocation2 + $0xa0] sm:$0xf] %v984
      %v993 = vld [vmem:[#allocation2 + $0xa4] sm:$0x1]
      %v994 = vsel %vm608, %v985, %v993
      %995 = vst [vmem:[#allocation2 + $0xa4] sm:$0x1] %v994
      %v997 = vunpack.c.l.b16 %v569
      %v998 = vunpack.c.h.b16 %v569
      %v999 = vpack.c.b16 %v997, %v997
      %v1000 = vpack.c.b16 %v998, %v998
      %v1002 = vshrl.u32 %v999, 16
      %v1004 = vrot.slane %v1002, 7
      %v1005 = vshll.u32 %v999, 16
      %v1007 = vor.u32 %v1004, %v1005
      %v1008 = vrot.slane %v1004, 4
      %v1010 = vshrl.u32 %v1000, 16
      %v1012 = vrot.slane %v1010, 7
      %v1013 = vshll.u32 %v1000, 16
      %v1015 = vor.u32 %v1012, %v1013
      %v1016 = vsel %vm579, %v1008, %v1015
      %v1017 = vrot.slane %v1012, 4
      %v1021 = vld [vmem:[#allocation2 + $0xa8] sm:$0xf]
      %v1022 = vsel %vm602, %v1007, %v1021
      %1023 = vst [vmem:[#allocation2 + $0xa8] sm:$0xf] %v1022
      %1024 = vst [vmem:[#allocation2 + $0xac] sm:$0xf] %v1016
      %v1025 = vld [vmem:[#allocation2 + $0xb0] sm:$0x1]
      %v1026 = vsel %vm608, %v1017, %v1025
      %1027 = vst [vmem:[#allocation2 + $0xb0] sm:$0x1] %v1026
      %v1029 = vunpack.c.l.b16 %v570
      %v1030 = vunpack.c.h.b16 %v570
      %v1031 = vpack.c.b16 %v1029, %v1029
      %v1032 = vpack.c.b16 %v1030, %v1030
      %v1034 = vshrl.u32 %v1031, 16
      %v1036 = vrot.slane %v1034, 7
      %v1037 = vshll.u32 %v1031, 16
      %v1039 = vor.u32 %v1036, %v1037
      %v1040 = vrot.slane %v1036, 4
      %v1042 = vshrl.u32 %v1032, 16
      %v1044 = vrot.slane %v1042, 7
      %v1045 = vshll.u32 %v1032, 16
      %v1047 = vor.u32 %v1044, %v1045
      %v1048 = vsel %vm579, %v1040, %v1047
      %v1049 = vrot.slane %v1044, 4
      %v1053 = vld [vmem:[#allocation2 + $0xb4] sm:$0xf]
      %v1054 = vsel %vm602, %v1039, %v1053
      %1055 = vst [vmem:[#allocation2 + $0xb4] sm:$0xf] %v1054
      %1056 = vst [vmem:[#allocation2 + $0xb8] sm:$0xf] %v1048
      %v1057 = vld [vmem:[#allocation2 + $0xbc] sm:$0x1]
      %v1058 = vsel %vm608, %v1049, %v1057
      %1059 = vst [vmem:[#allocation2 + $0xbc] sm:$0x1] %v1058
      %v1061 = vunpack.c.l.b16 %v571
      %v1062 = vunpack.c.h.b16 %v571
      %v1063 = vpack.c.b16 %v1061, %v1061
      %v1064 = vpack.c.b16 %v1062, %v1062
      %v1066 = vshrl.u32 %v1063, 16
      %v1068 = vrot.slane %v1066, 7
      %v1069 = vshll.u32 %v1063, 16
      %v1071 = vor.u32 %v1068, %v1069
      %v1072 = vrot.slane %v1068, 4
      %v1074 = vshrl.u32 %v1064, 16
      %v1076 = vrot.slane %v1074, 7
      %v1077 = vshll.u32 %v1064, 16
      %v1079 = vor.u32 %v1076, %v1077
      %v1080 = vsel %vm579, %v1072, %v1079
      %v1081 = vrot.slane %v1076, 4
      %v1085 = vld [vmem:[#allocation2 + $0xc0] sm:$0xf]
      %v1086 = vsel %vm602, %v1071, %v1085
      %1087 = vst [vmem:[#allocation2 + $0xc0] sm:$0xf] %v1086
      %1088 = vst [vmem:[#allocation2 + $0xc4] sm:$0xf] %v1080
      %v1089 = vld [vmem:[#allocation2 + $0xc8] sm:$0x1]
      %v1090 = vsel %vm608, %v1081, %v1089
      %1091 = vst [vmem:[#allocation2 + $0xc8] sm:$0x1] %v1090
      %v1092 = vld [vmem:[#allocation2] sm:$0xf]
      %v1093 = vld [vmem:[#allocation2 + $0x4] sm:$0xf]
      %v1094 = vld [vmem:[#allocation2 + $0x8] sm:$0xf]
      %v1095 = vld [vmem:[#allocation2 + $0xc] sm:$0xf]
      %v1096 = vld [vmem:[#allocation2 + $0x10] sm:$0xf]
      %v1097 = vld [vmem:[#allocation2 + $0x14] sm:$0xf]
      %v1098 = vld [vmem:[#allocation2 + $0x18] sm:$0xf]
      %v1099 = vld [vmem:[#allocation2 + $0x1c] sm:$0xf]
      %v1100 = vld [vmem:[#allocation2 + $0x20] sm:$0xf]
      %v1101 = vld [vmem:[#allocation2 + $0x24] sm:$0xf]
      %v1102 = vld [vmem:[#allocation2 + $0x28] sm:$0xf]
      %v1103 = vld [vmem:[#allocation2 + $0x2c] sm:$0xf]
      %v1104 = vld [vmem:[#allocation2 + $0x30] sm:$0xf]
      %v1105 = vld [vmem:[#allocation2 + $0x34] sm:$0xf]
      %v1106 = vld [vmem:[#allocation2 + $0x38] sm:$0xf]
      %v1107 = vld [vmem:[#allocation2 + $0x3c] sm:$0xf]
      %v1108 = vld [vmem:[#allocation2 + $0x40] sm:$0xf]
      %v1109 = vld [vmem:[#allocation2 + $0x44] sm:$0xf]
      %v1110 = vld [vmem:[#allocation2 + $0x48] sm:$0xf]
      %v1111 = vld [vmem:[#allocation2 + $0x4c] sm:$0xf]
      %v1112 = vld [vmem:[#allocation2 + $0x50] sm:$0xf]
      %v1113 = vld [vmem:[#allocation2 + $0x54] sm:$0xf]
      %v1114 = vld [vmem:[#allocation2 + $0x58] sm:$0xf]
      %v1115 = vld [vmem:[#allocation2 + $0x5c] sm:$0xf]
      %v1116 = vld [vmem:[#allocation2 + $0x60] sm:$0xf]
      %v1117 = vld [vmem:[#allocation2 + $0x64] sm:$0xf]
      %v1118 = vld [vmem:[#allocation2 + $0x68] sm:$0xf]
      %v1119 = vld [vmem:[#allocation2 + $0x6c] sm:$0xf]
      %v1120 = vld [vmem:[#allocation2 + $0x70] sm:$0xf]
      %v1121 = vld [vmem:[#allocation2 + $0x74] sm:$0xf]
      %v1122 = vld [vmem:[#allocation2 + $0x78] sm:$0xf]
      %v1123 = vld [vmem:[#allocation2 + $0x7c] sm:$0xf]
      %v1124 = vld [vmem:[#allocation2 + $0x80] sm:$0xf]
      %v1125 = vld [vmem:[#allocation2 + $0x84] sm:$0xf]
      %v1126 = vld [vmem:[#allocation2 + $0x88] sm:$0xf]
      %v1127 = vld [vmem:[#allocation2 + $0x8c] sm:$0xf]
      %v1128 = vld [vmem:[#allocation2 + $0x90] sm:$0xf]
      %v1129 = vld [vmem:[#allocation2 + $0x94] sm:$0xf]
      %v1130 = vld [vmem:[#allocation2 + $0x98] sm:$0xf]
      %v1131 = vld [vmem:[#allocation2 + $0x9c] sm:$0xf]
      %v1132 = vld [vmem:[#allocation2 + $0xa0] sm:$0xf]
      %v1133 = vld [vmem:[#allocation2 + $0xa4] sm:$0xf]
      %v1134 = vld [vmem:[#allocation2 + $0xa8] sm:$0xf]
      %v1135 = vld [vmem:[#allocation2 + $0xac] sm:$0xf]
      %v1136 = vld [vmem:[#allocation2 + $0xb0] sm:$0xf]
      %v1137 = vld [vmem:[#allocation2 + $0xb4] sm:$0xf]
      %v1138 = vld [vmem:[#allocation2 + $0xb8] sm:$0xf]
      %v1139 = vld [vmem:[#allocation2 + $0xbc] sm:$0xf]
      %v1140 = vld [vmem:[%s4] sm:$0xf]
      %v1141 = vld [vmem:[%s4 + $0x4] sm:$0xf]
      %v1142 = vld [vmem:[%s4 + $0x8] sm:$0xf]
      %v1143 = vld [vmem:[%s4 + $0xc] sm:$0xf]
      %v1144 = vld [vmem:[%s4 + $0x10] sm:$0xf]
      %v1145 = vld [vmem:[%s4 + $0x14] sm:$0xf]
      %v1146 = vld [vmem:[%s4 + $0x18] sm:$0xf]
      %v1147 = vld [vmem:[%s4 + $0x1c] sm:$0xf]
      %v1148 = vld [vmem:[%s4 + $0x20] sm:$0xf]
      %v1149 = vld [vmem:[%s4 + $0x24] sm:$0xf]
      %v1150 = vld [vmem:[%s4 + $0x28] sm:$0xf]
      %v1151 = vld [vmem:[%s4 + $0x2c] sm:$0xf]
      %v1152 = vld [vmem:[%s4 + $0x30] sm:$0xf]
      %v1153 = vld [vmem:[%s4 + $0x34] sm:$0xf]
      %v1154 = vld [vmem:[%s4 + $0x38] sm:$0xf]
      %v1155 = vld [vmem:[%s4 + $0x3c] sm:$0xf]
      %v1204 = vunpack.c.l.b16 %v1092
      %v1205 = vunpack.c.l.b16 %v1093
      %v1206 = vunpack.c.l.b16 %v1094
      %v1207 = vunpack.c.l.b16 %v1095
      %v1208 = vunpack.c.l.b16 %v1096
      %v1209 = vunpack.c.l.b16 %v1097
      %v1210 = vunpack.c.l.b16 %v1098
      %v1211 = vunpack.c.l.b16 %v1099
      %v1212 = vunpack.c.l.b16 %v1100
      %v1213 = vunpack.c.l.b16 %v1101
      %v1214 = vunpack.c.l.b16 %v1102
      %v1215 = vunpack.c.l.b16 %v1103
      %v1216 = vunpack.c.l.b16 %v1104
      %v1217 = vunpack.c.l.b16 %v1105
      %v1218 = vunpack.c.l.b16 %v1106
      %v1219 = vunpack.c.l.b16 %v1107
      %v1220 = vunpack.c.l.b16 %v1108
      %v1221 = vunpack.c.l.b16 %v1109
      %v1222 = vunpack.c.l.b16 %v1110
      %v1223 = vunpack.c.l.b16 %v1111
      %v1224 = vunpack.c.l.b16 %v1112
      %v1225 = vunpack.c.l.b16 %v1113
      %v1226 = vunpack.c.l.b16 %v1114
      %v1227 = vunpack.c.l.b16 %v1115
      %v1228 = vunpack.c.l.b16 %v1116
      %v1229 = vunpack.c.l.b16 %v1117
      %v1230 = vunpack.c.l.b16 %v1118
      %v1231 = vunpack.c.l.b16 %v1119
      %v1232 = vunpack.c.l.b16 %v1120
      %v1233 = vunpack.c.l.b16 %v1121
      %v1234 = vunpack.c.l.b16 %v1122
      %v1235 = vunpack.c.l.b16 %v1123
      %v1236 = vunpack.c.l.b16 %v1124
      %v1237 = vunpack.c.l.b16 %v1125
      %v1238 = vunpack.c.l.b16 %v1126
      %v1239 = vunpack.c.l.b16 %v1127
      %v1240 = vunpack.c.l.b16 %v1128
      %v1241 = vunpack.c.l.b16 %v1129
      %v1242 = vunpack.c.l.b16 %v1130
      %v1243 = vunpack.c.l.b16 %v1131
      %v1244 = vunpack.c.l.b16 %v1132
      %v1245 = vunpack.c.l.b16 %v1133
      %v1246 = vunpack.c.l.b16 %v1134
      %v1247 = vunpack.c.l.b16 %v1135
      %v1248 = vunpack.c.l.b16 %v1136
      %v1249 = vunpack.c.l.b16 %v1137
      %v1250 = vunpack.c.l.b16 %v1138
      %v1251 = vunpack.c.l.b16 %v1139
      %v1252 = vpack.c.b16 %v1205, %v1204
      %v1253 = vpack.c.b16 %v1207, %v1206
      %v1254 = vpack.c.b16 %v1209, %v1208
      %v1255 = vpack.c.b16 %v1211, %v1210
      %v1256 = vpack.c.b16 %v1213, %v1212
      %v1257 = vpack.c.b16 %v1215, %v1214
      %v1258 = vpack.c.b16 %v1217, %v1216
      %v1259 = vpack.c.b16 %v1219, %v1218
      %v1260 = vpack.c.b16 %v1221, %v1220
      %v1261 = vpack.c.b16 %v1223, %v1222
      %v1262 = vpack.c.b16 %v1225, %v1224
      %v1263 = vpack.c.b16 %v1227, %v1226
      %v1264 = vpack.c.b16 %v1229, %v1228
      %v1265 = vpack.c.b16 %v1231, %v1230
      %v1266 = vpack.c.b16 %v1233, %v1232
      %v1267 = vpack.c.b16 %v1235, %v1234
      %v1268 = vpack.c.b16 %v1237, %v1236
      %v1269 = vpack.c.b16 %v1239, %v1238
      %v1270 = vpack.c.b16 %v1241, %v1240
      %v1271 = vpack.c.b16 %v1243, %v1242
      %v1272 = vpack.c.b16 %v1245, %v1244
      %v1273 = vpack.c.b16 %v1247, %v1246
      %v1274 = vpack.c.b16 %v1249, %v1248
      %v1275 = vpack.c.b16 %v1251, %v1250
      %v1316 = vunpack.c.l.b16 %v1140
      %v1317 = vunpack.c.l.b16 %v1141
      %v1318 = vunpack.c.l.b16 %v1142
      %v1319 = vunpack.c.l.b16 %v1143
      %v1320 = vunpack.c.l.b16 %v1144
      %v1321 = vunpack.c.l.b16 %v1145
      %v1322 = vunpack.c.l.b16 %v1146
      %v1323 = vunpack.c.l.b16 %v1147
      %v1324 = vunpack.c.l.b16 %v1148
      %v1325 = vunpack.c.l.b16 %v1149
      %v1326 = vunpack.c.l.b16 %v1150
      %v1327 = vunpack.c.l.b16 %v1151
      %v1328 = vunpack.c.l.b16 %v1152
      %v1329 = vunpack.c.l.b16 %v1153
      %v1330 = vunpack.c.l.b16 %v1154
      %v1331 = vunpack.c.l.b16 %v1155
      %v1332 = vpack.c.b16 %v1317, %v1316
      %v1333 = vpack.c.b16 %v1319, %v1318
      %v1334 = vpack.c.b16 %v1321, %v1320
      %v1335 = vpack.c.b16 %v1323, %v1322
      %v1336 = vpack.c.b16 %v1325, %v1324
      %v1337 = vpack.c.b16 %v1327, %v1326
      %v1338 = vpack.c.b16 %v1329, %v1328
      %v1339 = vpack.c.b16 %v1331, %v1330
      %1348 = vmatprep.subr.bf16.mxu0 0
      %1349 = vmatpush1.bf16.msra.mxu0 %v1339
      %1350 = vmatprep.subr.bf16.mxu0 0
      %1351 = vmatpush1.bf16.msra.mxu0 %v1338
      %1352 = vmatprep.subr.bf16.mxu0 0
      %1353 = vmatpush1.bf16.msra.mxu0 %v1337
      %1354 = vmatprep.subr.bf16.mxu0 0
      %1355 = vmatpush1.bf16.msra.mxu0 %v1336
      %1356 = vmatprep.subr.bf16.mxu0 0
      %1357 = vmatpush1.bf16.msra.mxu0 %v1335
      %1358 = vmatprep.subr.bf16.mxu0 0
      %1359 = vmatpush1.bf16.msra.mxu0 %v1334
      %1360 = vmatprep.subr.bf16.mxu0 0
      %1361 = vmatpush1.bf16.msra.mxu0 %v1333
      %1362 = vmatprep.subr.bf16.mxu0 0
      %1363 = vmatpush1.bf16.msra.mxu0 %v1332
      %1364 = vmatprep.subr.bf16.mxu0 0
      %1365 = vmatpush2.bf16.msra.mxu0 0
      %1366 = vmatprep.subr.bf16.mxu0 0
      %1367 = vmatpush2.bf16.msra.mxu0 0
      %1368 = vmatprep.subr.bf16.mxu0 0
      %1369 = vmatpush2.bf16.msra.mxu0 0
      %1370 = vmatprep.subr.bf16.mxu0 0
      %1371 = vmatpush2.bf16.msra.mxu0 0
      %1372 = vmatprep.subr.bf16.mxu0 0
      %1373 = vmatpush2.bf16.msra.mxu0 0
      %1374 = vmatprep.subr.bf16.mxu0 0
      %1375 = vmatpush2.bf16.msra.mxu0 0
      %1376 = vmatprep.subr.bf16.mxu0 0
      %1377 = vmatpush2.bf16.msra.mxu0 0
      %1378 = vmatprep.subr.bf16.mxu0 0
      %1379 = vmatpush2.bf16.msra.mxu0 0
      %1380 = vmatprep.mubr.bf16.mxu0 0
      %1381 = vmatmul.mubr.bf16.gmra.mxu0 %v1252
      %v1382 = vpop.f32.mrf.mxu0
      %v1383 = vadd.f32 0.0, %v1382
      %v1384 = vpop.f32.mrf.mxu0
      %v1385 = vpop.f32.mrf.mxu0
      %v1386 = vadd.f32 0.0, %v1385
      %v1387 = vpop.f32.mrf.mxu0
      %1388 = vmatprep.mubr.bf16.mxu0 0
      %1389 = vmatmul.mubr.bf16.gmra.mxu0 %v1253
      %v1390 = vpop.f32.mrf.mxu0
      %v1391 = vadd.f32 0.0, %v1390
      %v1392 = vpop.f32.mrf.mxu0
      %v1393 = vpop.f32.mrf.mxu0
      %v1394 = vadd.f32 0.0, %v1393
      %v1395 = vpop.f32.mrf.mxu0
      %1396 = vmatprep.mubr.bf16.mxu0 0
      %1397 = vmatmul.mubr.bf16.gmra.mxu0 %v1254
      %v1398 = vpop.f32.mrf.mxu0
      %v1399 = vadd.f32 0.0, %v1398
      %v1400 = vpop.f32.mrf.mxu0
      %v1401 = vpop.f32.mrf.mxu0
      %v1402 = vadd.f32 0.0, %v1401
      %v1403 = vpop.f32.mrf.mxu0
      %1404 = vmatprep.mubr.bf16.mxu0 0
      %1405 = vmatmul.mubr.bf16.gmra.mxu0 %v1255
      %v1406 = vpop.f32.mrf.mxu0
      %v1407 = vadd.f32 0.0, %v1406
      %v1408 = vpop.f32.mrf.mxu0
      %v1409 = vpop.f32.mrf.mxu0
      %v1410 = vadd.f32 0.0, %v1409
      %v1411 = vpop.f32.mrf.mxu0
      %1412 = vmatprep.mubr.bf16.mxu0 0
      %1413 = vmatmul.mubr.bf16.gmra.mxu0 %v1256
      %v1414 = vpop.f32.mrf.mxu0
      %v1415 = vadd.f32 0.0, %v1414
      %v1416 = vpop.f32.mrf.mxu0
      %v1417 = vpop.f32.mrf.mxu0
      %v1418 = vadd.f32 0.0, %v1417
      %v1419 = vpop.f32.mrf.mxu0
      %1420 = vmatprep.mubr.bf16.mxu0 0
      %1421 = vmatmul.mubr.bf16.gmra.mxu0 %v1257
      %v1422 = vpop.f32.mrf.mxu0
      %v1423 = vadd.f32 0.0, %v1422
      %v1424 = vpop.f32.mrf.mxu0
      %v1425 = vpop.f32.mrf.mxu0
      %v1426 = vadd.f32 0.0, %v1425
      %v1427 = vpop.f32.mrf.mxu0
      %1428 = vmatprep.mubr.bf16.mxu0 0
      %1429 = vmatmul.mubr.bf16.gmra.mxu0 %v1258
      %v1430 = vpop.f32.mrf.mxu0
      %v1431 = vadd.f32 0.0, %v1430
      %v1432 = vpop.f32.mrf.mxu0
      %v1433 = vpop.f32.mrf.mxu0
      %v1434 = vadd.f32 0.0, %v1433
      %v1435 = vpop.f32.mrf.mxu0
      %1436 = vmatprep.mubr.bf16.mxu0 0
      %1437 = vmatmul.mubr.bf16.gmra.mxu0 %v1259
      %v1438 = vpop.f32.mrf.mxu0
      %v1439 = vadd.f32 0.0, %v1438
      %v1440 = vpop.f32.mrf.mxu0
      %v1441 = vpop.f32.mrf.mxu0
      %v1442 = vadd.f32 0.0, %v1441
      %v1443 = vpop.f32.mrf.mxu0
      %1444 = vmatprep.mubr.bf16.mxu0 0
      %1445 = vmatmul.mubr.bf16.gmra.mxu0 %v1260
      %v1446 = vpop.f32.mrf.mxu0
      %v1447 = vadd.f32 0.0, %v1446
      %v1448 = vpop.f32.mrf.mxu0
      %v1449 = vpop.f32.mrf.mxu0
      %v1450 = vadd.f32 0.0, %v1449
      %v1451 = vpop.f32.mrf.mxu0
      %1452 = vmatprep.mubr.bf16.mxu0 0
      %1453 = vmatmul.mubr.bf16.gmra.mxu0 %v1261
      %v1454 = vpop.f32.mrf.mxu0
      %v1455 = vadd.f32 0.0, %v1454
      %v1456 = vpop.f32.mrf.mxu0
      %v1457 = vpop.f32.mrf.mxu0
      %v1458 = vadd.f32 0.0, %v1457
      %v1459 = vpop.f32.mrf.mxu0
      %1460 = vmatprep.mubr.bf16.mxu0 0
      %1461 = vmatmul.mubr.bf16.gmra.mxu0 %v1262
      %v1462 = vpop.f32.mrf.mxu0
      %v1463 = vadd.f32 0.0, %v1462
      %v1464 = vpop.f32.mrf.mxu0
      %v1465 = vpop.f32.mrf.mxu0
      %v1466 = vadd.f32 0.0, %v1465
      %v1467 = vpop.f32.mrf.mxu0
      %1468 = vmatprep.mubr.bf16.mxu0 0
      %1469 = vmatmul.mubr.bf16.gmra.mxu0 %v1263
      %v1470 = vpop.f32.mrf.mxu0
      %v1471 = vadd.f32 0.0, %v1470
      %v1472 = vpop.f32.mrf.mxu0
      %v1473 = vpop.f32.mrf.mxu0
      %v1474 = vadd.f32 0.0, %v1473
      %v1475 = vpop.f32.mrf.mxu0
      %1476 = vmatprep.mubr.bf16.mxu0 0
      %1477 = vmatmul.mubr.bf16.gmra.mxu0 %v1264
      %v1478 = vpop.f32.mrf.mxu0
      %v1479 = vadd.f32 0.0, %v1478
      %v1480 = vpop.f32.mrf.mxu0
      %v1481 = vpop.f32.mrf.mxu0
      %v1482 = vadd.f32 0.0, %v1481
      %v1483 = vpop.f32.mrf.mxu0
      %1484 = vmatprep.mubr.bf16.mxu0 0
      %1485 = vmatmul.mubr.bf16.gmra.mxu0 %v1265
      %v1486 = vpop.f32.mrf.mxu0
      %v1487 = vadd.f32 0.0, %v1486
      %v1488 = vpop.f32.mrf.mxu0
      %v1489 = vpop.f32.mrf.mxu0
      %v1490 = vadd.f32 0.0, %v1489
      %v1491 = vpop.f32.mrf.mxu0
      %1492 = vmatprep.mubr.bf16.mxu0 0
      %1493 = vmatmul.mubr.bf16.gmra.mxu0 %v1266
      %v1494 = vpop.f32.mrf.mxu0
      %v1495 = vadd.f32 0.0, %v1494
      %v1496 = vpop.f32.mrf.mxu0
      %v1497 = vpop.f32.mrf.mxu0
      %v1498 = vadd.f32 0.0, %v1497
      %v1499 = vpop.f32.mrf.mxu0
      %1500 = vmatprep.mubr.bf16.mxu0 0
      %1501 = vmatmul.mubr.bf16.gmra.mxu0 %v1267
      %v1502 = vpop.f32.mrf.mxu0
      %v1503 = vadd.f32 0.0, %v1502
      %v1504 = vpop.f32.mrf.mxu0
      %v1505 = vpop.f32.mrf.mxu0
      %v1506 = vadd.f32 0.0, %v1505
      %v1507 = vpop.f32.mrf.mxu0
      %1508 = vmatprep.mubr.bf16.mxu0 0
      %1509 = vmatmul.mubr.bf16.gmra.mxu0 %v1268
      %v1510 = vpop.f32.mrf.mxu0
      %v1511 = vadd.f32 0.0, %v1510
      %v1512 = vpop.f32.mrf.mxu0
      %v1513 = vpop.f32.mrf.mxu0
      %v1514 = vadd.f32 0.0, %v1513
      %v1515 = vpop.f32.mrf.mxu0
      %1516 = vmatprep.mubr.bf16.mxu0 0
      %1517 = vmatmul.mubr.bf16.gmra.mxu0 %v1269
      %v1518 = vpop.f32.mrf.mxu0
      %v1519 = vadd.f32 0.0, %v1518
      %v1520 = vpop.f32.mrf.mxu0
      %v1521 = vpop.f32.mrf.mxu0
      %v1522 = vadd.f32 0.0, %v1521
      %v1523 = vpop.f32.mrf.mxu0
      %1524 = vmatprep.mubr.bf16.mxu0 0
      %1525 = vmatmul.mubr.bf16.gmra.mxu0 %v1270
      %v1526 = vpop.f32.mrf.mxu0
      %v1527 = vadd.f32 0.0, %v1526
      %v1528 = vpop.f32.mrf.mxu0
      %v1529 = vpop.f32.mrf.mxu0
      %v1530 = vadd.f32 0.0, %v1529
      %v1531 = vpop.f32.mrf.mxu0
      %1532 = vmatprep.mubr.bf16.mxu0 0
      %1533 = vmatmul.mubr.bf16.gmra.mxu0 %v1271
      %v1534 = vpop.f32.mrf.mxu0
      %v1535 = vadd.f32 0.0, %v1534
      %v1536 = vpop.f32.mrf.mxu0
      %v1537 = vpop.f32.mrf.mxu0
      %v1538 = vadd.f32 0.0, %v1537
      %v1539 = vpop.f32.mrf.mxu0
      %1540 = vmatprep.mubr.bf16.mxu0 0
      %1541 = vmatmul.mubr.bf16.gmra.mxu0 %v1272
      %v1542 = vpop.f32.mrf.mxu0
      %v1543 = vadd.f32 0.0, %v1542
      %v1544 = vpop.f32.mrf.mxu0
      %v1545 = vpop.f32.mrf.mxu0
      %v1546 = vadd.f32 0.0, %v1545
      %v1547 = vpop.f32.mrf.mxu0
      %1548 = vmatprep.mubr.bf16.mxu0 0
      %1549 = vmatmul.mubr.bf16.gmra.mxu0 %v1273
      %v1550 = vpop.f32.mrf.mxu0
      %v1551 = vadd.f32 0.0, %v1550
      %v1552 = vpop.f32.mrf.mxu0
      %v1553 = vpop.f32.mrf.mxu0
      %v1554 = vadd.f32 0.0, %v1553
      %v1555 = vpop.f32.mrf.mxu0
      %1556 = vmatprep.mubr.bf16.mxu0 0
      %1557 = vmatmul.mubr.bf16.gmra.mxu0 %v1274
      %v1558 = vpop.f32.mrf.mxu0
      %v1559 = vadd.f32 0.0, %v1558
      %v1560 = vpop.f32.mrf.mxu0
      %v1561 = vpop.f32.mrf.mxu0
      %v1562 = vadd.f32 0.0, %v1561
      %v1563 = vpop.f32.mrf.mxu0
      %1564 = vmatprep.mubr.bf16.mxu0 0
      %1565 = vmatmul.mubr.bf16.gmra.mxu0 %v1275
      %v1566 = vpop.f32.mrf.mxu0
      %v1567 = vadd.f32 0.0, %v1566
      %v1568 = vpop.f32.mrf.mxu0
      %v1569 = vpop.f32.mrf.mxu0
      %v1570 = vadd.f32 0.0, %v1569
      %v1571 = vpop.f32.mrf.mxu0
      %1572 = vdwg.mxu0
      %1573 = vst [vmem:[#allocation3] sm:$0xff] %v1383
      %1574 = vst [vmem:[#allocation3 + $0x8] sm:$0xff] %v1386
      %1575 = vst [vmem:[#allocation3 + $0x10] sm:$0xff] %v1391
      %1576 = vst [vmem:[#allocation3 + $0x18] sm:$0xff] %v1394
      %1577 = vst [vmem:[#allocation3 + $0x20] sm:$0xff] %v1399
      %1578 = vst [vmem:[#allocation3 + $0x28] sm:$0xff] %v1402
      %1579 = vst [vmem:[#allocation3 + $0x30] sm:$0xff] %v1407
      %1580 = vst [vmem:[#allocation3 + $0x38] sm:$0xff] %v1410
      %1581 = vst [vmem:[#allocation3 + $0x40] sm:$0xff] %v1415
      %1582 = vst [vmem:[#allocation3 + $0x48] sm:$0xff] %v1418
      %1583 = vst [vmem:[#allocation3 + $0x50] sm:$0xff] %v1423
      %1584 = vst [vmem:[#allocation3 + $0x58] sm:$0xff] %v1426
      %1585 = vst [vmem:[#allocation3 + $0x60] sm:$0xff] %v1431
      %1586 = vst [vmem:[#allocation3 + $0x68] sm:$0xff] %v1434
      %1587 = vst [vmem:[#allocation3 + $0x70] sm:$0xff] %v1439
      %1588 = vst [vmem:[#allocation3 + $0x78] sm:$0xff] %v1442
      %1589 = vst [vmem:[#allocation3 + $0x80] sm:$0xff] %v1447
      %1590 = vst [vmem:[#allocation3 + $0x88] sm:$0xff] %v1450
      %1591 = vst [vmem:[#allocation3 + $0x90] sm:$0xff] %v1455
      %1592 = vst [vmem:[#allocation3 + $0x98] sm:$0xff] %v1458
      %1593 = vst [vmem:[#allocation3 + $0xa0] sm:$0xff] %v1463
      %1594 = vst [vmem:[#allocation3 + $0xa8] sm:$0xff] %v1466
      %1595 = vst [vmem:[#allocation3 + $0xb0] sm:$0xff] %v1471
      %1596 = vst [vmem:[#allocation3 + $0xb8] sm:$0xff] %v1474
      %1597 = vst [vmem:[#allocation3 + $0xc0] sm:$0xff] %v1479
      %1598 = vst [vmem:[#allocation3 + $0xc8] sm:$0xff] %v1482
      %1599 = vst [vmem:[#allocation3 + $0xd0] sm:$0xff] %v1487
      %1600 = vst [vmem:[#allocation3 + $0xd8] sm:$0xff] %v1490
      %1601 = vst [vmem:[#allocation3 + $0xe0] sm:$0xff] %v1495
      %1602 = vst [vmem:[#allocation3 + $0xe8] sm:$0xff] %v1498
      %1603 = vst [vmem:[#allocation3 + $0xf0] sm:$0xff] %v1503
      %1604 = vst [vmem:[#allocation3 + $0xf8] sm:$0xff] %v1506
      %1605 = vst [vmem:[#allocation3 + $0x100] sm:$0xff] %v1511
      %1606 = vst [vmem:[#allocation3 + $0x108] sm:$0xff] %v1514
      %1607 = vst [vmem:[#allocation3 + $0x110] sm:$0xff] %v1519
      %1608 = vst [vmem:[#allocation3 + $0x118] sm:$0xff] %v1522
      %1609 = vst [vmem:[#allocation3 + $0x120] sm:$0xff] %v1527
      %1610 = vst [vmem:[#allocation3 + $0x128] sm:$0xff] %v1530
      %1611 = vst [vmem:[#allocation3 + $0x130] sm:$0xff] %v1535
      %1612 = vst [vmem:[#allocation3 + $0x138] sm:$0xff] %v1538
      %1613 = vst [vmem:[#allocation3 + $0x140] sm:$0xff] %v1543
      %1614 = vst [vmem:[#allocation3 + $0x148] sm:$0xff] %v1546
      %1615 = vst [vmem:[#allocation3 + $0x150] sm:$0xff] %v1551
      %1616 = vst [vmem:[#allocation3 + $0x158] sm:$0xff] %v1554
      %1617 = vst [vmem:[#allocation3 + $0x160] sm:$0xff] %v1559
      %1618 = vst [vmem:[#allocation3 + $0x168] sm:$0xff] %v1562
      %1619 = vst [vmem:[#allocation3 + $0x170] sm:$0xff] %v1567
      %1620 = vst [vmem:[#allocation3 + $0x178] sm:$0xff] %v1570
      %v1621 = vld [vmem:[#allocation2] sm:$0xf]
      %v1622 = vld [vmem:[#allocation2 + $0x4] sm:$0xf]
      %v1623 = vld [vmem:[#allocation2 + $0x8] sm:$0xf]
      %v1624 = vld [vmem:[#allocation2 + $0xc] sm:$0xf]
      %v1625 = vld [vmem:[#allocation2 + $0x10] sm:$0xf]
      %v1626 = vld [vmem:[#allocation2 + $0x14] sm:$0xf]
      %v1627 = vld [vmem:[#allocation2 + $0x18] sm:$0xf]
      %v1628 = vld [vmem:[#allocation2 + $0x1c] sm:$0xf]
      %v1629 = vld [vmem:[#allocation2 + $0x20] sm:$0xf]
      %v1630 = vld [vmem:[#allocation2 + $0x24] sm:$0xf]
      %v1631 = vld [vmem:[#allocation2 + $0x28] sm:$0xf]
      %v1632 = vld [vmem:[#allocation2 + $0x2c] sm:$0xf]
      %v1633 = vld [vmem:[#allocation2 + $0x30] sm:$0xf]
      %v1634 = vld [vmem:[#allocation2 + $0x34] sm:$0xf]
      %v1635 = vld [vmem:[#allocation2 + $0x38] sm:$0xf]
      %v1636 = vld [vmem:[#allocation2 + $0x3c] sm:$0xf]
      %v1637 = vld [vmem:[#allocation2 + $0x40] sm:$0xf]
      %v1638 = vld [vmem:[#allocation2 + $0x44] sm:$0xf]
      %v1639 = vld [vmem:[#allocation2 + $0x48] sm:$0xf]
      %v1640 = vld [vmem:[#allocation2 + $0x4c] sm:$0xf]
      %v1641 = vld [vmem:[#allocation2 + $0x50] sm:$0xf]
      %v1642 = vld [vmem:[#allocation2 + $0x54] sm:$0xf]
      %v1643 = vld [vmem:[#allocation2 + $0x58] sm:$0xf]
      %v1644 = vld [vmem:[#allocation2 + $0x5c] sm:$0xf]
      %v1645 = vld [vmem:[#allocation2 + $0x60] sm:$0xf]
      %v1646 = vld [vmem:[#allocation2 + $0x64] sm:$0xf]
      %v1647 = vld [vmem:[#allocation2 + $0x68] sm:$0xf]
      %v1648 = vld [vmem:[#allocation2 + $0x6c] sm:$0xf]
      %v1649 = vld [vmem:[#allocation2 + $0x70] sm:$0xf]
      %v1650 = vld [vmem:[#allocation2 + $0x74] sm:$0xf]
      %v1651 = vld [vmem:[#allocation2 + $0x78] sm:$0xf]
      %v1652 = vld [vmem:[#allocation2 + $0x7c] sm:$0xf]
      %v1653 = vld [vmem:[#allocation2 + $0x80] sm:$0xf]
      %v1654 = vld [vmem:[#allocation2 + $0x84] sm:$0xf]
      %v1655 = vld [vmem:[#allocation2 + $0x88] sm:$0xf]
      %v1656 = vld [vmem:[#allocation2 + $0x8c] sm:$0xf]
      %v1657 = vld [vmem:[#allocation2 + $0x90] sm:$0xf]
      %v1658 = vld [vmem:[#allocation2 + $0x94] sm:$0xf]
      %v1659 = vld [vmem:[#allocation2 + $0x98] sm:$0xf]
      %v1660 = vld [vmem:[#allocation2 + $0x9c] sm:$0xf]
      %v1661 = vld [vmem:[#allocation2 + $0xa0] sm:$0xf]
      %v1662 = vld [vmem:[#allocation2 + $0xa4] sm:$0xf]
      %v1663 = vld [vmem:[#allocation2 + $0xa8] sm:$0xf]
      %v1664 = vld [vmem:[#allocation2 + $0xac] sm:$0xf]
      %v1665 = vld [vmem:[#allocation2 + $0xb0] sm:$0xf]
      %v1666 = vld [vmem:[#allocation2 + $0xb4] sm:$0xf]
      %v1667 = vld [vmem:[#allocation2 + $0xb8] sm:$0xf]
      %v1668 = vld [vmem:[#allocation2 + $0xbc] sm:$0xf]
      %v1669 = vld [vmem:[#allocation2 + $0xc0] sm:$0x1]
      %s1670 = scalar_lea.vmem %s4, 64
      %v1671 = vld [vmem:[%s1670] sm:$0xf]
      %v1672 = vld [vmem:[%s1670 + $0x4] sm:$0xf]
      %v1673 = vld [vmem:[%s1670 + $0x8] sm:$0xf]
      %v1674 = vld [vmem:[%s1670 + $0xc] sm:$0xf]
      %v1675 = vld [vmem:[%s1670 + $0x10] sm:$0xf]
      %v1676 = vld [vmem:[%s1670 + $0x14] sm:$0xf]
      %v1677 = vld [vmem:[%s1670 + $0x18] sm:$0xf]
      %v1678 = vld [vmem:[%s1670 + $0x1c] sm:$0xf]
      %v1679 = vld [vmem:[%s1670 + $0x20] sm:$0xf]
      %v1680 = vld [vmem:[%s1670 + $0x24] sm:$0xf]
      %v1681 = vld [vmem:[%s1670 + $0x28] sm:$0xf]
      %v1682 = vld [vmem:[%s1670 + $0x2c] sm:$0xf]
      %v1683 = vld [vmem:[%s1670 + $0x30] sm:$0xf]
      %v1684 = vld [vmem:[%s1670 + $0x34] sm:$0xf]
      %v1685 = vld [vmem:[%s1670 + $0x38] sm:$0xf]
      %v1686 = vld [vmem:[%s1670 + $0x3c] sm:$0xf]
      %v1736 = vunpack.c.l.b16 %v1621
      %v1737 = vunpack.c.l.b16 %v1622
      %v1738 = vunpack.c.l.b16 %v1623
      %v1739 = vunpack.c.l.b16 %v1624
      %v1740 = vunpack.c.l.b16 %v1625
      %v1741 = vunpack.c.l.b16 %v1626
      %v1742 = vunpack.c.l.b16 %v1627
      %v1743 = vunpack.c.l.b16 %v1628
      %v1744 = vunpack.c.l.b16 %v1629
      %v1745 = vunpack.c.l.b16 %v1630
      %v1746 = vunpack.c.l.b16 %v1631
      %v1747 = vunpack.c.l.b16 %v1632
      %v1748 = vunpack.c.l.b16 %v1633
      %v1749 = vunpack.c.l.b16 %v1634
      %v1750 = vunpack.c.l.b16 %v1635
      %v1751 = vunpack.c.l.b16 %v1636
      %v1752 = vunpack.c.l.b16 %v1637
      %v1753 = vunpack.c.l.b16 %v1638
      %v1754 = vunpack.c.l.b16 %v1639
      %v1755 = vunpack.c.l.b16 %v1640
      %v1756 = vunpack.c.l.b16 %v1641
      %v1757 = vunpack.c.l.b16 %v1642
      %v1758 = vunpack.c.l.b16 %v1643
      %v1759 = vunpack.c.l.b16 %v1644
      %v1760 = vunpack.c.l.b16 %v1645
      %v1761 = vunpack.c.l.b16 %v1646
      %v1762 = vunpack.c.l.b16 %v1647
      %v1763 = vunpack.c.l.b16 %v1648
      %v1764 = vunpack.c.l.b16 %v1649
      %v1765 = vunpack.c.l.b16 %v1650
      %v1766 = vunpack.c.l.b16 %v1651
      %v1767 = vunpack.c.l.b16 %v1652
      %v1768 = vunpack.c.l.b16 %v1653
      %v1769 = vunpack.c.l.b16 %v1654
      %v1770 = vunpack.c.l.b16 %v1655
      %v1771 = vunpack.c.l.b16 %v1656
      %v1772 = vunpack.c.l.b16 %v1657
      %v1773 = vunpack.c.l.b16 %v1658
      %v1774 = vunpack.c.l.b16 %v1659
      %v1775 = vunpack.c.l.b16 %v1660
      %v1776 = vunpack.c.l.b16 %v1661
      %v1777 = vunpack.c.l.b16 %v1662
      %v1778 = vunpack.c.l.b16 %v1663
      %v1779 = vunpack.c.l.b16 %v1664
      %v1780 = vunpack.c.l.b16 %v1665
      %v1781 = vunpack.c.l.b16 %v1666
      %v1782 = vunpack.c.l.b16 %v1667
      %v1783 = vunpack.c.l.b16 %v1668
      %v1784 = vunpack.c.l.b16 %v1669
      %v1785 = vpack.c.b16 %v1737, %v1736
      %v1786 = vpack.c.b16 %v1739, %v1738
      %v1787 = vpack.c.b16 %v1741, %v1740
      %v1788 = vpack.c.b16 %v1743, %v1742
      %v1789 = vpack.c.b16 %v1745, %v1744
      %v1790 = vpack.c.b16 %v1747, %v1746
      %v1791 = vpack.c.b16 %v1749, %v1748
      %v1792 = vpack.c.b16 %v1751, %v1750
      %v1793 = vpack.c.b16 %v1753, %v1752
      %v1794 = vpack.c.b16 %v1755, %v1754
      %v1795 = vpack.c.b16 %v1757, %v1756
      %v1796 = vpack.c.b16 %v1759, %v1758
      %v1797 = vpack.c.b16 %v1761, %v1760
      %v1798 = vpack.c.b16 %v1763, %v1762
      %v1799 = vpack.c.b16 %v1765, %v1764
      %v1800 = vpack.c.b16 %v1767, %v1766
      %v1801 = vpack.c.b16 %v1769, %v1768
      %v1802 = vpack.c.b16 %v1771, %v1770
      %v1803 = vpack.c.b16 %v1773, %v1772
      %v1804 = vpack.c.b16 %v1775, %v1774
      %v1805 = vpack.c.b16 %v1777, %v1776
      %v1806 = vpack.c.b16 %v1779, %v1778
      %v1807 = vpack.c.b16 %v1781, %v1780
      %v1808 = vpack.c.b16 %v1783, %v1782
      %v1809 = vpack.c.b16 %v1784, %v1784
      %vm1810 = vsmask.f32 7424
      %v1812 = vshrl.u32 %v1785, 16
      %v1814 = vshll.u32 %v1785, 16
      %v1816 = vrot.slane %v1814, 1
      %v1817 = vor.u32 %v1812, %v1816
      %v1819 = vshll.u32 %v1786, 16
      %v1821 = vrot.slane %v1819, 1
      %v1822 = vsel %vm1810, %v1817, %v1821
      %v1823 = vshrl.u32 %v1786, 16
      %v1825 = vor.u32 %v1823, %v1821
      %v1827 = vshll.u32 %v1787, 16
      %v1829 = vrot.slane %v1827, 1
      %v1830 = vsel %vm1810, %v1825, %v1829
      %v1831 = vshrl.u32 %v1787, 16
      %v1833 = vor.u32 %v1831, %v1829
      %v1835 = vshll.u32 %v1788, 16
      %v1837 = vrot.slane %v1835, 1
      %v1838 = vsel %vm1810, %v1833, %v1837
      %v1839 = vshrl.u32 %v1788, 16
      %v1841 = vor.u32 %v1839, %v1837
      %v1843 = vshll.u32 %v1789, 16
      %v1845 = vrot.slane %v1843, 1
      %v1846 = vsel %vm1810, %v1841, %v1845
      %v1847 = vshrl.u32 %v1789, 16
      %v1849 = vor.u32 %v1847, %v1845
      %v1851 = vshll.u32 %v1790, 16
      %v1853 = vrot.slane %v1851, 1
      %v1854 = vsel %vm1810, %v1849, %v1853
      %v1855 = vshrl.u32 %v1790, 16
      %v1857 = vor.u32 %v1855, %v1853
      %v1859 = vshll.u32 %v1791, 16
      %v1861 = vrot.slane %v1859, 1
      %v1862 = vsel %vm1810, %v1857, %v1861
      %v1863 = vshrl.u32 %v1791, 16
      %v1865 = vor.u32 %v1863, %v1861
      %v1867 = vshll.u32 %v1792, 16
      %v1869 = vrot.slane %v1867, 1
      %v1870 = vsel %vm1810, %v1865, %v1869
      %v1871 = vshrl.u32 %v1792, 16
      %v1873 = vor.u32 %v1871, %v1869
      %v1875 = vshll.u32 %v1793, 16
      %v1877 = vrot.slane %v1875, 1
      %v1878 = vsel %vm1810, %v1873, %v1877
      %v1879 = vshrl.u32 %v1793, 16
      %v1881 = vor.u32 %v1879, %v1877
      %v1883 = vshll.u32 %v1794, 16
      %v1885 = vrot.slane %v1883, 1
      %v1886 = vsel %vm1810, %v1881, %v1885
      %v1887 = vshrl.u32 %v1794, 16
      %v1889 = vor.u32 %v1887, %v1885
      %v1891 = vshll.u32 %v1795, 16
      %v1893 = vrot.slane %v1891, 1
      %v1894 = vsel %vm1810, %v1889, %v1893
      %v1895 = vshrl.u32 %v1795, 16
      %v1897 = vor.u32 %v1895, %v1893
      %v1899 = vshll.u32 %v1796, 16
      %v1901 = vrot.slane %v1899, 1
      %v1902 = vsel %vm1810, %v1897, %v1901
      %v1903 = vshrl.u32 %v1796, 16
      %v1905 = vor.u32 %v1903, %v1901
      %v1907 = vshll.u32 %v1797, 16
      %v1909 = vrot.slane %v1907, 1
      %v1910 = vsel %vm1810, %v1905, %v1909
      %v1911 = vshrl.u32 %v1797, 16
      %v1913 = vor.u32 %v1911, %v1909
      %v1915 = vshll.u32 %v1798, 16
      %v1917 = vrot.slane %v1915, 1
      %v1918 = vsel %vm1810, %v1913, %v1917
      %v1919 = vshrl.u32 %v1798, 16
      %v1921 = vor.u32 %v1919, %v1917
      %v1923 = vshll.u32 %v1799, 16
      %v1925 = vrot.slane %v1923, 1
      %v1926 = vsel %vm1810, %v1921, %v1925
      %v1927 = vshrl.u32 %v1799, 16
      %v1929 = vor.u32 %v1927, %v1925
      %v1931 = vshll.u32 %v1800, 16
      %v1933 = vrot.slane %v1931, 1
      %v1934 = vsel %vm1810, %v1929, %v1933
      %v1935 = vshrl.u32 %v1800, 16
      %v1937 = vor.u32 %v1935, %v1933
      %v1939 = vshll.u32 %v1801, 16
      %v1941 = vrot.slane %v1939, 1
      %v1942 = vsel %vm1810, %v1937, %v1941
      %v1943 = vshrl.u32 %v1801, 16
      %v1945 = vor.u32 %v1943, %v1941
      %v1947 = vshll.u32 %v1802, 16
      %v1949 = vrot.slane %v1947, 1
      %v1950 = vsel %vm1810, %v1945, %v1949
      %v1951 = vshrl.u32 %v1802, 16
      %v1953 = vor.u32 %v1951, %v1949
      %v1955 = vshll.u32 %v1803, 16
      %v1957 = vrot.slane %v1955, 1
      %v1958 = vsel %vm1810, %v1953, %v1957
      %v1959 = vshrl.u32 %v1803, 16
      %v1961 = vor.u32 %v1959, %v1957
      %v1963 = vshll.u32 %v1804, 16
      %v1965 = vrot.slane %v1963, 1
      %v1966 = vsel %vm1810, %v1961, %v1965
      %v1967 = vshrl.u32 %v1804, 16
      %v1969 = vor.u32 %v1967, %v1965
      %v1971 = vshll.u32 %v1805, 16
      %v1973 = vrot.slane %v1971, 1
      %v1974 = vsel %vm1810, %v1969, %v1973
      %v1975 = vshrl.u32 %v1805, 16
      %v1977 = vor.u32 %v1975, %v1973
      %v1979 = vshll.u32 %v1806, 16
      %v1981 = vrot.slane %v1979, 1
      %v1982 = vsel %vm1810, %v1977, %v1981
      %v1983 = vshrl.u32 %v1806, 16
      %v1985 = vor.u32 %v1983, %v1981
      %v1987 = vshll.u32 %v1807, 16
      %v1989 = vrot.slane %v1987, 1
      %v1990 = vsel %vm1810, %v1985, %v1989
      %v1991 = vshrl.u32 %v1807, 16
      %v1993 = vor.u32 %v1991, %v1989
      %v1995 = vshll.u32 %v1808, 16
      %v1997 = vrot.slane %v1995, 1
      %v1998 = vsel %vm1810, %v1993, %v1997
      %v1999 = vshrl.u32 %v1808, 16
      %v2001 = vor.u32 %v1999, %v1997
      %v2003 = vshll.u32 %v1809, 16
      %v2005 = vrot.slane %v2003, 1
      %v2006 = vsel %vm1810, %v2001, %v2005
      %v2047 = vunpack.c.l.b16 %v1671
      %v2048 = vunpack.c.l.b16 %v1672
      %v2049 = vunpack.c.l.b16 %v1673
      %v2050 = vunpack.c.l.b16 %v1674
      %v2051 = vunpack.c.l.b16 %v1675
      %v2052 = vunpack.c.l.b16 %v1676
      %v2053 = vunpack.c.l.b16 %v1677
      %v2054 = vunpack.c.l.b16 %v1678
      %v2055 = vunpack.c.l.b16 %v1679
      %v2056 = vunpack.c.l.b16 %v1680
      %v2057 = vunpack.c.l.b16 %v1681
      %v2058 = vunpack.c.l.b16 %v1682
      %v2059 = vunpack.c.l.b16 %v1683
      %v2060 = vunpack.c.l.b16 %v1684
      %v2061 = vunpack.c.l.b16 %v1685
      %v2062 = vunpack.c.l.b16 %v1686
      %v2063 = vpack.c.b16 %v2048, %v2047
      %v2064 = vpack.c.b16 %v2050, %v2049
      %v2065 = vpack.c.b16 %v2052, %v2051
      %v2066 = vpack.c.b16 %v2054, %v2053
      %v2067 = vpack.c.b16 %v2056, %v2055
      %v2068 = vpack.c.b16 %v2058, %v2057
      %v2069 = vpack.c.b16 %v2060, %v2059
      %v2070 = vpack.c.b16 %v2062, %v2061
      %2079 = vmatprep.subr.bf16.mxu0 0
      %2080 = vmatpush1.bf16.msra.mxu0 %v2070
      %2081 = vmatprep.subr.bf16.mxu0 0
      %2082 = vmatpush1.bf16.msra.mxu0 %v2069
      %2083 = vmatprep.subr.bf16.mxu0 0
      %2084 = vmatpush1.bf16.msra.mxu0 %v2068
      %2085 = vmatprep.subr.bf16.mxu0 0
      %2086 = vmatpush1.bf16.msra.mxu0 %v2067
      %2087 = vmatprep.subr.bf16.mxu0 0
      %2088 = vmatpush1.bf16.msra.mxu0 %v2066
      %2089 = vmatprep.subr.bf16.mxu0 0
      %2090 = vmatpush1.bf16.msra.mxu0 %v2065
      %2091 = vmatprep.subr.bf16.mxu0 0
      %2092 = vmatpush1.bf16.msra.mxu0 %v2064
      %2093 = vmatprep.subr.bf16.mxu0 0
      %2094 = vmatpush1.bf16.msra.mxu0 %v2063
      %2095 = vmatprep.subr.bf16.mxu0 0
      %2096 = vmatpush2.bf16.msra.mxu0 0
      %2097 = vmatprep.subr.bf16.mxu0 0
      %2098 = vmatpush2.bf16.msra.mxu0 0
      %2099 = vmatprep.subr.bf16.mxu0 0
      %2100 = vmatpush2.bf16.msra.mxu0 0
      %2101 = vmatprep.subr.bf16.mxu0 0
      %2102 = vmatpush2.bf16.msra.mxu0 0
      %2103 = vmatprep.subr.bf16.mxu0 0
      %2104 = vmatpush2.bf16.msra.mxu0 0
      %2105 = vmatprep.subr.bf16.mxu0 0
      %2106 = vmatpush2.bf16.msra.mxu0 0
      %2107 = vmatprep.subr.bf16.mxu0 0
      %2108 = vmatpush2.bf16.msra.mxu0 0
      %2109 = vmatprep.subr.bf16.mxu0 0
      %2110 = vmatpush2.bf16.msra.mxu0 0
      %2111 = vmatprep.mubr.bf16.mxu0 0
      %2112 = vmatmul.mubr.bf16.gmra.mxu0 %v1822
      %v2113 = vpop.f32.mrf.mxu0
      %v2114 = vadd.f32 0.0, %v2113
      %v2115 = vpop.f32.mrf.mxu0
      %v2116 = vpop.f32.mrf.mxu0
      %v2117 = vadd.f32 0.0, %v2116
      %v2118 = vpop.f32.mrf.mxu0
      %2119 = vmatprep.mubr.bf16.mxu0 0
      %2120 = vmatmul.mubr.bf16.gmra.mxu0 %v1830
      %v2121 = vpop.f32.mrf.mxu0
      %v2122 = vadd.f32 0.0, %v2121
      %v2123 = vpop.f32.mrf.mxu0
      %v2124 = vpop.f32.mrf.mxu0
      %v2125 = vadd.f32 0.0, %v2124
      %v2126 = vpop.f32.mrf.mxu0
      %2127 = vmatprep.mubr.bf16.mxu0 0
      %2128 = vmatmul.mubr.bf16.gmra.mxu0 %v1838
      %v2129 = vpop.f32.mrf.mxu0
      %v2130 = vadd.f32 0.0, %v2129
      %v2131 = vpop.f32.mrf.mxu0
      %v2132 = vpop.f32.mrf.mxu0
      %v2133 = vadd.f32 0.0, %v2132
      %v2134 = vpop.f32.mrf.mxu0
      %2135 = vmatprep.mubr.bf16.mxu0 0
      %2136 = vmatmul.mubr.bf16.gmra.mxu0 %v1846
      %v2137 = vpop.f32.mrf.mxu0
      %v2138 = vadd.f32 0.0, %v2137
      %v2139 = vpop.f32.mrf.mxu0
      %v2140 = vpop.f32.mrf.mxu0
      %v2141 = vadd.f32 0.0, %v2140
      %v2142 = vpop.f32.mrf.mxu0
      %2143 = vmatprep.mubr.bf16.mxu0 0
      %2144 = vmatmul.mubr.bf16.gmra.mxu0 %v1854
      %v2145 = vpop.f32.mrf.mxu0
      %v2146 = vadd.f32 0.0, %v2145
      %v2147 = vpop.f32.mrf.mxu0
      %v2148 = vpop.f32.mrf.mxu0
      %v2149 = vadd.f32 0.0, %v2148
      %v2150 = vpop.f32.mrf.mxu0
      %2151 = vmatprep.mubr.bf16.mxu0 0
      %2152 = vmatmul.mubr.bf16.gmra.mxu0 %v1862
      %v2153 = vpop.f32.mrf.mxu0
      %v2154 = vadd.f32 0.0, %v2153
      %v2155 = vpop.f32.mrf.mxu0
      %v2156 = vpop.f32.mrf.mxu0
      %v2157 = vadd.f32 0.0, %v2156
      %v2158 = vpop.f32.mrf.mxu0
      %2159 = vmatprep.mubr.bf16.mxu0 0
      %2160 = vmatmul.mubr.bf16.gmra.mxu0 %v1870
      %v2161 = vpop.f32.mrf.mxu0
      %v2162 = vadd.f32 0.0, %v2161
      %v2163 = vpop.f32.mrf.mxu0
      %v2164 = vpop.f32.mrf.mxu0
      %v2165 = vadd.f32 0.0, %v2164
      %v2166 = vpop.f32.mrf.mxu0
      %2167 = vmatprep.mubr.bf16.mxu0 0
      %2168 = vmatmul.mubr.bf16.gmra.mxu0 %v1878
      %v2169 = vpop.f32.mrf.mxu0
      %v2170 = vadd.f32 0.0, %v2169
      %v2171 = vpop.f32.mrf.mxu0
      %v2172 = vpop.f32.mrf.mxu0
      %v2173 = vadd.f32 0.0, %v2172
      %v2174 = vpop.f32.mrf.mxu0
      %2175 = vmatprep.mubr.bf16.mxu0 0
      %2176 = vmatmul.mubr.bf16.gmra.mxu0 %v1886
      %v2177 = vpop.f32.mrf.mxu0
      %v2178 = vadd.f32 0.0, %v2177
      %v2179 = vpop.f32.mrf.mxu0
      %v2180 = vpop.f32.mrf.mxu0
      %v2181 = vadd.f32 0.0, %v2180
      %v2182 = vpop.f32.mrf.mxu0
      %2183 = vmatprep.mubr.bf16.mxu0 0
      %2184 = vmatmul.mubr.bf16.gmra.mxu0 %v1894
      %v2185 = vpop.f32.mrf.mxu0
      %v2186 = vadd.f32 0.0, %v2185
      %v2187 = vpop.f32.mrf.mxu0
      %v2188 = vpop.f32.mrf.mxu0
      %v2189 = vadd.f32 0.0, %v2188
      %v2190 = vpop.f32.mrf.mxu0
      %2191 = vmatprep.mubr.bf16.mxu0 0
      %2192 = vmatmul.mubr.bf16.gmra.mxu0 %v1902
      %v2193 = vpop.f32.mrf.mxu0
      %v2194 = vadd.f32 0.0, %v2193
      %v2195 = vpop.f32.mrf.mxu0
      %v2196 = vpop.f32.mrf.mxu0
      %v2197 = vadd.f32 0.0, %v2196
      %v2198 = vpop.f32.mrf.mxu0
      %2199 = vmatprep.mubr.bf16.mxu0 0
      %2200 = vmatmul.mubr.bf16.gmra.mxu0 %v1910
      %v2201 = vpop.f32.mrf.mxu0
      %v2202 = vadd.f32 0.0, %v2201
      %v2203 = vpop.f32.mrf.mxu0
      %v2204 = vpop.f32.mrf.mxu0
      %v2205 = vadd.f32 0.0, %v2204
      %v2206 = vpop.f32.mrf.mxu0
      %2207 = vmatprep.mubr.bf16.mxu0 0
      %2208 = vmatmul.mubr.bf16.gmra.mxu0 %v1918
      %v2209 = vpop.f32.mrf.mxu0
      %v2210 = vadd.f32 0.0, %v2209
      %v2211 = vpop.f32.mrf.mxu0
      %v2212 = vpop.f32.mrf.mxu0
      %v2213 = vadd.f32 0.0, %v2212
      %v2214 = vpop.f32.mrf.mxu0
      %2215 = vmatprep.mubr.bf16.mxu0 0
      %2216 = vmatmul.mubr.bf16.gmra.mxu0 %v1926
      %v2217 = vpop.f32.mrf.mxu0
      %v2218 = vadd.f32 0.0, %v2217
      %v2219 = vpop.f32.mrf.mxu0
      %v2220 = vpop.f32.mrf.mxu0
      %v2221 = vadd.f32 0.0, %v2220
      %v2222 = vpop.f32.mrf.mxu0
      %2223 = vmatprep.mubr.bf16.mxu0 0
      %2224 = vmatmul.mubr.bf16.gmra.mxu0 %v1934
      %v2225 = vpop.f32.mrf.mxu0
      %v2226 = vadd.f32 0.0, %v2225
      %v2227 = vpop.f32.mrf.mxu0
      %v2228 = vpop.f32.mrf.mxu0
      %v2229 = vadd.f32 0.0, %v2228
      %v2230 = vpop.f32.mrf.mxu0
      %2231 = vmatprep.mubr.bf16.mxu0 0
      %2232 = vmatmul.mubr.bf16.gmra.mxu0 %v1942
      %v2233 = vpop.f32.mrf.mxu0
      %v2234 = vadd.f32 0.0, %v2233
      %v2235 = vpop.f32.mrf.mxu0
      %v2236 = vpop.f32.mrf.mxu0
      %v2237 = vadd.f32 0.0, %v2236
      %v2238 = vpop.f32.mrf.mxu0
      %2239 = vmatprep.mubr.bf16.mxu0 0
      %2240 = vmatmul.mubr.bf16.gmra.mxu0 %v1950
      %v2241 = vpop.f32.mrf.mxu0
      %v2242 = vadd.f32 0.0, %v2241
      %v2243 = vpop.f32.mrf.mxu0
      %v2244 = vpop.f32.mrf.mxu0
      %v2245 = vadd.f32 0.0, %v2244
      %v2246 = vpop.f32.mrf.mxu0
      %2247 = vmatprep.mubr.bf16.mxu0 0
      %2248 = vmatmul.mubr.bf16.gmra.mxu0 %v1958
      %v2249 = vpop.f32.mrf.mxu0
      %v2250 = vadd.f32 0.0, %v2249
      %v2251 = vpop.f32.mrf.mxu0
      %v2252 = vpop.f32.mrf.mxu0
      %v2253 = vadd.f32 0.0, %v2252
      %v2254 = vpop.f32.mrf.mxu0
      %2255 = vmatprep.mubr.bf16.mxu0 0
      %2256 = vmatmul.mubr.bf16.gmra.mxu0 %v1966
      %v2257 = vpop.f32.mrf.mxu0
      %v2258 = vadd.f32 0.0, %v2257
      %v2259 = vpop.f32.mrf.mxu0
      %v2260 = vpop.f32.mrf.mxu0
      %v2261 = vadd.f32 0.0, %v2260
      %v2262 = vpop.f32.mrf.mxu0
      %2263 = vmatprep.mubr.bf16.mxu0 0
      %2264 = vmatmul.mubr.bf16.gmra.mxu0 %v1974
      %v2265 = vpop.f32.mrf.mxu0
      %v2266 = vadd.f32 0.0, %v2265
      %v2267 = vpop.f32.mrf.mxu0
      %v2268 = vpop.f32.mrf.mxu0
      %v2269 = vadd.f32 0.0, %v2268
      %v2270 = vpop.f32.mrf.mxu0
      %2271 = vmatprep.mubr.bf16.mxu0 0
      %2272 = vmatmul.mubr.bf16.gmra.mxu0 %v1982
      %v2273 = vpop.f32.mrf.mxu0
      %v2274 = vadd.f32 0.0, %v2273
      %v2275 = vpop.f32.mrf.mxu0
      %v2276 = vpop.f32.mrf.mxu0
      %v2277 = vadd.f32 0.0, %v2276
      %v2278 = vpop.f32.mrf.mxu0
      %2279 = vmatprep.mubr.bf16.mxu0 0
      %2280 = vmatmul.mubr.bf16.gmra.mxu0 %v1990
      %v2281 = vpop.f32.mrf.mxu0
      %v2282 = vadd.f32 0.0, %v2281
      %v2283 = vpop.f32.mrf.mxu0
      %v2284 = vpop.f32.mrf.mxu0
      %v2285 = vadd.f32 0.0, %v2284
      %v2286 = vpop.f32.mrf.mxu0
      %2287 = vmatprep.mubr.bf16.mxu0 0
      %2288 = vmatmul.mubr.bf16.gmra.mxu0 %v1998
      %v2289 = vpop.f32.mrf.mxu0
      %v2290 = vadd.f32 0.0, %v2289
      %v2291 = vpop.f32.mrf.mxu0
      %v2292 = vpop.f32.mrf.mxu0
      %v2293 = vadd.f32 0.0, %v2292
      %v2294 = vpop.f32.mrf.mxu0
      %2295 = vmatprep.mubr.bf16.mxu0 0
      %2296 = vmatmul.mubr.bf16.gmra.mxu0 %v2006
      %v2297 = vpop.f32.mrf.mxu0
      %v2298 = vadd.f32 0.0, %v2297
      %v2299 = vpop.f32.mrf.mxu0
      %v2300 = vpop.f32.mrf.mxu0
      %v2301 = vadd.f32 0.0, %v2300
      %v2302 = vpop.f32.mrf.mxu0
      %2303 = vdwg.mxu0
      %v2304 = vld [vmem:[#allocation3] sm:$0xff]
      %v2305 = vld [vmem:[#allocation3 + $0x8] sm:$0xff]
      %v2306 = vld [vmem:[#allocation3 + $0x10] sm:$0xff]
      %v2307 = vld [vmem:[#allocation3 + $0x18] sm:$0xff]
      %v2308 = vld [vmem:[#allocation3 + $0x20] sm:$0xff]
      %v2309 = vld [vmem:[#allocation3 + $0x28] sm:$0xff]
      %v2310 = vld [vmem:[#allocation3 + $0x30] sm:$0xff]
      %v2311 = vld [vmem:[#allocation3 + $0x38] sm:$0xff]
      %v2312 = vld [vmem:[#allocation3 + $0x40] sm:$0xff]
      %v2313 = vld [vmem:[#allocation3 + $0x48] sm:$0xff]
      %v2314 = vld [vmem:[#allocation3 + $0x50] sm:$0xff]
      %v2315 = vld [vmem:[#allocation3 + $0x58] sm:$0xff]
      %v2316 = vld [vmem:[#allocation3 + $0x60] sm:$0xff]
      %v2317 = vld [vmem:[#allocation3 + $0x68] sm:$0xff]
      %v2318 = vld [vmem:[#allocation3 + $0x70] sm:$0xff]
      %v2319 = vld [vmem:[#allocation3 + $0x78] sm:$0xff]
      %v2320 = vld [vmem:[#allocation3 + $0x80] sm:$0xff]
      %v2321 = vld [vmem:[#allocation3 + $0x88] sm:$0xff]
      %v2322 = vld [vmem:[#allocation3 + $0x90] sm:$0xff]
      %v2323 = vld [vmem:[#allocation3 + $0x98] sm:$0xff]
      %v2324 = vld [vmem:[#allocation3 + $0xa0] sm:$0xff]
      %v2325 = vld [vmem:[#allocation3 + $0xa8] sm:$0xff]
      %v2326 = vld [vmem:[#allocation3 + $0xb0] sm:$0xff]
      %v2327 = vld [vmem:[#allocation3 + $0xb8] sm:$0xff]
      %v2328 = vld [vmem:[#allocation3 + $0xc0] sm:$0xff]
      %v2329 = vld [vmem:[#allocation3 + $0xc8] sm:$0xff]
      %v2330 = vld [vmem:[#allocation3 + $0xd0] sm:$0xff]
      %v2331 = vld [vmem:[#allocation3 + $0xd8] sm:$0xff]
      %v2332 = vld [vmem:[#allocation3 + $0xe0] sm:$0xff]
      %v2333 = vld [vmem:[#allocation3 + $0xe8] sm:$0xff]
      %v2334 = vld [vmem:[#allocation3 + $0xf0] sm:$0xff]
      %v2335 = vld [vmem:[#allocation3 + $0xf8] sm:$0xff]
      %v2336 = vld [vmem:[#allocation3 + $0x100] sm:$0xff]
      %v2337 = vld [vmem:[#allocation3 + $0x108] sm:$0xff]
      %v2338 = vld [vmem:[#allocation3 + $0x110] sm:$0xff]
      %v2339 = vld [vmem:[#allocation3 + $0x118] sm:$0xff]
      %v2340 = vld [vmem:[#allocation3 + $0x120] sm:$0xff]
      %v2341 = vld [vmem:[#allocation3 + $0x128] sm:$0xff]
      %v2342 = vld [vmem:[#allocation3 + $0x130] sm:$0xff]
      %v2343 = vld [vmem:[#allocation3 + $0x138] sm:$0xff]
      %v2344 = vld [vmem:[#allocation3 + $0x140] sm:$0xff]
      %v2345 = vld [vmem:[#allocation3 + $0x148] sm:$0xff]
      %v2346 = vld [vmem:[#allocation3 + $0x150] sm:$0xff]
      %v2347 = vld [vmem:[#allocation3 + $0x158] sm:$0xff]
      %v2348 = vld [vmem:[#allocation3 + $0x160] sm:$0xff]
      %v2349 = vld [vmem:[#allocation3 + $0x168] sm:$0xff]
      %v2350 = vld [vmem:[#allocation3 + $0x170] sm:$0xff]
      %v2351 = vld [vmem:[#allocation3 + $0x178] sm:$0xff]
      %v2352 = vadd.f32 %v2304, %v2114
      %v2353 = vadd.f32 %v2305, %v2117
      %v2354 = vadd.f32 %v2306, %v2122
      %v2355 = vadd.f32 %v2307, %v2125
      %v2356 = vadd.f32 %v2308, %v2130
      %v2357 = vadd.f32 %v2309, %v2133
      %v2358 = vadd.f32 %v2310, %v2138
      %v2359 = vadd.f32 %v2311, %v2141
      %v2360 = vadd.f32 %v2312, %v2146
      %v2361 = vadd.f32 %v2313, %v2149
      %v2362 = vadd.f32 %v2314, %v2154
      %v2363 = vadd.f32 %v2315, %v2157
      %v2364 = vadd.f32 %v2316, %v2162
      %v2365 = vadd.f32 %v2317, %v2165
      %v2366 = vadd.f32 %v2318, %v2170
      %v2367 = vadd.f32 %v2319, %v2173
      %v2368 = vadd.f32 %v2320, %v2178
      %v2369 = vadd.f32 %v2321, %v2181
      %v2370 = vadd.f32 %v2322, %v2186
      %v2371 = vadd.f32 %v2323, %v2189
      %v2372 = vadd.f32 %v2324, %v2194
      %v2373 = vadd.f32 %v2325, %v2197
      %v2374 = vadd.f32 %v2326, %v2202
      %v2375 = vadd.f32 %v2327, %v2205
      %v2376 = vadd.f32 %v2328, %v2210
      %v2377 = vadd.f32 %v2329, %v2213
      %v2378 = vadd.f32 %v2330, %v2218
      %v2379 = vadd.f32 %v2331, %v2221
      %v2380 = vadd.f32 %v2332, %v2226
      %v2381 = vadd.f32 %v2333, %v2229
      %v2382 = vadd.f32 %v2334, %v2234
      %v2383 = vadd.f32 %v2335, %v2237
      %v2384 = vadd.f32 %v2336, %v2242
      %v2385 = vadd.f32 %v2337, %v2245
      %v2386 = vadd.f32 %v2338, %v2250
      %v2387 = vadd.f32 %v2339, %v2253
      %v2388 = vadd.f32 %v2340, %v2258
      %v2389 = vadd.f32 %v2341, %v2261
      %v2390 = vadd.f32 %v2342, %v2266
      %v2391 = vadd.f32 %v2343, %v2269
      %v2392 = vadd.f32 %v2344, %v2274
      %v2393 = vadd.f32 %v2345, %v2277
      %v2394 = vadd.f32 %v2346, %v2282
      %v2395 = vadd.f32 %v2347, %v2285
      %v2396 = vadd.f32 %v2348, %v2290
      %v2397 = vadd.f32 %v2349, %v2293
      %v2398 = vadd.f32 %v2350, %v2298
      %v2399 = vadd.f32 %v2351, %v2301
      %2400 = vst [vmem:[#allocation3] sm:$0xff] %v2352
      %2401 = vst [vmem:[#allocation3 + $0x8] sm:$0xff] %v2353
      %2402 = vst [vmem:[#allocation3 + $0x10] sm:$0xff] %v2354
      %2403 = vst [vmem:[#allocation3 + $0x18] sm:$0xff] %v2355
      %2404 = vst [vmem:[#allocation3 + $0x20] sm:$0xff] %v2356
      %2405 = vst [vmem:[#allocation3 + $0x28] sm:$0xff] %v2357
      %2406 = vst [vmem:[#allocation3 + $0x30] sm:$0xff] %v2358
      %2407 = vst [vmem:[#allocation3 + $0x38] sm:$0xff] %v2359
      %2408 = vst [vmem:[#allocation3 + $0x40] sm:$0xff] %v2360
      %2409 = vst [vmem:[#allocation3 + $0x48] sm:$0xff] %v2361
      %2410 = vst [vmem:[#allocation3 + $0x50] sm:$0xff] %v2362
      %2411 = vst [vmem:[#allocation3 + $0x58] sm:$0xff] %v2363
      %2412 = vst [vmem:[#allocation3 + $0x60] sm:$0xff] %v2364
      %2413 = vst [vmem:[#allocation3 + $0x68] sm:$0xff] %v2365
      %2414 = vst [vmem:[#allocation3 + $0x70] sm:$0xff] %v2366
      %2415 = vst [vmem:[#allocation3 + $0x78] sm:$0xff] %v2367
      %2416 = vst [vmem:[#allocation3 + $0x80] sm:$0xff] %v2368
      %2417 = vst [vmem:[#allocation3 + $0x88] sm:$0xff] %v2369
      %2418 = vst [vmem:[#allocation3 + $0x90] sm:$0xff] %v2370
      %2419 = vst [vmem:[#allocation3 + $0x98] sm:$0xff] %v2371
      %2420 = vst [vmem:[#allocation3 + $0xa0] sm:$0xff] %v2372
      %2421 = vst [vmem:[#allocation3 + $0xa8] sm:$0xff] %v2373
      %2422 = vst [vmem:[#allocation3 + $0xb0] sm:$0xff] %v2374
      %2423 = vst [vmem:[#allocation3 + $0xb8] sm:$0xff] %v2375
      %2424 = vst [vmem:[#allocation3 + $0xc0] sm:$0xff] %v2376
      %2425 = vst [vmem:[#allocation3 + $0xc8] sm:$0xff] %v2377
      %2426 = vst [vmem:[#allocation3 + $0xd0] sm:$0xff] %v2378
      %2427 = vst [vmem:[#allocation3 + $0xd8] sm:$0xff] %v2379
      %2428 = vst [vmem:[#allocation3 + $0xe0] sm:$0xff] %v2380
      %2429 = vst [vmem:[#allocation3 + $0xe8] sm:$0xff] %v2381
      %2430 = vst [vmem:[#allocation3 + $0xf0] sm:$0xff] %v2382
      %2431 = vst [vmem:[#allocation3 + $0xf8] sm:$0xff] %v2383
      %2432 = vst [vmem:[#allocation3 + $0x100] sm:$0xff] %v2384
      %2433 = vst [vmem:[#allocation3 + $0x108] sm:$0xff] %v2385
      %2434 = vst [vmem:[#allocation3 + $0x110] sm:$0xff] %v2386
      %2435 = vst [vmem:[#allocation3 + $0x118] sm:$0xff] %v2387
      %2436 = vst [vmem:[#allocation3 + $0x120] sm:$0xff] %v2388
      %2437 = vst [vmem:[#allocation3 + $0x128] sm:$0xff] %v2389
      %2438 = vst [vmem:[#allocation3 + $0x130] sm:$0xff] %v2390
      %2439 = vst [vmem:[#allocation3 + $0x138] sm:$0xff] %v2391
      %2440 = vst [vmem:[#allocation3 + $0x140] sm:$0xff] %v2392
      %2441 = vst [vmem:[#allocation3 + $0x148] sm:$0xff] %v2393
      %2442 = vst [vmem:[#allocation3 + $0x150] sm:$0xff] %v2394
      %2443 = vst [vmem:[#allocation3 + $0x158] sm:$0xff] %v2395
      %2444 = vst [vmem:[#allocation3 + $0x160] sm:$0xff] %v2396
      %2445 = vst [vmem:[#allocation3 + $0x168] sm:$0xff] %v2397
      %2446 = vst [vmem:[#allocation3 + $0x170] sm:$0xff] %v2398
      %2447 = vst [vmem:[#allocation3 + $0x178] sm:$0xff] %v2399
      %v2448 = vld [vmem:[#allocation2] sm:$0xe]
      %v2449 = vld [vmem:[#allocation2 + $0x4] sm:$0xf]
      %v2450 = vld [vmem:[#allocation2 + $0x8] sm:$0xf]
      %v2451 = vld [vmem:[#allocation2 + $0xc] sm:$0xf]
      %v2452 = vld [vmem:[#allocation2 + $0x10] sm:$0xf]
      %v2453 = vld [vmem:[#allocation2 + $0x14] sm:$0xf]
      %v2454 = vld [vmem:[#allocation2 + $0x18] sm:$0xf]
      %v2455 = vld [vmem:[#allocation2 + $0x1c] sm:$0xf]
      %v2456 = vld [vmem:[#allocation2 + $0x20] sm:$0xf]
      %v2457 = vld [vmem:[#allocation2 + $0x24] sm:$0xf]
      %v2458 = vld [vmem:[#allocation2 + $0x28] sm:$0xf]
      %v2459 = vld [vmem:[#allocation2 + $0x2c] sm:$0xf]
      %v2460 = vld [vmem:[#allocation2 + $0x30] sm:$0xf]
      %v2461 = vld [vmem:[#allocation2 + $0x34] sm:$0xf]
      %v2462 = vld [vmem:[#allocation2 + $0x38] sm:$0xf]
      %v2463 = vld [vmem:[#allocation2 + $0x3c] sm:$0xf]
      %v2464 = vld [vmem:[#allocation2 + $0x40] sm:$0xf]
      %v2465 = vld [vmem:[#allocation2 + $0x44] sm:$0xf]
      %v2466 = vld [vmem:[#allocation2 + $0x48] sm:$0xf]
      %v2467 = vld [vmem:[#allocation2 + $0x4c] sm:$0xf]
      %v2468 = vld [vmem:[#allocation2 + $0x50] sm:$0xf]
      %v2469 = vld [vmem:[#allocation2 + $0x54] sm:$0xf]
      %v2470 = vld [vmem:[#allocation2 + $0x58] sm:$0xf]
      %v2471 = vld [vmem:[#allocation2 + $0x5c] sm:$0xf]
      %v2472 = vld [vmem:[#allocation2 + $0x60] sm:$0xf]
      %v2473 = vld [vmem:[#allocation2 + $0x64] sm:$0xf]
      %v2474 = vld [vmem:[#allocation2 + $0x68] sm:$0xf]
      %v2475 = vld [vmem:[#allocation2 + $0x6c] sm:$0xf]
      %v2476 = vld [vmem:[#allocation2 + $0x70] sm:$0xf]
      %v2477 = vld [vmem:[#allocation2 + $0x74] sm:$0xf]
      %v2478 = vld [vmem:[#allocation2 + $0x78] sm:$0xf]
      %v2479 = vld [vmem:[#allocation2 + $0x7c] sm:$0xf]
      %v2480 = vld [vmem:[#allocation2 + $0x80] sm:$0xf]
      %v2481 = vld [vmem:[#allocation2 + $0x84] sm:$0xf]
      %v2482 = vld [vmem:[#allocation2 + $0x88] sm:$0xf]
      %v2483 = vld [vmem:[#allocation2 + $0x8c] sm:$0xf]
      %v2484 = vld [vmem:[#allocation2 + $0x90] sm:$0xf]
      %v2485 = vld [vmem:[#allocation2 + $0x94] sm:$0xf]
      %v2486 = vld [vmem:[#allocation2 + $0x98] sm:$0xf]
      %v2487 = vld [vmem:[#allocation2 + $0x9c] sm:$0xf]
      %v2488 = vld [vmem:[#allocation2 + $0xa0] sm:$0xf]
      %v2489 = vld [vmem:[#allocation2 + $0xa4] sm:$0xf]
      %v2490 = vld [vmem:[#allocation2 + $0xa8] sm:$0xf]
      %v2491 = vld [vmem:[#allocation2 + $0xac] sm:$0xf]
      %v2492 = vld [vmem:[#allocation2 + $0xb0] sm:$0xf]
      %v2493 = vld [vmem:[#allocation2 + $0xb4] sm:$0xf]
      %v2494 = vld [vmem:[#allocation2 + $0xb8] sm:$0xf]
      %v2495 = vld [vmem:[#allocation2 + $0xbc] sm:$0xf]
      %v2496 = vld [vmem:[#allocation2 + $0xc0] sm:$0x1]
      %s2497 = scalar_lea.vmem %s4, 128
      %v2498 = vld [vmem:[%s2497] sm:$0xf]
      %v2499 = vld [vmem:[%s2497 + $0x4] sm:$0xf]
      %v2500 = vld [vmem:[%s2497 + $0x8] sm:$0xf]
      %v2501 = vld [vmem:[%s2497 + $0xc] sm:$0xf]
      %v2502 = vld [vmem:[%s2497 + $0x10] sm:$0xf]
      %v2503 = vld [vmem:[%s2497 + $0x14] sm:$0xf]
      %v2504 = vld [vmem:[%s2497 + $0x18] sm:$0xf]
      %v2505 = vld [vmem:[%s2497 + $0x1c] sm:$0xf]
      %v2506 = vld [vmem:[%s2497 + $0x20] sm:$0xf]
      %v2507 = vld [vmem:[%s2497 + $0x24] sm:$0xf]
      %v2508 = vld [vmem:[%s2497 + $0x28] sm:$0xf]
      %v2509 = vld [vmem:[%s2497 + $0x2c] sm:$0xf]
      %v2510 = vld [vmem:[%s2497 + $0x30] sm:$0xf]
      %v2511 = vld [vmem:[%s2497 + $0x34] sm:$0xf]
      %v2512 = vld [vmem:[%s2497 + $0x38] sm:$0xf]
      %v2513 = vld [vmem:[%s2497 + $0x3c] sm:$0xf]
      %v2563 = vunpack.c.l.b16 %v2448
      %v2564 = vunpack.c.l.b16 %v2449
      %v2565 = vunpack.c.l.b16 %v2450
      %v2566 = vunpack.c.l.b16 %v2451
      %v2567 = vunpack.c.l.b16 %v2452
      %v2568 = vunpack.c.l.b16 %v2453
      %v2569 = vunpack.c.l.b16 %v2454
      %v2570 = vunpack.c.l.b16 %v2455
      %v2571 = vunpack.c.l.b16 %v2456
      %v2572 = vunpack.c.l.b16 %v2457
      %v2573 = vunpack.c.l.b16 %v2458
      %v2574 = vunpack.c.l.b16 %v2459
      %v2575 = vunpack.c.l.b16 %v2460
      %v2576 = vunpack.c.l.b16 %v2461
      %v2577 = vunpack.c.l.b16 %v2462
      %v2578 = vunpack.c.l.b16 %v2463
      %v2579 = vunpack.c.l.b16 %v2464
      %v2580 = vunpack.c.l.b16 %v2465
      %v2581 = vunpack.c.l.b16 %v2466
      %v2582 = vunpack.c.l.b16 %v2467
      %v2583 = vunpack.c.l.b16 %v2468
      %v2584 = vunpack.c.l.b16 %v2469
      %v2585 = vunpack.c.l.b16 %v2470
      %v2586 = vunpack.c.l.b16 %v2471
      %v2587 = vunpack.c.l.b16 %v2472
      %v2588 = vunpack.c.l.b16 %v2473
      %v2589 = vunpack.c.l.b16 %v2474
      %v2590 = vunpack.c.l.b16 %v2475
      %v2591 = vunpack.c.l.b16 %v2476
      %v2592 = vunpack.c.l.b16 %v2477
      %v2593 = vunpack.c.l.b16 %v2478
      %v2594 = vunpack.c.l.b16 %v2479
      %v2595 = vunpack.c.l.b16 %v2480
      %v2596 = vunpack.c.l.b16 %v2481
      %v2597 = vunpack.c.l.b16 %v2482
      %v2598 = vunpack.c.l.b16 %v2483
      %v2599 = vunpack.c.l.b16 %v2484
      %v2600 = vunpack.c.l.b16 %v2485
      %v2601 = vunpack.c.l.b16 %v2486
      %v2602 = vunpack.c.l.b16 %v2487
      %v2603 = vunpack.c.l.b16 %v2488
      %v2604 = vunpack.c.l.b16 %v2489
      %v2605 = vunpack.c.l.b16 %v2490
      %v2606 = vunpack.c.l.b16 %v2491
      %v2607 = vunpack.c.l.b16 %v2492
      %v2608 = vunpack.c.l.b16 %v2493
      %v2609 = vunpack.c.l.b16 %v2494
      %v2610 = vunpack.c.l.b16 %v2495
      %v2611 = vunpack.c.l.b16 %v2496
      %v2612 = vpack.c.b16 %v2564, %v2563
      %v2613 = vpack.c.b16 %v2566, %v2565
      %v2614 = vpack.c.b16 %v2568, %v2567
      %v2615 = vpack.c.b16 %v2570, %v2569
      %v2616 = vpack.c.b16 %v2572, %v2571
      %v2617 = vpack.c.b16 %v2574, %v2573
      %v2618 = vpack.c.b16 %v2576, %v2575
      %v2619 = vpack.c.b16 %v2578, %v2577
      %v2620 = vpack.c.b16 %v2580, %v2579
      %v2621 = vpack.c.b16 %v2582, %v2581
      %v2622 = vpack.c.b16 %v2584, %v2583
      %v2623 = vpack.c.b16 %v2586, %v2585
      %v2624 = vpack.c.b16 %v2588, %v2587
      %v2625 = vpack.c.b16 %v2590, %v2589
      %v2626 = vpack.c.b16 %v2592, %v2591
      %v2627 = vpack.c.b16 %v2594, %v2593
      %v2628 = vpack.c.b16 %v2596, %v2595
      %v2629 = vpack.c.b16 %v2598, %v2597
      %v2630 = vpack.c.b16 %v2600, %v2599
      %v2631 = vpack.c.b16 %v2602, %v2601
      %v2632 = vpack.c.b16 %v2604, %v2603
      %v2633 = vpack.c.b16 %v2606, %v2605
      %v2634 = vpack.c.b16 %v2608, %v2607
      %v2635 = vpack.c.b16 %v2610, %v2609
      %v2636 = vpack.c.b16 %v2611, %v2611
      %vm2637 = vcmask 1046528
      %v2638 = vrot.slane %v2612, 1
      %v2639 = vrot.slane %v2613, 1
      %v2640 = vsel %vm2637, %v2638, %v2639
      %v2641 = vrot.slane %v2614, 1
      %v2642 = vsel %vm2637, %v2639, %v2641
      %v2643 = vrot.slane %v2615, 1
      %v2644 = vsel %vm2637, %v2641, %v2643
      %v2645 = vrot.slane %v2616, 1
      %v2646 = vsel %vm2637, %v2643, %v2645
      %v2647 = vrot.slane %v2617, 1
      %v2648 = vsel %vm2637, %v2645, %v2647
      %v2649 = vrot.slane %v2618, 1
      %v2650 = vsel %vm2637, %v2647, %v2649
      %v2651 = vrot.slane %v2619, 1
      %v2652 = vsel %vm2637, %v2649, %v2651
      %v2653 = vrot.slane %v2620, 1
      %v2654 = vsel %vm2637, %v2651, %v2653
      %v2655 = vrot.slane %v2621, 1
      %v2656 = vsel %vm2637, %v2653, %v2655
      %v2657 = vrot.slane %v2622, 1
      %v2658 = vsel %vm2637, %v2655, %v2657
      %v2659 = vrot.slane %v2623, 1
      %v2660 = vsel %vm2637, %v2657, %v2659
      %v2661 = vrot.slane %v2624, 1
      %v2662 = vsel %vm2637, %v2659, %v2661
      %v2663 = vrot.slane %v2625, 1
      %v2664 = vsel %vm2637, %v2661, %v2663
      %v2665 = vrot.slane %v2626, 1
      %v2666 = vsel %vm2637, %v2663, %v2665
      %v2667 = vrot.slane %v2627, 1
      %v2668 = vsel %vm2637, %v2665, %v2667
      %v2669 = vrot.slane %v2628, 1
      %v2670 = vsel %vm2637, %v2667, %v2669
      %v2671 = vrot.slane %v2629, 1
      %v2672 = vsel %vm2637, %v2669, %v2671
      %v2673 = vrot.slane %v2630, 1
      %v2674 = vsel %vm2637, %v2671, %v2673
      %v2675 = vrot.slane %v2631, 1
      %v2676 = vsel %vm2637, %v2673, %v2675
      %v2677 = vrot.slane %v2632, 1
      %v2678 = vsel %vm2637, %v2675, %v2677
      %v2679 = vrot.slane %v2633, 1
      %v2680 = vsel %vm2637, %v2677, %v2679
      %v2681 = vrot.slane %v2634, 1
      %v2682 = vsel %vm2637, %v2679, %v2681
      %v2683 = vrot.slane %v2635, 1
      %v2684 = vsel %vm2637, %v2681, %v2683
      %v2685 = vrot.slane %v2636, 1
      %v2686 = vsel %vm2637, %v2683, %v2685
      %v2727 = vunpack.c.l.b16 %v2498
      %v2728 = vunpack.c.l.b16 %v2499
      %v2729 = vunpack.c.l.b16 %v2500
      %v2730 = vunpack.c.l.b16 %v2501
      %v2731 = vunpack.c.l.b16 %v2502
      %v2732 = vunpack.c.l.b16 %v2503
      %v2733 = vunpack.c.l.b16 %v2504
      %v2734 = vunpack.c.l.b16 %v2505
      %v2735 = vunpack.c.l.b16 %v2506
      %v2736 = vunpack.c.l.b16 %v2507
      %v2737 = vunpack.c.l.b16 %v2508
      %v2738 = vunpack.c.l.b16 %v2509
      %v2739 = vunpack.c.l.b16 %v2510
      %v2740 = vunpack.c.l.b16 %v2511
      %v2741 = vunpack.c.l.b16 %v2512
      %v2742 = vunpack.c.l.b16 %v2513
      %v2743 = vpack.c.b16 %v2728, %v2727
      %v2744 = vpack.c.b16 %v2730, %v2729
      %v2745 = vpack.c.b16 %v2732, %v2731
      %v2746 = vpack.c.b16 %v2734, %v2733
      %v2747 = vpack.c.b16 %v2736, %v2735
      %v2748 = vpack.c.b16 %v2738, %v2737
      %v2749 = vpack.c.b16 %v2740, %v2739
      %v2750 = vpack.c.b16 %v2742, %v2741
      %2759 = vmatprep.subr.bf16.mxu0 0
      %2760 = vmatpush1.bf16.msra.mxu0 %v2750
      %2761 = vmatprep.subr.bf16.mxu0 0
      %2762 = vmatpush1.bf16.msra.mxu0 %v2749
      %2763 = vmatprep.subr.bf16.mxu0 0
      %2764 = vmatpush1.bf16.msra.mxu0 %v2748
      %2765 = vmatprep.subr.bf16.mxu0 0
      %2766 = vmatpush1.bf16.msra.mxu0 %v2747
      %2767 = vmatprep.subr.bf16.mxu0 0
      %2768 = vmatpush1.bf16.msra.mxu0 %v2746
      %2769 = vmatprep.subr.bf16.mxu0 0
      %2770 = vmatpush1.bf16.msra.mxu0 %v2745
      %2771 = vmatprep.subr.bf16.mxu0 0
      %2772 = vmatpush1.bf16.msra.mxu0 %v2744
      %2773 = vmatprep.subr.bf16.mxu0 0
      %2774 = vmatpush1.bf16.msra.mxu0 %v2743
      %2775 = vmatprep.subr.bf16.mxu0 0
      %2776 = vmatpush2.bf16.msra.mxu0 0
      %2777 = vmatprep.subr.bf16.mxu0 0
      %2778 = vmatpush2.bf16.msra.mxu0 0
      %2779 = vmatprep.subr.bf16.mxu0 0
      %2780 = vmatpush2.bf16.msra.mxu0 0
      %2781 = vmatprep.subr.bf16.mxu0 0
      %2782 = vmatpush2.bf16.msra.mxu0 0
      %2783 = vmatprep.subr.bf16.mxu0 0
      %2784 = vmatpush2.bf16.msra.mxu0 0
      %2785 = vmatprep.subr.bf16.mxu0 0
      %2786 = vmatpush2.bf16.msra.mxu0 0
      %2787 = vmatprep.subr.bf16.mxu0 0
      %2788 = vmatpush2.bf16.msra.mxu0 0
      %2789 = vmatprep.subr.bf16.mxu0 0
      %2790 = vmatpush2.bf16.msra.mxu0 0
      %2791 = vmatprep.mubr.bf16.mxu0 0
      %2792 = vmatmul.mubr.bf16.gmra.mxu0 %v2640
      %v2793 = vpop.f32.mrf.mxu0
      %v2794 = vadd.f32 0.0, %v2793
      %v2795 = vpop.f32.mrf.mxu0
      %v2796 = vpop.f32.mrf.mxu0
      %v2797 = vadd.f32 0.0, %v2796
      %v2798 = vpop.f32.mrf.mxu0
      %2799 = vmatprep.mubr.bf16.mxu0 0
      %2800 = vmatmul.mubr.bf16.gmra.mxu0 %v2642
      %v2801 = vpop.f32.mrf.mxu0
      %v2802 = vadd.f32 0.0, %v2801
      %v2803 = vpop.f32.mrf.mxu0
      %v2804 = vpop.f32.mrf.mxu0
      %v2805 = vadd.f32 0.0, %v2804
      %v2806 = vpop.f32.mrf.mxu0
      %2807 = vmatprep.mubr.bf16.mxu0 0
      %2808 = vmatmul.mubr.bf16.gmra.mxu0 %v2644
      %v2809 = vpop.f32.mrf.mxu0
      %v2810 = vadd.f32 0.0, %v2809
      %v2811 = vpop.f32.mrf.mxu0
      %v2812 = vpop.f32.mrf.mxu0
      %v2813 = vadd.f32 0.0, %v2812
      %v2814 = vpop.f32.mrf.mxu0
      %2815 = vmatprep.mubr.bf16.mxu0 0
      %2816 = vmatmul.mubr.bf16.gmra.mxu0 %v2646
      %v2817 = vpop.f32.mrf.mxu0
      %v2818 = vadd.f32 0.0, %v2817
      %v2819 = vpop.f32.mrf.mxu0
      %v2820 = vpop.f32.mrf.mxu0
      %v2821 = vadd.f32 0.0, %v2820
      %v2822 = vpop.f32.mrf.mxu0
      %2823 = vmatprep.mubr.bf16.mxu0 0
      %2824 = vmatmul.mubr.bf16.gmra.mxu0 %v2648
      %v2825 = vpop.f32.mrf.mxu0
      %v2826 = vadd.f32 0.0, %v2825
      %v2827 = vpop.f32.mrf.mxu0
      %v2828 = vpop.f32.mrf.mxu0
      %v2829 = vadd.f32 0.0, %v2828
      %v2830 = vpop.f32.mrf.mxu0
      %2831 = vmatprep.mubr.bf16.mxu0 0
      %2832 = vmatmul.mubr.bf16.gmra.mxu0 %v2650
      %v2833 = vpop.f32.mrf.mxu0
      %v2834 = vadd.f32 0.0, %v2833
      %v2835 = vpop.f32.mrf.mxu0
      %v2836 = vpop.f32.mrf.mxu0
      %v2837 = vadd.f32 0.0, %v2836
      %v2838 = vpop.f32.mrf.mxu0
      %2839 = vmatprep.mubr.bf16.mxu0 0
      %2840 = vmatmul.mubr.bf16.gmra.mxu0 %v2652
      %v2841 = vpop.f32.mrf.mxu0
      %v2842 = vadd.f32 0.0, %v2841
      %v2843 = vpop.f32.mrf.mxu0
      %v2844 = vpop.f32.mrf.mxu0
      %v2845 = vadd.f32 0.0, %v2844
      %v2846 = vpop.f32.mrf.mxu0
      %2847 = vmatprep.mubr.bf16.mxu0 0
      %2848 = vmatmul.mubr.bf16.gmra.mxu0 %v2654
      %v2849 = vpop.f32.mrf.mxu0
      %v2850 = vadd.f32 0.0, %v2849
      %v2851 = vpop.f32.mrf.mxu0
      %v2852 = vpop.f32.mrf.mxu0
      %v2853 = vadd.f32 0.0, %v2852
      %v2854 = vpop.f32.mrf.mxu0
      %2855 = vmatprep.mubr.bf16.mxu0 0
      %2856 = vmatmul.mubr.bf16.gmra.mxu0 %v2656
      %v2857 = vpop.f32.mrf.mxu0
      %v2858 = vadd.f32 0.0, %v2857
      %v2859 = vpop.f32.mrf.mxu0
      %v2860 = vpop.f32.mrf.mxu0
      %v2861 = vadd.f32 0.0, %v2860
      %v2862 = vpop.f32.mrf.mxu0
      %2863 = vmatprep.mubr.bf16.mxu0 0
      %2864 = vmatmul.mubr.bf16.gmra.mxu0 %v2658
      %v2865 = vpop.f32.mrf.mxu0
      %v2866 = vadd.f32 0.0, %v2865
      %v2867 = vpop.f32.mrf.mxu0
      %v2868 = vpop.f32.mrf.mxu0
      %v2869 = vadd.f32 0.0, %v2868
      %v2870 = vpop.f32.mrf.mxu0
      %2871 = vmatprep.mubr.bf16.mxu0 0
      %2872 = vmatmul.mubr.bf16.gmra.mxu0 %v2660
      %v2873 = vpop.f32.mrf.mxu0
      %v2874 = vadd.f32 0.0, %v2873
      %v2875 = vpop.f32.mrf.mxu0
      %v2876 = vpop.f32.mrf.mxu0
      %v2877 = vadd.f32 0.0, %v2876
      %v2878 = vpop.f32.mrf.mxu0
      %2879 = vmatprep.mubr.bf16.mxu0 0
      %2880 = vmatmul.mubr.bf16.gmra.mxu0 %v2662
      %v2881 = vpop.f32.mrf.mxu0
      %v2882 = vadd.f32 0.0, %v2881
      %v2883 = vpop.f32.mrf.mxu0
      %v2884 = vpop.f32.mrf.mxu0
      %v2885 = vadd.f32 0.0, %v2884
      %v2886 = vpop.f32.mrf.mxu0
      %2887 = vmatprep.mubr.bf16.mxu0 0
      %2888 = vmatmul.mubr.bf16.gmra.mxu0 %v2664
      %v2889 = vpop.f32.mrf.mxu0
      %v2890 = vadd.f32 0.0, %v2889
      %v2891 = vpop.f32.mrf.mxu0
      %v2892 = vpop.f32.mrf.mxu0
      %v2893 = vadd.f32 0.0, %v2892
      %v2894 = vpop.f32.mrf.mxu0
      %2895 = vmatprep.mubr.bf16.mxu0 0
      %2896 = vmatmul.mubr.bf16.gmra.mxu0 %v2666
      %v2897 = vpop.f32.mrf.mxu0
      %v2898 = vadd.f32 0.0, %v2897
      %v2899 = vpop.f32.mrf.mxu0
      %v2900 = vpop.f32.mrf.mxu0
      %v2901 = vadd.f32 0.0, %v2900
      %v2902 = vpop.f32.mrf.mxu0
      %2903 = vmatprep.mubr.bf16.mxu0 0
      %2904 = vmatmul.mubr.bf16.gmra.mxu0 %v2668
      %v2905 = vpop.f32.mrf.mxu0
      %v2906 = vadd.f32 0.0, %v2905
      %v2907 = vpop.f32.mrf.mxu0
      %v2908 = vpop.f32.mrf.mxu0
      %v2909 = vadd.f32 0.0, %v2908
      %v2910 = vpop.f32.mrf.mxu0
      %2911 = vmatprep.mubr.bf16.mxu0 0
      %2912 = vmatmul.mubr.bf16.gmra.mxu0 %v2670
      %v2913 = vpop.f32.mrf.mxu0
      %v2914 = vadd.f32 0.0, %v2913
      %v2915 = vpop.f32.mrf.mxu0
      %v2916 = vpop.f32.mrf.mxu0
      %v2917 = vadd.f32 0.0, %v2916
      %v2918 = vpop.f32.mrf.mxu0
      %2919 = vmatprep.mubr.bf16.mxu0 0
      %2920 = vmatmul.mubr.bf16.gmra.mxu0 %v2672
      %v2921 = vpop.f32.mrf.mxu0
      %v2922 = vadd.f32 0.0, %v2921
      %v2923 = vpop.f32.mrf.mxu0
      %v2924 = vpop.f32.mrf.mxu0
      %v2925 = vadd.f32 0.0, %v2924
      %v2926 = vpop.f32.mrf.mxu0
      %2927 = vmatprep.mubr.bf16.mxu0 0
      %2928 = vmatmul.mubr.bf16.gmra.mxu0 %v2674
      %v2929 = vpop.f32.mrf.mxu0
      %v2930 = vadd.f32 0.0, %v2929
      %v2931 = vpop.f32.mrf.mxu0
      %v2932 = vpop.f32.mrf.mxu0
      %v2933 = vadd.f32 0.0, %v2932
      %v2934 = vpop.f32.mrf.mxu0
      %2935 = vmatprep.mubr.bf16.mxu0 0
      %2936 = vmatmul.mubr.bf16.gmra.mxu0 %v2676
      %v2937 = vpop.f32.mrf.mxu0
      %v2938 = vadd.f32 0.0, %v2937
      %v2939 = vpop.f32.mrf.mxu0
      %v2940 = vpop.f32.mrf.mxu0
      %v2941 = vadd.f32 0.0, %v2940
      %v2942 = vpop.f32.mrf.mxu0
      %2943 = vmatprep.mubr.bf16.mxu0 0
      %2944 = vmatmul.mubr.bf16.gmra.mxu0 %v2678
      %v2945 = vpop.f32.mrf.mxu0
      %v2946 = vadd.f32 0.0, %v2945
      %v2947 = vpop.f32.mrf.mxu0
      %v2948 = vpop.f32.mrf.mxu0
      %v2949 = vadd.f32 0.0, %v2948
      %v2950 = vpop.f32.mrf.mxu0
      %2951 = vmatprep.mubr.bf16.mxu0 0
      %2952 = vmatmul.mubr.bf16.gmra.mxu0 %v2680
      %v2953 = vpop.f32.mrf.mxu0
      %v2954 = vadd.f32 0.0, %v2953
      %v2955 = vpop.f32.mrf.mxu0
      %v2956 = vpop.f32.mrf.mxu0
      %v2957 = vadd.f32 0.0, %v2956
      %v2958 = vpop.f32.mrf.mxu0
      %2959 = vmatprep.mubr.bf16.mxu0 0
      %2960 = vmatmul.mubr.bf16.gmra.mxu0 %v2682
      %v2961 = vpop.f32.mrf.mxu0
      %v2962 = vadd.f32 0.0, %v2961
      %v2963 = vpop.f32.mrf.mxu0
      %v2964 = vpop.f32.mrf.mxu0
      %v2965 = vadd.f32 0.0, %v2964
      %v2966 = vpop.f32.mrf.mxu0
      %2967 = vmatprep.mubr.bf16.mxu0 0
      %2968 = vmatmul.mubr.bf16.gmra.mxu0 %v2684
      %v2969 = vpop.f32.mrf.mxu0
      %v2970 = vadd.f32 0.0, %v2969
      %v2971 = vpop.f32.mrf.mxu0
      %v2972 = vpop.f32.mrf.mxu0
      %v2973 = vadd.f32 0.0, %v2972
      %v2974 = vpop.f32.mrf.mxu0
      %2975 = vmatprep.mubr.bf16.mxu0 0
      %2976 = vmatmul.mubr.bf16.gmra.mxu0 %v2686
      %v2977 = vpop.f32.mrf.mxu0
      %v2978 = vadd.f32 0.0, %v2977
      %v2979 = vpop.f32.mrf.mxu0
      %v2980 = vpop.f32.mrf.mxu0
      %v2981 = vadd.f32 0.0, %v2980
      %v2982 = vpop.f32.mrf.mxu0
      %2983 = vdwg.mxu0
      %v2984 = vld [vmem:[#allocation3] sm:$0xff]
      %v2985 = vld [vmem:[#allocation3 + $0x8] sm:$0xff]
      %v2986 = vld [vmem:[#allocation3 + $0x10] sm:$0xff]
      %v2987 = vld [vmem:[#allocation3 + $0x18] sm:$0xff]
      %v2988 = vld [vmem:[#allocation3 + $0x20] sm:$0xff]
      %v2989 = vld [vmem:[#allocation3 + $0x28] sm:$0xff]
      %v2990 = vld [vmem:[#allocation3 + $0x30] sm:$0xff]
      %v2991 = vld [vmem:[#allocation3 + $0x38] sm:$0xff]
      %v2992 = vld [vmem:[#allocation3 + $0x40] sm:$0xff]
      %v2993 = vld [vmem:[#allocation3 + $0x48] sm:$0xff]
      %v2994 = vld [vmem:[#allocation3 + $0x50] sm:$0xff]
      %v2995 = vld [vmem:[#allocation3 + $0x58] sm:$0xff]
      %v2996 = vld [vmem:[#allocation3 + $0x60] sm:$0xff]
      %v2997 = vld [vmem:[#allocation3 + $0x68] sm:$0xff]
      %v2998 = vld [vmem:[#allocation3 + $0x70] sm:$0xff]
      %v2999 = vld [vmem:[#allocation3 + $0x78] sm:$0xff]
      %v3000 = vld [vmem:[#allocation3 + $0x80] sm:$0xff]
      %v3001 = vld [vmem:[#allocation3 + $0x88] sm:$0xff]
      %v3002 = vld [vmem:[#allocation3 + $0x90] sm:$0xff]
      %v3003 = vld [vmem:[#allocation3 + $0x98] sm:$0xff]
      %v3004 = vld [vmem:[#allocation3 + $0xa0] sm:$0xff]
      %v3005 = vld [vmem:[#allocation3 + $0xa8] sm:$0xff]
      %v3006 = vld [vmem:[#allocation3 + $0xb0] sm:$0xff]
      %v3007 = vld [vmem:[#allocation3 + $0xb8] sm:$0xff]
      %v3008 = vld [vmem:[#allocation3 + $0xc0] sm:$0xff]
      %v3009 = vld [vmem:[#allocation3 + $0xc8] sm:$0xff]
      %v3010 = vld [vmem:[#allocation3 + $0xd0] sm:$0xff]
      %v3011 = vld [vmem:[#allocation3 + $0xd8] sm:$0xff]
      %v3012 = vld [vmem:[#allocation3 + $0xe0] sm:$0xff]
      %v3013 = vld [vmem:[#allocation3 + $0xe8] sm:$0xff]
      %v3014 = vld [vmem:[#allocation3 + $0xf0] sm:$0xff]
      %v3015 = vld [vmem:[#allocation3 + $0xf8] sm:$0xff]
      %v3016 = vld [vmem:[#allocation3 + $0x100] sm:$0xff]
      %v3017 = vld [vmem:[#allocation3 + $0x108] sm:$0xff]
      %v3018 = vld [vmem:[#allocation3 + $0x110] sm:$0xff]
      %v3019 = vld [vmem:[#allocation3 + $0x118] sm:$0xff]
      %v3020 = vld [vmem:[#allocation3 + $0x120] sm:$0xff]
      %v3021 = vld [vmem:[#allocation3 + $0x128] sm:$0xff]
      %v3022 = vld [vmem:[#allocation3 + $0x130] sm:$0xff]
      %v3023 = vld [vmem:[#allocation3 + $0x138] sm:$0xff]
      %v3024 = vld [vmem:[#allocation3 + $0x140] sm:$0xff]
      %v3025 = vld [vmem:[#allocation3 + $0x148] sm:$0xff]
      %v3026 = vld [vmem:[#allocation3 + $0x150] sm:$0xff]
      %v3027 = vld [vmem:[#allocation3 + $0x158] sm:$0xff]
      %v3028 = vld [vmem:[#allocation3 + $0x160] sm:$0xff]
      %v3029 = vld [vmem:[#allocation3 + $0x168] sm:$0xff]
      %v3030 = vld [vmem:[#allocation3 + $0x170] sm:$0xff]
      %v3031 = vld [vmem:[#allocation3 + $0x178] sm:$0xff]
      %v3032 = vadd.f32 %v2984, %v2794
      %v3033 = vadd.f32 %v2985, %v2797
      %v3034 = vadd.f32 %v2986, %v2802
      %v3035 = vadd.f32 %v2987, %v2805
      %v3036 = vadd.f32 %v2988, %v2810
      %v3037 = vadd.f32 %v2989, %v2813
      %v3038 = vadd.f32 %v2990, %v2818
      %v3039 = vadd.f32 %v2991, %v2821
      %v3040 = vadd.f32 %v2992, %v2826
      %v3041 = vadd.f32 %v2993, %v2829
      %v3042 = vadd.f32 %v2994, %v2834
      %v3043 = vadd.f32 %v2995, %v2837
      %v3044 = vadd.f32 %v2996, %v2842
      %v3045 = vadd.f32 %v2997, %v2845
      %v3046 = vadd.f32 %v2998, %v2850
      %v3047 = vadd.f32 %v2999, %v2853
      %v3048 = vadd.f32 %v3000, %v2858
      %v3049 = vadd.f32 %v3001, %v2861
      %v3050 = vadd.f32 %v3002, %v2866
      %v3051 = vadd.f32 %v3003, %v2869
      %v3052 = vadd.f32 %v3004, %v2874
      %v3053 = vadd.f32 %v3005, %v2877
      %v3054 = vadd.f32 %v3006, %v2882
      %v3055 = vadd.f32 %v3007, %v2885
      %v3056 = vadd.f32 %v3008, %v2890
      %v3057 = vadd.f32 %v3009, %v2893
      %v3058 = vadd.f32 %v3010, %v2898
      %v3059 = vadd.f32 %v3011, %v2901
      %v3060 = vadd.f32 %v3012, %v2906
      %v3061 = vadd.f32 %v3013, %v2909
      %v3062 = vadd.f32 %v3014, %v2914
      %v3063 = vadd.f32 %v3015, %v2917
      %v3064 = vadd.f32 %v3016, %v2922
      %v3065 = vadd.f32 %v3017, %v2925
      %v3066 = vadd.f32 %v3018, %v2930
      %v3067 = vadd.f32 %v3019, %v2933
      %v3068 = vadd.f32 %v3020, %v2938
      %v3069 = vadd.f32 %v3021, %v2941
      %v3070 = vadd.f32 %v3022, %v2946
      %v3071 = vadd.f32 %v3023, %v2949
      %v3072 = vadd.f32 %v3024, %v2954
      %v3073 = vadd.f32 %v3025, %v2957
      %v3074 = vadd.f32 %v3026, %v2962
      %v3075 = vadd.f32 %v3027, %v2965
      %v3076 = vadd.f32 %v3028, %v2970
      %v3077 = vadd.f32 %v3029, %v2973
      %v3078 = vadd.f32 %v3030, %v2978
      %v3079 = vadd.f32 %v3031, %v2981
      %3080 = vst [vmem:[#allocation3] sm:$0xff] %v3032
      %3081 = vst [vmem:[#allocation3 + $0x8] sm:$0xff] %v3033
      %3082 = vst [vmem:[#allocation3 + $0x10] sm:$0xff] %v3034
      %3083 = vst [vmem:[#allocation3 + $0x18] sm:$0xff] %v3035
      %3084 = vst [vmem:[#allocation3 + $0x20] sm:$0xff] %v3036
      %3085 = vst [vmem:[#allocation3 + $0x28] sm:$0xff] %v3037
      %3086 = vst [vmem:[#allocation3 + $0x30] sm:$0xff] %v3038
      %3087 = vst [vmem:[#allocation3 + $0x38] sm:$0xff] %v3039
      %3088 = vst [vmem:[#allocation3 + $0x40] sm:$0xff] %v3040
      %3089 = vst [vmem:[#allocation3 + $0x48] sm:$0xff] %v3041
      %3090 = vst [vmem:[#allocation3 + $0x50] sm:$0xff] %v3042
      %3091 = vst [vmem:[#allocation3 + $0x58] sm:$0xff] %v3043
      %3092 = vst [vmem:[#allocation3 + $0x60] sm:$0xff] %v3044
      %3093 = vst [vmem:[#allocation3 + $0x68] sm:$0xff] %v3045
      %3094 = vst [vmem:[#allocation3 + $0x70] sm:$0xff] %v3046
      %3095 = vst [vmem:[#allocation3 + $0x78] sm:$0xff] %v3047
      %3096 = vst [vmem:[#allocation3 + $0x80] sm:$0xff] %v3048
      %3097 = vst [vmem:[#allocation3 + $0x88] sm:$0xff] %v3049
      %3098 = vst [vmem:[#allocation3 + $0x90] sm:$0xff] %v3050
      %3099 = vst [vmem:[#allocation3 + $0x98] sm:$0xff] %v3051
      %3100 = vst [vmem:[#allocation3 + $0xa0] sm:$0xff] %v3052
      %3101 = vst [vmem:[#allocation3 + $0xa8] sm:$0xff] %v3053
      %3102 = vst [vmem:[#allocation3 + $0xb0] sm:$0xff] %v3054
      %3103 = vst [vmem:[#allocation3 + $0xb8] sm:$0xff] %v3055
      %3104 = vst [vmem:[#allocation3 + $0xc0] sm:$0xff] %v3056
      %3105 = vst [vmem:[#allocation3 + $0xc8] sm:$0xff] %v3057
      %3106 = vst [vmem:[#allocation3 + $0xd0] sm:$0xff] %v3058
      %3107 = vst [vmem:[#allocation3 + $0xd8] sm:$0xff] %v3059
      %3108 = vst [vmem:[#allocation3 + $0xe0] sm:$0xff] %v3060
      %3109 = vst [vmem:[#allocation3 + $0xe8] sm:$0xff] %v3061
      %3110 = vst [vmem:[#allocation3 + $0xf0] sm:$0xff] %v3062
      %3111 = vst [vmem:[#allocation3 + $0xf8] sm:$0xff] %v3063
      %3112 = vst [vmem:[#allocation3 + $0x100] sm:$0xff] %v3064
      %3113 = vst [vmem:[#allocation3 + $0x108] sm:$0xff] %v3065
      %3114 = vst [vmem:[#allocation3 + $0x110] sm:$0xff] %v3066
      %3115 = vst [vmem:[#allocation3 + $0x118] sm:$0xff] %v3067
      %3116 = vst [vmem:[#allocation3 + $0x120] sm:$0xff] %v3068
      %3117 = vst [vmem:[#allocation3 + $0x128] sm:$0xff] %v3069
      %3118 = vst [vmem:[#allocation3 + $0x130] sm:$0xff] %v3070
      %3119 = vst [vmem:[#allocation3 + $0x138] sm:$0xff] %v3071
      %3120 = vst [vmem:[#allocation3 + $0x140] sm:$0xff] %v3072
      %3121 = vst [vmem:[#allocation3 + $0x148] sm:$0xff] %v3073
      %3122 = vst [vmem:[#allocation3 + $0x150] sm:$0xff] %v3074
      %3123 = vst [vmem:[#allocation3 + $0x158] sm:$0xff] %v3075
      %3124 = vst [vmem:[#allocation3 + $0x160] sm:$0xff] %v3076
      %3125 = vst [vmem:[#allocation3 + $0x168] sm:$0xff] %v3077
      %3126 = vst [vmem:[#allocation3 + $0x170] sm:$0xff] %v3078
      %3127 = vst [vmem:[#allocation3 + $0x178] sm:$0xff] %v3079
      %v3128 = vld [vmem:[#allocation2 + $0xc] sm:$0xf]
      %v3129 = vld [vmem:[#allocation2 + $0x10] sm:$0xf]
      %v3130 = vld [vmem:[#allocation2 + $0x14] sm:$0xf]
      %v3131 = vld [vmem:[#allocation2 + $0x18] sm:$0xf]
      %v3132 = vld [vmem:[#allocation2 + $0x1c] sm:$0xf]
      %v3133 = vld [vmem:[#allocation2 + $0x20] sm:$0xf]
      %v3134 = vld [vmem:[#allocation2 + $0x24] sm:$0xf]
      %v3135 = vld [vmem:[#allocation2 + $0x28] sm:$0xf]
      %v3136 = vld [vmem:[#allocation2 + $0x2c] sm:$0xf]
      %v3137 = vld [vmem:[#allocation2 + $0x30] sm:$0xf]
      %v3138 = vld [vmem:[#allocation2 + $0x34] sm:$0xf]
      %v3139 = vld [vmem:[#allocation2 + $0x38] sm:$0xf]
      %v3140 = vld [vmem:[#allocation2 + $0x3c] sm:$0xf]
      %v3141 = vld [vmem:[#allocation2 + $0x40] sm:$0xf]
      %v3142 = vld [vmem:[#allocation2 + $0x44] sm:$0xf]
      %v3143 = vld [vmem:[#allocation2 + $0x48] sm:$0xf]
      %v3144 = vld [vmem:[#allocation2 + $0x4c] sm:$0xf]
      %v3145 = vld [vmem:[#allocation2 + $0x50] sm:$0xf]
      %v3146 = vld [vmem:[#allocation2 + $0x54] sm:$0xf]
      %v3147 = vld [vmem:[#allocation2 + $0x58] sm:$0xf]
      %v3148 = vld [vmem:[#allocation2 + $0x5c] sm:$0xf]
      %v3149 = vld [vmem:[#allocation2 + $0x60] sm:$0xf]
      %v3150 = vld [vmem:[#allocation2 + $0x64] sm:$0xf]
      %v3151 = vld [vmem:[#allocation2 + $0x68] sm:$0xf]
      %v3152 = vld [vmem:[#allocation2 + $0x6c] sm:$0xf]
      %v3153 = vld [vmem:[#allocation2 + $0x70] sm:$0xf]
      %v3154 = vld [vmem:[#allocation2 + $0x74] sm:$0xf]
      %v3155 = vld [vmem:[#allocation2 + $0x78] sm:$0xf]
      %v3156 = vld [vmem:[#allocation2 + $0x7c] sm:$0xf]
      %v3157 = vld [vmem:[#allocation2 + $0x80] sm:$0xf]
      %v3158 = vld [vmem:[#allocation2 + $0x84] sm:$0xf]
      %v3159 = vld [vmem:[#allocation2 + $0x88] sm:$0xf]
      %v3160 = vld [vmem:[#allocation2 + $0x8c] sm:$0xf]
      %v3161 = vld [vmem:[#allocation2 + $0x90] sm:$0xf]
      %v3162 = vld [vmem:[#allocation2 + $0x94] sm:$0xf]
      %v3163 = vld [vmem:[#allocation2 + $0x98] sm:$0xf]
      %v3164 = vld [vmem:[#allocation2 + $0x9c] sm:$0xf]
      %v3165 = vld [vmem:[#allocation2 + $0xa0] sm:$0xf]
      %v3166 = vld [vmem:[#allocation2 + $0xa4] sm:$0xf]
      %v3167 = vld [vmem:[#allocation2 + $0xa8] sm:$0xf]
      %v3168 = vld [vmem:[#allocation2 + $0xac] sm:$0xf]
      %v3169 = vld [vmem:[#allocation2 + $0xb0] sm:$0xf]
      %v3170 = vld [vmem:[#allocation2 + $0xb4] sm:$0xf]
      %v3171 = vld [vmem:[#allocation2 + $0xb8] sm:$0xf]
      %v3172 = vld [vmem:[#allocation2 + $0xbc] sm:$0xf]
      %v3173 = vld [vmem:[#allocation2 + $0xc0] sm:$0xf]
      %v3174 = vld [vmem:[#allocation2 + $0xc4] sm:$0xf]
      %v3175 = vld [vmem:[#allocation2 + $0xc8] sm:$0xf]
      %s3176 = scalar_lea.vmem %s4, 192
      %v3177 = vld [vmem:[%s3176] sm:$0xf]
      %v3178 = vld [vmem:[%s3176 + $0x4] sm:$0xf]
      %v3179 = vld [vmem:[%s3176 + $0x8] sm:$0xf]
      %v3180 = vld [vmem:[%s3176 + $0xc] sm:$0xf]
      %v3181 = vld [vmem:[%s3176 + $0x10] sm:$0xf]
      %v3182 = vld [vmem:[%s3176 + $0x14] sm:$0xf]
      %v3183 = vld [vmem:[%s3176 + $0x18] sm:$0xf]
      %v3184 = vld [vmem:[%s3176 + $0x1c] sm:$0xf]
      %v3185 = vld [vmem:[%s3176 + $0x20] sm:$0xf]
      %v3186 = vld [vmem:[%s3176 + $0x24] sm:$0xf]
      %v3187 = vld [vmem:[%s3176 + $0x28] sm:$0xf]
      %v3188 = vld [vmem:[%s3176 + $0x2c] sm:$0xf]
      %v3189 = vld [vmem:[%s3176 + $0x30] sm:$0xf]
      %v3190 = vld [vmem:[%s3176 + $0x34] sm:$0xf]
      %v3191 = vld [vmem:[%s3176 + $0x38] sm:$0xf]
      %v3192 = vld [vmem:[%s3176 + $0x3c] sm:$0xf]
      %v3241 = vunpack.c.l.b16 %v3128
      %v3242 = vunpack.c.l.b16 %v3129
      %v3243 = vunpack.c.l.b16 %v3130
      %v3244 = vunpack.c.l.b16 %v3131
      %v3245 = vunpack.c.l.b16 %v3132
      %v3246 = vunpack.c.l.b16 %v3133
      %v3247 = vunpack.c.l.b16 %v3134
      %v3248 = vunpack.c.l.b16 %v3135
      %v3249 = vunpack.c.l.b16 %v3136
      %v3250 = vunpack.c.l.b16 %v3137
      %v3251 = vunpack.c.l.b16 %v3138
      %v3252 = vunpack.c.l.b16 %v3139
      %v3253 = vunpack.c.l.b16 %v3140
      %v3254 = vunpack.c.l.b16 %v3141
      %v3255 = vunpack.c.l.b16 %v3142
      %v3256 = vunpack.c.l.b16 %v3143
      %v3257 = vunpack.c.l.b16 %v3144
      %v3258 = vunpack.c.l.b16 %v3145
      %v3259 = vunpack.c.l.b16 %v3146
      %v3260 = vunpack.c.l.b16 %v3147
      %v3261 = vunpack.c.l.b16 %v3148
      %v3262 = vunpack.c.l.b16 %v3149
      %v3263 = vunpack.c.l.b16 %v3150
      %v3264 = vunpack.c.l.b16 %v3151
      %v3265 = vunpack.c.l.b16 %v3152
      %v3266 = vunpack.c.l.b16 %v3153
      %v3267 = vunpack.c.l.b16 %v3154
      %v3268 = vunpack.c.l.b16 %v3155
      %v3269 = vunpack.c.l.b16 %v3156
      %v3270 = vunpack.c.l.b16 %v3157
      %v3271 = vunpack.c.l.b16 %v3158
      %v3272 = vunpack.c.l.b16 %v3159
      %v3273 = vunpack.c.l.b16 %v3160
      %v3274 = vunpack.c.l.b16 %v3161
      %v3275 = vunpack.c.l.b16 %v3162
      %v3276 = vunpack.c.l.b16 %v3163
      %v3277 = vunpack.c.l.b16 %v3164
      %v3278 = vunpack.c.l.b16 %v3165
      %v3279 = vunpack.c.l.b16 %v3166
      %v3280 = vunpack.c.l.b16 %v3167
      %v3281 = vunpack.c.l.b16 %v3168
      %v3282 = vunpack.c.l.b16 %v3169
      %v3283 = vunpack.c.l.b16 %v3170
      %v3284 = vunpack.c.l.b16 %v3171
      %v3285 = vunpack.c.l.b16 %v3172
      %v3286 = vunpack.c.l.b16 %v3173
      %v3287 = vunpack.c.l.b16 %v3174
      %v3288 = vunpack.c.l.b16 %v3175
      %v3289 = vpack.c.b16 %v3242, %v3241
      %v3290 = vpack.c.b16 %v3244, %v3243
      %v3291 = vpack.c.b16 %v3246, %v3245
      %v3292 = vpack.c.b16 %v3248, %v3247
      %v3293 = vpack.c.b16 %v3250, %v3249
      %v3294 = vpack.c.b16 %v3252, %v3251
      %v3295 = vpack.c.b16 %v3254, %v3253
      %v3296 = vpack.c.b16 %v3256, %v3255
      %v3297 = vpack.c.b16 %v3258, %v3257
      %v3298 = vpack.c.b16 %v3260, %v3259
      %v3299 = vpack.c.b16 %v3262, %v3261
      %v3300 = vpack.c.b16 %v3264, %v3263
      %v3301 = vpack.c.b16 %v3266, %v3265
      %v3302 = vpack.c.b16 %v3268, %v3267
      %v3303 = vpack.c.b16 %v3270, %v3269
      %v3304 = vpack.c.b16 %v3272, %v3271
      %v3305 = vpack.c.b16 %v3274, %v3273
      %v3306 = vpack.c.b16 %v3276, %v3275
      %v3307 = vpack.c.b16 %v3278, %v3277
      %v3308 = vpack.c.b16 %v3280, %v3279
      %v3309 = vpack.c.b16 %v3282, %v3281
      %v3310 = vpack.c.b16 %v3284, %v3283
      %v3311 = vpack.c.b16 %v3286, %v3285
      %v3312 = vpack.c.b16 %v3288, %v3287
      %v3353 = vunpack.c.l.b16 %v3177
      %v3354 = vunpack.c.l.b16 %v3178
      %v3355 = vunpack.c.l.b16 %v3179
      %v3356 = vunpack.c.l.b16 %v3180
      %v3357 = vunpack.c.l.b16 %v3181
      %v3358 = vunpack.c.l.b16 %v3182
      %v3359 = vunpack.c.l.b16 %v3183
      %v3360 = vunpack.c.l.b16 %v3184
      %v3361 = vunpack.c.l.b16 %v3185
      %v3362 = vunpack.c.l.b16 %v3186
      %v3363 = vunpack.c.l.b16 %v3187
      %v3364 = vunpack.c.l.b16 %v3188
      %v3365 = vunpack.c.l.b16 %v3189
      %v3366 = vunpack.c.l.b16 %v3190
      %v3367 = vunpack.c.l.b16 %v3191
      %v3368 = vunpack.c.l.b16 %v3192
      %v3369 = vpack.c.b16 %v3354, %v3353
      %v3370 = vpack.c.b16 %v3356, %v3355
      %v3371 = vpack.c.b16 %v3358, %v3357
      %v3372 = vpack.c.b16 %v3360, %v3359
      %v3373 = vpack.c.b16 %v3362, %v3361
      %v3374 = vpack.c.b16 %v3364, %v3363
      %v3375 = vpack.c.b16 %v3366, %v3365
      %v3376 = vpack.c.b16 %v3368, %v3367
      %3385 = vmatprep.subr.bf16.mxu0 0
      %3386 = vmatpush1.bf16.msra.mxu0 %v3376
      %3387 = vmatprep.subr.bf16.mxu0 0
      %3388 = vmatpush1.bf16.msra.mxu0 %v3375
      %3389 = vmatprep.subr.bf16.mxu0 0
      %3390 = vmatpush1.bf16.msra.mxu0 %v3374
      %3391 = vmatprep.subr.bf16.mxu0 0
      %3392 = vmatpush1.bf16.msra.mxu0 %v3373
      %3393 = vmatprep.subr.bf16.mxu0 0
      %3394 = vmatpush1.bf16.msra.mxu0 %v3372
      %3395 = vmatprep.subr.bf16.mxu0 0
      %3396 = vmatpush1.bf16.msra.mxu0 %v3371
      %3397 = vmatprep.subr.bf16.mxu0 0
      %3398 = vmatpush1.bf16.msra.mxu0 %v3370
      %3399 = vmatprep.subr.bf16.mxu0 0
      %3400 = vmatpush1.bf16.msra.mxu0 %v3369
      %3401 = vmatprep.subr.bf16.mxu0 0
      %3402 = vmatpush2.bf16.msra.mxu0 0
      %3403 = vmatprep.subr.bf16.mxu0 0
      %3404 = vmatpush2.bf16.msra.mxu0 0
      %3405 = vmatprep.subr.bf16.mxu0 0
      %3406 = vmatpush2.bf16.msra.mxu0 0
      %3407 = vmatprep.subr.bf16.mxu0 0
      %3408 = vmatpush2.bf16.msra.mxu0 0
      %3409 = vmatprep.subr.bf16.mxu0 0
      %3410 = vmatpush2.bf16.msra.mxu0 0
      %3411 = vmatprep.subr.bf16.mxu0 0
      %3412 = vmatpush2.bf16.msra.mxu0 0
      %3413 = vmatprep.subr.bf16.mxu0 0
      %3414 = vmatpush2.bf16.msra.mxu0 0
      %3415 = vmatprep.subr.bf16.mxu0 0
      %3416 = vmatpush2.bf16.msra.mxu0 0
      %3417 = vmatprep.mubr.bf16.mxu0 0
      %3418 = vmatmul.mubr.bf16.gmra.mxu0 %v3289
      %v3419 = vpop.f32.mrf.mxu0
      %v3420 = vadd.f32 0.0, %v3419
      %v3421 = vpop.f32.mrf.mxu0
      %v3422 = vpop.f32.mrf.mxu0
      %v3423 = vadd.f32 0.0, %v3422
      %v3424 = vpop.f32.mrf.mxu0
      %3425 = vmatprep.mubr.bf16.mxu0 0
      %3426 = vmatmul.mubr.bf16.gmra.mxu0 %v3290
      %v3427 = vpop.f32.mrf.mxu0
      %v3428 = vadd.f32 0.0, %v3427
      %v3429 = vpop.f32.mrf.mxu0
      %v3430 = vpop.f32.mrf.mxu0
      %v3431 = vadd.f32 0.0, %v3430
      %v3432 = vpop.f32.mrf.mxu0
      %3433 = vmatprep.mubr.bf16.mxu0 0
      %3434 = vmatmul.mubr.bf16.gmra.mxu0 %v3291
      %v3435 = vpop.f32.mrf.mxu0
      %v3436 = vadd.f32 0.0, %v3435
      %v3437 = vpop.f32.mrf.mxu0
      %v3438 = vpop.f32.mrf.mxu0
      %v3439 = vadd.f32 0.0, %v3438
      %v3440 = vpop.f32.mrf.mxu0
      %3441 = vmatprep.mubr.bf16.mxu0 0
      %3442 = vmatmul.mubr.bf16.gmra.mxu0 %v3292
      %v3443 = vpop.f32.mrf.mxu0
      %v3444 = vadd.f32 0.0, %v3443
      %v3445 = vpop.f32.mrf.mxu0
      %v3446 = vpop.f32.mrf.mxu0
      %v3447 = vadd.f32 0.0, %v3446
      %v3448 = vpop.f32.mrf.mxu0
      %3449 = vmatprep.mubr.bf16.mxu0 0
      %3450 = vmatmul.mubr.bf16.gmra.mxu0 %v3293
      %v3451 = vpop.f32.mrf.mxu0
      %v3452 = vadd.f32 0.0, %v3451
      %v3453 = vpop.f32.mrf.mxu0
      %v3454 = vpop.f32.mrf.mxu0
      %v3455 = vadd.f32 0.0, %v3454
      %v3456 = vpop.f32.mrf.mxu0
      %3457 = vmatprep.mubr.bf16.mxu0 0
      %3458 = vmatmul.mubr.bf16.gmra.mxu0 %v3294
      %v3459 = vpop.f32.mrf.mxu0
      %v3460 = vadd.f32 0.0, %v3459
      %v3461 = vpop.f32.mrf.mxu0
      %v3462 = vpop.f32.mrf.mxu0
      %v3463 = vadd.f32 0.0, %v3462
      %v3464 = vpop.f32.mrf.mxu0
      %3465 = vmatprep.mubr.bf16.mxu0 0
      %3466 = vmatmul.mubr.bf16.gmra.mxu0 %v3295
      %v3467 = vpop.f32.mrf.mxu0
      %v3468 = vadd.f32 0.0, %v3467
      %v3469 = vpop.f32.mrf.mxu0
      %v3470 = vpop.f32.mrf.mxu0
      %v3471 = vadd.f32 0.0, %v3470
      %v3472 = vpop.f32.mrf.mxu0
      %3473 = vmatprep.mubr.bf16.mxu0 0
      %3474 = vmatmul.mubr.bf16.gmra.mxu0 %v3296
      %v3475 = vpop.f32.mrf.mxu0
      %v3476 = vadd.f32 0.0, %v3475
      %v3477 = vpop.f32.mrf.mxu0
      %v3478 = vpop.f32.mrf.mxu0
      %v3479 = vadd.f32 0.0, %v3478
      %v3480 = vpop.f32.mrf.mxu0
      %3481 = vmatprep.mubr.bf16.mxu0 0
      %3482 = vmatmul.mubr.bf16.gmra.mxu0 %v3297
      %v3483 = vpop.f32.mrf.mxu0
      %v3484 = vadd.f32 0.0, %v3483
      %v3485 = vpop.f32.mrf.mxu0
      %v3486 = vpop.f32.mrf.mxu0
      %v3487 = vadd.f32 0.0, %v3486
      %v3488 = vpop.f32.mrf.mxu0
      %3489 = vmatprep.mubr.bf16.mxu0 0
      %3490 = vmatmul.mubr.bf16.gmra.mxu0 %v3298
      %v3491 = vpop.f32.mrf.mxu0
      %v3492 = vadd.f32 0.0, %v3491
      %v3493 = vpop.f32.mrf.mxu0
      %v3494 = vpop.f32.mrf.mxu0
      %v3495 = vadd.f32 0.0, %v3494
      %v3496 = vpop.f32.mrf.mxu0
      %3497 = vmatprep.mubr.bf16.mxu0 0
      %3498 = vmatmul.mubr.bf16.gmra.mxu0 %v3299
      %v3499 = vpop.f32.mrf.mxu0
      %v3500 = vadd.f32 0.0, %v3499
      %v3501 = vpop.f32.mrf.mxu0
      %v3502 = vpop.f32.mrf.mxu0
      %v3503 = vadd.f32 0.0, %v3502
      %v3504 = vpop.f32.mrf.mxu0
      %3505 = vmatprep.mubr.bf16.mxu0 0
      %3506 = vmatmul.mubr.bf16.gmra.mxu0 %v3300
      %v3507 = vpop.f32.mrf.mxu0
      %v3508 = vadd.f32 0.0, %v3507
      %v3509 = vpop.f32.mrf.mxu0
      %v3510 = vpop.f32.mrf.mxu0
      %v3511 = vadd.f32 0.0, %v3510
      %v3512 = vpop.f32.mrf.mxu0
      %3513 = vmatprep.mubr.bf16.mxu0 0
      %3514 = vmatmul.mubr.bf16.gmra.mxu0 %v3301
      %v3515 = vpop.f32.mrf.mxu0
      %v3516 = vadd.f32 0.0, %v3515
      %v3517 = vpop.f32.mrf.mxu0
      %v3518 = vpop.f32.mrf.mxu0
      %v3519 = vadd.f32 0.0, %v3518
      %v3520 = vpop.f32.mrf.mxu0
      %3521 = vmatprep.mubr.bf16.mxu0 0
      %3522 = vmatmul.mubr.bf16.gmra.mxu0 %v3302
      %v3523 = vpop.f32.mrf.mxu0
      %v3524 = vadd.f32 0.0, %v3523
      %v3525 = vpop.f32.mrf.mxu0
      %v3526 = vpop.f32.mrf.mxu0
      %v3527 = vadd.f32 0.0, %v3526
      %v3528 = vpop.f32.mrf.mxu0
      %3529 = vmatprep.mubr.bf16.mxu0 0
      %3530 = vmatmul.mubr.bf16.gmra.mxu0 %v3303
      %v3531 = vpop.f32.mrf.mxu0
      %v3532 = vadd.f32 0.0, %v3531
      %v3533 = vpop.f32.mrf.mxu0
      %v3534 = vpop.f32.mrf.mxu0
      %v3535 = vadd.f32 0.0, %v3534
      %v3536 = vpop.f32.mrf.mxu0
      %3537 = vmatprep.mubr.bf16.mxu0 0
      %3538 = vmatmul.mubr.bf16.gmra.mxu0 %v3304
      %v3539 = vpop.f32.mrf.mxu0
      %v3540 = vadd.f32 0.0, %v3539
      %v3541 = vpop.f32.mrf.mxu0
      %v3542 = vpop.f32.mrf.mxu0
      %v3543 = vadd.f32 0.0, %v3542
      %v3544 = vpop.f32.mrf.mxu0
      %3545 = vmatprep.mubr.bf16.mxu0 0
      %3546 = vmatmul.mubr.bf16.gmra.mxu0 %v3305
      %v3547 = vpop.f32.mrf.mxu0
      %v3548 = vadd.f32 0.0, %v3547
      %v3549 = vpop.f32.mrf.mxu0
      %v3550 = vpop.f32.mrf.mxu0
      %v3551 = vadd.f32 0.0, %v3550
      %v3552 = vpop.f32.mrf.mxu0
      %3553 = vmatprep.mubr.bf16.mxu0 0
      %3554 = vmatmul.mubr.bf16.gmra.mxu0 %v3306
      %v3555 = vpop.f32.mrf.mxu0
      %v3556 = vadd.f32 0.0, %v3555
      %v3557 = vpop.f32.mrf.mxu0
      %v3558 = vpop.f32.mrf.mxu0
      %v3559 = vadd.f32 0.0, %v3558
      %v3560 = vpop.f32.mrf.mxu0
      %3561 = vmatprep.mubr.bf16.mxu0 0
      %3562 = vmatmul.mubr.bf16.gmra.mxu0 %v3307
      %v3563 = vpop.f32.mrf.mxu0
      %v3564 = vadd.f32 0.0, %v3563
      %v3565 = vpop.f32.mrf.mxu0
      %v3566 = vpop.f32.mrf.mxu0
      %v3567 = vadd.f32 0.0, %v3566
      %v3568 = vpop.f32.mrf.mxu0
      %3569 = vmatprep.mubr.bf16.mxu0 0
      %3570 = vmatmul.mubr.bf16.gmra.mxu0 %v3308
      %v3571 = vpop.f32.mrf.mxu0
      %v3572 = vadd.f32 0.0, %v3571
      %v3573 = vpop.f32.mrf.mxu0
      %v3574 = vpop.f32.mrf.mxu0
      %v3575 = vadd.f32 0.0, %v3574
      %v3576 = vpop.f32.mrf.mxu0
      %3577 = vmatprep.mubr.bf16.mxu0 0
      %3578 = vmatmul.mubr.bf16.gmra.mxu0 %v3309
      %v3579 = vpop.f32.mrf.mxu0
      %v3580 = vadd.f32 0.0, %v3579
      %v3581 = vpop.f32.mrf.mxu0
      %v3582 = vpop.f32.mrf.mxu0
      %v3583 = vadd.f32 0.0, %v3582
      %v3584 = vpop.f32.mrf.mxu0
      %3585 = vmatprep.mubr.bf16.mxu0 0
      %3586 = vmatmul.mubr.bf16.gmra.mxu0 %v3310
      %v3587 = vpop.f32.mrf.mxu0
      %v3588 = vadd.f32 0.0, %v3587
      %v3589 = vpop.f32.mrf.mxu0
      %v3590 = vpop.f32.mrf.mxu0
      %v3591 = vadd.f32 0.0, %v3590
      %v3592 = vpop.f32.mrf.mxu0
      %3593 = vmatprep.mubr.bf16.mxu0 0
      %3594 = vmatmul.mubr.bf16.gmra.mxu0 %v3311
      %v3595 = vpop.f32.mrf.mxu0
      %v3596 = vadd.f32 0.0, %v3595
      %v3597 = vpop.f32.mrf.mxu0
      %v3598 = vpop.f32.mrf.mxu0
      %v3599 = vadd.f32 0.0, %v3598
      %v3600 = vpop.f32.mrf.mxu0
      %3601 = vmatprep.mubr.bf16.mxu0 0
      %3602 = vmatmul.mubr.bf16.gmra.mxu0 %v3312
      %v3603 = vpop.f32.mrf.mxu0
      %v3604 = vadd.f32 0.0, %v3603
      %v3605 = vpop.f32.mrf.mxu0
      %v3606 = vpop.f32.mrf.mxu0
      %v3607 = vadd.f32 0.0, %v3606
      %v3608 = vpop.f32.mrf.mxu0
      %3609 = vdwg.mxu0
      %v3610 = vld [vmem:[#allocation3] sm:$0xff]
      %v3611 = vld [vmem:[#allocation3 + $0x8] sm:$0xff]
      %v3612 = vld [vmem:[#allocation3 + $0x10] sm:$0xff]
      %v3613 = vld [vmem:[#allocation3 + $0x18] sm:$0xff]
      %v3614 = vld [vmem:[#allocation3 + $0x20] sm:$0xff]
      %v3615 = vld [vmem:[#allocation3 + $0x28] sm:$0xff]
      %v3616 = vld [vmem:[#allocation3 + $0x30] sm:$0xff]
      %v3617 = vld [vmem:[#allocation3 + $0x38] sm:$0xff]
      %v3618 = vld [vmem:[#allocation3 + $0x40] sm:$0xff]
      %v3619 = vld [vmem:[#allocation3 + $0x48] sm:$0xff]
      %v3620 = vld [vmem:[#allocation3 + $0x50] sm:$0xff]
      %v3621 = vld [vmem:[#allocation3 + $0x58] sm:$0xff]
      %v3622 = vld [vmem:[#allocation3 + $0x60] sm:$0xff]
      %v3623 = vld [vmem:[#allocation3 + $0x68] sm:$0xff]
      %v3624 = vld [vmem:[#allocation3 + $0x70] sm:$0xff]
      %v3625 = vld [vmem:[#allocation3 + $0x78] sm:$0xff]
      %v3626 = vld [vmem:[#allocation3 + $0x80] sm:$0xff]
      %v3627 = vld [vmem:[#allocation3 + $0x88] sm:$0xff]
      %v3628 = vld [vmem:[#allocation3 + $0x90] sm:$0xff]
      %v3629 = vld [vmem:[#allocation3 + $0x98] sm:$0xff]
      %v3630 = vld [vmem:[#allocation3 + $0xa0] sm:$0xff]
      %v3631 = vld [vmem:[#allocation3 + $0xa8] sm:$0xff]
      %v3632 = vld [vmem:[#allocation3 + $0xb0] sm:$0xff]
      %v3633 = vld [vmem:[#allocation3 + $0xb8] sm:$0xff]
      %v3634 = vld [vmem:[#allocation3 + $0xc0] sm:$0xff]
      %v3635 = vld [vmem:[#allocation3 + $0xc8] sm:$0xff]
      %v3636 = vld [vmem:[#allocation3 + $0xd0] sm:$0xff]
      %v3637 = vld [vmem:[#allocation3 + $0xd8] sm:$0xff]
      %v3638 = vld [vmem:[#allocation3 + $0xe0] sm:$0xff]
      %v3639 = vld [vmem:[#allocation3 + $0xe8] sm:$0xff]
      %v3640 = vld [vmem:[#allocation3 + $0xf0] sm:$0xff]
      %v3641 = vld [vmem:[#allocation3 + $0xf8] sm:$0xff]
      %v3642 = vld [vmem:[#allocation3 + $0x100] sm:$0xff]
      %v3643 = vld [vmem:[#allocation3 + $0x108] sm:$0xff]
      %v3644 = vld [vmem:[#allocation3 + $0x110] sm:$0xff]
      %v3645 = vld [vmem:[#allocation3 + $0x118] sm:$0xff]
      %v3646 = vld [vmem:[#allocation3 + $0x120] sm:$0xff]
      %v3647 = vld [vmem:[#allocation3 + $0x128] sm:$0xff]
      %v3648 = vld [vmem:[#allocation3 + $0x130] sm:$0xff]
      %v3649 = vld [vmem:[#allocation3 + $0x138] sm:$0xff]
      %v3650 = vld [vmem:[#allocation3 + $0x140] sm:$0xff]
      %v3651 = vld [vmem:[#allocation3 + $0x148] sm:$0xff]
      %v3652 = vld [vmem:[#allocation3 + $0x150] sm:$0xff]
      %v3653 = vld [vmem:[#allocation3 + $0x158] sm:$0xff]
      %v3654 = vld [vmem:[#allocation3 + $0x160] sm:$0xff]
      %v3655 = vld [vmem:[#allocation3 + $0x168] sm:$0xff]
      %v3656 = vld [vmem:[#allocation3 + $0x170] sm:$0xff]
      %v3657 = vld [vmem:[#allocation3 + $0x178] sm:$0xff]
      %v3658 = vadd.f32 %v3610, %v3420
      %v3659 = vadd.f32 %v3611, %v3423
      %v3660 = vadd.f32 %v3612, %v3428
      %v3661 = vadd.f32 %v3613, %v3431
      %v3662 = vadd.f32 %v3614, %v3436
      %v3663 = vadd.f32 %v3615, %v3439
      %v3664 = vadd.f32 %v3616, %v3444
      %v3665 = vadd.f32 %v3617, %v3447
      %v3666 = vadd.f32 %v3618, %v3452
      %v3667 = vadd.f32 %v3619, %v3455
      %v3668 = vadd.f32 %v3620, %v3460
      %v3669 = vadd.f32 %v3621, %v3463
      %v3670 = vadd.f32 %v3622, %v3468
      %v3671 = vadd.f32 %v3623, %v3471
      %v3672 = vadd.f32 %v3624, %v3476
      %v3673 = vadd.f32 %v3625, %v3479
      %v3674 = vadd.f32 %v3626, %v3484
      %v3675 = vadd.f32 %v3627, %v3487
      %v3676 = vadd.f32 %v3628, %v3492
      %v3677 = vadd.f32 %v3629, %v3495
      %v3678 = vadd.f32 %v3630, %v3500
      %v3679 = vadd.f32 %v3631, %v3503
      %v3680 = vadd.f32 %v3632, %v3508
      %v3681 = vadd.f32 %v3633, %v3511
      %v3682 = vadd.f32 %v3634, %v3516
      %v3683 = vadd.f32 %v3635, %v3519
      %v3684 = vadd.f32 %v3636, %v3524
      %v3685 = vadd.f32 %v3637, %v3527
      %v3686 = vadd.f32 %v3638, %v3532
      %v3687 = vadd.f32 %v3639, %v3535
      %v3688 = vadd.f32 %v3640, %v3540
      %v3689 = vadd.f32 %v3641, %v3543
      %v3690 = vadd.f32 %v3642, %v3548
      %v3691 = vadd.f32 %v3643, %v3551
      %v3692 = vadd.f32 %v3644, %v3556
      %v3693 = vadd.f32 %v3645, %v3559
      %v3694 = vadd.f32 %v3646, %v3564
      %v3695 = vadd.f32 %v3647, %v3567
      %v3696 = vadd.f32 %v3648, %v3572
      %v3697 = vadd.f32 %v3649, %v3575
      %v3698 = vadd.f32 %v3650, %v3580
      %v3699 = vadd.f32 %v3651, %v3583
      %v3700 = vadd.f32 %v3652, %v3588
      %v3701 = vadd.f32 %v3653, %v3591
      %v3702 = vadd.f32 %v3654, %v3596
      %v3703 = vadd.f32 %v3655, %v3599
      %v3704 = vadd.f32 %v3656, %v3604
      %v3705 = vadd.f32 %v3657, %v3607
      %3706 = vst [vmem:[#allocation3] sm:$0xff] %v3658
      %3707 = vst [vmem:[#allocation3 + $0x8] sm:$0xff] %v3659
      %3708 = vst [vmem:[#allocation3 + $0x10] sm:$0xff] %v3660
      %3709 = vst [vmem:[#allocation3 + $0x18] sm:$0xff] %v3661
      %3710 = vst [vmem:[#allocation3 + $0x20] sm:$0xff] %v3662
      %3711 = vst [vmem:[#allocation3 + $0x28] sm:$0xff] %v3663
      %3712 = vst [vmem:[#allocation3 + $0x30] sm:$0xff] %v3664
      %3713 = vst [vmem:[#allocation3 + $0x38] sm:$0xff] %v3665
      %3714 = vst [vmem:[#allocation3 + $0x40] sm:$0xff] %v3666
      %3715 = vst [vmem:[#allocation3 + $0x48] sm:$0xff] %v3667
      %3716 = vst [vmem:[#allocation3 + $0x50] sm:$0xff] %v3668
      %3717 = vst [vmem:[#allocation3 + $0x58] sm:$0xff] %v3669
      %3718 = vst [vmem:[#allocation3 + $0x60] sm:$0xff] %v3670
      %3719 = vst [vmem:[#allocation3 + $0x68] sm:$0xff] %v3671
      %3720 = vst [vmem:[#allocation3 + $0x70] sm:$0xff] %v3672
      %3721 = vst [vmem:[#allocation3 + $0x78] sm:$0xff] %v3673
      %3722 = vst [vmem:[#allocation3 + $0x80] sm:$0xff] %v3674
      %3723 = vst [vmem:[#allocation3 + $0x88] sm:$0xff] %v3675
      %3724 = vst [vmem:[#allocation3 + $0x90] sm:$0xff] %v3676
      %3725 = vst [vmem:[#allocation3 + $0x98] sm:$0xff] %v3677
      %3726 = vst [vmem:[#allocation3 + $0xa0] sm:$0xff] %v3678
      %3727 = vst [vmem:[#allocation3 + $0xa8] sm:$0xff] %v3679
      %3728 = vst [vmem:[#allocation3 + $0xb0] sm:$0xff] %v3680
      %3729 = vst [vmem:[#allocation3 + $0xb8] sm:$0xff] %v3681
      %3730 = vst [vmem:[#allocation3 + $0xc0] sm:$0xff] %v3682
      %3731 = vst [vmem:[#allocation3 + $0xc8] sm:$0xff] %v3683
      %3732 = vst [vmem:[#allocation3 + $0xd0] sm:$0xff] %v3684
      %3733 = vst [vmem:[#allocation3 + $0xd8] sm:$0xff] %v3685
      %3734 = vst [vmem:[#allocation3 + $0xe0] sm:$0xff] %v3686
      %3735 = vst [vmem:[#allocation3 + $0xe8] sm:$0xff] %v3687
      %3736 = vst [vmem:[#allocation3 + $0xf0] sm:$0xff] %v3688
      %3737 = vst [vmem:[#allocation3 + $0xf8] sm:$0xff] %v3689
      %3738 = vst [vmem:[#allocation3 + $0x100] sm:$0xff] %v3690
      %3739 = vst [vmem:[#allocation3 + $0x108] sm:$0xff] %v3691
      %3740 = vst [vmem:[#allocation3 + $0x110] sm:$0xff] %v3692
      %3741 = vst [vmem:[#allocation3 + $0x118] sm:$0xff] %v3693
      %3742 = vst [vmem:[#allocation3 + $0x120] sm:$0xff] %v3694
      %3743 = vst [vmem:[#allocation3 + $0x128] sm:$0xff] %v3695
      %3744 = vst [vmem:[#allocation3 + $0x130] sm:$0xff] %v3696
      %3745 = vst [vmem:[#allocation3 + $0x138] sm:$0xff] %v3697
      %3746 = vst [vmem:[#allocation3 + $0x140] sm:$0xff] %v3698
      %3747 = vst [vmem:[#allocation3 + $0x148] sm:$0xff] %v3699
      %3748 = vst [vmem:[#allocation3 + $0x150] sm:$0xff] %v3700
      %3749 = vst [vmem:[#allocation3 + $0x158] sm:$0xff] %v3701
      %3750 = vst [vmem:[#allocation3 + $0x160] sm:$0xff] %v3702
      %3751 = vst [vmem:[#allocation3 + $0x168] sm:$0xff] %v3703
      %3752 = vst [vmem:[#allocation3 + $0x170] sm:$0xff] %v3704
      %3753 = vst [vmem:[#allocation3 + $0x178] sm:$0xff] %v3705
      %v3754 = vld [vmem:[#allocation2 + $0xc] sm:$0xf]
      %v3755 = vld [vmem:[#allocation2 + $0x10] sm:$0xf]
      %v3756 = vld [vmem:[#allocation2 + $0x14] sm:$0xf]
      %v3757 = vld [vmem:[#allocation2 + $0x18] sm:$0xf]
      %v3758 = vld [vmem:[#allocation2 + $0x1c] sm:$0xf]
      %v3759 = vld [vmem:[#allocation2 + $0x20] sm:$0xf]
      %v3760 = vld [vmem:[#allocation2 + $0x24] sm:$0xf]
      %v3761 = vld [vmem:[#allocation2 + $0x28] sm:$0xf]
      %v3762 = vld [vmem:[#allocation2 + $0x2c] sm:$0xf]
      %v3763 = vld [vmem:[#allocation2 + $0x30] sm:$0xf]
      %v3764 = vld [vmem:[#allocation2 + $0x34] sm:$0xf]
      %v3765 = vld [vmem:[#allocation2 + $0x38] sm:$0xf]
      %v3766 = vld [vmem:[#allocation2 + $0x3c] sm:$0xf]
      %v3767 = vld [vmem:[#allocation2 + $0x40] sm:$0xf]
      %v3768 = vld [vmem:[#allocation2 + $0x44] sm:$0xf]
      %v3769 = vld [vmem:[#allocation2 + $0x48] sm:$0xf]
      %v3770 = vld [vmem:[#allocation2 + $0x4c] sm:$0xf]
      %v3771 = vld [vmem:[#allocation2 + $0x50] sm:$0xf]
      %v3772 = vld [vmem:[#allocation2 + $0x54] sm:$0xf]
      %v3773 = vld [vmem:[#allocation2 + $0x58] sm:$0xf]
      %v3774 = vld [vmem:[#allocation2 + $0x5c] sm:$0xf]
      %v3775 = vld [vmem:[#allocation2 + $0x60] sm:$0xf]
      %v3776 = vld [vmem:[#allocation2 + $0x64] sm:$0xf]
      %v3777 = vld [vmem:[#allocation2 + $0x68] sm:$0xf]
      %v3778 = vld [vmem:[#allocation2 + $0x6c] sm:$0xf]
      %v3779 = vld [vmem:[#allocation2 + $0x70] sm:$0xf]
      %v3780 = vld [vmem:[#allocation2 + $0x74] sm:$0xf]
      %v3781 = vld [vmem:[#allocation2 + $0x78] sm:$0xf]
      %v3782 = vld [vmem:[#allocation2 + $0x7c] sm:$0xf]
      %v3783 = vld [vmem:[#allocation2 + $0x80] sm:$0xf]
      %v3784 = vld [vmem:[#allocation2 + $0x84] sm:$0xf]
      %v3785 = vld [vmem:[#allocation2 + $0x88] sm:$0xf]
      %v3786 = vld [vmem:[#allocation2 + $0x8c] sm:$0xf]
      %v3787 = vld [vmem:[#allocation2 + $0x90] sm:$0xf]
      %v3788 = vld [vmem:[#allocation2 + $0x94] sm:$0xf]
      %v3789 = vld [vmem:[#allocation2 + $0x98] sm:$0xf]
      %v3790 = vld [vmem:[#allocation2 + $0x9c] sm:$0xf]
      %v3791 = vld [vmem:[#allocation2 + $0xa0] sm:$0xf]
      %v3792 = vld [vmem:[#allocation2 + $0xa4] sm:$0xf]
      %v3793 = vld [vmem:[#allocation2 + $0xa8] sm:$0xf]
      %v3794 = vld [vmem:[#allocation2 + $0xac] sm:$0xf]
      %v3795 = vld [vmem:[#allocation2 + $0xb0] sm:$0xf]
      %v3796 = vld [vmem:[#allocation2 + $0xb4] sm:$0xf]
      %v3797 = vld [vmem:[#allocation2 + $0xb8] sm:$0xf]
      %v3798 = vld [vmem:[#allocation2 + $0xbc] sm:$0xf]
      %v3799 = vld [vmem:[#allocation2 + $0xc0] sm:$0xf]
      %v3800 = vld [vmem:[#allocation2 + $0xc4] sm:$0xf]
      %v3801 = vld [vmem:[#allocation2 + $0xc8] sm:$0xf]
      %v3802 = vld [vmem:[#allocation2 + $0xcc] sm:$0x1]
      %s3803 = scalar_lea.vmem %s4, 256
      %v3804 = vld [vmem:[%s3803] sm:$0xf]
      %v3805 = vld [vmem:[%s3803 + $0x4] sm:$0xf]
      %v3806 = vld [vmem:[%s3803 + $0x8] sm:$0xf]
      %v3807 = vld [vmem:[%s3803 + $0xc] sm:$0xf]
      %v3808 = vld [vmem:[%s3803 + $0x10] sm:$0xf]
      %v3809 = vld [vmem:[%s3803 + $0x14] sm:$0xf]
      %v3810 = vld [vmem:[%s3803 + $0x18] sm:$0xf]
      %v3811 = vld [vmem:[%s3803 + $0x1c] sm:$0xf]
      %v3812 = vld [vmem:[%s3803 + $0x20] sm:$0xf]
      %v3813 = vld [vmem:[%s3803 + $0x24] sm:$0xf]
      %v3814 = vld [vmem:[%s3803 + $0x28] sm:$0xf]
      %v3815 = vld [vmem:[%s3803 + $0x2c] sm:$0xf]
      %v3816 = vld [vmem:[%s3803 + $0x30] sm:$0xf]
      %v3817 = vld [vmem:[%s3803 + $0x34] sm:$0xf]
      %v3818 = vld [vmem:[%s3803 + $0x38] sm:$0xf]
      %v3819 = vld [vmem:[%s3803 + $0x3c] sm:$0xf]
      %v3869 = vunpack.c.l.b16 %v3754
      %v3870 = vunpack.c.l.b16 %v3755
      %v3871 = vunpack.c.l.b16 %v3756
      %v3872 = vunpack.c.l.b16 %v3757
      %v3873 = vunpack.c.l.b16 %v3758
      %v3874 = vunpack.c.l.b16 %v3759
      %v3875 = vunpack.c.l.b16 %v3760
      %v3876 = vunpack.c.l.b16 %v3761
      %v3877 = vunpack.c.l.b16 %v3762
      %v3878 = vunpack.c.l.b16 %v3763
      %v3879 = vunpack.c.l.b16 %v3764
      %v3880 = vunpack.c.l.b16 %v3765
      %v3881 = vunpack.c.l.b16 %v3766
      %v3882 = vunpack.c.l.b16 %v3767
      %v3883 = vunpack.c.l.b16 %v3768
      %v3884 = vunpack.c.l.b16 %v3769
      %v3885 = vunpack.c.l.b16 %v3770
      %v3886 = vunpack.c.l.b16 %v3771
      %v3887 = vunpack.c.l.b16 %v3772
      %v3888 = vunpack.c.l.b16 %v3773
      %v3889 = vunpack.c.l.b16 %v3774
      %v3890 = vunpack.c.l.b16 %v3775
      %v3891 = vunpack.c.l.b16 %v3776
      %v3892 = vunpack.c.l.b16 %v3777
      %v3893 = vunpack.c.l.b16 %v3778
      %v3894 = vunpack.c.l.b16 %v3779
      %v3895 = vunpack.c.l.b16 %v3780
      %v3896 = vunpack.c.l.b16 %v3781
      %v3897 = vunpack.c.l.b16 %v3782
      %v3898 = vunpack.c.l.b16 %v3783
      %v3899 = vunpack.c.l.b16 %v3784
      %v3900 = vunpack.c.l.b16 %v3785
      %v3901 = vunpack.c.l.b16 %v3786
      %v3902 = vunpack.c.l.b16 %v3787
      %v3903 = vunpack.c.l.b16 %v3788
      %v3904 = vunpack.c.l.b16 %v3789
      %v3905 = vunpack.c.l.b16 %v3790
      %v3906 = vunpack.c.l.b16 %v3791
      %v3907 = vunpack.c.l.b16 %v3792
      %v3908 = vunpack.c.l.b16 %v3793
      %v3909 = vunpack.c.l.b16 %v3794
      %v3910 = vunpack.c.l.b16 %v3795
      %v3911 = vunpack.c.l.b16 %v3796
      %v3912 = vunpack.c.l.b16 %v3797
      %v3913 = vunpack.c.l.b16 %v3798
      %v3914 = vunpack.c.l.b16 %v3799
      %v3915 = vunpack.c.l.b16 %v3800
      %v3916 = vunpack.c.l.b16 %v3801
      %v3917 = vunpack.c.l.b16 %v3802
      %v3918 = vpack.c.b16 %v3870, %v3869
      %v3919 = vpack.c.b16 %v3872, %v3871
      %v3920 = vpack.c.b16 %v3874, %v3873
      %v3921 = vpack.c.b16 %v3876, %v3875
      %v3922 = vpack.c.b16 %v3878, %v3877
      %v3923 = vpack.c.b16 %v3880, %v3879
      %v3924 = vpack.c.b16 %v3882, %v3881
      %v3925 = vpack.c.b16 %v3884, %v3883
      %v3926 = vpack.c.b16 %v3886, %v3885
      %v3927 = vpack.c.b16 %v3888, %v3887
      %v3928 = vpack.c.b16 %v3890, %v3889
      %v3929 = vpack.c.b16 %v3892, %v3891
      %v3930 = vpack.c.b16 %v3894, %v3893
      %v3931 = vpack.c.b16 %v3896, %v3895
      %v3932 = vpack.c.b16 %v3898, %v3897
      %v3933 = vpack.c.b16 %v3900, %v3899
      %v3934 = vpack.c.b16 %v3902, %v3901
      %v3935 = vpack.c.b16 %v3904, %v3903
      %v3936 = vpack.c.b16 %v3906, %v3905
      %v3937 = vpack.c.b16 %v3908, %v3907
      %v3938 = vpack.c.b16 %v3910, %v3909
      %v3939 = vpack.c.b16 %v3912, %v3911
      %v3940 = vpack.c.b16 %v3914, %v3913
      %v3941 = vpack.c.b16 %v3916, %v3915
      %v3942 = vpack.c.b16 %v3917, %v3917
      %v3944 = vshrl.u32 %v3918, 16
      %v3946 = vshll.u32 %v3918, 16
      %v3948 = vrot.slane %v3946, 1
      %v3949 = vor.u32 %v3944, %v3948
      %v3951 = vshll.u32 %v3919, 16
      %v3953 = vrot.slane %v3951, 1
      %v3954 = vsel %vm1810, %v3949, %v3953
      %v3955 = vshrl.u32 %v3919, 16
      %v3957 = vor.u32 %v3955, %v3953
      %v3959 = vshll.u32 %v3920, 16
      %v3961 = vrot.slane %v3959, 1
      %v3962 = vsel %vm1810, %v3957, %v3961
      %v3963 = vshrl.u32 %v3920, 16
      %v3965 = vor.u32 %v3963, %v3961
      %v3967 = vshll.u32 %v3921, 16
      %v3969 = vrot.slane %v3967, 1
      %v3970 = vsel %vm1810, %v3965, %v3969
      %v3971 = vshrl.u32 %v3921, 16
      %v3973 = vor.u32 %v3971, %v3969
      %v3975 = vshll.u32 %v3922, 16
      %v3977 = vrot.slane %v3975, 1
      %v3978 = vsel %vm1810, %v3973, %v3977
      %v3979 = vshrl.u32 %v3922, 16
      %v3981 = vor.u32 %v3979, %v3977
      %v3983 = vshll.u32 %v3923, 16
      %v3985 = vrot.slane %v3983, 1
      %v3986 = vsel %vm1810, %v3981, %v3985
      %v3987 = vshrl.u32 %v3923, 16
      %v3989 = vor.u32 %v3987, %v3985
      %v3991 = vshll.u32 %v3924, 16
      %v3993 = vrot.slane %v3991, 1
      %v3994 = vsel %vm1810, %v3989, %v3993
      %v3995 = vshrl.u32 %v3924, 16
      %v3997 = vor.u32 %v3995, %v3993
      %v3999 = vshll.u32 %v3925, 16
      %v4001 = vrot.slane %v3999, 1
      %v4002 = vsel %vm1810, %v3997, %v4001
      %v4003 = vshrl.u32 %v3925, 16
      %v4005 = vor.u32 %v4003, %v4001
      %v4007 = vshll.u32 %v3926, 16
      %v4009 = vrot.slane %v4007, 1
      %v4010 = vsel %vm1810, %v4005, %v4009
      %v4011 = vshrl.u32 %v3926, 16
      %v4013 = vor.u32 %v4011, %v4009
      %v4015 = vshll.u32 %v3927, 16
      %v4017 = vrot.slane %v4015, 1
      %v4018 = vsel %vm1810, %v4013, %v4017
      %v4019 = vshrl.u32 %v3927, 16
      %v4021 = vor.u32 %v4019, %v4017
      %v4023 = vshll.u32 %v3928, 16
      %v4025 = vrot.slane %v4023, 1
      %v4026 = vsel %vm1810, %v4021, %v4025
      %v4027 = vshrl.u32 %v3928, 16
      %v4029 = vor.u32 %v4027, %v4025
      %v4031 = vshll.u32 %v3929, 16
      %v4033 = vrot.slane %v4031, 1
      %v4034 = vsel %vm1810, %v4029, %v4033
      %v4035 = vshrl.u32 %v3929, 16
      %v4037 = vor.u32 %v4035, %v4033
      %v4039 = vshll.u32 %v3930, 16
      %v4041 = vrot.slane %v4039, 1
      %v4042 = vsel %vm1810, %v4037, %v4041
      %v4043 = vshrl.u32 %v3930, 16
      %v4045 = vor.u32 %v4043, %v4041
      %v4047 = vshll.u32 %v3931, 16
      %v4049 = vrot.slane %v4047, 1
      %v4050 = vsel %vm1810, %v4045, %v4049
      %v4051 = vshrl.u32 %v3931, 16
      %v4053 = vor.u32 %v4051, %v4049
      %v4055 = vshll.u32 %v3932, 16
      %v4057 = vrot.slane %v4055, 1
      %v4058 = vsel %vm1810, %v4053, %v4057
      %v4059 = vshrl.u32 %v3932, 16
      %v4061 = vor.u32 %v4059, %v4057
      %v4063 = vshll.u32 %v3933, 16
      %v4065 = vrot.slane %v4063, 1
      %v4066 = vsel %vm1810, %v4061, %v4065
      %v4067 = vshrl.u32 %v3933, 16
      %v4069 = vor.u32 %v4067, %v4065
      %v4071 = vshll.u32 %v3934, 16
      %v4073 = vrot.slane %v4071, 1
      %v4074 = vsel %vm1810, %v4069, %v4073
      %v4075 = vshrl.u32 %v3934, 16
      %v4077 = vor.u32 %v4075, %v4073
      %v4079 = vshll.u32 %v3935, 16
      %v4081 = vrot.slane %v4079, 1
      %v4082 = vsel %vm1810, %v4077, %v4081
      %v4083 = vshrl.u32 %v3935, 16
      %v4085 = vor.u32 %v4083, %v4081
      %v4087 = vshll.u32 %v3936, 16
      %v4089 = vrot.slane %v4087, 1
      %v4090 = vsel %vm1810, %v4085, %v4089
      %v4091 = vshrl.u32 %v3936, 16
      %v4093 = vor.u32 %v4091, %v4089
      %v4095 = vshll.u32 %v3937, 16
      %v4097 = vrot.slane %v4095, 1
      %v4098 = vsel %vm1810, %v4093, %v4097
      %v4099 = vshrl.u32 %v3937, 16
      %v4101 = vor.u32 %v4099, %v4097
      %v4103 = vshll.u32 %v3938, 16
      %v4105 = vrot.slane %v4103, 1
      %v4106 = vsel %vm1810, %v4101, %v4105
      %v4107 = vshrl.u32 %v3938, 16
      %v4109 = vor.u32 %v4107, %v4105
      %v4111 = vshll.u32 %v3939, 16
      %v4113 = vrot.slane %v4111, 1
      %v4114 = vsel %vm1810, %v4109, %v4113
      %v4115 = vshrl.u32 %v3939, 16
      %v4117 = vor.u32 %v4115, %v4113
      %v4119 = vshll.u32 %v3940, 16
      %v4121 = vrot.slane %v4119, 1
      %v4122 = vsel %vm1810, %v4117, %v4121
      %v4123 = vshrl.u32 %v3940, 16
      %v4125 = vor.u32 %v4123, %v4121
      %v4127 = vshll.u32 %v3941, 16
      %v4129 = vrot.slane %v4127, 1
      %v4130 = vsel %vm1810, %v4125, %v4129
      %v4131 = vshrl.u32 %v3941, 16
      %v4133 = vor.u32 %v4131, %v4129
      %v4135 = vshll.u32 %v3942, 16
      %v4137 = vrot.slane %v4135, 1
      %v4138 = vsel %vm1810, %v4133, %v4137
      %v4179 = vunpack.c.l.b16 %v3804
      %v4180 = vunpack.c.l.b16 %v3805
      %v4181 = vunpack.c.l.b16 %v3806
      %v4182 = vunpack.c.l.b16 %v3807
      %v4183 = vunpack.c.l.b16 %v3808
      %v4184 = vunpack.c.l.b16 %v3809
      %v4185 = vunpack.c.l.b16 %v3810
      %v4186 = vunpack.c.l.b16 %v3811
      %v4187 = vunpack.c.l.b16 %v3812
      %v4188 = vunpack.c.l.b16 %v3813
      %v4189 = vunpack.c.l.b16 %v3814
      %v4190 = vunpack.c.l.b16 %v3815
      %v4191 = vunpack.c.l.b16 %v3816
      %v4192 = vunpack.c.l.b16 %v3817
      %v4193 = vunpack.c.l.b16 %v3818
      %v4194 = vunpack.c.l.b16 %v3819
      %v4195 = vpack.c.b16 %v4180, %v4179
      %v4196 = vpack.c.b16 %v4182, %v4181
      %v4197 = vpack.c.b16 %v4184, %v4183
      %v4198 = vpack.c.b16 %v4186, %v4185
      %v4199 = vpack.c.b16 %v4188, %v4187
      %v4200 = vpack.c.b16 %v4190, %v4189
      %v4201 = vpack.c.b16 %v4192, %v4191
      %v4202 = vpack.c.b16 %v4194, %v4193
      %4211 = vmatprep.subr.bf16.mxu0 0
      %4212 = vmatpush1.bf16.msra.mxu0 %v4202
      %4213 = vmatprep.subr.bf16.mxu0 0
      %4214 = vmatpush1.bf16.msra.mxu0 %v4201
      %4215 = vmatprep.subr.bf16.mxu0 0
      %4216 = vmatpush1.bf16.msra.mxu0 %v4200
      %4217 = vmatprep.subr.bf16.mxu0 0
      %4218 = vmatpush1.bf16.msra.mxu0 %v4199
      %4219 = vmatprep.subr.bf16.mxu0 0
      %4220 = vmatpush1.bf16.msra.mxu0 %v4198
      %4221 = vmatprep.subr.bf16.mxu0 0
      %4222 = vmatpush1.bf16.msra.mxu0 %v4197
      %4223 = vmatprep.subr.bf16.mxu0 0
      %4224 = vmatpush1.bf16.msra.mxu0 %v4196
      %4225 = vmatprep.subr.bf16.mxu0 0
      %4226 = vmatpush1.bf16.msra.mxu0 %v4195
      %4227 = vmatprep.subr.bf16.mxu0 0
      %4228 = vmatpush2.bf16.msra.mxu0 0
      %4229 = vmatprep.subr.bf16.mxu0 0
      %4230 = vmatpush2.bf16.msra.mxu0 0
      %4231 = vmatprep.subr.bf16.mxu0 0
      %4232 = vmatpush2.bf16.msra.mxu0 0
      %4233 = vmatprep.subr.bf16.mxu0 0
      %4234 = vmatpush2.bf16.msra.mxu0 0
      %4235 = vmatprep.subr.bf16.mxu0 0
      %4236 = vmatpush2.bf16.msra.mxu0 0
      %4237 = vmatprep.subr.bf16.mxu0 0
      %4238 = vmatpush2.bf16.msra.mxu0 0
      %4239 = vmatprep.subr.bf16.mxu0 0
      %4240 = vmatpush2.bf16.msra.mxu0 0
      %4241 = vmatprep.subr.bf16.mxu0 0
      %4242 = vmatpush2.bf16.msra.mxu0 0
      %4243 = vmatprep.mubr.bf16.mxu0 0
      %4244 = vmatmul.mubr.bf16.gmra.mxu0 %v3954
      %v4245 = vpop.f32.mrf.mxu0
      %v4246 = vadd.f32 0.0, %v4245
      %v4247 = vpop.f32.mrf.mxu0
      %v4248 = vpop.f32.mrf.mxu0
      %v4249 = vadd.f32 0.0, %v4248
      %v4250 = vpop.f32.mrf.mxu0
      %4251 = vmatprep.mubr.bf16.mxu0 0
      %4252 = vmatmul.mubr.bf16.gmra.mxu0 %v3962
      %v4253 = vpop.f32.mrf.mxu0
      %v4254 = vadd.f32 0.0, %v4253
      %v4255 = vpop.f32.mrf.mxu0
      %v4256 = vpop.f32.mrf.mxu0
      %v4257 = vadd.f32 0.0, %v4256
      %v4258 = vpop.f32.mrf.mxu0
      %4259 = vmatprep.mubr.bf16.mxu0 0
      %4260 = vmatmul.mubr.bf16.gmra.mxu0 %v3970
      %v4261 = vpop.f32.mrf.mxu0
      %v4262 = vadd.f32 0.0, %v4261
      %v4263 = vpop.f32.mrf.mxu0
      %v4264 = vpop.f32.mrf.mxu0
      %v4265 = vadd.f32 0.0, %v4264
      %v4266 = vpop.f32.mrf.mxu0
      %4267 = vmatprep.mubr.bf16.mxu0 0
      %4268 = vmatmul.mubr.bf16.gmra.mxu0 %v3978
      %v4269 = vpop.f32.mrf.mxu0
      %v4270 = vadd.f32 0.0, %v4269
      %v4271 = vpop.f32.mrf.mxu0
      %v4272 = vpop.f32.mrf.mxu0
      %v4273 = vadd.f32 0.0, %v4272
      %v4274 = vpop.f32.mrf.mxu0
      %4275 = vmatprep.mubr.bf16.mxu0 0
      %4276 = vmatmul.mubr.bf16.gmra.mxu0 %v3986
      %v4277 = vpop.f32.mrf.mxu0
      %v4278 = vadd.f32 0.0, %v4277
      %v4279 = vpop.f32.mrf.mxu0
      %v4280 = vpop.f32.mrf.mxu0
      %v4281 = vadd.f32 0.0, %v4280
      %v4282 = vpop.f32.mrf.mxu0
      %4283 = vmatprep.mubr.bf16.mxu0 0
      %4284 = vmatmul.mubr.bf16.gmra.mxu0 %v3994
      %v4285 = vpop.f32.mrf.mxu0
      %v4286 = vadd.f32 0.0, %v4285
      %v4287 = vpop.f32.mrf.mxu0
      %v4288 = vpop.f32.mrf.mxu0
      %v4289 = vadd.f32 0.0, %v4288
      %v4290 = vpop.f32.mrf.mxu0
      %4291 = vmatprep.mubr.bf16.mxu0 0
      %4292 = vmatmul.mubr.bf16.gmra.mxu0 %v4002
      %v4293 = vpop.f32.mrf.mxu0
      %v4294 = vadd.f32 0.0, %v4293
      %v4295 = vpop.f32.mrf.mxu0
      %v4296 = vpop.f32.mrf.mxu0
      %v4297 = vadd.f32 0.0, %v4296
      %v4298 = vpop.f32.mrf.mxu0
      %4299 = vmatprep.mubr.bf16.mxu0 0
      %4300 = vmatmul.mubr.bf16.gmra.mxu0 %v4010
      %v4301 = vpop.f32.mrf.mxu0
      %v4302 = vadd.f32 0.0, %v4301
      %v4303 = vpop.f32.mrf.mxu0
      %v4304 = vpop.f32.mrf.mxu0
      %v4305 = vadd.f32 0.0, %v4304
      %v4306 = vpop.f32.mrf.mxu0
      %4307 = vmatprep.mubr.bf16.mxu0 0
      %4308 = vmatmul.mubr.bf16.gmra.mxu0 %v4018
      %v4309 = vpop.f32.mrf.mxu0
      %v4310 = vadd.f32 0.0, %v4309
      %v4311 = vpop.f32.mrf.mxu0
      %v4312 = vpop.f32.mrf.mxu0
      %v4313 = vadd.f32 0.0, %v4312
      %v4314 = vpop.f32.mrf.mxu0
      %4315 = vmatprep.mubr.bf16.mxu0 0
      %4316 = vmatmul.mubr.bf16.gmra.mxu0 %v4026
      %v4317 = vpop.f32.mrf.mxu0
      %v4318 = vadd.f32 0.0, %v4317
      %v4319 = vpop.f32.mrf.mxu0
      %v4320 = vpop.f32.mrf.mxu0
      %v4321 = vadd.f32 0.0, %v4320
      %v4322 = vpop.f32.mrf.mxu0
      %4323 = vmatprep.mubr.bf16.mxu0 0
      %4324 = vmatmul.mubr.bf16.gmra.mxu0 %v4034
      %v4325 = vpop.f32.mrf.mxu0
      %v4326 = vadd.f32 0.0, %v4325
      %v4327 = vpop.f32.mrf.mxu0
      %v4328 = vpop.f32.mrf.mxu0
      %v4329 = vadd.f32 0.0, %v4328
      %v4330 = vpop.f32.mrf.mxu0
      %4331 = vmatprep.mubr.bf16.mxu0 0
      %4332 = vmatmul.mubr.bf16.gmra.mxu0 %v4042
      %v4333 = vpop.f32.mrf.mxu0
      %v4334 = vadd.f32 0.0, %v4333
      %v4335 = vpop.f32.mrf.mxu0
      %v4336 = vpop.f32.mrf.mxu0
      %v4337 = vadd.f32 0.0, %v4336
      %v4338 = vpop.f32.mrf.mxu0
      %4339 = vmatprep.mubr.bf16.mxu0 0
      %4340 = vmatmul.mubr.bf16.gmra.mxu0 %v4050
      %v4341 = vpop.f32.mrf.mxu0
      %v4342 = vadd.f32 0.0, %v4341
      %v4343 = vpop.f32.mrf.mxu0
      %v4344 = vpop.f32.mrf.mxu0
      %v4345 = vadd.f32 0.0, %v4344
      %v4346 = vpop.f32.mrf.mxu0
      %4347 = vmatprep.mubr.bf16.mxu0 0
      %4348 = vmatmul.mubr.bf16.gmra.mxu0 %v4058
      %v4349 = vpop.f32.mrf.mxu0
      %v4350 = vadd.f32 0.0, %v4349
      %v4351 = vpop.f32.mrf.mxu0
      %v4352 = vpop.f32.mrf.mxu0
      %v4353 = vadd.f32 0.0, %v4352
      %v4354 = vpop.f32.mrf.mxu0
      %4355 = vmatprep.mubr.bf16.mxu0 0
      %4356 = vmatmul.mubr.bf16.gmra.mxu0 %v4066
      %v4357 = vpop.f32.mrf.mxu0
      %v4358 = vadd.f32 0.0, %v4357
      %v4359 = vpop.f32.mrf.mxu0
      %v4360 = vpop.f32.mrf.mxu0
      %v4361 = vadd.f32 0.0, %v4360
      %v4362 = vpop.f32.mrf.mxu0
      %4363 = vmatprep.mubr.bf16.mxu0 0
      %4364 = vmatmul.mubr.bf16.gmra.mxu0 %v4074
      %v4365 = vpop.f32.mrf.mxu0
      %v4366 = vadd.f32 0.0, %v4365
      %v4367 = vpop.f32.mrf.mxu0
      %v4368 = vpop.f32.mrf.mxu0
      %v4369 = vadd.f32 0.0, %v4368
      %v4370 = vpop.f32.mrf.mxu0
      %4371 = vmatprep.mubr.bf16.mxu0 0
      %4372 = vmatmul.mubr.bf16.gmra.mxu0 %v4082
      %v4373 = vpop.f32.mrf.mxu0
      %v4374 = vadd.f32 0.0, %v4373
      %v4375 = vpop.f32.mrf.mxu0
      %v4376 = vpop.f32.mrf.mxu0
      %v4377 = vadd.f32 0.0, %v4376
      %v4378 = vpop.f32.mrf.mxu0
      %4379 = vmatprep.mubr.bf16.mxu0 0
      %4380 = vmatmul.mubr.bf16.gmra.mxu0 %v4090
      %v4381 = vpop.f32.mrf.mxu0
      %v4382 = vadd.f32 0.0, %v4381
      %v4383 = vpop.f32.mrf.mxu0
      %v4384 = vpop.f32.mrf.mxu0
      %v4385 = vadd.f32 0.0, %v4384
      %v4386 = vpop.f32.mrf.mxu0
      %4387 = vmatprep.mubr.bf16.mxu0 0
      %4388 = vmatmul.mubr.bf16.gmra.mxu0 %v4098
      %v4389 = vpop.f32.mrf.mxu0
      %v4390 = vadd.f32 0.0, %v4389
      %v4391 = vpop.f32.mrf.mxu0
      %v4392 = vpop.f32.mrf.mxu0
      %v4393 = vadd.f32 0.0, %v4392
      %v4394 = vpop.f32.mrf.mxu0
      %4395 = vmatprep.mubr.bf16.mxu0 0
      %4396 = vmatmul.mubr.bf16.gmra.mxu0 %v4106
      %v4397 = vpop.f32.mrf.mxu0
      %v4398 = vadd.f32 0.0, %v4397
      %v4399 = vpop.f32.mrf.mxu0
      %v4400 = vpop.f32.mrf.mxu0
      %v4401 = vadd.f32 0.0, %v4400
      %v4402 = vpop.f32.mrf.mxu0
      %4403 = vmatprep.mubr.bf16.mxu0 0
      %4404 = vmatmul.mubr.bf16.gmra.mxu0 %v4114
      %v4405 = vpop.f32.mrf.mxu0
      %v4406 = vadd.f32 0.0, %v4405
      %v4407 = vpop.f32.mrf.mxu0
      %v4408 = vpop.f32.mrf.mxu0
      %v4409 = vadd.f32 0.0, %v4408
      %v4410 = vpop.f32.mrf.mxu0
      %4411 = vmatprep.mubr.bf16.mxu0 0
      %4412 = vmatmul.mubr.bf16.gmra.mxu0 %v4122
      %v4413 = vpop.f32.mrf.mxu0
      %v4414 = vadd.f32 0.0, %v4413
      %v4415 = vpop.f32.mrf.mxu0
      %v4416 = vpop.f32.mrf.mxu0
      %v4417 = vadd.f32 0.0, %v4416
      %v4418 = vpop.f32.mrf.mxu0
      %4419 = vmatprep.mubr.bf16.mxu0 0
      %4420 = vmatmul.mubr.bf16.gmra.mxu0 %v4130
      %v4421 = vpop.f32.mrf.mxu0
      %v4422 = vadd.f32 0.0, %v4421
      %v4423 = vpop.f32.mrf.mxu0
      %v4424 = vpop.f32.mrf.mxu0
      %v4425 = vadd.f32 0.0, %v4424
      %v4426 = vpop.f32.mrf.mxu0
      %4427 = vmatprep.mubr.bf16.mxu0 0
      %4428 = vmatmul.mubr.bf16.gmra.mxu0 %v4138
      %v4429 = vpop.f32.mrf.mxu0
      %v4430 = vadd.f32 0.0, %v4429
      %v4431 = vpop.f32.mrf.mxu0
      %v4432 = vpop.f32.mrf.mxu0
      %v4433 = vadd.f32 0.0, %v4432
      %v4434 = vpop.f32.mrf.mxu0
      %4435 = vdwg.mxu0
      %v4436 = vld [vmem:[#allocation3] sm:$0xff]
      %v4437 = vld [vmem:[#allocation3 + $0x8] sm:$0xff]
      %v4438 = vld [vmem:[#allocation3 + $0x10] sm:$0xff]
      %v4439 = vld [vmem:[#allocation3 + $0x18] sm:$0xff]
      %v4440 = vld [vmem:[#allocation3 + $0x20] sm:$0xff]
      %v4441 = vld [vmem:[#allocation3 + $0x28] sm:$0xff]
      %v4442 = vld [vmem:[#allocation3 + $0x30] sm:$0xff]
      %v4443 = vld [vmem:[#allocation3 + $0x38] sm:$0xff]
      %v4444 = vld [vmem:[#allocation3 + $0x40] sm:$0xff]
      %v4445 = vld [vmem:[#allocation3 + $0x48] sm:$0xff]
      %v4446 = vld [vmem:[#allocation3 + $0x50] sm:$0xff]
      %v4447 = vld [vmem:[#allocation3 + $0x58] sm:$0xff]
      %v4448 = vld [vmem:[#allocation3 + $0x60] sm:$0xff]
      %v4449 = vld [vmem:[#allocation3 + $0x68] sm:$0xff]
      %v4450 = vld [vmem:[#allocation3 + $0x70] sm:$0xff]
      %v4451 = vld [vmem:[#allocation3 + $0x78] sm:$0xff]
      %v4452 = vld [vmem:[#allocation3 + $0x80] sm:$0xff]
      %v4453 = vld [vmem:[#allocation3 + $0x88] sm:$0xff]
      %v4454 = vld [vmem:[#allocation3 + $0x90] sm:$0xff]
      %v4455 = vld [vmem:[#allocation3 + $0x98] sm:$0xff]
      %v4456 = vld [vmem:[#allocation3 + $0xa0] sm:$0xff]
      %v4457 = vld [vmem:[#allocation3 + $0xa8] sm:$0xff]
      %v4458 = vld [vmem:[#allocation3 + $0xb0] sm:$0xff]
      %v4459 = vld [vmem:[#allocation3 + $0xb8] sm:$0xff]
      %v4460 = vld [vmem:[#allocation3 + $0xc0] sm:$0xff]
      %v4461 = vld [vmem:[#allocation3 + $0xc8] sm:$0xff]
      %v4462 = vld [vmem:[#allocation3 + $0xd0] sm:$0xff]
      %v4463 = vld [vmem:[#allocation3 + $0xd8] sm:$0xff]
      %v4464 = vld [vmem:[#allocation3 + $0xe0] sm:$0xff]
      %v4465 = vld [vmem:[#allocation3 + $0xe8] sm:$0xff]
      %v4466 = vld [vmem:[#allocation3 + $0xf0] sm:$0xff]
      %v4467 = vld [vmem:[#allocation3 + $0xf8] sm:$0xff]
      %v4468 = vld [vmem:[#allocation3 + $0x100] sm:$0xff]
      %v4469 = vld [vmem:[#allocation3 + $0x108] sm:$0xff]
      %v4470 = vld [vmem:[#allocation3 + $0x110] sm:$0xff]
      %v4471 = vld [vmem:[#allocation3 + $0x118] sm:$0xff]
      %v4472 = vld [vmem:[#allocation3 + $0x120] sm:$0xff]
      %v4473 = vld [vmem:[#allocation3 + $0x128] sm:$0xff]
      %v4474 = vld [vmem:[#allocation3 + $0x130] sm:$0xff]
      %v4475 = vld [vmem:[#allocation3 + $0x138] sm:$0xff]
      %v4476 = vld [vmem:[#allocation3 + $0x140] sm:$0xff]
      %v4477 = vld [vmem:[#allocation3 + $0x148] sm:$0xff]
      %v4478 = vld [vmem:[#allocation3 + $0x150] sm:$0xff]
      %v4479 = vld [vmem:[#allocation3 + $0x158] sm:$0xff]
      %v4480 = vld [vmem:[#allocation3 + $0x160] sm:$0xff]
      %v4481 = vld [vmem:[#allocation3 + $0x168] sm:$0xff]
      %v4482 = vld [vmem:[#allocation3 + $0x170] sm:$0xff]
      %v4483 = vld [vmem:[#allocation3 + $0x178] sm:$0xff]
      %v4484 = vadd.f32 %v4436, %v4246
      %v4485 = vadd.f32 %v4437, %v4249
      %v4486 = vadd.f32 %v4438, %v4254
      %v4487 = vadd.f32 %v4439, %v4257
      %v4488 = vadd.f32 %v4440, %v4262
      %v4489 = vadd.f32 %v4441, %v4265
      %v4490 = vadd.f32 %v4442, %v4270
      %v4491 = vadd.f32 %v4443, %v4273
      %v4492 = vadd.f32 %v4444, %v4278
      %v4493 = vadd.f32 %v4445, %v4281
      %v4494 = vadd.f32 %v4446, %v4286
      %v4495 = vadd.f32 %v4447, %v4289
      %v4496 = vadd.f32 %v4448, %v4294
      %v4497 = vadd.f32 %v4449, %v4297
      %v4498 = vadd.f32 %v4450, %v4302
      %v4499 = vadd.f32 %v4451, %v4305
      %v4500 = vadd.f32 %v4452, %v4310
      %v4501 = vadd.f32 %v4453, %v4313
      %v4502 = vadd.f32 %v4454, %v4318
      %v4503 = vadd.f32 %v4455, %v4321
      %v4504 = vadd.f32 %v4456, %v4326
      %v4505 = vadd.f32 %v4457, %v4329
      %v4506 = vadd.f32 %v4458, %v4334
      %v4507 = vadd.f32 %v4459, %v4337
      %v4508 = vadd.f32 %v4460, %v4342
      %v4509 = vadd.f32 %v4461, %v4345
      %v4510 = vadd.f32 %v4462, %v4350
      %v4511 = vadd.f32 %v4463, %v4353
      %v4512 = vadd.f32 %v4464, %v4358
      %v4513 = vadd.f32 %v4465, %v4361
      %v4514 = vadd.f32 %v4466, %v4366
      %v4515 = vadd.f32 %v4467, %v4369
      %v4516 = vadd.f32 %v4468, %v4374
      %v4517 = vadd.f32 %v4469, %v4377
      %v4518 = vadd.f32 %v4470, %v4382
      %v4519 = vadd.f32 %v4471, %v4385
      %v4520 = vadd.f32 %v4472, %v4390
      %v4521 = vadd.f32 %v4473, %v4393
      %v4522 = vadd.f32 %v4474, %v4398
      %v4523 = vadd.f32 %v4475, %v4401
      %v4524 = vadd.f32 %v4476, %v4406
      %v4525 = vadd.f32 %v4477, %v4409
      %v4526 = vadd.f32 %v4478, %v4414
      %v4527 = vadd.f32 %v4479, %v4417
      %v4528 = vadd.f32 %v4480, %v4422
      %v4529 = vadd.f32 %v4481, %v4425
      %v4530 = vadd.f32 %v4482, %v4430
      %v4531 = vadd.f32 %v4483, %v4433
      %4532 = vst [vmem:[#allocation3] sm:$0xff] %v4484
      %4533 = vst [vmem:[#allocation3 + $0x8] sm:$0xff] %v4485
      %4534 = vst [vmem:[#allocation3 + $0x10] sm:$0xff] %v4486
      %4535 = vst [vmem:[#allocation3 + $0x18] sm:$0xff] %v4487
      %4536 = vst [vmem:[#allocation3 + $0x20] sm:$0xff] %v4488
      %4537 = vst [vmem:[#allocation3 + $0x28] sm:$0xff] %v4489
      %4538 = vst [vmem:[#allocation3 + $0x30] sm:$0xff] %v4490
      %4539 = vst [vmem:[#allocation3 + $0x38] sm:$0xff] %v4491
      %4540 = vst [vmem:[#allocation3 + $0x40] sm:$0xff] %v4492
      %4541 = vst [vmem:[#allocation3 + $0x48] sm:$0xff] %v4493
      %4542 = vst [vmem:[#allocation3 + $0x50] sm:$0xff] %v4494
      %4543 = vst [vmem:[#allocation3 + $0x58] sm:$0xff] %v4495
      %4544 = vst [vmem:[#allocation3 + $0x60] sm:$0xff] %v4496
      %4545 = vst [vmem:[#allocation3 + $0x68] sm:$0xff] %v4497
      %4546 = vst [vmem:[#allocation3 + $0x70] sm:$0xff] %v4498
      %4547 = vst [vmem:[#allocation3 + $0x78] sm:$0xff] %v4499
      %4548 = vst [vmem:[#allocation3 + $0x80] sm:$0xff] %v4500
      %4549 = vst [vmem:[#allocation3 + $0x88] sm:$0xff] %v4501
      %4550 = vst [vmem:[#allocation3 + $0x90] sm:$0xff] %v4502
      %4551 = vst [vmem:[#allocation3 + $0x98] sm:$0xff] %v4503
      %4552 = vst [vmem:[#allocation3 + $0xa0] sm:$0xff] %v4504
      %4553 = vst [vmem:[#allocation3 + $0xa8] sm:$0xff] %v4505
      %4554 = vst [vmem:[#allocation3 + $0xb0] sm:$0xff] %v4506
      %4555 = vst [vmem:[#allocation3 + $0xb8] sm:$0xff] %v4507
      %4556 = vst [vmem:[#allocation3 + $0xc0] sm:$0xff] %v4508
      %4557 = vst [vmem:[#allocation3 + $0xc8] sm:$0xff] %v4509
      %4558 = vst [vmem:[#allocation3 + $0xd0] sm:$0xff] %v4510
      %4559 = vst [vmem:[#allocation3 + $0xd8] sm:$0xff] %v4511
      %4560 = vst [vmem:[#allocation3 + $0xe0] sm:$0xff] %v4512
      %4561 = vst [vmem:[#allocation3 + $0xe8] sm:$0xff] %v4513
      %4562 = vst [vmem:[#allocation3 + $0xf0] sm:$0xff] %v4514
      %4563 = vst [vmem:[#allocation3 + $0xf8] sm:$0xff] %v4515
      %4564 = vst [vmem:[#allocation3 + $0x100] sm:$0xff] %v4516
      %4565 = vst [vmem:[#allocation3 + $0x108] sm:$0xff] %v4517
      %4566 = vst [vmem:[#allocation3 + $0x110] sm:$0xff] %v4518
      %4567 = vst [vmem:[#allocation3 + $0x118] sm:$0xff] %v4519
      %4568 = vst [vmem:[#allocation3 + $0x120] sm:$0xff] %v4520
      %4569 = vst [vmem:[#allocation3 + $0x128] sm:$0xff] %v4521
      %4570 = vst [vmem:[#allocation3 + $0x130] sm:$0xff] %v4522
      %4571 = vst [vmem:[#allocation3 + $0x138] sm:$0xff] %v4523
      %4572 = vst [vmem:[#allocation3 + $0x140] sm:$0xff] %v4524
      %4573 = vst [vmem:[#allocation3 + $0x148] sm:$0xff] %v4525
      %4574 = vst [vmem:[#allocation3 + $0x150] sm:$0xff] %v4526
      %4575 = vst [vmem:[#allocation3 + $0x158] sm:$0xff] %v4527
      %4576 = vst [vmem:[#allocation3 + $0x160] sm:$0xff] %v4528
      %4577 = vst [vmem:[#allocation3 + $0x168] sm:$0xff] %v4529
      %4578 = vst [vmem:[#allocation3 + $0x170] sm:$0xff] %v4530
      %4579 = vst [vmem:[#allocation3 + $0x178] sm:$0xff] %v4531
      %v4580 = vld [vmem:[#allocation2 + $0xc] sm:$0xe]
      %v4581 = vld [vmem:[#allocation2 + $0x10] sm:$0xf]
      %v4582 = vld [vmem:[#allocation2 + $0x14] sm:$0xf]
      %v4583 = vld [vmem:[#allocation2 + $0x18] sm:$0xf]
      %v4584 = vld [vmem:[#allocation2 + $0x1c] sm:$0xf]
      %v4585 = vld [vmem:[#allocation2 + $0x20] sm:$0xf]
      %v4586 = vld [vmem:[#allocation2 + $0x24] sm:$0xf]
      %v4587 = vld [vmem:[#allocation2 + $0x28] sm:$0xf]
      %v4588 = vld [vmem:[#allocation2 + $0x2c] sm:$0xf]
      %v4589 = vld [vmem:[#allocation2 + $0x30] sm:$0xf]
      %v4590 = vld [vmem:[#allocation2 + $0x34] sm:$0xf]
      %v4591 = vld [vmem:[#allocation2 + $0x38] sm:$0xf]
      %v4592 = vld [vmem:[#allocation2 + $0x3c] sm:$0xf]
      %v4593 = vld [vmem:[#allocation2 + $0x40] sm:$0xf]
      %v4594 = vld [vmem:[#allocation2 + $0x44] sm:$0xf]
      %v4595 = vld [vmem:[#allocation2 + $0x48] sm:$0xf]
      %v4596 = vld [vmem:[#allocation2 + $0x4c] sm:$0xf]
      %v4597 = vld [vmem:[#allocation2 + $0x50] sm:$0xf]
      %v4598 = vld [vmem:[#allocation2 + $0x54] sm:$0xf]
      %v4599 = vld [vmem:[#allocation2 + $0x58] sm:$0xf]
      %v4600 = vld [vmem:[#allocation2 + $0x5c] sm:$0xf]
      %v4601 = vld [vmem:[#allocation2 + $0x60] sm:$0xf]
      %v4602 = vld [vmem:[#allocation2 + $0x64] sm:$0xf]
      %v4603 = vld [vmem:[#allocation2 + $0x68] sm:$0xf]
      %v4604 = vld [vmem:[#allocation2 + $0x6c] sm:$0xf]
      %v4605 = vld [vmem:[#allocation2 + $0x70] sm:$0xf]
      %v4606 = vld [vmem:[#allocation2 + $0x74] sm:$0xf]
      %v4607 = vld [vmem:[#allocation2 + $0x78] sm:$0xf]
      %v4608 = vld [vmem:[#allocation2 + $0x7c] sm:$0xf]
      %v4609 = vld [vmem:[#allocation2 + $0x80] sm:$0xf]
      %v4610 = vld [vmem:[#allocation2 + $0x84] sm:$0xf]
      %v4611 = vld [vmem:[#allocation2 + $0x88] sm:$0xf]
      %v4612 = vld [vmem:[#allocation2 + $0x8c] sm:$0xf]
      %v4613 = vld [vmem:[#allocation2 + $0x90] sm:$0xf]
      %v4614 = vld [vmem:[#allocation2 + $0x94] sm:$0xf]
      %v4615 = vld [vmem:[#allocation2 + $0x98] sm:$0xf]
      %v4616 = vld [vmem:[#allocation2 + $0x9c] sm:$0xf]
      %v4617 = vld [vmem:[#allocation2 + $0xa0] sm:$0xf]
      %v4618 = vld [vmem:[#allocation2 + $0xa4] sm:$0xf]
      %v4619 = vld [vmem:[#allocation2 + $0xa8] sm:$0xf]
      %v4620 = vld [vmem:[#allocation2 + $0xac] sm:$0xf]
      %v4621 = vld [vmem:[#allocation2 + $0xb0] sm:$0xf]
      %v4622 = vld [vmem:[#allocation2 + $0xb4] sm:$0xf]
      %v4623 = vld [vmem:[#allocation2 + $0xb8] sm:$0xf]
      %v4624 = vld [vmem:[#allocation2 + $0xbc] sm:$0xf]
      %v4625 = vld [vmem:[#allocation2 + $0xc0] sm:$0xf]
      %v4626 = vld [vmem:[#allocation2 + $0xc4] sm:$0xf]
      %v4627 = vld [vmem:[#allocation2 + $0xc8] sm:$0xf]
      %v4628 = vld [vmem:[#allocation2 + $0xcc] sm:$0x1]
      %s4629 = scalar_lea.vmem %s4, 320
      %v4630 = vld [vmem:[%s4629] sm:$0xf]
      %v4631 = vld [vmem:[%s4629 + $0x4] sm:$0xf]
      %v4632 = vld [vmem:[%s4629 + $0x8] sm:$0xf]
      %v4633 = vld [vmem:[%s4629 + $0xc] sm:$0xf]
      %v4634 = vld [vmem:[%s4629 + $0x10] sm:$0xf]
      %v4635 = vld [vmem:[%s4629 + $0x14] sm:$0xf]
      %v4636 = vld [vmem:[%s4629 + $0x18] sm:$0xf]
      %v4637 = vld [vmem:[%s4629 + $0x1c] sm:$0xf]
      %v4638 = vld [vmem:[%s4629 + $0x20] sm:$0xf]
      %v4639 = vld [vmem:[%s4629 + $0x24] sm:$0xf]
      %v4640 = vld [vmem:[%s4629 + $0x28] sm:$0xf]
      %v4641 = vld [vmem:[%s4629 + $0x2c] sm:$0xf]
      %v4642 = vld [vmem:[%s4629 + $0x30] sm:$0xf]
      %v4643 = vld [vmem:[%s4629 + $0x34] sm:$0xf]
      %v4644 = vld [vmem:[%s4629 + $0x38] sm:$0xf]
      %v4645 = vld [vmem:[%s4629 + $0x3c] sm:$0xf]
      %v4695 = vunpack.c.l.b16 %v4580
      %v4696 = vunpack.c.l.b16 %v4581
      %v4697 = vunpack.c.l.b16 %v4582
      %v4698 = vunpack.c.l.b16 %v4583
      %v4699 = vunpack.c.l.b16 %v4584
      %v4700 = vunpack.c.l.b16 %v4585
      %v4701 = vunpack.c.l.b16 %v4586
      %v4702 = vunpack.c.l.b16 %v4587
      %v4703 = vunpack.c.l.b16 %v4588
      %v4704 = vunpack.c.l.b16 %v4589
      %v4705 = vunpack.c.l.b16 %v4590
      %v4706 = vunpack.c.l.b16 %v4591
      %v4707 = vunpack.c.l.b16 %v4592
      %v4708 = vunpack.c.l.b16 %v4593
      %v4709 = vunpack.c.l.b16 %v4594
      %v4710 = vunpack.c.l.b16 %v4595
      %v4711 = vunpack.c.l.b16 %v4596
      %v4712 = vunpack.c.l.b16 %v4597
      %v4713 = vunpack.c.l.b16 %v4598
      %v4714 = vunpack.c.l.b16 %v4599
      %v4715 = vunpack.c.l.b16 %v4600
      %v4716 = vunpack.c.l.b16 %v4601
      %v4717 = vunpack.c.l.b16 %v4602
      %v4718 = vunpack.c.l.b16 %v4603
      %v4719 = vunpack.c.l.b16 %v4604
      %v4720 = vunpack.c.l.b16 %v4605
      %v4721 = vunpack.c.l.b16 %v4606
      %v4722 = vunpack.c.l.b16 %v4607
      %v4723 = vunpack.c.l.b16 %v4608
      %v4724 = vunpack.c.l.b16 %v4609
      %v4725 = vunpack.c.l.b16 %v4610
      %v4726 = vunpack.c.l.b16 %v4611
      %v4727 = vunpack.c.l.b16 %v4612
      %v4728 = vunpack.c.l.b16 %v4613
      %v4729 = vunpack.c.l.b16 %v4614
      %v4730 = vunpack.c.l.b16 %v4615
      %v4731 = vunpack.c.l.b16 %v4616
      %v4732 = vunpack.c.l.b16 %v4617
      %v4733 = vunpack.c.l.b16 %v4618
      %v4734 = vunpack.c.l.b16 %v4619
      %v4735 = vunpack.c.l.b16 %v4620
      %v4736 = vunpack.c.l.b16 %v4621
      %v4737 = vunpack.c.l.b16 %v4622
      %v4738 = vunpack.c.l.b16 %v4623
      %v4739 = vunpack.c.l.b16 %v4624
      %v4740 = vunpack.c.l.b16 %v4625
      %v4741 = vunpack.c.l.b16 %v4626
      %v4742 = vunpack.c.l.b16 %v4627
      %v4743 = vunpack.c.l.b16 %v4628
      %v4744 = vpack.c.b16 %v4696, %v4695
      %v4745 = vpack.c.b16 %v4698, %v4697
      %v4746 = vpack.c.b16 %v4700, %v4699
      %v4747 = vpack.c.b16 %v4702, %v4701
      %v4748 = vpack.c.b16 %v4704, %v4703
      %v4749 = vpack.c.b16 %v4706, %v4705
      %v4750 = vpack.c.b16 %v4708, %v4707
      %v4751 = vpack.c.b16 %v4710, %v4709
      %v4752 = vpack.c.b16 %v4712, %v4711
      %v4753 = vpack.c.b16 %v4714, %v4713
      %v4754 = vpack.c.b16 %v4716, %v4715
      %v4755 = vpack.c.b16 %v4718, %v4717
      %v4756 = vpack.c.b16 %v4720, %v4719
      %v4757 = vpack.c.b16 %v4722, %v4721
      %v4758 = vpack.c.b16 %v4724, %v4723
      %v4759 = vpack.c.b16 %v4726, %v4725
      %v4760 = vpack.c.b16 %v4728, %v4727
      %v4761 = vpack.c.b16 %v4730, %v4729
      %v4762 = vpack.c.b16 %v4732, %v4731
      %v4763 = vpack.c.b16 %v4734, %v4733
      %v4764 = vpack.c.b16 %v4736, %v4735
      %v4765 = vpack.c.b16 %v4738, %v4737
      %v4766 = vpack.c.b16 %v4740, %v4739
      %v4767 = vpack.c.b16 %v4742, %v4741
      %v4768 = vpack.c.b16 %v4743, %v4743
      %v4769 = vrot.slane %v4744, 1
      %v4770 = vrot.slane %v4745, 1
      %v4771 = vsel %vm2637, %v4769, %v4770
      %v4772 = vrot.slane %v4746, 1
      %v4773 = vsel %vm2637, %v4770, %v4772
      %v4774 = vrot.slane %v4747, 1
      %v4775 = vsel %vm2637, %v4772, %v4774
      %v4776 = vrot.slane %v4748, 1
      %v4777 = vsel %vm2637, %v4774, %v4776
      %v4778 = vrot.slane %v4749, 1
      %v4779 = vsel %vm2637, %v4776, %v4778
      %v4780 = vrot.slane %v4750, 1
      %v4781 = vsel %vm2637, %v4778, %v4780
      %v4782 = vrot.slane %v4751, 1
      %v4783 = vsel %vm2637, %v4780, %v4782
      %v4784 = vrot.slane %v4752, 1
      %v4785 = vsel %vm2637, %v4782, %v4784
      %v4786 = vrot.slane %v4753, 1
      %v4787 = vsel %vm2637, %v4784, %v4786
      %v4788 = vrot.slane %v4754, 1
      %v4789 = vsel %vm2637, %v4786, %v4788
      %v4790 = vrot.slane %v4755, 1
      %v4791 = vsel %vm2637, %v4788, %v4790
      %v4792 = vrot.slane %v4756, 1
      %v4793 = vsel %vm2637, %v4790, %v4792
      %v4794 = vrot.slane %v4757, 1
      %v4795 = vsel %vm2637, %v4792, %v4794
      %v4796 = vrot.slane %v4758, 1
      %v4797 = vsel %vm2637, %v4794, %v4796
      %v4798 = vrot.slane %v4759, 1
      %v4799 = vsel %vm2637, %v4796, %v4798
      %v4800 = vrot.slane %v4760, 1
      %v4801 = vsel %vm2637, %v4798, %v4800
      %v4802 = vrot.slane %v4761, 1
      %v4803 = vsel %vm2637, %v4800, %v4802
      %v4804 = vrot.slane %v4762, 1
      %v4805 = vsel %vm2637, %v4802, %v4804
      %v4806 = vrot.slane %v4763, 1
      %v4807 = vsel %vm2637, %v4804, %v4806
      %v4808 = vrot.slane %v4764, 1
      %v4809 = vsel %vm2637, %v4806, %v4808
      %v4810 = vrot.slane %v4765, 1
      %v4811 = vsel %vm2637, %v4808, %v4810
      %v4812 = vrot.slane %v4766, 1
      %v4813 = vsel %vm2637, %v4810, %v4812
      %v4814 = vrot.slane %v4767, 1
      %v4815 = vsel %vm2637, %v4812, %v4814
      %v4816 = vrot.slane %v4768, 1
      %v4817 = vsel %vm2637, %v4814, %v4816
      %v4858 = vunpack.c.l.b16 %v4630
      %v4859 = vunpack.c.l.b16 %v4631
      %v4860 = vunpack.c.l.b16 %v4632
      %v4861 = vunpack.c.l.b16 %v4633
      %v4862 = vunpack.c.l.b16 %v4634
      %v4863 = vunpack.c.l.b16 %v4635
      %v4864 = vunpack.c.l.b16 %v4636
      %v4865 = vunpack.c.l.b16 %v4637
      %v4866 = vunpack.c.l.b16 %v4638
      %v4867 = vunpack.c.l.b16 %v4639
      %v4868 = vunpack.c.l.b16 %v4640
      %v4869 = vunpack.c.l.b16 %v4641
      %v4870 = vunpack.c.l.b16 %v4642
      %v4871 = vunpack.c.l.b16 %v4643
      %v4872 = vunpack.c.l.b16 %v4644
      %v4873 = vunpack.c.l.b16 %v4645
      %v4874 = vpack.c.b16 %v4859, %v4858
      %v4875 = vpack.c.b16 %v4861, %v4860
      %v4876 = vpack.c.b16 %v4863, %v4862
      %v4877 = vpack.c.b16 %v4865, %v4864
      %v4878 = vpack.c.b16 %v4867, %v4866
      %v4879 = vpack.c.b16 %v4869, %v4868
      %v4880 = vpack.c.b16 %v4871, %v4870
      %v4881 = vpack.c.b16 %v4873, %v4872
      %4890 = vmatprep.subr.bf16.mxu0 0
      %4891 = vmatpush1.bf16.msra.mxu0 %v4881
      %4892 = vmatprep.subr.bf16.mxu0 0
      %4893 = vmatpush1.bf16.msra.mxu0 %v4880
      %4894 = vmatprep.subr.bf16.mxu0 0
      %4895 = vmatpush1.bf16.msra.mxu0 %v4879
      %4896 = vmatprep.subr.bf16.mxu0 0
      %4897 = vmatpush1.bf16.msra.mxu0 %v4878
      %4898 = vmatprep.subr.bf16.mxu0 0
      %4899 = vmatpush1.bf16.msra.mxu0 %v4877
      %4900 = vmatprep.subr.bf16.mxu0 0
      %4901 = vmatpush1.bf16.msra.mxu0 %v4876
      %4902 = vmatprep.subr.bf16.mxu0 0
      %4903 = vmatpush1.bf16.msra.mxu0 %v4875
      %4904 = vmatprep.subr.bf16.mxu0 0
      %4905 = vmatpush1.bf16.msra.mxu0 %v4874
      %4906 = vmatprep.subr.bf16.mxu0 0
      %4907 = vmatpush2.bf16.msra.mxu0 0
      %4908 = vmatprep.subr.bf16.mxu0 0
      %4909 = vmatpush2.bf16.msra.mxu0 0
      %4910 = vmatprep.subr.bf16.mxu0 0
      %4911 = vmatpush2.bf16.msra.mxu0 0
      %4912 = vmatprep.subr.bf16.mxu0 0
      %4913 = vmatpush2.bf16.msra.mxu0 0
      %4914 = vmatprep.subr.bf16.mxu0 0
      %4915 = vmatpush2.bf16.msra.mxu0 0
      %4916 = vmatprep.subr.bf16.mxu0 0
      %4917 = vmatpush2.bf16.msra.mxu0 0
      %4918 = vmatprep.subr.bf16.mxu0 0
      %4919 = vmatpush2.bf16.msra.mxu0 0
      %4920 = vmatprep.subr.bf16.mxu0 0
      %4921 = vmatpush2.bf16.msra.mxu0 0
      %4922 = vmatprep.mubr.bf16.mxu0 0
      %4923 = vmatmul.mubr.bf16.gmra.mxu0 %v4771
      %v4924 = vpop.f32.mrf.mxu0
      %v4925 = vadd.f32 0.0, %v4924
      %v4926 = vpop.f32.mrf.mxu0
      %v4927 = vpop.f32.mrf.mxu0
      %v4928 = vadd.f32 0.0, %v4927
      %v4929 = vpop.f32.mrf.mxu0
      %4930 = vmatprep.mubr.bf16.mxu0 0
      %4931 = vmatmul.mubr.bf16.gmra.mxu0 %v4773
      %v4932 = vpop.f32.mrf.mxu0
      %v4933 = vadd.f32 0.0, %v4932
      %v4934 = vpop.f32.mrf.mxu0
      %v4935 = vpop.f32.mrf.mxu0
      %v4936 = vadd.f32 0.0, %v4935
      %v4937 = vpop.f32.mrf.mxu0
      %4938 = vmatprep.mubr.bf16.mxu0 0
      %4939 = vmatmul.mubr.bf16.gmra.mxu0 %v4775
      %v4940 = vpop.f32.mrf.mxu0
      %v4941 = vadd.f32 0.0, %v4940
      %v4942 = vpop.f32.mrf.mxu0
      %v4943 = vpop.f32.mrf.mxu0
      %v4944 = vadd.f32 0.0, %v4943
      %v4945 = vpop.f32.mrf.mxu0
      %4946 = vmatprep.mubr.bf16.mxu0 0
      %4947 = vmatmul.mubr.bf16.gmra.mxu0 %v4777
      %v4948 = vpop.f32.mrf.mxu0
      %v4949 = vadd.f32 0.0, %v4948
      %v4950 = vpop.f32.mrf.mxu0
      %v4951 = vpop.f32.mrf.mxu0
      %v4952 = vadd.f32 0.0, %v4951
      %v4953 = vpop.f32.mrf.mxu0
      %4954 = vmatprep.mubr.bf16.mxu0 0
      %4955 = vmatmul.mubr.bf16.gmra.mxu0 %v4779
      %v4956 = vpop.f32.mrf.mxu0
      %v4957 = vadd.f32 0.0, %v4956
      %v4958 = vpop.f32.mrf.mxu0
      %v4959 = vpop.f32.mrf.mxu0
      %v4960 = vadd.f32 0.0, %v4959
      %v4961 = vpop.f32.mrf.mxu0
      %4962 = vmatprep.mubr.bf16.mxu0 0
      %4963 = vmatmul.mubr.bf16.gmra.mxu0 %v4781
      %v4964 = vpop.f32.mrf.mxu0
      %v4965 = vadd.f32 0.0, %v4964
      %v4966 = vpop.f32.mrf.mxu0
      %v4967 = vpop.f32.mrf.mxu0
      %v4968 = vadd.f32 0.0, %v4967
      %v4969 = vpop.f32.mrf.mxu0
      %4970 = vmatprep.mubr.bf16.mxu0 0
      %4971 = vmatmul.mubr.bf16.gmra.mxu0 %v4783
      %v4972 = vpop.f32.mrf.mxu0
      %v4973 = vadd.f32 0.0, %v4972
      %v4974 = vpop.f32.mrf.mxu0
      %v4975 = vpop.f32.mrf.mxu0
      %v4976 = vadd.f32 0.0, %v4975
      %v4977 = vpop.f32.mrf.mxu0
      %4978 = vmatprep.mubr.bf16.mxu0 0
      %4979 = vmatmul.mubr.bf16.gmra.mxu0 %v4785
      %v4980 = vpop.f32.mrf.mxu0
      %v4981 = vadd.f32 0.0, %v4980
      %v4982 = vpop.f32.mrf.mxu0
      %v4983 = vpop.f32.mrf.mxu0
      %v4984 = vadd.f32 0.0, %v4983
      %v4985 = vpop.f32.mrf.mxu0
      %4986 = vmatprep.mubr.bf16.mxu0 0
      %4987 = vmatmul.mubr.bf16.gmra.mxu0 %v4787
      %v4988 = vpop.f32.mrf.mxu0
      %v4989 = vadd.f32 0.0, %v4988
      %v4990 = vpop.f32.mrf.mxu0
      %v4991 = vpop.f32.mrf.mxu0
      %v4992 = vadd.f32 0.0, %v4991
      %v4993 = vpop.f32.mrf.mxu0
      %4994 = vmatprep.mubr.bf16.mxu0 0
      %4995 = vmatmul.mubr.bf16.gmra.mxu0 %v4789
      %v4996 = vpop.f32.mrf.mxu0
      %v4997 = vadd.f32 0.0, %v4996
      %v4998 = vpop.f32.mrf.mxu0
      %v4999 = vpop.f32.mrf.mxu0
      %v5000 = vadd.f32 0.0, %v4999
      %v5001 = vpop.f32.mrf.mxu0
      %5002 = vmatprep.mubr.bf16.mxu0 0
      %5003 = vmatmul.mubr.bf16.gmra.mxu0 %v4791
      %v5004 = vpop.f32.mrf.mxu0
      %v5005 = vadd.f32 0.0, %v5004
      %v5006 = vpop.f32.mrf.mxu0
      %v5007 = vpop.f32.mrf.mxu0
      %v5008 = vadd.f32 0.0, %v5007
      %v5009 = vpop.f32.mrf.mxu0
      %5010 = vmatprep.mubr.bf16.mxu0 0
      %5011 = vmatmul.mubr.bf16.gmra.mxu0 %v4793
      %v5012 = vpop.f32.mrf.mxu0
      %v5013 = vadd.f32 0.0, %v5012
      %v5014 = vpop.f32.mrf.mxu0
      %v5015 = vpop.f32.mrf.mxu0
      %v5016 = vadd.f32 0.0, %v5015
      %v5017 = vpop.f32.mrf.mxu0
      %5018 = vmatprep.mubr.bf16.mxu0 0
      %5019 = vmatmul.mubr.bf16.gmra.mxu0 %v4795
      %v5020 = vpop.f32.mrf.mxu0
      %v5021 = vadd.f32 0.0, %v5020
      %v5022 = vpop.f32.mrf.mxu0
      %v5023 = vpop.f32.mrf.mxu0
      %v5024 = vadd.f32 0.0, %v5023
      %v5025 = vpop.f32.mrf.mxu0
      %5026 = vmatprep.mubr.bf16.mxu0 0
      %5027 = vmatmul.mubr.bf16.gmra.mxu0 %v4797
      %v5028 = vpop.f32.mrf.mxu0
      %v5029 = vadd.f32 0.0, %v5028
      %v5030 = vpop.f32.mrf.mxu0
      %v5031 = vpop.f32.mrf.mxu0
      %v5032 = vadd.f32 0.0, %v5031
      %v5033 = vpop.f32.mrf.mxu0
      %5034 = vmatprep.mubr.bf16.mxu0 0
      %5035 = vmatmul.mubr.bf16.gmra.mxu0 %v4799
      %v5036 = vpop.f32.mrf.mxu0
      %v5037 = vadd.f32 0.0, %v5036
      %v5038 = vpop.f32.mrf.mxu0
      %v5039 = vpop.f32.mrf.mxu0
      %v5040 = vadd.f32 0.0, %v5039
      %v5041 = vpop.f32.mrf.mxu0
      %5042 = vmatprep.mubr.bf16.mxu0 0
      %5043 = vmatmul.mubr.bf16.gmra.mxu0 %v4801
      %v5044 = vpop.f32.mrf.mxu0
      %v5045 = vadd.f32 0.0, %v5044
      %v5046 = vpop.f32.mrf.mxu0
      %v5047 = vpop.f32.mrf.mxu0
      %v5048 = vadd.f32 0.0, %v5047
      %v5049 = vpop.f32.mrf.mxu0
      %5050 = vmatprep.mubr.bf16.mxu0 0
      %5051 = vmatmul.mubr.bf16.gmra.mxu0 %v4803
      %v5052 = vpop.f32.mrf.mxu0
      %v5053 = vadd.f32 0.0, %v5052
      %v5054 = vpop.f32.mrf.mxu0
      %v5055 = vpop.f32.mrf.mxu0
      %v5056 = vadd.f32 0.0, %v5055
      %v5057 = vpop.f32.mrf.mxu0
      %5058 = vmatprep.mubr.bf16.mxu0 0
      %5059 = vmatmul.mubr.bf16.gmra.mxu0 %v4805
      %v5060 = vpop.f32.mrf.mxu0
      %v5061 = vadd.f32 0.0, %v5060
      %v5062 = vpop.f32.mrf.mxu0
      %v5063 = vpop.f32.mrf.mxu0
      %v5064 = vadd.f32 0.0, %v5063
      %v5065 = vpop.f32.mrf.mxu0
      %5066 = vmatprep.mubr.bf16.mxu0 0
      %5067 = vmatmul.mubr.bf16.gmra.mxu0 %v4807
      %v5068 = vpop.f32.mrf.mxu0
      %v5069 = vadd.f32 0.0, %v5068
      %v5070 = vpop.f32.mrf.mxu0
      %v5071 = vpop.f32.mrf.mxu0
      %v5072 = vadd.f32 0.0, %v5071
      %v5073 = vpop.f32.mrf.mxu0
      %5074 = vmatprep.mubr.bf16.mxu0 0
      %5075 = vmatmul.mubr.bf16.gmra.mxu0 %v4809
      %v5076 = vpop.f32.mrf.mxu0
      %v5077 = vadd.f32 0.0, %v5076
      %v5078 = vpop.f32.mrf.mxu0
      %v5079 = vpop.f32.mrf.mxu0
      %v5080 = vadd.f32 0.0, %v5079
      %v5081 = vpop.f32.mrf.mxu0
      %5082 = vmatprep.mubr.bf16.mxu0 0
      %5083 = vmatmul.mubr.bf16.gmra.mxu0 %v4811
      %v5084 = vpop.f32.mrf.mxu0
      %v5085 = vadd.f32 0.0, %v5084
      %v5086 = vpop.f32.mrf.mxu0
      %v5087 = vpop.f32.mrf.mxu0
      %v5088 = vadd.f32 0.0, %v5087
      %v5089 = vpop.f32.mrf.mxu0
      %5090 = vmatprep.mubr.bf16.mxu0 0
      %5091 = vmatmul.mubr.bf16.gmra.mxu0 %v4813
      %v5092 = vpop.f32.mrf.mxu0
      %v5093 = vadd.f32 0.0, %v5092
      %v5094 = vpop.f32.mrf.mxu0
      %v5095 = vpop.f32.mrf.mxu0
      %v5096 = vadd.f32 0.0, %v5095
      %v5097 = vpop.f32.mrf.mxu0
      %5098 = vmatprep.mubr.bf16.mxu0 0
      %5099 = vmatmul.mubr.bf16.gmra.mxu0 %v4815
      %v5100 = vpop.f32.mrf.mxu0
      %v5101 = vadd.f32 0.0, %v5100
      %v5102 = vpop.f32.mrf.mxu0
      %v5103 = vpop.f32.mrf.mxu0
      %v5104 = vadd.f32 0.0, %v5103
      %v5105 = vpop.f32.mrf.mxu0
      %5106 = vmatprep.mubr.bf16.mxu0 0
      %5107 = vmatmul.mubr.bf16.gmra.mxu0 %v4817
      %v5108 = vpop.f32.mrf.mxu0
      %v5109 = vadd.f32 0.0, %v5108
      %v5110 = vpop.f32.mrf.mxu0
      %v5111 = vpop.f32.mrf.mxu0
      %v5112 = vadd.f32 0.0, %v5111
      %v5113 = vpop.f32.mrf.mxu0
      %5114 = vdwg.mxu0
      %v5115 = vld [vmem:[#allocation3] sm:$0xff]
      %v5116 = vld [vmem:[#allocation3 + $0x8] sm:$0xff]
      %v5117 = vld [vmem:[#allocation3 + $0x10] sm:$0xff]
      %v5118 = vld [vmem:[#allocation3 + $0x18] sm:$0xff]
      %v5119 = vld [vmem:[#allocation3 + $0x20] sm:$0xff]
      %v5120 = vld [vmem:[#allocation3 + $0x28] sm:$0xff]
      %v5121 = vld [vmem:[#allocation3 + $0x30] sm:$0xff]
      %v5122 = vld [vmem:[#allocation3 + $0x38] sm:$0xff]
      %v5123 = vld [vmem:[#allocation3 + $0x40] sm:$0xff]
      %v5124 = vld [vmem:[#allocation3 + $0x48] sm:$0xff]
      %v5125 = vld [vmem:[#allocation3 + $0x50] sm:$0xff]
      %v5126 = vld [vmem:[#allocation3 + $0x58] sm:$0xff]
      %v5127 = vld [vmem:[#allocation3 + $0x60] sm:$0xff]
      %v5128 = vld [vmem:[#allocation3 + $0x68] sm:$0xff]
      %v5129 = vld [vmem:[#allocation3 + $0x70] sm:$0xff]
      %v5130 = vld [vmem:[#allocation3 + $0x78] sm:$0xff]
      %v5131 = vld [vmem:[#allocation3 + $0x80] sm:$0xff]
      %v5132 = vld [vmem:[#allocation3 + $0x88] sm:$0xff]
      %v5133 = vld [vmem:[#allocation3 + $0x90] sm:$0xff]
      %v5134 = vld [vmem:[#allocation3 + $0x98] sm:$0xff]
      %v5135 = vld [vmem:[#allocation3 + $0xa0] sm:$0xff]
      %v5136 = vld [vmem:[#allocation3 + $0xa8] sm:$0xff]
      %v5137 = vld [vmem:[#allocation3 + $0xb0] sm:$0xff]
      %v5138 = vld [vmem:[#allocation3 + $0xb8] sm:$0xff]
      %v5139 = vld [vmem:[#allocation3 + $0xc0] sm:$0xff]
      %v5140 = vld [vmem:[#allocation3 + $0xc8] sm:$0xff]
      %v5141 = vld [vmem:[#allocation3 + $0xd0] sm:$0xff]
      %v5142 = vld [vmem:[#allocation3 + $0xd8] sm:$0xff]
      %v5143 = vld [vmem:[#allocation3 + $0xe0] sm:$0xff]
      %v5144 = vld [vmem:[#allocation3 + $0xe8] sm:$0xff]
      %v5145 = vld [vmem:[#allocation3 + $0xf0] sm:$0xff]
      %v5146 = vld [vmem:[#allocation3 + $0xf8] sm:$0xff]
      %v5147 = vld [vmem:[#allocation3 + $0x100] sm:$0xff]
      %v5148 = vld [vmem:[#allocation3 + $0x108] sm:$0xff]
      %v5149 = vld [vmem:[#allocation3 + $0x110] sm:$0xff]
      %v5150 = vld [vmem:[#allocation3 + $0x118] sm:$0xff]
      %v5151 = vld [vmem:[#allocation3 + $0x120] sm:$0xff]
      %v5152 = vld [vmem:[#allocation3 + $0x128] sm:$0xff]
      %v5153 = vld [vmem:[#allocation3 + $0x130] sm:$0xff]
      %v5154 = vld [vmem:[#allocation3 + $0x138] sm:$0xff]
      %v5155 = vld [vmem:[#allocation3 + $0x140] sm:$0xff]
      %v5156 = vld [vmem:[#allocation3 + $0x148] sm:$0xff]
      %v5157 = vld [vmem:[#allocation3 + $0x150] sm:$0xff]
      %v5158 = vld [vmem:[#allocation3 + $0x158] sm:$0xff]
      %v5159 = vld [vmem:[#allocation3 + $0x160] sm:$0xff]
      %v5160 = vld [vmem:[#allocation3 + $0x168] sm:$0xff]
      %v5161 = vld [vmem:[#allocation3 + $0x170] sm:$0xff]
      %v5162 = vld [vmem:[#allocation3 + $0x178] sm:$0xff]
      %v5163 = vadd.f32 %v5115, %v4925
      %v5164 = vadd.f32 %v5116, %v4928
      %v5165 = vadd.f32 %v5117, %v4933
      %v5166 = vadd.f32 %v5118, %v4936
      %v5167 = vadd.f32 %v5119, %v4941
      %v5168 = vadd.f32 %v5120, %v4944
      %v5169 = vadd.f32 %v5121, %v4949
      %v5170 = vadd.f32 %v5122, %v4952
      %v5171 = vadd.f32 %v5123, %v4957
      %v5172 = vadd.f32 %v5124, %v4960
      %v5173 = vadd.f32 %v5125, %v4965
      %v5174 = vadd.f32 %v5126, %v4968
      %v5175 = vadd.f32 %v5127, %v4973
      %v5176 = vadd.f32 %v5128, %v4976
      %v5177 = vadd.f32 %v5129, %v4981
      %v5178 = vadd.f32 %v5130, %v4984
      %v5179 = vadd.f32 %v5131, %v4989
      %v5180 = vadd.f32 %v5132, %v4992
      %v5181 = vadd.f32 %v5133, %v4997
      %v5182 = vadd.f32 %v5134, %v5000
      %v5183 = vadd.f32 %v5135, %v5005
      %v5184 = vadd.f32 %v5136, %v5008
      %v5185 = vadd.f32 %v5137, %v5013
      %v5186 = vadd.f32 %v5138, %v5016
      %v5187 = vadd.f32 %v5139, %v5021
      %v5188 = vadd.f32 %v5140, %v5024
      %v5189 = vadd.f32 %v5141, %v5029
      %v5190 = vadd.f32 %v5142, %v5032
      %v5191 = vadd.f32 %v5143, %v5037
      %v5192 = vadd.f32 %v5144, %v5040
      %v5193 = vadd.f32 %v5145, %v5045
      %v5194 = vadd.f32 %v5146, %v5048
      %v5195 = vadd.f32 %v5147, %v5053
      %v5196 = vadd.f32 %v5148, %v5056
      %v5197 = vadd.f32 %v5149, %v5061
      %v5198 = vadd.f32 %v5150, %v5064
      %v5199 = vadd.f32 %v5151, %v5069
      %v5200 = vadd.f32 %v5152, %v5072
      %v5201 = vadd.f32 %v5153, %v5077
      %v5202 = vadd.f32 %v5154, %v5080
      %v5203 = vadd.f32 %v5155, %v5085
      %v5204 = vadd.f32 %v5156, %v5088
      %v5205 = vadd.f32 %v5157, %v5093
      %v5206 = vadd.f32 %v5158, %v5096
      %v5207 = vadd.f32 %v5159, %v5101
      %v5208 = vadd.f32 %v5160, %v5104
      %v5209 = vadd.f32 %v5161, %v5109
      %v5210 = vadd.f32 %v5162, %v5112
      %5211 = vst [vmem:[#allocation3] sm:$0xff] %v5163
      %5212 = vst [vmem:[#allocation3 + $0x8] sm:$0xff] %v5164
      %5213 = vst [vmem:[#allocation3 + $0x10] sm:$0xff] %v5165
      %5214 = vst [vmem:[#allocation3 + $0x18] sm:$0xff] %v5166
      %5215 = vst [vmem:[#allocation3 + $0x20] sm:$0xff] %v5167
      %5216 = vst [vmem:[#allocation3 + $0x28] sm:$0xff] %v5168
      %5217 = vst [vmem:[#allocation3 + $0x30] sm:$0xff] %v5169
      %5218 = vst [vmem:[#allocation3 + $0x38] sm:$0xff] %v5170
      %5219 = vst [vmem:[#allocation3 + $0x40] sm:$0xff] %v5171
      %5220 = vst [vmem:[#allocation3 + $0x48] sm:$0xff] %v5172
      %5221 = vst [vmem:[#allocation3 + $0x50] sm:$0xff] %v5173
      %5222 = vst [vmem:[#allocation3 + $0x58] sm:$0xff] %v5174
      %5223 = vst [vmem:[#allocation3 + $0x60] sm:$0xff] %v5175
      %5224 = vst [vmem:[#allocation3 + $0x68] sm:$0xff] %v5176
      %5225 = vst [vmem:[#allocation3 + $0x70] sm:$0xff] %v5177
      %5226 = vst [vmem:[#allocation3 + $0x78] sm:$0xff] %v5178
      %5227 = vst [vmem:[#allocation3 + $0x80] sm:$0xff] %v5179
      %5228 = vst [vmem:[#allocation3 + $0x88] sm:$0xff] %v5180
      %5229 = vst [vmem:[#allocation3 + $0x90] sm:$0xff] %v5181
      %5230 = vst [vmem:[#allocation3 + $0x98] sm:$0xff] %v5182
      %5231 = vst [vmem:[#allocation3 + $0xa0] sm:$0xff] %v5183
      %5232 = vst [vmem:[#allocation3 + $0xa8] sm:$0xff] %v5184
      %5233 = vst [vmem:[#allocation3 + $0xb0] sm:$0xff] %v5185
      %5234 = vst [vmem:[#allocation3 + $0xb8] sm:$0xff] %v5186
      %5235 = vst [vmem:[#allocation3 + $0xc0] sm:$0xff] %v5187
      %5236 = vst [vmem:[#allocation3 + $0xc8] sm:$0xff] %v5188
      %5237 = vst [vmem:[#allocation3 + $0xd0] sm:$0xff] %v5189
      %5238 = vst [vmem:[#allocation3 + $0xd8] sm:$0xff] %v5190
      %5239 = vst [vmem:[#allocation3 + $0xe0] sm:$0xff] %v5191
      %5240 = vst [vmem:[#allocation3 + $0xe8] sm:$0xff] %v5192
      %5241 = vst [vmem:[#allocation3 + $0xf0] sm:$0xff] %v5193
      %5242 = vst [vmem:[#allocation3 + $0xf8] sm:$0xff] %v5194
      %5243 = vst [vmem:[#allocation3 + $0x100] sm:$0xff] %v5195
      %5244 = vst [vmem:[#allocation3 + $0x108] sm:$0xff] %v5196
      %5245 = vst [vmem:[#allocation3 + $0x110] sm:$0xff] %v5197
      %5246 = vst [vmem:[#allocation3 + $0x118] sm:$0xff] %v5198
      %5247 = vst [vmem:[#allocation3 + $0x120] sm:$0xff] %v5199
      %5248 = vst [vmem:[#allocation3 + $0x128] sm:$0xff] %v5200
      %5249 = vst [vmem:[#allocation3 + $0x130] sm:$0xff] %v5201
      %5250 = vst [vmem:[#allocation3 + $0x138] sm:$0xff] %v5202
      %5251 = vst [vmem:[#allocation3 + $0x140] sm:$0xff] %v5203
      %5252 = vst [vmem:[#allocation3 + $0x148] sm:$0xff] %v5204
      %5253 = vst [vmem:[#allocation3 + $0x150] sm:$0xff] %v5205
      %5254 = vst [vmem:[#allocation3 + $0x158] sm:$0xff] %v5206
      %5255 = vst [vmem:[#allocation3 + $0x160] sm:$0xff] %v5207
      %5256 = vst [vmem:[#allocation3 + $0x168] sm:$0xff] %v5208
      %5257 = vst [vmem:[#allocation3 + $0x170] sm:$0xff] %v5209
      %5258 = vst [vmem:[#allocation3 + $0x178] sm:$0xff] %v5210
      %v5259 = vld [vmem:[#allocation2 + $0x18] sm:$0xf]
      %v5260 = vld [vmem:[#allocation2 + $0x1c] sm:$0xf]
      %v5261 = vld [vmem:[#allocation2 + $0x20] sm:$0xf]
      %v5262 = vld [vmem:[#allocation2 + $0x24] sm:$0xf]
      %v5263 = vld [vmem:[#allocation2 + $0x28] sm:$0xf]
      %v5264 = vld [vmem:[#allocation2 + $0x2c] sm:$0xf]
      %v5265 = vld [vmem:[#allocation2 + $0x30] sm:$0xf]
      %v5266 = vld [vmem:[#allocation2 + $0x34] sm:$0xf]
      %v5267 = vld [vmem:[#allocation2 + $0x38] sm:$0xf]
      %v5268 = vld [vmem:[#allocation2 + $0x3c] sm:$0xf]
      %v5269 = vld [vmem:[#allocation2 + $0x40] sm:$0xf]
      %v5270 = vld [vmem:[#allocation2 + $0x44] sm:$0xf]
      %v5271 = vld [vmem:[#allocation2 + $0x48] sm:$0xf]
      %v5272 = vld [vmem:[#allocation2 + $0x4c] sm:$0xf]
      %v5273 = vld [vmem:[#allocation2 + $0x50] sm:$0xf]
      %v5274 = vld [vmem:[#allocation2 + $0x54] sm:$0xf]
      %v5275 = vld [vmem:[#allocation2 + $0x58] sm:$0xf]
      %v5276 = vld [vmem:[#allocation2 + $0x5c] sm:$0xf]
      %v5277 = vld [vmem:[#allocation2 + $0x60] sm:$0xf]
      %v5278 = vld [vmem:[#allocation2 + $0x64] sm:$0xf]
      %v5279 = vld [vmem:[#allocation2 + $0x68] sm:$0xf]
      %v5280 = vld [vmem:[#allocation2 + $0x6c] sm:$0xf]
      %v5281 = vld [vmem:[#allocation2 + $0x70] sm:$0xf]
      %v5282 = vld [vmem:[#allocation2 + $0x74] sm:$0xf]
      %v5283 = vld [vmem:[#allocation2 + $0x78] sm:$0xf]
      %v5284 = vld [vmem:[#allocation2 + $0x7c] sm:$0xf]
      %v5285 = vld [vmem:[#allocation2 + $0x80] sm:$0xf]
      %v5286 = vld [vmem:[#allocation2 + $0x84] sm:$0xf]
      %v5287 = vld [vmem:[#allocation2 + $0x88] sm:$0xf]
      %v5288 = vld [vmem:[#allocation2 + $0x8c] sm:$0xf]
      %v5289 = vld [vmem:[#allocation2 + $0x90] sm:$0xf]
      %v5290 = vld [vmem:[#allocation2 + $0x94] sm:$0xf]
      %v5291 = vld [vmem:[#allocation2 + $0x98] sm:$0xf]
      %v5292 = vld [vmem:[#allocation2 + $0x9c] sm:$0xf]
      %v5293 = vld [vmem:[#allocation2 + $0xa0] sm:$0xf]
      %v5294 = vld [vmem:[#allocation2 + $0xa4] sm:$0xf]
      %v5295 = vld [vmem:[#allocation2 + $0xa8] sm:$0xf]
      %v5296 = vld [vmem:[#allocation2 + $0xac] sm:$0xf]
      %v5297 = vld [vmem:[#allocation2 + $0xb0] sm:$0xf]
      %v5298 = vld [vmem:[#allocation2 + $0xb4] sm:$0xf]
      %v5299 = vld [vmem:[#allocation2 + $0xb8] sm:$0xf]
      %v5300 = vld [vmem:[#allocation2 + $0xbc] sm:$0xf]
      %v5301 = vld [vmem:[#allocation2 + $0xc0] sm:$0xf]
      %v5302 = vld [vmem:[#allocation2 + $0xc4] sm:$0xf]
      %v5303 = vld [vmem:[#allocation2 + $0xc8] sm:$0xf]
      %v5304 = vld [vmem:[#allocation2 + $0xcc] sm:$0xf]
      %v5305 = vld [vmem:[#allocation2 + $0xd0] sm:$0xf]
      %v5306 = vld [vmem:[#allocation2 + $0xd4] sm:$0xf]
      %s5307 = scalar_lea.vmem %s4, 384
      %v5308 = vld [vmem:[%s5307] sm:$0xf]
      %v5309 = vld [vmem:[%s5307 + $0x4] sm:$0xf]
      %v5310 = vld [vmem:[%s5307 + $0x8] sm:$0xf]
      %v5311 = vld [vmem:[%s5307 + $0xc] sm:$0xf]
      %v5312 = vld [vmem:[%s5307 + $0x10] sm:$0xf]
      %v5313 = vld [vmem:[%s5307 + $0x14] sm:$0xf]
      %v5314 = vld [vmem:[%s5307 + $0x18] sm:$0xf]
      %v5315 = vld [vmem:[%s5307 + $0x1c] sm:$0xf]
      %v5316 = vld [vmem:[%s5307 + $0x20] sm:$0xf]
      %v5317 = vld [vmem:[%s5307 + $0x24] sm:$0xf]
      %v5318 = vld [vmem:[%s5307 + $0x28] sm:$0xf]
      %v5319 = vld [vmem:[%s5307 + $0x2c] sm:$0xf]
      %v5320 = vld [vmem:[%s5307 + $0x30] sm:$0xf]
      %v5321 = vld [vmem:[%s5307 + $0x34] sm:$0xf]
      %v5322 = vld [vmem:[%s5307 + $0x38] sm:$0xf]
      %v5323 = vld [vmem:[%s5307 + $0x3c] sm:$0xf]
      %v5372 = vunpack.c.l.b16 %v5259
      %v5373 = vunpack.c.l.b16 %v5260
      %v5374 = vunpack.c.l.b16 %v5261
      %v5375 = vunpack.c.l.b16 %v5262
      %v5376 = vunpack.c.l.b16 %v5263
      %v5377 = vunpack.c.l.b16 %v5264
      %v5378 = vunpack.c.l.b16 %v5265
      %v5379 = vunpack.c.l.b16 %v5266
      %v5380 = vunpack.c.l.b16 %v5267
      %v5381 = vunpack.c.l.b16 %v5268
      %v5382 = vunpack.c.l.b16 %v5269
      %v5383 = vunpack.c.l.b16 %v5270
      %v5384 = vunpack.c.l.b16 %v5271
      %v5385 = vunpack.c.l.b16 %v5272
      %v5386 = vunpack.c.l.b16 %v5273
      %v5387 = vunpack.c.l.b16 %v5274
      %v5388 = vunpack.c.l.b16 %v5275
      %v5389 = vunpack.c.l.b16 %v5276
      %v5390 = vunpack.c.l.b16 %v5277
      %v5391 = vunpack.c.l.b16 %v5278
      %v5392 = vunpack.c.l.b16 %v5279
      %v5393 = vunpack.c.l.b16 %v5280
      %v5394 = vunpack.c.l.b16 %v5281
      %v5395 = vunpack.c.l.b16 %v5282
      %v5396 = vunpack.c.l.b16 %v5283
      %v5397 = vunpack.c.l.b16 %v5284
      %v5398 = vunpack.c.l.b16 %v5285
      %v5399 = vunpack.c.l.b16 %v5286
      %v5400 = vunpack.c.l.b16 %v5287
      %v5401 = vunpack.c.l.b16 %v5288
      %v5402 = vunpack.c.l.b16 %v5289
      %v5403 = vunpack.c.l.b16 %v5290
      %v5404 = vunpack.c.l.b16 %v5291
      %v5405 = vunpack.c.l.b16 %v5292
      %v5406 = vunpack.c.l.b16 %v5293
      %v5407 = vunpack.c.l.b16 %v5294
      %v5408 = vunpack.c.l.b16 %v5295
      %v5409 = vunpack.c.l.b16 %v5296
      %v5410 = vunpack.c.l.b16 %v5297
      %v5411 = vunpack.c.l.b16 %v5298
      %v5412 = vunpack.c.l.b16 %v5299
      %v5413 = vunpack.c.l.b16 %v5300
      %v5414 = vunpack.c.l.b16 %v5301
      %v5415 = vunpack.c.l.b16 %v5302
      %v5416 = vunpack.c.l.b16 %v5303
      %v5417 = vunpack.c.l.b16 %v5304
      %v5418 = vunpack.c.l.b16 %v5305
      %v5419 = vunpack.c.l.b16 %v5306
      %v5420 = vpack.c.b16 %v5373, %v5372
      %v5421 = vpack.c.b16 %v5375, %v5374
      %v5422 = vpack.c.b16 %v5377, %v5376
      %v5423 = vpack.c.b16 %v5379, %v5378
      %v5424 = vpack.c.b16 %v5381, %v5380
      %v5425 = vpack.c.b16 %v5383, %v5382
      %v5426 = vpack.c.b16 %v5385, %v5384
      %v5427 = vpack.c.b16 %v5387, %v5386
      %v5428 = vpack.c.b16 %v5389, %v5388
      %v5429 = vpack.c.b16 %v5391, %v5390
      %v5430 = vpack.c.b16 %v5393, %v5392
      %v5431 = vpack.c.b16 %v5395, %v5394
      %v5432 = vpack.c.b16 %v5397, %v5396
      %v5433 = vpack.c.b16 %v5399, %v5398
      %v5434 = vpack.c.b16 %v5401, %v5400
      %v5435 = vpack.c.b16 %v5403, %v5402
      %v5436 = vpack.c.b16 %v5405, %v5404
      %v5437 = vpack.c.b16 %v5407, %v5406
      %v5438 = vpack.c.b16 %v5409, %v5408
      %v5439 = vpack.c.b16 %v5411, %v5410
      %v5440 = vpack.c.b16 %v5413, %v5412
      %v5441 = vpack.c.b16 %v5415, %v5414
      %v5442 = vpack.c.b16 %v5417, %v5416
      %v5443 = vpack.c.b16 %v5419, %v5418
      %v5484 = vunpack.c.l.b16 %v5308
      %v5485 = vunpack.c.l.b16 %v5309
      %v5486 = vunpack.c.l.b16 %v5310
      %v5487 = vunpack.c.l.b16 %v5311
      %v5488 = vunpack.c.l.b16 %v5312
      %v5489 = vunpack.c.l.b16 %v5313
      %v5490 = vunpack.c.l.b16 %v5314
      %v5491 = vunpack.c.l.b16 %v5315
      %v5492 = vunpack.c.l.b16 %v5316
      %v5493 = vunpack.c.l.b16 %v5317
      %v5494 = vunpack.c.l.b16 %v5318
      %v5495 = vunpack.c.l.b16 %v5319
      %v5496 = vunpack.c.l.b16 %v5320
      %v5497 = vunpack.c.l.b16 %v5321
      %v5498 = vunpack.c.l.b16 %v5322
      %v5499 = vunpack.c.l.b16 %v5323
      %v5500 = vpack.c.b16 %v5485, %v5484
      %v5501 = vpack.c.b16 %v5487, %v5486
      %v5502 = vpack.c.b16 %v5489, %v5488
      %v5503 = vpack.c.b16 %v5491, %v5490
      %v5504 = vpack.c.b16 %v5493, %v5492
      %v5505 = vpack.c.b16 %v5495, %v5494
      %v5506 = vpack.c.b16 %v5497, %v5496
      %v5507 = vpack.c.b16 %v5499, %v5498
      %5516 = vmatprep.subr.bf16.mxu0 0
      %5517 = vmatpush1.bf16.msra.mxu0 %v5507
      %5518 = vmatprep.subr.bf16.mxu0 0
      %5519 = vmatpush1.bf16.msra.mxu0 %v5506
      %5520 = vmatprep.subr.bf16.mxu0 0
      %5521 = vmatpush1.bf16.msra.mxu0 %v5505
      %5522 = vmatprep.subr.bf16.mxu0 0
      %5523 = vmatpush1.bf16.msra.mxu0 %v5504
      %5524 = vmatprep.subr.bf16.mxu0 0
      %5525 = vmatpush1.bf16.msra.mxu0 %v5503
      %5526 = vmatprep.subr.bf16.mxu0 0
      %5527 = vmatpush1.bf16.msra.mxu0 %v5502
      %5528 = vmatprep.subr.bf16.mxu0 0
      %5529 = vmatpush1.bf16.msra.mxu0 %v5501
      %5530 = vmatprep.subr.bf16.mxu0 0
      %5531 = vmatpush1.bf16.msra.mxu0 %v5500
      %5532 = vmatprep.subr.bf16.mxu0 0
      %5533 = vmatpush2.bf16.msra.mxu0 0
      %5534 = vmatprep.subr.bf16.mxu0 0
      %5535 = vmatpush2.bf16.msra.mxu0 0
      %5536 = vmatprep.subr.bf16.mxu0 0
      %5537 = vmatpush2.bf16.msra.mxu0 0
      %5538 = vmatprep.subr.bf16.mxu0 0
      %5539 = vmatpush2.bf16.msra.mxu0 0
      %5540 = vmatprep.subr.bf16.mxu0 0
      %5541 = vmatpush2.bf16.msra.mxu0 0
      %5542 = vmatprep.subr.bf16.mxu0 0
      %5543 = vmatpush2.bf16.msra.mxu0 0
      %5544 = vmatprep.subr.bf16.mxu0 0
      %5545 = vmatpush2.bf16.msra.mxu0 0
      %5546 = vmatprep.subr.bf16.mxu0 0
      %5547 = vmatpush2.bf16.msra.mxu0 0
      %5548 = vmatprep.mubr.bf16.mxu0 0
      %5549 = vmatmul.mubr.bf16.gmra.mxu0 %v5420
      %v5550 = vpop.f32.mrf.mxu0
      %v5551 = vadd.f32 0.0, %v5550
      %v5552 = vpop.f32.mrf.mxu0
      %v5553 = vpop.f32.mrf.mxu0
      %v5554 = vadd.f32 0.0, %v5553
      %v5555 = vpop.f32.mrf.mxu0
      %5556 = vmatprep.mubr.bf16.mxu0 0
      %5557 = vmatmul.mubr.bf16.gmra.mxu0 %v5421
      %v5558 = vpop.f32.mrf.mxu0
      %v5559 = vadd.f32 0.0, %v5558
      %v5560 = vpop.f32.mrf.mxu0
      %v5561 = vpop.f32.mrf.mxu0
      %v5562 = vadd.f32 0.0, %v5561
      %v5563 = vpop.f32.mrf.mxu0
      %5564 = vmatprep.mubr.bf16.mxu0 0
      %5565 = vmatmul.mubr.bf16.gmra.mxu0 %v5422
      %v5566 = vpop.f32.mrf.mxu0
      %v5567 = vadd.f32 0.0, %v5566
      %v5568 = vpop.f32.mrf.mxu0
      %v5569 = vpop.f32.mrf.mxu0
      %v5570 = vadd.f32 0.0, %v5569
      %v5571 = vpop.f32.mrf.mxu0
      %5572 = vmatprep.mubr.bf16.mxu0 0
      %5573 = vmatmul.mubr.bf16.gmra.mxu0 %v5423
      %v5574 = vpop.f32.mrf.mxu0
      %v5575 = vadd.f32 0.0, %v5574
      %v5576 = vpop.f32.mrf.mxu0
      %v5577 = vpop.f32.mrf.mxu0
      %v5578 = vadd.f32 0.0, %v5577
      %v5579 = vpop.f32.mrf.mxu0
      %5580 = vmatprep.mubr.bf16.mxu0 0
      %5581 = vmatmul.mubr.bf16.gmra.mxu0 %v5424
      %v5582 = vpop.f32.mrf.mxu0
      %v5583 = vadd.f32 0.0, %v5582
      %v5584 = vpop.f32.mrf.mxu0
      %v5585 = vpop.f32.mrf.mxu0
      %v5586 = vadd.f32 0.0, %v5585
      %v5587 = vpop.f32.mrf.mxu0
      %5588 = vmatprep.mubr.bf16.mxu0 0
      %5589 = vmatmul.mubr.bf16.gmra.mxu0 %v5425
      %v5590 = vpop.f32.mrf.mxu0
      %v5591 = vadd.f32 0.0, %v5590
      %v5592 = vpop.f32.mrf.mxu0
      %v5593 = vpop.f32.mrf.mxu0
      %v5594 = vadd.f32 0.0, %v5593
      %v5595 = vpop.f32.mrf.mxu0
      %5596 = vmatprep.mubr.bf16.mxu0 0
      %5597 = vmatmul.mubr.bf16.gmra.mxu0 %v5426
      %v5598 = vpop.f32.mrf.mxu0
      %v5599 = vadd.f32 0.0, %v5598
      %v5600 = vpop.f32.mrf.mxu0
      %v5601 = vpop.f32.mrf.mxu0
      %v5602 = vadd.f32 0.0, %v5601
      %v5603 = vpop.f32.mrf.mxu0
      %5604 = vmatprep.mubr.bf16.mxu0 0
      %5605 = vmatmul.mubr.bf16.gmra.mxu0 %v5427
      %v5606 = vpop.f32.mrf.mxu0
      %v5607 = vadd.f32 0.0, %v5606
      %v5608 = vpop.f32.mrf.mxu0
      %v5609 = vpop.f32.mrf.mxu0
      %v5610 = vadd.f32 0.0, %v5609
      %v5611 = vpop.f32.mrf.mxu0
      %5612 = vmatprep.mubr.bf16.mxu0 0
      %5613 = vmatmul.mubr.bf16.gmra.mxu0 %v5428
      %v5614 = vpop.f32.mrf.mxu0
      %v5615 = vadd.f32 0.0, %v5614
      %v5616 = vpop.f32.mrf.mxu0
      %v5617 = vpop.f32.mrf.mxu0
      %v5618 = vadd.f32 0.0, %v5617
      %v5619 = vpop.f32.mrf.mxu0
      %5620 = vmatprep.mubr.bf16.mxu0 0
      %5621 = vmatmul.mubr.bf16.gmra.mxu0 %v5429
      %v5622 = vpop.f32.mrf.mxu0
      %v5623 = vadd.f32 0.0, %v5622
      %v5624 = vpop.f32.mrf.mxu0
      %v5625 = vpop.f32.mrf.mxu0
      %v5626 = vadd.f32 0.0, %v5625
      %v5627 = vpop.f32.mrf.mxu0
      %5628 = vmatprep.mubr.bf16.mxu0 0
      %5629 = vmatmul.mubr.bf16.gmra.mxu0 %v5430
      %v5630 = vpop.f32.mrf.mxu0
      %v5631 = vadd.f32 0.0, %v5630
      %v5632 = vpop.f32.mrf.mxu0
      %v5633 = vpop.f32.mrf.mxu0
      %v5634 = vadd.f32 0.0, %v5633
      %v5635 = vpop.f32.mrf.mxu0
      %5636 = vmatprep.mubr.bf16.mxu0 0
      %5637 = vmatmul.mubr.bf16.gmra.mxu0 %v5431
      %v5638 = vpop.f32.mrf.mxu0
      %v5639 = vadd.f32 0.0, %v5638
      %v5640 = vpop.f32.mrf.mxu0
      %v5641 = vpop.f32.mrf.mxu0
      %v5642 = vadd.f32 0.0, %v5641
      %v5643 = vpop.f32.mrf.mxu0
      %5644 = vmatprep.mubr.bf16.mxu0 0
      %5645 = vmatmul.mubr.bf16.gmra.mxu0 %v5432
      %v5646 = vpop.f32.mrf.mxu0
      %v5647 = vadd.f32 0.0, %v5646
      %v5648 = vpop.f32.mrf.mxu0
      %v5649 = vpop.f32.mrf.mxu0
      %v5650 = vadd.f32 0.0, %v5649
      %v5651 = vpop.f32.mrf.mxu0
      %5652 = vmatprep.mubr.bf16.mxu0 0
      %5653 = vmatmul.mubr.bf16.gmra.mxu0 %v5433
      %v5654 = vpop.f32.mrf.mxu0
      %v5655 = vadd.f32 0.0, %v5654
      %v5656 = vpop.f32.mrf.mxu0
      %v5657 = vpop.f32.mrf.mxu0
      %v5658 = vadd.f32 0.0, %v5657
      %v5659 = vpop.f32.mrf.mxu0
      %5660 = vmatprep.mubr.bf16.mxu0 0
      %5661 = vmatmul.mubr.bf16.gmra.mxu0 %v5434
      %v5662 = vpop.f32.mrf.mxu0
      %v5663 = vadd.f32 0.0, %v5662
      %v5664 = vpop.f32.mrf.mxu0
      %v5665 = vpop.f32.mrf.mxu0
      %v5666 = vadd.f32 0.0, %v5665
      %v5667 = vpop.f32.mrf.mxu0
      %5668 = vmatprep.mubr.bf16.mxu0 0
      %5669 = vmatmul.mubr.bf16.gmra.mxu0 %v5435
      %v5670 = vpop.f32.mrf.mxu0
      %v5671 = vadd.f32 0.0, %v5670
      %v5672 = vpop.f32.mrf.mxu0
      %v5673 = vpop.f32.mrf.mxu0
      %v5674 = vadd.f32 0.0, %v5673
      %v5675 = vpop.f32.mrf.mxu0
      %5676 = vmatprep.mubr.bf16.mxu0 0
      %5677 = vmatmul.mubr.bf16.gmra.mxu0 %v5436
      %v5678 = vpop.f32.mrf.mxu0
      %v5679 = vadd.f32 0.0, %v5678
      %v5680 = vpop.f32.mrf.mxu0
      %v5681 = vpop.f32.mrf.mxu0
      %v5682 = vadd.f32 0.0, %v5681
      %v5683 = vpop.f32.mrf.mxu0
      %5684 = vmatprep.mubr.bf16.mxu0 0
      %5685 = vmatmul.mubr.bf16.gmra.mxu0 %v5437
      %v5686 = vpop.f32.mrf.mxu0
      %v5687 = vadd.f32 0.0, %v5686
      %v5688 = vpop.f32.mrf.mxu0
      %v5689 = vpop.f32.mrf.mxu0
      %v5690 = vadd.f32 0.0, %v5689
      %v5691 = vpop.f32.mrf.mxu0
      %5692 = vmatprep.mubr.bf16.mxu0 0
      %5693 = vmatmul.mubr.bf16.gmra.mxu0 %v5438
      %v5694 = vpop.f32.mrf.mxu0
      %v5695 = vadd.f32 0.0, %v5694
      %v5696 = vpop.f32.mrf.mxu0
      %v5697 = vpop.f32.mrf.mxu0
      %v5698 = vadd.f32 0.0, %v5697
      %v5699 = vpop.f32.mrf.mxu0
      %5700 = vmatprep.mubr.bf16.mxu0 0
      %5701 = vmatmul.mubr.bf16.gmra.mxu0 %v5439
      %v5702 = vpop.f32.mrf.mxu0
      %v5703 = vadd.f32 0.0, %v5702
      %v5704 = vpop.f32.mrf.mxu0
      %v5705 = vpop.f32.mrf.mxu0
      %v5706 = vadd.f32 0.0, %v5705
      %v5707 = vpop.f32.mrf.mxu0
      %5708 = vmatprep.mubr.bf16.mxu0 0
      %5709 = vmatmul.mubr.bf16.gmra.mxu0 %v5440
      %v5710 = vpop.f32.mrf.mxu0
      %v5711 = vadd.f32 0.0, %v5710
      %v5712 = vpop.f32.mrf.mxu0
      %v5713 = vpop.f32.mrf.mxu0
      %v5714 = vadd.f32 0.0, %v5713
      %v5715 = vpop.f32.mrf.mxu0
      %5716 = vmatprep.mubr.bf16.mxu0 0
      %5717 = vmatmul.mubr.bf16.gmra.mxu0 %v5441
      %v5718 = vpop.f32.mrf.mxu0
      %v5719 = vadd.f32 0.0, %v5718
      %v5720 = vpop.f32.mrf.mxu0
      %v5721 = vpop.f32.mrf.mxu0
      %v5722 = vadd.f32 0.0, %v5721
      %v5723 = vpop.f32.mrf.mxu0
      %5724 = vmatprep.mubr.bf16.mxu0 0
      %5725 = vmatmul.mubr.bf16.gmra.mxu0 %v5442
      %v5726 = vpop.f32.mrf.mxu0
      %v5727 = vadd.f32 0.0, %v5726
      %v5728 = vpop.f32.mrf.mxu0
      %v5729 = vpop.f32.mrf.mxu0
      %v5730 = vadd.f32 0.0, %v5729
      %v5731 = vpop.f32.mrf.mxu0
      %5732 = vmatprep.mubr.bf16.mxu0 0
      %5733 = vmatmul.mubr.bf16.gmra.mxu0 %v5443
      %v5734 = vpop.f32.mrf.mxu0
      %v5735 = vadd.f32 0.0, %v5734
      %v5736 = vpop.f32.mrf.mxu0
      %v5737 = vpop.f32.mrf.mxu0
      %v5738 = vadd.f32 0.0, %v5737
      %v5739 = vpop.f32.mrf.mxu0
      %5740 = vdwg.mxu0
      %v5741 = vld [vmem:[#allocation3] sm:$0xff]
      %v5742 = vld [vmem:[#allocation3 + $0x8] sm:$0xff]
      %v5743 = vld [vmem:[#allocation3 + $0x10] sm:$0xff]
      %v5744 = vld [vmem:[#allocation3 + $0x18] sm:$0xff]
      %v5745 = vld [vmem:[#allocation3 + $0x20] sm:$0xff]
      %v5746 = vld [vmem:[#allocation3 + $0x28] sm:$0xff]
      %v5747 = vld [vmem:[#allocation3 + $0x30] sm:$0xff]
      %v5748 = vld [vmem:[#allocation3 + $0x38] sm:$0xff]
      %v5749 = vld [vmem:[#allocation3 + $0x40] sm:$0xff]
      %v5750 = vld [vmem:[#allocation3 + $0x48] sm:$0xff]
      %v5751 = vld [vmem:[#allocation3 + $0x50] sm:$0xff]
      %v5752 = vld [vmem:[#allocation3 + $0x58] sm:$0xff]
      %v5753 = vld [vmem:[#allocation3 + $0x60] sm:$0xff]
      %v5754 = vld [vmem:[#allocation3 + $0x68] sm:$0xff]
      %v5755 = vld [vmem:[#allocation3 + $0x70] sm:$0xff]
      %v5756 = vld [vmem:[#allocation3 + $0x78] sm:$0xff]
      %v5757 = vld [vmem:[#allocation3 + $0x80] sm:$0xff]
      %v5758 = vld [vmem:[#allocation3 + $0x88] sm:$0xff]
      %v5759 = vld [vmem:[#allocation3 + $0x90] sm:$0xff]
      %v5760 = vld [vmem:[#allocation3 + $0x98] sm:$0xff]
      %v5761 = vld [vmem:[#allocation3 + $0xa0] sm:$0xff]
      %v5762 = vld [vmem:[#allocation3 + $0xa8] sm:$0xff]
      %v5763 = vld [vmem:[#allocation3 + $0xb0] sm:$0xff]
      %v5764 = vld [vmem:[#allocation3 + $0xb8] sm:$0xff]
      %v5765 = vld [vmem:[#allocation3 + $0xc0] sm:$0xff]
      %v5766 = vld [vmem:[#allocation3 + $0xc8] sm:$0xff]
      %v5767 = vld [vmem:[#allocation3 + $0xd0] sm:$0xff]
      %v5768 = vld [vmem:[#allocation3 + $0xd8] sm:$0xff]
      %v5769 = vld [vmem:[#allocation3 + $0xe0] sm:$0xff]
      %v5770 = vld [vmem:[#allocation3 + $0xe8] sm:$0xff]
      %v5771 = vld [vmem:[#allocation3 + $0xf0] sm:$0xff]
      %v5772 = vld [vmem:[#allocation3 + $0xf8] sm:$0xff]
      %v5773 = vld [vmem:[#allocation3 + $0x100] sm:$0xff]
      %v5774 = vld [vmem:[#allocation3 + $0x108] sm:$0xff]
      %v5775 = vld [vmem:[#allocation3 + $0x110] sm:$0xff]
      %v5776 = vld [vmem:[#allocation3 + $0x118] sm:$0xff]
      %v5777 = vld [vmem:[#allocation3 + $0x120] sm:$0xff]
      %v5778 = vld [vmem:[#allocation3 + $0x128] sm:$0xff]
      %v5779 = vld [vmem:[#allocation3 + $0x130] sm:$0xff]
      %v5780 = vld [vmem:[#allocation3 + $0x138] sm:$0xff]
      %v5781 = vld [vmem:[#allocation3 + $0x140] sm:$0xff]
      %v5782 = vld [vmem:[#allocation3 + $0x148] sm:$0xff]
      %v5783 = vld [vmem:[#allocation3 + $0x150] sm:$0xff]
      %v5784 = vld [vmem:[#allocation3 + $0x158] sm:$0xff]
      %v5785 = vld [vmem:[#allocation3 + $0x160] sm:$0xff]
      %v5786 = vld [vmem:[#allocation3 + $0x168] sm:$0xff]
      %v5787 = vld [vmem:[#allocation3 + $0x170] sm:$0xff]
      %v5788 = vld [vmem:[#allocation3 + $0x178] sm:$0xff]
      %v5789 = vadd.f32 %v5741, %v5551
      %v5790 = vadd.f32 %v5742, %v5554
      %v5791 = vadd.f32 %v5743, %v5559
      %v5792 = vadd.f32 %v5744, %v5562
      %v5793 = vadd.f32 %v5745, %v5567
      %v5794 = vadd.f32 %v5746, %v5570
      %v5795 = vadd.f32 %v5747, %v5575
      %v5796 = vadd.f32 %v5748, %v5578
      %v5797 = vadd.f32 %v5749, %v5583
      %v5798 = vadd.f32 %v5750, %v5586
      %v5799 = vadd.f32 %v5751, %v5591
      %v5800 = vadd.f32 %v5752, %v5594
      %v5801 = vadd.f32 %v5753, %v5599
      %v5802 = vadd.f32 %v5754, %v5602
      %v5803 = vadd.f32 %v5755, %v5607
      %v5804 = vadd.f32 %v5756, %v5610
      %v5805 = vadd.f32 %v5757, %v5615
      %v5806 = vadd.f32 %v5758, %v5618
      %v5807 = vadd.f32 %v5759, %v5623
      %v5808 = vadd.f32 %v5760, %v5626
      %v5809 = vadd.f32 %v5761, %v5631
      %v5810 = vadd.f32 %v5762, %v5634
      %v5811 = vadd.f32 %v5763, %v5639
      %v5812 = vadd.f32 %v5764, %v5642
      %v5813 = vadd.f32 %v5765, %v5647
      %v5814 = vadd.f32 %v5766, %v5650
      %v5815 = vadd.f32 %v5767, %v5655
      %v5816 = vadd.f32 %v5768, %v5658
      %v5817 = vadd.f32 %v5769, %v5663
      %v5818 = vadd.f32 %v5770, %v5666
      %v5819 = vadd.f32 %v5771, %v5671
      %v5820 = vadd.f32 %v5772, %v5674
      %v5821 = vadd.f32 %v5773, %v5679
      %v5822 = vadd.f32 %v5774, %v5682
      %v5823 = vadd.f32 %v5775, %v5687
      %v5824 = vadd.f32 %v5776, %v5690
      %v5825 = vadd.f32 %v5777, %v5695
      %v5826 = vadd.f32 %v5778, %v5698
      %v5827 = vadd.f32 %v5779, %v5703
      %v5828 = vadd.f32 %v5780, %v5706
      %v5829 = vadd.f32 %v5781, %v5711
      %v5830 = vadd.f32 %v5782, %v5714
      %v5831 = vadd.f32 %v5783, %v5719
      %v5832 = vadd.f32 %v5784, %v5722
      %v5833 = vadd.f32 %v5785, %v5727
      %v5834 = vadd.f32 %v5786, %v5730
      %v5835 = vadd.f32 %v5787, %v5735
      %v5836 = vadd.f32 %v5788, %v5738
      %5837 = vst [vmem:[#allocation3] sm:$0xff] %v5789
      %5838 = vst [vmem:[#allocation3 + $0x8] sm:$0xff] %v5790
      %5839 = vst [vmem:[#allocation3 + $0x10] sm:$0xff] %v5791
      %5840 = vst [vmem:[#allocation3 + $0x18] sm:$0xff] %v5792
      %5841 = vst [vmem:[#allocation3 + $0x20] sm:$0xff] %v5793
      %5842 = vst [vmem:[#allocation3 + $0x28] sm:$0xff] %v5794
      %5843 = vst [vmem:[#allocation3 + $0x30] sm:$0xff] %v5795
      %5844 = vst [vmem:[#allocation3 + $0x38] sm:$0xff] %v5796
      %5845 = vst [vmem:[#allocation3 + $0x40] sm:$0xff] %v5797
      %5846 = vst [vmem:[#allocation3 + $0x48] sm:$0xff] %v5798
      %5847 = vst [vmem:[#allocation3 + $0x50] sm:$0xff] %v5799
      %5848 = vst [vmem:[#allocation3 + $0x58] sm:$0xff] %v5800
      %5849 = vst [vmem:[#allocation3 + $0x60] sm:$0xff] %v5801
      %5850 = vst [vmem:[#allocation3 + $0x68] sm:$0xff] %v5802
      %5851 = vst [vmem:[#allocation3 + $0x70] sm:$0xff] %v5803
      %5852 = vst [vmem:[#allocation3 + $0x78] sm:$0xff] %v5804
      %5853 = vst [vmem:[#allocation3 + $0x80] sm:$0xff] %v5805
      %5854 = vst [vmem:[#allocation3 + $0x88] sm:$0xff] %v5806
      %5855 = vst [vmem:[#allocation3 + $0x90] sm:$0xff] %v5807
      %5856 = vst [vmem:[#allocation3 + $0x98] sm:$0xff] %v5808
      %5857 = vst [vmem:[#allocation3 + $0xa0] sm:$0xff] %v5809
      %5858 = vst [vmem:[#allocation3 + $0xa8] sm:$0xff] %v5810
      %5859 = vst [vmem:[#allocation3 + $0xb0] sm:$0xff] %v5811
      %5860 = vst [vmem:[#allocation3 + $0xb8] sm:$0xff] %v5812
      %5861 = vst [vmem:[#allocation3 + $0xc0] sm:$0xff] %v5813
      %5862 = vst [vmem:[#allocation3 + $0xc8] sm:$0xff] %v5814
      %5863 = vst [vmem:[#allocation3 + $0xd0] sm:$0xff] %v5815
      %5864 = vst [vmem:[#allocation3 + $0xd8] sm:$0xff] %v5816
      %5865 = vst [vmem:[#allocation3 + $0xe0] sm:$0xff] %v5817
      %5866 = vst [vmem:[#allocation3 + $0xe8] sm:$0xff] %v5818
      %5867 = vst [vmem:[#allocation3 + $0xf0] sm:$0xff] %v5819
      %5868 = vst [vmem:[#allocation3 + $0xf8] sm:$0xff] %v5820
      %5869 = vst [vmem:[#allocation3 + $0x100] sm:$0xff] %v5821
      %5870 = vst [vmem:[#allocation3 + $0x108] sm:$0xff] %v5822
      %5871 = vst [vmem:[#allocation3 + $0x110] sm:$0xff] %v5823
      %5872 = vst [vmem:[#allocation3 + $0x118] sm:$0xff] %v5824
      %5873 = vst [vmem:[#allocation3 + $0x120] sm:$0xff] %v5825
      %5874 = vst [vmem:[#allocation3 + $0x128] sm:$0xff] %v5826
      %5875 = vst [vmem:[#allocation3 + $0x130] sm:$0xff] %v5827
      %5876 = vst [vmem:[#allocation3 + $0x138] sm:$0xff] %v5828
      %5877 = vst [vmem:[#allocation3 + $0x140] sm:$0xff] %v5829
      %5878 = vst [vmem:[#allocation3 + $0x148] sm:$0xff] %v5830
      %5879 = vst [vmem:[#allocation3 + $0x150] sm:$0xff] %v5831
      %5880 = vst [vmem:[#allocation3 + $0x158] sm:$0xff] %v5832
      %5881 = vst [vmem:[#allocation3 + $0x160] sm:$0xff] %v5833
      %5882 = vst [vmem:[#allocation3 + $0x168] sm:$0xff] %v5834
      %5883 = vst [vmem:[#allocation3 + $0x170] sm:$0xff] %v5835
      %5884 = vst [vmem:[#allocation3 + $0x178] sm:$0xff] %v5836
      %v5885 = vld [vmem:[#allocation2 + $0x18] sm:$0xf]
      %v5886 = vld [vmem:[#allocation2 + $0x1c] sm:$0xf]
      %v5887 = vld [vmem:[#allocation2 + $0x20] sm:$0xf]
      %v5888 = vld [vmem:[#allocation2 + $0x24] sm:$0xf]
      %v5889 = vld [vmem:[#allocation2 + $0x28] sm:$0xf]
      %v5890 = vld [vmem:[#allocation2 + $0x2c] sm:$0xf]
      %v5891 = vld [vmem:[#allocation2 + $0x30] sm:$0xf]
      %v5892 = vld [vmem:[#allocation2 + $0x34] sm:$0xf]
      %v5893 = vld [vmem:[#allocation2 + $0x38] sm:$0xf]
      %v5894 = vld [vmem:[#allocation2 + $0x3c] sm:$0xf]
      %v5895 = vld [vmem:[#allocation2 + $0x40] sm:$0xf]
      %v5896 = vld [vmem:[#allocation2 + $0x44] sm:$0xf]
      %v5897 = vld [vmem:[#allocation2 + $0x48] sm:$0xf]
      %v5898 = vld [vmem:[#allocation2 + $0x4c] sm:$0xf]
      %v5899 = vld [vmem:[#allocation2 + $0x50] sm:$0xf]
      %v5900 = vld [vmem:[#allocation2 + $0x54] sm:$0xf]
      %v5901 = vld [vmem:[#allocation2 + $0x58] sm:$0xf]
      %v5902 = vld [vmem:[#allocation2 + $0x5c] sm:$0xf]
      %v5903 = vld [vmem:[#allocation2 + $0x60] sm:$0xf]
      %v5904 = vld [vmem:[#allocation2 + $0x64] sm:$0xf]
      %v5905 = vld [vmem:[#allocation2 + $0x68] sm:$0xf]
      %v5906 = vld [vmem:[#allocation2 + $0x6c] sm:$0xf]
      %v5907 = vld [vmem:[#allocation2 + $0x70] sm:$0xf]
      %v5908 = vld [vmem:[#allocation2 + $0x74] sm:$0xf]
      %v5909 = vld [vmem:[#allocation2 + $0x78] sm:$0xf]
      %v5910 = vld [vmem:[#allocation2 + $0x7c] sm:$0xf]
      %v5911 = vld [vmem:[#allocation2 + $0x80] sm:$0xf]
      %v5912 = vld [vmem:[#allocation2 + $0x84] sm:$0xf]
      %v5913 = vld [vmem:[#allocation2 + $0x88] sm:$0xf]
      %v5914 = vld [vmem:[#allocation2 + $0x8c] sm:$0xf]
      %v5915 = vld [vmem:[#allocation2 + $0x90] sm:$0xf]
      %v5916 = vld [vmem:[#allocation2 + $0x94] sm:$0xf]
      %v5917 = vld [vmem:[#allocation2 + $0x98] sm:$0xf]
      %v5918 = vld [vmem:[#allocation2 + $0x9c] sm:$0xf]
      %v5919 = vld [vmem:[#allocation2 + $0xa0] sm:$0xf]
      %v5920 = vld [vmem:[#allocation2 + $0xa4] sm:$0xf]
      %v5921 = vld [vmem:[#allocation2 + $0xa8] sm:$0xf]
      %v5922 = vld [vmem:[#allocation2 + $0xac] sm:$0xf]
      %v5923 = vld [vmem:[#allocation2 + $0xb0] sm:$0xf]
      %v5924 = vld [vmem:[#allocation2 + $0xb4] sm:$0xf]
      %v5925 = vld [vmem:[#allocation2 + $0xb8] sm:$0xf]
      %v5926 = vld [vmem:[#allocation2 + $0xbc] sm:$0xf]
      %v5927 = vld [vmem:[#allocation2 + $0xc0] sm:$0xf]
      %v5928 = vld [vmem:[#allocation2 + $0xc4] sm:$0xf]
      %v5929 = vld [vmem:[#allocation2 + $0xc8] sm:$0xf]
      %v5930 = vld [vmem:[#allocation2 + $0xcc] sm:$0xf]
      %v5931 = vld [vmem:[#allocation2 + $0xd0] sm:$0xf]
      %v5932 = vld [vmem:[#allocation2 + $0xd4] sm:$0xf]
      %v5933 = vld [vmem:[#allocation2 + $0xd8] sm:$0x1]
      %s5934 = scalar_lea.vmem %s4, 448
      %v5935 = vld [vmem:[%s5934] sm:$0xf]
      %v5936 = vld [vmem:[%s5934 + $0x4] sm:$0xf]
      %v5937 = vld [vmem:[%s5934 + $0x8] sm:$0xf]
      %v5938 = vld [vmem:[%s5934 + $0xc] sm:$0xf]
      %v5939 = vld [vmem:[%s5934 + $0x10] sm:$0xf]
      %v5940 = vld [vmem:[%s5934 + $0x14] sm:$0xf]
      %v5941 = vld [vmem:[%s5934 + $0x18] sm:$0xf]
      %v5942 = vld [vmem:[%s5934 + $0x1c] sm:$0xf]
      %v5943 = vld [vmem:[%s5934 + $0x20] sm:$0xf]
      %v5944 = vld [vmem:[%s5934 + $0x24] sm:$0xf]
      %v5945 = vld [vmem:[%s5934 + $0x28] sm:$0xf]
      %v5946 = vld [vmem:[%s5934 + $0x2c] sm:$0xf]
      %v5947 = vld [vmem:[%s5934 + $0x30] sm:$0xf]
      %v5948 = vld [vmem:[%s5934 + $0x34] sm:$0xf]
      %v5949 = vld [vmem:[%s5934 + $0x38] sm:$0xf]
      %v5950 = vld [vmem:[%s5934 + $0x3c] sm:$0xf]
      %v6000 = vunpack.c.l.b16 %v5885
      %v6001 = vunpack.c.l.b16 %v5886
      %v6002 = vunpack.c.l.b16 %v5887
      %v6003 = vunpack.c.l.b16 %v5888
      %v6004 = vunpack.c.l.b16 %v5889
      %v6005 = vunpack.c.l.b16 %v5890
      %v6006 = vunpack.c.l.b16 %v5891
      %v6007 = vunpack.c.l.b16 %v5892
      %v6008 = vunpack.c.l.b16 %v5893
      %v6009 = vunpack.c.l.b16 %v5894
      %v6010 = vunpack.c.l.b16 %v5895
      %v6011 = vunpack.c.l.b16 %v5896
      %v6012 = vunpack.c.l.b16 %v5897
      %v6013 = vunpack.c.l.b16 %v5898
      %v6014 = vunpack.c.l.b16 %v5899
      %v6015 = vunpack.c.l.b16 %v5900
      %v6016 = vunpack.c.l.b16 %v5901
      %v6017 = vunpack.c.l.b16 %v5902
      %v6018 = vunpack.c.l.b16 %v5903
      %v6019 = vunpack.c.l.b16 %v5904
      %v6020 = vunpack.c.l.b16 %v5905
      %v6021 = vunpack.c.l.b16 %v5906
      %v6022 = vunpack.c.l.b16 %v5907
      %v6023 = vunpack.c.l.b16 %v5908
      %v6024 = vunpack.c.l.b16 %v5909
      %v6025 = vunpack.c.l.b16 %v5910
      %v6026 = vunpack.c.l.b16 %v5911
      %v6027 = vunpack.c.l.b16 %v5912
      %v6028 = vunpack.c.l.b16 %v5913
      %v6029 = vunpack.c.l.b16 %v5914
      %v6030 = vunpack.c.l.b16 %v5915
      %v6031 = vunpack.c.l.b16 %v5916
      %v6032 = vunpack.c.l.b16 %v5917
      %v6033 = vunpack.c.l.b16 %v5918
      %v6034 = vunpack.c.l.b16 %v5919
      %v6035 = vunpack.c.l.b16 %v5920
      %v6036 = vunpack.c.l.b16 %v5921
      %v6037 = vunpack.c.l.b16 %v5922
      %v6038 = vunpack.c.l.b16 %v5923
      %v6039 = vunpack.c.l.b16 %v5924
      %v6040 = vunpack.c.l.b16 %v5925
      %v6041 = vunpack.c.l.b16 %v5926
      %v6042 = vunpack.c.l.b16 %v5927
      %v6043 = vunpack.c.l.b16 %v5928
      %v6044 = vunpack.c.l.b16 %v5929
      %v6045 = vunpack.c.l.b16 %v5930
      %v6046 = vunpack.c.l.b16 %v5931
      %v6047 = vunpack.c.l.b16 %v5932
      %v6048 = vunpack.c.l.b16 %v5933
      %v6049 = vpack.c.b16 %v6001, %v6000
      %v6050 = vpack.c.b16 %v6003, %v6002
      %v6051 = vpack.c.b16 %v6005, %v6004
      %v6052 = vpack.c.b16 %v6007, %v6006
      %v6053 = vpack.c.b16 %v6009, %v6008
      %v6054 = vpack.c.b16 %v6011, %v6010
      %v6055 = vpack.c.b16 %v6013, %v6012
      %v6056 = vpack.c.b16 %v6015, %v6014
      %v6057 = vpack.c.b16 %v6017, %v6016
      %v6058 = vpack.c.b16 %v6019, %v6018
      %v6059 = vpack.c.b16 %v6021, %v6020
      %v6060 = vpack.c.b16 %v6023, %v6022
      %v6061 = vpack.c.b16 %v6025, %v6024
      %v6062 = vpack.c.b16 %v6027, %v6026
      %v6063 = vpack.c.b16 %v6029, %v6028
      %v6064 = vpack.c.b16 %v6031, %v6030
      %v6065 = vpack.c.b16 %v6033, %v6032
      %v6066 = vpack.c.b16 %v6035, %v6034
      %v6067 = vpack.c.b16 %v6037, %v6036
      %v6068 = vpack.c.b16 %v6039, %v6038
      %v6069 = vpack.c.b16 %v6041, %v6040
      %v6070 = vpack.c.b16 %v6043, %v6042
      %v6071 = vpack.c.b16 %v6045, %v6044
      %v6072 = vpack.c.b16 %v6047, %v6046
      %v6073 = vpack.c.b16 %v6048, %v6048
      %v6075 = vshrl.u32 %v6049, 16
      %v6077 = vshll.u32 %v6049, 16
      %v6079 = vrot.slane %v6077, 1
      %v6080 = vor.u32 %v6075, %v6079
      %v6082 = vshll.u32 %v6050, 16
      %v6084 = vrot.slane %v6082, 1
      %v6085 = vsel %vm1810, %v6080, %v6084
      %v6086 = vshrl.u32 %v6050, 16
      %v6088 = vor.u32 %v6086, %v6084
      %v6090 = vshll.u32 %v6051, 16
      %v6092 = vrot.slane %v6090, 1
      %v6093 = vsel %vm1810, %v6088, %v6092
      %v6094 = vshrl.u32 %v6051, 16
      %v6096 = vor.u32 %v6094, %v6092
      %v6098 = vshll.u32 %v6052, 16
      %v6100 = vrot.slane %v6098, 1
      %v6101 = vsel %vm1810, %v6096, %v6100
      %v6102 = vshrl.u32 %v6052, 16
      %v6104 = vor.u32 %v6102, %v6100
      %v6106 = vshll.u32 %v6053, 16
      %v6108 = vrot.slane %v6106, 1
      %v6109 = vsel %vm1810, %v6104, %v6108
      %v6110 = vshrl.u32 %v6053, 16
      %v6112 = vor.u32 %v6110, %v6108
      %v6114 = vshll.u32 %v6054, 16
      %v6116 = vrot.slane %v6114, 1
      %v6117 = vsel %vm1810, %v6112, %v6116
      %v6118 = vshrl.u32 %v6054, 16
      %v6120 = vor.u32 %v6118, %v6116
      %v6122 = vshll.u32 %v6055, 16
      %v6124 = vrot.slane %v6122, 1
      %v6125 = vsel %vm1810, %v6120, %v6124
      %v6126 = vshrl.u32 %v6055, 16
      %v6128 = vor.u32 %v6126, %v6124
      %v6130 = vshll.u32 %v6056, 16
      %v6132 = vrot.slane %v6130, 1
      %v6133 = vsel %vm1810, %v6128, %v6132
      %v6134 = vshrl.u32 %v6056, 16
      %v6136 = vor.u32 %v6134, %v6132
      %v6138 = vshll.u32 %v6057, 16
      %v6140 = vrot.slane %v6138, 1
      %v6141 = vsel %vm1810, %v6136, %v6140
      %v6142 = vshrl.u32 %v6057, 16
      %v6144 = vor.u32 %v6142, %v6140
      %v6146 = vshll.u32 %v6058, 16
      %v6148 = vrot.slane %v6146, 1
      %v6149 = vsel %vm1810, %v6144, %v6148
      %v6150 = vshrl.u32 %v6058, 16
      %v6152 = vor.u32 %v6150, %v6148
      %v6154 = vshll.u32 %v6059, 16
      %v6156 = vrot.slane %v6154, 1
      %v6157 = vsel %vm1810, %v6152, %v6156
      %v6158 = vshrl.u32 %v6059, 16
      %v6160 = vor.u32 %v6158, %v6156
      %v6162 = vshll.u32 %v6060, 16
      %v6164 = vrot.slane %v6162, 1
      %v6165 = vsel %vm1810, %v6160, %v6164
      %v6166 = vshrl.u32 %v6060, 16
      %v6168 = vor.u32 %v6166, %v6164
      %v6170 = vshll.u32 %v6061, 16
      %v6172 = vrot.slane %v6170, 1
      %v6173 = vsel %vm1810, %v6168, %v6172
      %v6174 = vshrl.u32 %v6061, 16
      %v6176 = vor.u32 %v6174, %v6172
      %v6178 = vshll.u32 %v6062, 16
      %v6180 = vrot.slane %v6178, 1
      %v6181 = vsel %vm1810, %v6176, %v6180
      %v6182 = vshrl.u32 %v6062, 16
      %v6184 = vor.u32 %v6182, %v6180
      %v6186 = vshll.u32 %v6063, 16
      %v6188 = vrot.slane %v6186, 1
      %v6189 = vsel %vm1810, %v6184, %v6188
      %v6190 = vshrl.u32 %v6063, 16
      %v6192 = vor.u32 %v6190, %v6188
      %v6194 = vshll.u32 %v6064, 16
      %v6196 = vrot.slane %v6194, 1
      %v6197 = vsel %vm1810, %v6192, %v6196
      %v6198 = vshrl.u32 %v6064, 16
      %v6200 = vor.u32 %v6198, %v6196
      %v6202 = vshll.u32 %v6065, 16
      %v6204 = vrot.slane %v6202, 1
      %v6205 = vsel %vm1810, %v6200, %v6204
      %v6206 = vshrl.u32 %v6065, 16
      %v6208 = vor.u32 %v6206, %v6204
      %v6210 = vshll.u32 %v6066, 16
      %v6212 = vrot.slane %v6210, 1
      %v6213 = vsel %vm1810, %v6208, %v6212
      %v6214 = vshrl.u32 %v6066, 16
      %v6216 = vor.u32 %v6214, %v6212
      %v6218 = vshll.u32 %v6067, 16
      %v6220 = vrot.slane %v6218, 1
      %v6221 = vsel %vm1810, %v6216, %v6220
      %v6222 = vshrl.u32 %v6067, 16
      %v6224 = vor.u32 %v6222, %v6220
      %v6226 = vshll.u32 %v6068, 16
      %v6228 = vrot.slane %v6226, 1
      %v6229 = vsel %vm1810, %v6224, %v6228
      %v6230 = vshrl.u32 %v6068, 16
      %v6232 = vor.u32 %v6230, %v6228
      %v6234 = vshll.u32 %v6069, 16
      %v6236 = vrot.slane %v6234, 1
      %v6237 = vsel %vm1810, %v6232, %v6236
      %v6238 = vshrl.u32 %v6069, 16
      %v6240 = vor.u32 %v6238, %v6236
      %v6242 = vshll.u32 %v6070, 16
      %v6244 = vrot.slane %v6242, 1
      %v6245 = vsel %vm1810, %v6240, %v6244
      %v6246 = vshrl.u32 %v6070, 16
      %v6248 = vor.u32 %v6246, %v6244
      %v6250 = vshll.u32 %v6071, 16
      %v6252 = vrot.slane %v6250, 1
      %v6253 = vsel %vm1810, %v6248, %v6252
      %v6254 = vshrl.u32 %v6071, 16
      %v6256 = vor.u32 %v6254, %v6252
      %v6258 = vshll.u32 %v6072, 16
      %v6260 = vrot.slane %v6258, 1
      %v6261 = vsel %vm1810, %v6256, %v6260
      %v6262 = vshrl.u32 %v6072, 16
      %v6264 = vor.u32 %v6262, %v6260
      %v6266 = vshll.u32 %v6073, 16
      %v6268 = vrot.slane %v6266, 1
      %v6269 = vsel %vm1810, %v6264, %v6268
      %v6310 = vunpack.c.l.b16 %v5935
      %v6311 = vunpack.c.l.b16 %v5936
      %v6312 = vunpack.c.l.b16 %v5937
      %v6313 = vunpack.c.l.b16 %v5938
      %v6314 = vunpack.c.l.b16 %v5939
      %v6315 = vunpack.c.l.b16 %v5940
      %v6316 = vunpack.c.l.b16 %v5941
      %v6317 = vunpack.c.l.b16 %v5942
      %v6318 = vunpack.c.l.b16 %v5943
      %v6319 = vunpack.c.l.b16 %v5944
      %v6320 = vunpack.c.l.b16 %v5945
      %v6321 = vunpack.c.l.b16 %v5946
      %v6322 = vunpack.c.l.b16 %v5947
      %v6323 = vunpack.c.l.b16 %v5948
      %v6324 = vunpack.c.l.b16 %v5949
      %v6325 = vunpack.c.l.b16 %v5950
      %v6326 = vpack.c.b16 %v6311, %v6310
      %v6327 = vpack.c.b16 %v6313, %v6312
      %v6328 = vpack.c.b16 %v6315, %v6314
      %v6329 = vpack.c.b16 %v6317, %v6316
      %v6330 = vpack.c.b16 %v6319, %v6318
      %v6331 = vpack.c.b16 %v6321, %v6320
      %v6332 = vpack.c.b16 %v6323, %v6322
      %v6333 = vpack.c.b16 %v6325, %v6324
      %6342 = vmatprep.subr.bf16.mxu0 0
      %6343 = vmatpush1.bf16.msra.mxu0 %v6333
      %6344 = vmatprep.subr.bf16.mxu0 0
      %6345 = vmatpush1.bf16.msra.mxu0 %v6332
      %6346 = vmatprep.subr.bf16.mxu0 0
      %6347 = vmatpush1.bf16.msra.mxu0 %v6331
      %6348 = vmatprep.subr.bf16.mxu0 0
      %6349 = vmatpush1.bf16.msra.mxu0 %v6330
      %6350 = vmatprep.subr.bf16.mxu0 0
      %6351 = vmatpush1.bf16.msra.mxu0 %v6329
      %6352 = vmatprep.subr.bf16.mxu0 0
      %6353 = vmatpush1.bf16.msra.mxu0 %v6328
      %6354 = vmatprep.subr.bf16.mxu0 0
      %6355 = vmatpush1.bf16.msra.mxu0 %v6327
      %6356 = vmatprep.subr.bf16.mxu0 0
      %6357 = vmatpush1.bf16.msra.mxu0 %v6326
      %6358 = vmatprep.subr.bf16.mxu0 0
      %6359 = vmatpush2.bf16.msra.mxu0 0
      %6360 = vmatprep.subr.bf16.mxu0 0
      %6361 = vmatpush2.bf16.msra.mxu0 0
      %6362 = vmatprep.subr.bf16.mxu0 0
      %6363 = vmatpush2.bf16.msra.mxu0 0
      %6364 = vmatprep.subr.bf16.mxu0 0
      %6365 = vmatpush2.bf16.msra.mxu0 0
      %6366 = vmatprep.subr.bf16.mxu0 0
      %6367 = vmatpush2.bf16.msra.mxu0 0
      %6368 = vmatprep.subr.bf16.mxu0 0
      %6369 = vmatpush2.bf16.msra.mxu0 0
      %6370 = vmatprep.subr.bf16.mxu0 0
      %6371 = vmatpush2.bf16.msra.mxu0 0
      %6372 = vmatprep.subr.bf16.mxu0 0
      %6373 = vmatpush2.bf16.msra.mxu0 0
      %6374 = vmatprep.mubr.bf16.mxu0 0
      %6375 = vmatmul.mubr.bf16.gmra.mxu0 %v6085
      %v6376 = vpop.f32.mrf.mxu0
      %v6377 = vadd.f32 0.0, %v6376
      %v6378 = vpop.f32.mrf.mxu0
      %v6379 = vpop.f32.mrf.mxu0
      %v6380 = vadd.f32 0.0, %v6379
      %v6381 = vpop.f32.mrf.mxu0
      %6382 = vmatprep.mubr.bf16.mxu0 0
      %6383 = vmatmul.mubr.bf16.gmra.mxu0 %v6093
      %v6384 = vpop.f32.mrf.mxu0
      %v6385 = vadd.f32 0.0, %v6384
      %v6386 = vpop.f32.mrf.mxu0
      %v6387 = vpop.f32.mrf.mxu0
      %v6388 = vadd.f32 0.0, %v6387
      %v6389 = vpop.f32.mrf.mxu0
      %6390 = vmatprep.mubr.bf16.mxu0 0
      %6391 = vmatmul.mubr.bf16.gmra.mxu0 %v6101
      %v6392 = vpop.f32.mrf.mxu0
      %v6393 = vadd.f32 0.0, %v6392
      %v6394 = vpop.f32.mrf.mxu0
      %v6395 = vpop.f32.mrf.mxu0
      %v6396 = vadd.f32 0.0, %v6395
      %v6397 = vpop.f32.mrf.mxu0
      %6398 = vmatprep.mubr.bf16.mxu0 0
      %6399 = vmatmul.mubr.bf16.gmra.mxu0 %v6109
      %v6400 = vpop.f32.mrf.mxu0
      %v6401 = vadd.f32 0.0, %v6400
      %v6402 = vpop.f32.mrf.mxu0
      %v6403 = vpop.f32.mrf.mxu0
      %v6404 = vadd.f32 0.0, %v6403
      %v6405 = vpop.f32.mrf.mxu0
      %6406 = vmatprep.mubr.bf16.mxu0 0
      %6407 = vmatmul.mubr.bf16.gmra.mxu0 %v6117
      %v6408 = vpop.f32.mrf.mxu0
      %v6409 = vadd.f32 0.0, %v6408
      %v6410 = vpop.f32.mrf.mxu0
      %v6411 = vpop.f32.mrf.mxu0
      %v6412 = vadd.f32 0.0, %v6411
      %v6413 = vpop.f32.mrf.mxu0
      %6414 = vmatprep.mubr.bf16.mxu0 0
      %6415 = vmatmul.mubr.bf16.gmra.mxu0 %v6125
      %v6416 = vpop.f32.mrf.mxu0
      %v6417 = vadd.f32 0.0, %v6416
      %v6418 = vpop.f32.mrf.mxu0
      %v6419 = vpop.f32.mrf.mxu0
      %v6420 = vadd.f32 0.0, %v6419
      %v6421 = vpop.f32.mrf.mxu0
      %6422 = vmatprep.mubr.bf16.mxu0 0
      %6423 = vmatmul.mubr.bf16.gmra.mxu0 %v6133
      %v6424 = vpop.f32.mrf.mxu0
      %v6425 = vadd.f32 0.0, %v6424
      %v6426 = vpop.f32.mrf.mxu0
      %v6427 = vpop.f32.mrf.mxu0
      %v6428 = vadd.f32 0.0, %v6427
      %v6429 = vpop.f32.mrf.mxu0
      %6430 = vmatprep.mubr.bf16.mxu0 0
      %6431 = vmatmul.mubr.bf16.gmra.mxu0 %v6141
      %v6432 = vpop.f32.mrf.mxu0
      %v6433 = vadd.f32 0.0, %v6432
      %v6434 = vpop.f32.mrf.mxu0
      %v6435 = vpop.f32.mrf.mxu0
      %v6436 = vadd.f32 0.0, %v6435
      %v6437 = vpop.f32.mrf.mxu0
      %6438 = vmatprep.mubr.bf16.mxu0 0
      %6439 = vmatmul.mubr.bf16.gmra.mxu0 %v6149
      %v6440 = vpop.f32.mrf.mxu0
      %v6441 = vadd.f32 0.0, %v6440
      %v6442 = vpop.f32.mrf.mxu0
      %v6443 = vpop.f32.mrf.mxu0
      %v6444 = vadd.f32 0.0, %v6443
      %v6445 = vpop.f32.mrf.mxu0
      %6446 = vmatprep.mubr.bf16.mxu0 0
      %6447 = vmatmul.mubr.bf16.gmra.mxu0 %v6157
      %v6448 = vpop.f32.mrf.mxu0
      %v6449 = vadd.f32 0.0, %v6448
      %v6450 = vpop.f32.mrf.mxu0
      %v6451 = vpop.f32.mrf.mxu0
      %v6452 = vadd.f32 0.0, %v6451
      %v6453 = vpop.f32.mrf.mxu0
      %6454 = vmatprep.mubr.bf16.mxu0 0
      %6455 = vmatmul.mubr.bf16.gmra.mxu0 %v6165
      %v6456 = vpop.f32.mrf.mxu0
      %v6457 = vadd.f32 0.0, %v6456
      %v6458 = vpop.f32.mrf.mxu0
      %v6459 = vpop.f32.mrf.mxu0
      %v6460 = vadd.f32 0.0, %v6459
      %v6461 = vpop.f32.mrf.mxu0
      %6462 = vmatprep.mubr.bf16.mxu0 0
      %6463 = vmatmul.mubr.bf16.gmra.mxu0 %v6173
      %v6464 = vpop.f32.mrf.mxu0
      %v6465 = vadd.f32 0.0, %v6464
      %v6466 = vpop.f32.mrf.mxu0
      %v6467 = vpop.f32.mrf.mxu0
      %v6468 = vadd.f32 0.0, %v6467
      %v6469 = vpop.f32.mrf.mxu0
      %6470 = vmatprep.mubr.bf16.mxu0 0
      %6471 = vmatmul.mubr.bf16.gmra.mxu0 %v6181
      %v6472 = vpop.f32.mrf.mxu0
      %v6473 = vadd.f32 0.0, %v6472
      %v6474 = vpop.f32.mrf.mxu0
      %v6475 = vpop.f32.mrf.mxu0
      %v6476 = vadd.f32 0.0, %v6475
      %v6477 = vpop.f32.mrf.mxu0
      %6478 = vmatprep.mubr.bf16.mxu0 0
      %6479 = vmatmul.mubr.bf16.gmra.mxu0 %v6189
      %v6480 = vpop.f32.mrf.mxu0
      %v6481 = vadd.f32 0.0, %v6480
      %v6482 = vpop.f32.mrf.mxu0
      %v6483 = vpop.f32.mrf.mxu0
      %v6484 = vadd.f32 0.0, %v6483
      %v6485 = vpop.f32.mrf.mxu0
      %6486 = vmatprep.mubr.bf16.mxu0 0
      %6487 = vmatmul.mubr.bf16.gmra.mxu0 %v6197
      %v6488 = vpop.f32.mrf.mxu0
      %v6489 = vadd.f32 0.0, %v6488
      %v6490 = vpop.f32.mrf.mxu0
      %v6491 = vpop.f32.mrf.mxu0
      %v6492 = vadd.f32 0.0, %v6491
      %v6493 = vpop.f32.mrf.mxu0
      %6494 = vmatprep.mubr.bf16.mxu0 0
      %6495 = vmatmul.mubr.bf16.gmra.mxu0 %v6205
      %v6496 = vpop.f32.mrf.mxu0
      %v6497 = vadd.f32 0.0, %v6496
      %v6498 = vpop.f32.mrf.mxu0
      %v6499 = vpop.f32.mrf.mxu0
      %v6500 = vadd.f32 0.0, %v6499
      %v6501 = vpop.f32.mrf.mxu0
      %6502 = vmatprep.mubr.bf16.mxu0 0
      %6503 = vmatmul.mubr.bf16.gmra.mxu0 %v6213
      %v6504 = vpop.f32.mrf.mxu0
      %v6505 = vadd.f32 0.0, %v6504
      %v6506 = vpop.f32.mrf.mxu0
      %v6507 = vpop.f32.mrf.mxu0
      %v6508 = vadd.f32 0.0, %v6507
      %v6509 = vpop.f32.mrf.mxu0
      %6510 = vmatprep.mubr.bf16.mxu0 0
      %6511 = vmatmul.mubr.bf16.gmra.mxu0 %v6221
      %v6512 = vpop.f32.mrf.mxu0
      %v6513 = vadd.f32 0.0, %v6512
      %v6514 = vpop.f32.mrf.mxu0
      %v6515 = vpop.f32.mrf.mxu0
      %v6516 = vadd.f32 0.0, %v6515
      %v6517 = vpop.f32.mrf.mxu0
      %6518 = vmatprep.mubr.bf16.mxu0 0
      %6519 = vmatmul.mubr.bf16.gmra.mxu0 %v6229
      %v6520 = vpop.f32.mrf.mxu0
      %v6521 = vadd.f32 0.0, %v6520
      %v6522 = vpop.f32.mrf.mxu0
      %v6523 = vpop.f32.mrf.mxu0
      %v6524 = vadd.f32 0.0, %v6523
      %v6525 = vpop.f32.mrf.mxu0
      %6526 = vmatprep.mubr.bf16.mxu0 0
      %6527 = vmatmul.mubr.bf16.gmra.mxu0 %v6237
      %v6528 = vpop.f32.mrf.mxu0
      %v6529 = vadd.f32 0.0, %v6528
      %v6530 = vpop.f32.mrf.mxu0
      %v6531 = vpop.f32.mrf.mxu0
      %v6532 = vadd.f32 0.0, %v6531
      %v6533 = vpop.f32.mrf.mxu0
      %6534 = vmatprep.mubr.bf16.mxu0 0
      %6535 = vmatmul.mubr.bf16.gmra.mxu0 %v6245
      %v6536 = vpop.f32.mrf.mxu0
      %v6537 = vadd.f32 0.0, %v6536
      %v6538 = vpop.f32.mrf.mxu0
      %v6539 = vpop.f32.mrf.mxu0
      %v6540 = vadd.f32 0.0, %v6539
      %v6541 = vpop.f32.mrf.mxu0
      %6542 = vmatprep.mubr.bf16.mxu0 0
      %6543 = vmatmul.mubr.bf16.gmra.mxu0 %v6253
      %v6544 = vpop.f32.mrf.mxu0
      %v6545 = vadd.f32 0.0, %v6544
      %v6546 = vpop.f32.mrf.mxu0
      %v6547 = vpop.f32.mrf.mxu0
      %v6548 = vadd.f32 0.0, %v6547
      %v6549 = vpop.f32.mrf.mxu0
      %6550 = vmatprep.mubr.bf16.mxu0 0
      %6551 = vmatmul.mubr.bf16.gmra.mxu0 %v6261
      %v6552 = vpop.f32.mrf.mxu0
      %v6553 = vadd.f32 0.0, %v6552
      %v6554 = vpop.f32.mrf.mxu0
      %v6555 = vpop.f32.mrf.mxu0
      %v6556 = vadd.f32 0.0, %v6555
      %v6557 = vpop.f32.mrf.mxu0
      %6558 = vmatprep.mubr.bf16.mxu0 0
      %6559 = vmatmul.mubr.bf16.gmra.mxu0 %v6269
      %v6560 = vpop.f32.mrf.mxu0
      %v6561 = vadd.f32 0.0, %v6560
      %v6562 = vpop.f32.mrf.mxu0
      %v6563 = vpop.f32.mrf.mxu0
      %v6564 = vadd.f32 0.0, %v6563
      %v6565 = vpop.f32.mrf.mxu0
      %6566 = vdwg.mxu0
      %v6567 = vld [vmem:[#allocation3] sm:$0xff]
      %v6568 = vld [vmem:[#allocation3 + $0x8] sm:$0xff]
      %v6569 = vld [vmem:[#allocation3 + $0x10] sm:$0xff]
      %v6570 = vld [vmem:[#allocation3 + $0x18] sm:$0xff]
      %v6571 = vld [vmem:[#allocation3 + $0x20] sm:$0xff]
      %v6572 = vld [vmem:[#allocation3 + $0x28] sm:$0xff]
      %v6573 = vld [vmem:[#allocation3 + $0x30] sm:$0xff]
      %v6574 = vld [vmem:[#allocation3 + $0x38] sm:$0xff]
      %v6575 = vld [vmem:[#allocation3 + $0x40] sm:$0xff]
      %v6576 = vld [vmem:[#allocation3 + $0x48] sm:$0xff]
      %v6577 = vld [vmem:[#allocation3 + $0x50] sm:$0xff]
      %v6578 = vld [vmem:[#allocation3 + $0x58] sm:$0xff]
      %v6579 = vld [vmem:[#allocation3 + $0x60] sm:$0xff]
      %v6580 = vld [vmem:[#allocation3 + $0x68] sm:$0xff]
      %v6581 = vld [vmem:[#allocation3 + $0x70] sm:$0xff]
      %v6582 = vld [vmem:[#allocation3 + $0x78] sm:$0xff]
      %v6583 = vld [vmem:[#allocation3 + $0x80] sm:$0xff]
      %v6584 = vld [vmem:[#allocation3 + $0x88] sm:$0xff]
      %v6585 = vld [vmem:[#allocation3 + $0x90] sm:$0xff]
      %v6586 = vld [vmem:[#allocation3 + $0x98] sm:$0xff]
      %v6587 = vld [vmem:[#allocation3 + $0xa0] sm:$0xff]
      %v6588 = vld [vmem:[#allocation3 + $0xa8] sm:$0xff]
      %v6589 = vld [vmem:[#allocation3 + $0xb0] sm:$0xff]
      %v6590 = vld [vmem:[#allocation3 + $0xb8] sm:$0xff]
      %v6591 = vld [vmem:[#allocation3 + $0xc0] sm:$0xff]
      %v6592 = vld [vmem:[#allocation3 + $0xc8] sm:$0xff]
      %v6593 = vld [vmem:[#allocation3 + $0xd0] sm:$0xff]
      %v6594 = vld [vmem:[#allocation3 + $0xd8] sm:$0xff]
      %v6595 = vld [vmem:[#allocation3 + $0xe0] sm:$0xff]
      %v6596 = vld [vmem:[#allocation3 + $0xe8] sm:$0xff]
      %v6597 = vld [vmem:[#allocation3 + $0xf0] sm:$0xff]
      %v6598 = vld [vmem:[#allocation3 + $0xf8] sm:$0xff]
      %v6599 = vld [vmem:[#allocation3 + $0x100] sm:$0xff]
      %v6600 = vld [vmem:[#allocation3 + $0x108] sm:$0xff]
      %v6601 = vld [vmem:[#allocation3 + $0x110] sm:$0xff]
      %v6602 = vld [vmem:[#allocation3 + $0x118] sm:$0xff]
      %v6603 = vld [vmem:[#allocation3 + $0x120] sm:$0xff]
      %v6604 = vld [vmem:[#allocation3 + $0x128] sm:$0xff]
      %v6605 = vld [vmem:[#allocation3 + $0x130] sm:$0xff]
      %v6606 = vld [vmem:[#allocation3 + $0x138] sm:$0xff]
      %v6607 = vld [vmem:[#allocation3 + $0x140] sm:$0xff]
      %v6608 = vld [vmem:[#allocation3 + $0x148] sm:$0xff]
      %v6609 = vld [vmem:[#allocation3 + $0x150] sm:$0xff]
      %v6610 = vld [vmem:[#allocation3 + $0x158] sm:$0xff]
      %v6611 = vld [vmem:[#allocation3 + $0x160] sm:$0xff]
      %v6612 = vld [vmem:[#allocation3 + $0x168] sm:$0xff]
      %v6613 = vld [vmem:[#allocation3 + $0x170] sm:$0xff]
      %v6614 = vld [vmem:[#allocation3 + $0x178] sm:$0xff]
      %v6615 = vadd.f32 %v6567, %v6377
      %v6616 = vadd.f32 %v6568, %v6380
      %v6617 = vadd.f32 %v6569, %v6385
      %v6618 = vadd.f32 %v6570, %v6388
      %v6619 = vadd.f32 %v6571, %v6393
      %v6620 = vadd.f32 %v6572, %v6396
      %v6621 = vadd.f32 %v6573, %v6401
      %v6622 = vadd.f32 %v6574, %v6404
      %v6623 = vadd.f32 %v6575, %v6409
      %v6624 = vadd.f32 %v6576, %v6412
      %v6625 = vadd.f32 %v6577, %v6417
      %v6626 = vadd.f32 %v6578, %v6420
      %v6627 = vadd.f32 %v6579, %v6425
      %v6628 = vadd.f32 %v6580, %v6428
      %v6629 = vadd.f32 %v6581, %v6433
      %v6630 = vadd.f32 %v6582, %v6436
      %v6631 = vadd.f32 %v6583, %v6441
      %v6632 = vadd.f32 %v6584, %v6444
      %v6633 = vadd.f32 %v6585, %v6449
      %v6634 = vadd.f32 %v6586, %v6452
      %v6635 = vadd.f32 %v6587, %v6457
      %v6636 = vadd.f32 %v6588, %v6460
      %v6637 = vadd.f32 %v6589, %v6465
      %v6638 = vadd.f32 %v6590, %v6468
      %v6639 = vadd.f32 %v6591, %v6473
      %v6640 = vadd.f32 %v6592, %v6476
      %v6641 = vadd.f32 %v6593, %v6481
      %v6642 = vadd.f32 %v6594, %v6484
      %v6643 = vadd.f32 %v6595, %v6489
      %v6644 = vadd.f32 %v6596, %v6492
      %v6645 = vadd.f32 %v6597, %v6497
      %v6646 = vadd.f32 %v6598, %v6500
      %v6647 = vadd.f32 %v6599, %v6505
      %v6648 = vadd.f32 %v6600, %v6508
      %v6649 = vadd.f32 %v6601, %v6513
      %v6650 = vadd.f32 %v6602, %v6516
      %v6651 = vadd.f32 %v6603, %v6521
      %v6652 = vadd.f32 %v6604, %v6524
      %v6653 = vadd.f32 %v6605, %v6529
      %v6654 = vadd.f32 %v6606, %v6532
      %v6655 = vadd.f32 %v6607, %v6537
      %v6656 = vadd.f32 %v6608, %v6540
      %v6657 = vadd.f32 %v6609, %v6545
      %v6658 = vadd.f32 %v6610, %v6548
      %v6659 = vadd.f32 %v6611, %v6553
      %v6660 = vadd.f32 %v6612, %v6556
      %v6661 = vadd.f32 %v6613, %v6561
      %v6662 = vadd.f32 %v6614, %v6564
      %6663 = vst [vmem:[#allocation3] sm:$0xff] %v6615
      %6664 = vst [vmem:[#allocation3 + $0x8] sm:$0xff] %v6616
      %6665 = vst [vmem:[#allocation3 + $0x10] sm:$0xff] %v6617
      %6666 = vst [vmem:[#allocation3 + $0x18] sm:$0xff] %v6618
      %6667 = vst [vmem:[#allocation3 + $0x20] sm:$0xff] %v6619
      %6668 = vst [vmem:[#allocation3 + $0x28] sm:$0xff] %v6620
      %6669 = vst [vmem:[#allocation3 + $0x30] sm:$0xff] %v6621
      %6670 = vst [vmem:[#allocation3 + $0x38] sm:$0xff] %v6622
      %6671 = vst [vmem:[#allocation3 + $0x40] sm:$0xff] %v6623
      %6672 = vst [vmem:[#allocation3 + $0x48] sm:$0xff] %v6624
      %6673 = vst [vmem:[#allocation3 + $0x50] sm:$0xff] %v6625
      %6674 = vst [vmem:[#allocation3 + $0x58] sm:$0xff] %v6626
      %6675 = vst [vmem:[#allocation3 + $0x60] sm:$0xff] %v6627
      %6676 = vst [vmem:[#allocation3 + $0x68] sm:$0xff] %v6628
      %6677 = vst [vmem:[#allocation3 + $0x70] sm:$0xff] %v6629
      %6678 = vst [vmem:[#allocation3 + $0x78] sm:$0xff] %v6630
      %6679 = vst [vmem:[#allocation3 + $0x80] sm:$0xff] %v6631
      %6680 = vst [vmem:[#allocation3 + $0x88] sm:$0xff] %v6632
      %6681 = vst [vmem:[#allocation3 + $0x90] sm:$0xff] %v6633
      %6682 = vst [vmem:[#allocation3 + $0x98] sm:$0xff] %v6634
      %6683 = vst [vmem:[#allocation3 + $0xa0] sm:$0xff] %v6635
      %6684 = vst [vmem:[#allocation3 + $0xa8] sm:$0xff] %v6636
      %6685 = vst [vmem:[#allocation3 + $0xb0] sm:$0xff] %v6637
      %6686 = vst [vmem:[#allocation3 + $0xb8] sm:$0xff] %v6638
      %6687 = vst [vmem:[#allocation3 + $0xc0] sm:$0xff] %v6639
      %6688 = vst [vmem:[#allocation3 + $0xc8] sm:$0xff] %v6640
      %6689 = vst [vmem:[#allocation3 + $0xd0] sm:$0xff] %v6641
      %6690 = vst [vmem:[#allocation3 + $0xd8] sm:$0xff] %v6642
      %6691 = vst [vmem:[#allocation3 + $0xe0] sm:$0xff] %v6643
      %6692 = vst [vmem:[#allocation3 + $0xe8] sm:$0xff] %v6644
      %6693 = vst [vmem:[#allocation3 + $0xf0] sm:$0xff] %v6645
      %6694 = vst [vmem:[#allocation3 + $0xf8] sm:$0xff] %v6646
      %6695 = vst [vmem:[#allocation3 + $0x100] sm:$0xff] %v6647
      %6696 = vst [vmem:[#allocation3 + $0x108] sm:$0xff] %v6648
      %6697 = vst [vmem:[#allocation3 + $0x110] sm:$0xff] %v6649
      %6698 = vst [vmem:[#allocation3 + $0x118] sm:$0xff] %v6650
      %6699 = vst [vmem:[#allocation3 + $0x120] sm:$0xff] %v6651
      %6700 = vst [vmem:[#allocation3 + $0x128] sm:$0xff] %v6652
      %6701 = vst [vmem:[#allocation3 + $0x130] sm:$0xff] %v6653
      %6702 = vst [vmem:[#allocation3 + $0x138] sm:$0xff] %v6654
      %6703 = vst [vmem:[#allocation3 + $0x140] sm:$0xff] %v6655
      %6704 = vst [vmem:[#allocation3 + $0x148] sm:$0xff] %v6656
      %6705 = vst [vmem:[#allocation3 + $0x150] sm:$0xff] %v6657
      %6706 = vst [vmem:[#allocation3 + $0x158] sm:$0xff] %v6658
      %6707 = vst [vmem:[#allocation3 + $0x160] sm:$0xff] %v6659
      %6708 = vst [vmem:[#allocation3 + $0x168] sm:$0xff] %v6660
      %6709 = vst [vmem:[#allocation3 + $0x170] sm:$0xff] %v6661
      %6710 = vst [vmem:[#allocation3 + $0x178] sm:$0xff] %v6662
      %v6711 = vld [vmem:[#allocation2 + $0x18] sm:$0xe]
      %v6712 = vld [vmem:[#allocation2 + $0x1c] sm:$0xf]
      %v6713 = vld [vmem:[#allocation2 + $0x20] sm:$0xf]
      %v6714 = vld [vmem:[#allocation2 + $0x24] sm:$0xf]
      %v6715 = vld [vmem:[#allocation2 + $0x28] sm:$0xf]
      %v6716 = vld [vmem:[#allocation2 + $0x2c] sm:$0xf]
      %v6717 = vld [vmem:[#allocation2 + $0x30] sm:$0xf]
      %v6718 = vld [vmem:[#allocation2 + $0x34] sm:$0xf]
      %v6719 = vld [vmem:[#allocation2 + $0x38] sm:$0xf]
      %v6720 = vld [vmem:[#allocation2 + $0x3c] sm:$0xf]
      %v6721 = vld [vmem:[#allocation2 + $0x40] sm:$0xf]
      %v6722 = vld [vmem:[#allocation2 + $0x44] sm:$0xf]
      %v6723 = vld [vmem:[#allocation2 + $0x48] sm:$0xf]
      %v6724 = vld [vmem:[#allocation2 + $0x4c] sm:$0xf]
      %v6725 = vld [vmem:[#allocation2 + $0x50] sm:$0xf]
      %v6726 = vld [vmem:[#allocation2 + $0x54] sm:$0xf]
      %v6727 = vld [vmem:[#allocation2 + $0x58] sm:$0xf]
      %v6728 = vld [vmem:[#allocation2 + $0x5c] sm:$0xf]
      %v6729 = vld [vmem:[#allocation2 + $0x60] sm:$0xf]
      %v6730 = vld [vmem:[#allocation2 + $0x64] sm:$0xf]
      %v6731 = vld [vmem:[#allocation2 + $0x68] sm:$0xf]
      %v6732 = vld [vmem:[#allocation2 + $0x6c] sm:$0xf]
      %v6733 = vld [vmem:[#allocation2 + $0x70] sm:$0xf]
      %v6734 = vld [vmem:[#allocation2 + $0x74] sm:$0xf]
      %v6735 = vld [vmem:[#allocation2 + $0x78] sm:$0xf]
      %v6736 = vld [vmem:[#allocation2 + $0x7c] sm:$0xf]
      %v6737 = vld [vmem:[#allocation2 + $0x80] sm:$0xf]
      %v6738 = vld [vmem:[#allocation2 + $0x84] sm:$0xf]
      %v6739 = vld [vmem:[#allocation2 + $0x88] sm:$0xf]
      %v6740 = vld [vmem:[#allocation2 + $0x8c] sm:$0xf]
      %v6741 = vld [vmem:[#allocation2 + $0x90] sm:$0xf]
      %v6742 = vld [vmem:[#allocation2 + $0x94] sm:$0xf]
      %v6743 = vld [vmem:[#allocation2 + $0x98] sm:$0xf]
      %v6744 = vld [vmem:[#allocation2 + $0x9c] sm:$0xf]
      %v6745 = vld [vmem:[#allocation2 + $0xa0] sm:$0xf]
      %v6746 = vld [vmem:[#allocation2 + $0xa4] sm:$0xf]
      %v6747 = vld [vmem:[#allocation2 + $0xa8] sm:$0xf]
      %v6748 = vld [vmem:[#allocation2 + $0xac] sm:$0xf]
      %v6749 = vld [vmem:[#allocation2 + $0xb0] sm:$0xf]
      %v6750 = vld [vmem:[#allocation2 + $0xb4] sm:$0xf]
      %v6751 = vld [vmem:[#allocation2 + $0xb8] sm:$0xf]
      %v6752 = vld [vmem:[#allocation2 + $0xbc] sm:$0xf]
      %v6753 = vld [vmem:[#allocation2 + $0xc0] sm:$0xf]
      %v6754 = vld [vmem:[#allocation2 + $0xc4] sm:$0xf]
      %v6755 = vld [vmem:[#allocation2 + $0xc8] sm:$0xf]
      %v6756 = vld [vmem:[#allocation2 + $0xcc] sm:$0xf]
      %v6757 = vld [vmem:[#allocation2 + $0xd0] sm:$0xf]
      %v6758 = vld [vmem:[#allocation2 + $0xd4] sm:$0xf]
      %v6759 = vld [vmem:[#allocation2 + $0xd8] sm:$0x1]
      %s6760 = scalar_lea.vmem %s4, 512
      %v6761 = vld [vmem:[%s6760] sm:$0xf]
      %v6762 = vld [vmem:[%s6760 + $0x4] sm:$0xf]
      %v6763 = vld [vmem:[%s6760 + $0x8] sm:$0xf]
      %v6764 = vld [vmem:[%s6760 + $0xc] sm:$0xf]
      %v6765 = vld [vmem:[%s6760 + $0x10] sm:$0xf]
      %v6766 = vld [vmem:[%s6760 + $0x14] sm:$0xf]
      %v6767 = vld [vmem:[%s6760 + $0x18] sm:$0xf]
      %v6768 = vld [vmem:[%s6760 + $0x1c] sm:$0xf]
      %v6769 = vld [vmem:[%s6760 + $0x20] sm:$0xf]
      %v6770 = vld [vmem:[%s6760 + $0x24] sm:$0xf]
      %v6771 = vld [vmem:[%s6760 + $0x28] sm:$0xf]
      %v6772 = vld [vmem:[%s6760 + $0x2c] sm:$0xf]
      %v6773 = vld [vmem:[%s6760 + $0x30] sm:$0xf]
      %v6774 = vld [vmem:[%s6760 + $0x34] sm:$0xf]
      %v6775 = vld [vmem:[%s6760 + $0x38] sm:$0xf]
      %v6776 = vld [vmem:[%s6760 + $0x3c] sm:$0xf]
      %v6826 = vunpack.c.l.b16 %v6711
      %v6827 = vunpack.c.l.b16 %v6712
      %v6828 = vunpack.c.l.b16 %v6713
      %v6829 = vunpack.c.l.b16 %v6714
      %v6830 = vunpack.c.l.b16 %v6715
      %v6831 = vunpack.c.l.b16 %v6716
      %v6832 = vunpack.c.l.b16 %v6717
      %v6833 = vunpack.c.l.b16 %v6718
      %v6834 = vunpack.c.l.b16 %v6719
      %v6835 = vunpack.c.l.b16 %v6720
      %v6836 = vunpack.c.l.b16 %v6721
      %v6837 = vunpack.c.l.b16 %v6722
      %v6838 = vunpack.c.l.b16 %v6723
      %v6839 = vunpack.c.l.b16 %v6724
      %v6840 = vunpack.c.l.b16 %v6725
      %v6841 = vunpack.c.l.b16 %v6726
      %v6842 = vunpack.c.l.b16 %v6727
      %v6843 = vunpack.c.l.b16 %v6728
      %v6844 = vunpack.c.l.b16 %v6729
      %v6845 = vunpack.c.l.b16 %v6730
      %v6846 = vunpack.c.l.b16 %v6731
      %v6847 = vunpack.c.l.b16 %v6732
      %v6848 = vunpack.c.l.b16 %v6733
      %v6849 = vunpack.c.l.b16 %v6734
      %v6850 = vunpack.c.l.b16 %v6735
      %v6851 = vunpack.c.l.b16 %v6736
      %v6852 = vunpack.c.l.b16 %v6737
      %v6853 = vunpack.c.l.b16 %v6738
      %v6854 = vunpack.c.l.b16 %v6739
      %v6855 = vunpack.c.l.b16 %v6740
      %v6856 = vunpack.c.l.b16 %v6741
      %v6857 = vunpack.c.l.b16 %v6742
      %v6858 = vunpack.c.l.b16 %v6743
      %v6859 = vunpack.c.l.b16 %v6744
      %v6860 = vunpack.c.l.b16 %v6745
      %v6861 = vunpack.c.l.b16 %v6746
      %v6862 = vunpack.c.l.b16 %v6747
      %v6863 = vunpack.c.l.b16 %v6748
      %v6864 = vunpack.c.l.b16 %v6749
      %v6865 = vunpack.c.l.b16 %v6750
      %v6866 = vunpack.c.l.b16 %v6751
      %v6867 = vunpack.c.l.b16 %v6752
      %v6868 = vunpack.c.l.b16 %v6753
      %v6869 = vunpack.c.l.b16 %v6754
      %v6870 = vunpack.c.l.b16 %v6755
      %v6871 = vunpack.c.l.b16 %v6756
      %v6872 = vunpack.c.l.b16 %v6757
      %v6873 = vunpack.c.l.b16 %v6758
      %v6874 = vunpack.c.l.b16 %v6759
      %v6875 = vpack.c.b16 %v6827, %v6826
      %v6876 = vpack.c.b16 %v6829, %v6828
      %v6877 = vpack.c.b16 %v6831, %v6830
      %v6878 = vpack.c.b16 %v6833, %v6832
      %v6879 = vpack.c.b16 %v6835, %v6834
      %v6880 = vpack.c.b16 %v6837, %v6836
      %v6881 = vpack.c.b16 %v6839, %v6838
      %v6882 = vpack.c.b16 %v6841, %v6840
      %v6883 = vpack.c.b16 %v6843, %v6842
      %v6884 = vpack.c.b16 %v6845, %v6844
      %v6885 = vpack.c.b16 %v6847, %v6846
      %v6886 = vpack.c.b16 %v6849, %v6848
      %v6887 = vpack.c.b16 %v6851, %v6850
      %v6888 = vpack.c.b16 %v6853, %v6852
      %v6889 = vpack.c.b16 %v6855, %v6854
      %v6890 = vpack.c.b16 %v6857, %v6856
      %v6891 = vpack.c.b16 %v6859, %v6858
      %v6892 = vpack.c.b16 %v6861, %v6860
      %v6893 = vpack.c.b16 %v6863, %v6862
      %v6894 = vpack.c.b16 %v6865, %v6864
      %v6895 = vpack.c.b16 %v6867, %v6866
      %v6896 = vpack.c.b16 %v6869, %v6868
      %v6897 = vpack.c.b16 %v6871, %v6870
      %v6898 = vpack.c.b16 %v6873, %v6872
      %v6899 = vpack.c.b16 %v6874, %v6874
      %v6900 = vrot.slane %v6875, 1
      %v6901 = vrot.slane %v6876, 1
      %v6902 = vsel %vm2637, %v6900, %v6901
      %v6903 = vrot.slane %v6877, 1
      %v6904 = vsel %vm2637, %v6901, %v6903
      %v6905 = vrot.slane %v6878, 1
      %v6906 = vsel %vm2637, %v6903, %v6905
      %v6907 = vrot.slane %v6879, 1
      %v6908 = vsel %vm2637, %v6905, %v6907
      %v6909 = vrot.slane %v6880, 1
      %v6910 = vsel %vm2637, %v6907, %v6909
      %v6911 = vrot.slane %v6881, 1
      %v6912 = vsel %vm2637, %v6909, %v6911
      %v6913 = vrot.slane %v6882, 1
      %v6914 = vsel %vm2637, %v6911, %v6913
      %v6915 = vrot.slane %v6883, 1
      %v6916 = vsel %vm2637, %v6913, %v6915
      %v6917 = vrot.slane %v6884, 1
      %v6918 = vsel %vm2637, %v6915, %v6917
      %v6919 = vrot.slane %v6885, 1
      %v6920 = vsel %vm2637, %v6917, %v6919
      %v6921 = vrot.slane %v6886, 1
      %v6922 = vsel %vm2637, %v6919, %v6921
      %v6923 = vrot.slane %v6887, 1
      %v6924 = vsel %vm2637, %v6921, %v6923
      %v6925 = vrot.slane %v6888, 1
      %v6926 = vsel %vm2637, %v6923, %v6925
      %v6927 = vrot.slane %v6889, 1
      %v6928 = vsel %vm2637, %v6925, %v6927
      %v6929 = vrot.slane %v6890, 1
      %v6930 = vsel %vm2637, %v6927, %v6929
      %v6931 = vrot.slane %v6891, 1
      %v6932 = vsel %vm2637, %v6929, %v6931
      %v6933 = vrot.slane %v6892, 1
      %v6934 = vsel %vm2637, %v6931, %v6933
      %v6935 = vrot.slane %v6893, 1
      %v6936 = vsel %vm2637, %v6933, %v6935
      %v6937 = vrot.slane %v6894, 1
      %v6938 = vsel %vm2637, %v6935, %v6937
      %v6939 = vrot.slane %v6895, 1
      %v6940 = vsel %vm2637, %v6937, %v6939
      %v6941 = vrot.slane %v6896, 1
      %v6942 = vsel %vm2637, %v6939, %v6941
      %v6943 = vrot.slane %v6897, 1
      %v6944 = vsel %vm2637, %v6941, %v6943
      %v6945 = vrot.slane %v6898, 1
      %v6946 = vsel %vm2637, %v6943, %v6945
      %v6947 = vrot.slane %v6899, 1
      %v6948 = vsel %vm2637, %v6945, %v6947
      %v6989 = vunpack.c.l.b16 %v6761
      %v6990 = vunpack.c.l.b16 %v6762
      %v6991 = vunpack.c.l.b16 %v6763
      %v6992 = vunpack.c.l.b16 %v6764
      %v6993 = vunpack.c.l.b16 %v6765
      %v6994 = vunpack.c.l.b16 %v6766
      %v6995 = vunpack.c.l.b16 %v6767
      %v6996 = vunpack.c.l.b16 %v6768
      %v6997 = vunpack.c.l.b16 %v6769
      %v6998 = vunpack.c.l.b16 %v6770
      %v6999 = vunpack.c.l.b16 %v6771
      %v7000 = vunpack.c.l.b16 %v6772
      %v7001 = vunpack.c.l.b16 %v6773
      %v7002 = vunpack.c.l.b16 %v6774
      %v7003 = vunpack.c.l.b16 %v6775
      %v7004 = vunpack.c.l.b16 %v6776
      %v7005 = vpack.c.b16 %v6990, %v6989
      %v7006 = vpack.c.b16 %v6992, %v6991
      %v7007 = vpack.c.b16 %v6994, %v6993
      %v7008 = vpack.c.b16 %v6996, %v6995
      %v7009 = vpack.c.b16 %v6998, %v6997
      %v7010 = vpack.c.b16 %v7000, %v6999
      %v7011 = vpack.c.b16 %v7002, %v7001
      %v7012 = vpack.c.b16 %v7004, %v7003
      %7021 = vmatprep.subr.bf16.mxu0 0
      %7022 = vmatpush1.bf16.msra.mxu0 %v7012
      %7023 = vmatprep.subr.bf16.mxu0 0
      %7024 = vmatpush1.bf16.msra.mxu0 %v7011
      %7025 = vmatprep.subr.bf16.mxu0 0
      %7026 = vmatpush1.bf16.msra.mxu0 %v7010
      %7027 = vmatprep.subr.bf16.mxu0 0
      %7028 = vmatpush1.bf16.msra.mxu0 %v7009
      %7029 = vmatprep.subr.bf16.mxu0 0
      %7030 = vmatpush1.bf16.msra.mxu0 %v7008
      %7031 = vmatprep.subr.bf16.mxu0 0
      %7032 = vmatpush1.bf16.msra.mxu0 %v7007
      %7033 = vmatprep.subr.bf16.mxu0 0
      %7034 = vmatpush1.bf16.msra.mxu0 %v7006
      %7035 = vmatprep.subr.bf16.mxu0 0
      %7036 = vmatpush1.bf16.msra.mxu0 %v7005
      %7037 = vmatprep.subr.bf16.mxu0 0
      %7038 = vmatpush2.bf16.msra.mxu0 0
      %7039 = vmatprep.subr.bf16.mxu0 0
      %7040 = vmatpush2.bf16.msra.mxu0 0
      %7041 = vmatprep.subr.bf16.mxu0 0
      %7042 = vmatpush2.bf16.msra.mxu0 0
      %7043 = vmatprep.subr.bf16.mxu0 0
      %7044 = vmatpush2.bf16.msra.mxu0 0
      %7045 = vmatprep.subr.bf16.mxu0 0
      %7046 = vmatpush2.bf16.msra.mxu0 0
      %7047 = vmatprep.subr.bf16.mxu0 0
      %7048 = vmatpush2.bf16.msra.mxu0 0
      %7049 = vmatprep.subr.bf16.mxu0 0
      %7050 = vmatpush2.bf16.msra.mxu0 0
      %7051 = vmatprep.subr.bf16.mxu0 0
      %7052 = vmatpush2.bf16.msra.mxu0 0
      %7053 = vmatprep.mubr.bf16.mxu0 0
      %7054 = vmatmul.mubr.bf16.gmra.mxu0 %v6902
      %v7055 = vpop.f32.mrf.mxu0
      %v7056 = vadd.f32 0.0, %v7055
      %v7057 = vpop.f32.mrf.mxu0
      %v7058 = vpop.f32.mrf.mxu0
      %v7059 = vadd.f32 0.0, %v7058
      %v7060 = vpop.f32.mrf.mxu0
      %7061 = vmatprep.mubr.bf16.mxu0 0
      %7062 = vmatmul.mubr.bf16.gmra.mxu0 %v6904
      %v7063 = vpop.f32.mrf.mxu0
      %v7064 = vadd.f32 0.0, %v7063
      %v7065 = vpop.f32.mrf.mxu0
      %v7066 = vpop.f32.mrf.mxu0
      %v7067 = vadd.f32 0.0, %v7066
      %v7068 = vpop.f32.mrf.mxu0
      %7069 = vmatprep.mubr.bf16.mxu0 0
      %7070 = vmatmul.mubr.bf16.gmra.mxu0 %v6906
      %v7071 = vpop.f32.mrf.mxu0
      %v7072 = vadd.f32 0.0, %v7071
      %v7073 = vpop.f32.mrf.mxu0
      %v7074 = vpop.f32.mrf.mxu0
      %v7075 = vadd.f32 0.0, %v7074
      %v7076 = vpop.f32.mrf.mxu0
      %7077 = vmatprep.mubr.bf16.mxu0 0
      %7078 = vmatmul.mubr.bf16.gmra.mxu0 %v6908
      %v7079 = vpop.f32.mrf.mxu0
      %v7080 = vadd.f32 0.0, %v7079
      %v7081 = vpop.f32.mrf.mxu0
      %v7082 = vpop.f32.mrf.mxu0
      %v7083 = vadd.f32 0.0, %v7082
      %v7084 = vpop.f32.mrf.mxu0
      %7085 = vmatprep.mubr.bf16.mxu0 0
      %7086 = vmatmul.mubr.bf16.gmra.mxu0 %v6910
      %v7087 = vpop.f32.mrf.mxu0
      %v7088 = vadd.f32 0.0, %v7087
      %v7089 = vpop.f32.mrf.mxu0
      %v7090 = vpop.f32.mrf.mxu0
      %v7091 = vadd.f32 0.0, %v7090
      %v7092 = vpop.f32.mrf.mxu0
      %7093 = vmatprep.mubr.bf16.mxu0 0
      %7094 = vmatmul.mubr.bf16.gmra.mxu0 %v6912
      %v7095 = vpop.f32.mrf.mxu0
      %v7096 = vadd.f32 0.0, %v7095
      %v7097 = vpop.f32.mrf.mxu0
      %v7098 = vpop.f32.mrf.mxu0
      %v7099 = vadd.f32 0.0, %v7098
      %v7100 = vpop.f32.mrf.mxu0
      %7101 = vmatprep.mubr.bf16.mxu0 0
      %7102 = vmatmul.mubr.bf16.gmra.mxu0 %v6914
      %v7103 = vpop.f32.mrf.mxu0
      %v7104 = vadd.f32 0.0, %v7103
      %v7105 = vpop.f32.mrf.mxu0
      %v7106 = vpop.f32.mrf.mxu0
      %v7107 = vadd.f32 0.0, %v7106
      %v7108 = vpop.f32.mrf.mxu0
      %7109 = vmatprep.mubr.bf16.mxu0 0
      %7110 = vmatmul.mubr.bf16.gmra.mxu0 %v6916
      %v7111 = vpop.f32.mrf.mxu0
      %v7112 = vadd.f32 0.0, %v7111
      %v7113 = vpop.f32.mrf.mxu0
      %v7114 = vpop.f32.mrf.mxu0
      %v7115 = vadd.f32 0.0, %v7114
      %v7116 = vpop.f32.mrf.mxu0
      %7117 = vmatprep.mubr.bf16.mxu0 0
      %7118 = vmatmul.mubr.bf16.gmra.mxu0 %v6918
      %v7119 = vpop.f32.mrf.mxu0
      %v7120 = vadd.f32 0.0, %v7119
      %v7121 = vpop.f32.mrf.mxu0
      %v7122 = vpop.f32.mrf.mxu0
      %v7123 = vadd.f32 0.0, %v7122
      %v7124 = vpop.f32.mrf.mxu0
      %7125 = vmatprep.mubr.bf16.mxu0 0
      %7126 = vmatmul.mubr.bf16.gmra.mxu0 %v6920
      %v7127 = vpop.f32.mrf.mxu0
      %v7128 = vadd.f32 0.0, %v7127
      %v7129 = vpop.f32.mrf.mxu0
      %v7130 = vpop.f32.mrf.mxu0
      %v7131 = vadd.f32 0.0, %v7130
      %v7132 = vpop.f32.mrf.mxu0
      %7133 = vmatprep.mubr.bf16.mxu0 0
      %7134 = vmatmul.mubr.bf16.gmra.mxu0 %v6922
      %v7135 = vpop.f32.mrf.mxu0
      %v7136 = vadd.f32 0.0, %v7135
      %v7137 = vpop.f32.mrf.mxu0
      %v7138 = vpop.f32.mrf.mxu0
      %v7139 = vadd.f32 0.0, %v7138
      %v7140 = vpop.f32.mrf.mxu0
      %7141 = vmatprep.mubr.bf16.mxu0 0
      %7142 = vmatmul.mubr.bf16.gmra.mxu0 %v6924
      %v7143 = vpop.f32.mrf.mxu0
      %v7144 = vadd.f32 0.0, %v7143
      %v7145 = vpop.f32.mrf.mxu0
      %v7146 = vpop.f32.mrf.mxu0
      %v7147 = vadd.f32 0.0, %v7146
      %v7148 = vpop.f32.mrf.mxu0
      %7149 = vmatprep.mubr.bf16.mxu0 0
      %7150 = vmatmul.mubr.bf16.gmra.mxu0 %v6926
      %v7151 = vpop.f32.mrf.mxu0
      %v7152 = vadd.f32 0.0, %v7151
      %v7153 = vpop.f32.mrf.mxu0
      %v7154 = vpop.f32.mrf.mxu0
      %v7155 = vadd.f32 0.0, %v7154
      %v7156 = vpop.f32.mrf.mxu0
      %7157 = vmatprep.mubr.bf16.mxu0 0
      %7158 = vmatmul.mubr.bf16.gmra.mxu0 %v6928
      %v7159 = vpop.f32.mrf.mxu0
      %v7160 = vadd.f32 0.0, %v7159
      %v7161 = vpop.f32.mrf.mxu0
      %v7162 = vpop.f32.mrf.mxu0
      %v7163 = vadd.f32 0.0, %v7162
      %v7164 = vpop.f32.mrf.mxu0
      %7165 = vmatprep.mubr.bf16.mxu0 0
      %7166 = vmatmul.mubr.bf16.gmra.mxu0 %v6930
      %v7167 = vpop.f32.mrf.mxu0
      %v7168 = vadd.f32 0.0, %v7167
      %v7169 = vpop.f32.mrf.mxu0
      %v7170 = vpop.f32.mrf.mxu0
      %v7171 = vadd.f32 0.0, %v7170
      %v7172 = vpop.f32.mrf.mxu0
      %7173 = vmatprep.mubr.bf16.mxu0 0
      %7174 = vmatmul.mubr.bf16.gmra.mxu0 %v6932
      %v7175 = vpop.f32.mrf.mxu0
      %v7176 = vadd.f32 0.0, %v7175
      %v7177 = vpop.f32.mrf.mxu0
      %v7178 = vpop.f32.mrf.mxu0
      %v7179 = vadd.f32 0.0, %v7178
      %v7180 = vpop.f32.mrf.mxu0
      %7181 = vmatprep.mubr.bf16.mxu0 0
      %7182 = vmatmul.mubr.bf16.gmra.mxu0 %v6934
      %v7183 = vpop.f32.mrf.mxu0
      %v7184 = vadd.f32 0.0, %v7183
      %v7185 = vpop.f32.mrf.mxu0
      %v7186 = vpop.f32.mrf.mxu0
      %v7187 = vadd.f32 0.0, %v7186
      %v7188 = vpop.f32.mrf.mxu0
      %7189 = vmatprep.mubr.bf16.mxu0 0
      %7190 = vmatmul.mubr.bf16.gmra.mxu0 %v6936
      %v7191 = vpop.f32.mrf.mxu0
      %v7192 = vadd.f32 0.0, %v7191
      %v7193 = vpop.f32.mrf.mxu0
      %v7194 = vpop.f32.mrf.mxu0
      %v7195 = vadd.f32 0.0, %v7194
      %v7196 = vpop.f32.mrf.mxu0
      %7197 = vmatprep.mubr.bf16.mxu0 0
      %7198 = vmatmul.mubr.bf16.gmra.mxu0 %v6938
      %v7199 = vpop.f32.mrf.mxu0
      %v7200 = vadd.f32 0.0, %v7199
      %v7201 = vpop.f32.mrf.mxu0
      %v7202 = vpop.f32.mrf.mxu0
      %v7203 = vadd.f32 0.0, %v7202
      %v7204 = vpop.f32.mrf.mxu0
      %7205 = vmatprep.mubr.bf16.mxu0 0
      %7206 = vmatmul.mubr.bf16.gmra.mxu0 %v6940
      %v7207 = vpop.f32.mrf.mxu0
      %v7208 = vadd.f32 0.0, %v7207
      %v7209 = vpop.f32.mrf.mxu0
      %v7210 = vpop.f32.mrf.mxu0
      %v7211 = vadd.f32 0.0, %v7210
      %v7212 = vpop.f32.mrf.mxu0
      %7213 = vmatprep.mubr.bf16.mxu0 0
      %7214 = vmatmul.mubr.bf16.gmra.mxu0 %v6942
      %v7215 = vpop.f32.mrf.mxu0
      %v7216 = vadd.f32 0.0, %v7215
      %v7217 = vpop.f32.mrf.mxu0
      %v7218 = vpop.f32.mrf.mxu0
      %v7219 = vadd.f32 0.0, %v7218
      %v7220 = vpop.f32.mrf.mxu0
      %7221 = vmatprep.mubr.bf16.mxu0 0
      %7222 = vmatmul.mubr.bf16.gmra.mxu0 %v6944
      %v7223 = vpop.f32.mrf.mxu0
      %v7224 = vadd.f32 0.0, %v7223
      %v7225 = vpop.f32.mrf.mxu0
      %v7226 = vpop.f32.mrf.mxu0
      %v7227 = vadd.f32 0.0, %v7226
      %v7228 = vpop.f32.mrf.mxu0
      %7229 = vmatprep.mubr.bf16.mxu0 0
      %7230 = vmatmul.mubr.bf16.gmra.mxu0 %v6946
      %v7231 = vpop.f32.mrf.mxu0
      %v7232 = vadd.f32 0.0, %v7231
      %v7233 = vpop.f32.mrf.mxu0
      %v7234 = vpop.f32.mrf.mxu0
      %v7235 = vadd.f32 0.0, %v7234
      %v7236 = vpop.f32.mrf.mxu0
      %7237 = vmatprep.mubr.bf16.mxu0 0
      %7238 = vmatmul.mubr.bf16.gmra.mxu0 %v6948
      %v7239 = vpop.f32.mrf.mxu0
      %v7240 = vadd.f32 0.0, %v7239
      %v7241 = vpop.f32.mrf.mxu0
      %v7242 = vpop.f32.mrf.mxu0
      %v7243 = vadd.f32 0.0, %v7242
      %v7244 = vpop.f32.mrf.mxu0
      %7245 = vdwg.mxu0
      %v7246 = vld [vmem:[#allocation3] sm:$0xff]
      %v7247 = vld [vmem:[#allocation3 + $0x8] sm:$0xff]
      %v7248 = vld [vmem:[#allocation3 + $0x10] sm:$0xff]
      %v7249 = vld [vmem:[#allocation3 + $0x18] sm:$0xff]
      %v7250 = vld [vmem:[#allocation3 + $0x20] sm:$0xff]
      %v7251 = vld [vmem:[#allocation3 + $0x28] sm:$0xff]
      %v7252 = vld [vmem:[#allocation3 + $0x30] sm:$0xff]
      %v7253 = vld [vmem:[#allocation3 + $0x38] sm:$0xff]
      %v7254 = vld [vmem:[#allocation3 + $0x40] sm:$0xff]
      %v7255 = vld [vmem:[#allocation3 + $0x48] sm:$0xff]
      %v7256 = vld [vmem:[#allocation3 + $0x50] sm:$0xff]
      %v7257 = vld [vmem:[#allocation3 + $0x58] sm:$0xff]
      %v7258 = vld [vmem:[#allocation3 + $0x60] sm:$0xff]
      %v7259 = vld [vmem:[#allocation3 + $0x68] sm:$0xff]
      %v7260 = vld [vmem:[#allocation3 + $0x70] sm:$0xff]
      %v7261 = vld [vmem:[#allocation3 + $0x78] sm:$0xff]
      %v7262 = vld [vmem:[#allocation3 + $0x80] sm:$0xff]
      %v7263 = vld [vmem:[#allocation3 + $0x88] sm:$0xff]
      %v7264 = vld [vmem:[#allocation3 + $0x90] sm:$0xff]
      %v7265 = vld [vmem:[#allocation3 + $0x98] sm:$0xff]
      %v7266 = vld [vmem:[#allocation3 + $0xa0] sm:$0xff]
      %v7267 = vld [vmem:[#allocation3 + $0xa8] sm:$0xff]
      %v7268 = vld [vmem:[#allocation3 + $0xb0] sm:$0xff]
      %v7269 = vld [vmem:[#allocation3 + $0xb8] sm:$0xff]
      %v7270 = vld [vmem:[#allocation3 + $0xc0] sm:$0xff]
      %v7271 = vld [vmem:[#allocation3 + $0xc8] sm:$0xff]
      %v7272 = vld [vmem:[#allocation3 + $0xd0] sm:$0xff]
      %v7273 = vld [vmem:[#allocation3 + $0xd8] sm:$0xff]
      %v7274 = vld [vmem:[#allocation3 + $0xe0] sm:$0xff]
      %v7275 = vld [vmem:[#allocation3 + $0xe8] sm:$0xff]
      %v7276 = vld [vmem:[#allocation3 + $0xf0] sm:$0xff]
      %v7277 = vld [vmem:[#allocation3 + $0xf8] sm:$0xff]
      %v7278 = vld [vmem:[#allocation3 + $0x100] sm:$0xff]
      %v7279 = vld [vmem:[#allocation3 + $0x108] sm:$0xff]
      %v7280 = vld [vmem:[#allocation3 + $0x110] sm:$0xff]
      %v7281 = vld [vmem:[#allocation3 + $0x118] sm:$0xff]
      %v7282 = vld [vmem:[#allocation3 + $0x120] sm:$0xff]
      %v7283 = vld [vmem:[#allocation3 + $0x128] sm:$0xff]
      %v7284 = vld [vmem:[#allocation3 + $0x130] sm:$0xff]
      %v7285 = vld [vmem:[#allocation3 + $0x138] sm:$0xff]
      %v7286 = vld [vmem:[#allocation3 + $0x140] sm:$0xff]
      %v7287 = vld [vmem:[#allocation3 + $0x148] sm:$0xff]
      %v7288 = vld [vmem:[#allocation3 + $0x150] sm:$0xff]
      %v7289 = vld [vmem:[#allocation3 + $0x158] sm:$0xff]
      %v7290 = vld [vmem:[#allocation3 + $0x160] sm:$0xff]
      %v7291 = vld [vmem:[#allocation3 + $0x168] sm:$0xff]
      %v7292 = vld [vmem:[#allocation3 + $0x170] sm:$0xff]
      %v7293 = vld [vmem:[#allocation3 + $0x178] sm:$0xff]
      %v7294 = vadd.f32 %v7246, %v7056
      %v7295 = vadd.f32 %v7247, %v7059
      %v7296 = vadd.f32 %v7248, %v7064
      %v7297 = vadd.f32 %v7249, %v7067
      %v7298 = vadd.f32 %v7250, %v7072
      %v7299 = vadd.f32 %v7251, %v7075
      %v7300 = vadd.f32 %v7252, %v7080
      %v7301 = vadd.f32 %v7253, %v7083
      %v7302 = vadd.f32 %v7254, %v7088
      %v7303 = vadd.f32 %v7255, %v7091
      %v7304 = vadd.f32 %v7256, %v7096
      %v7305 = vadd.f32 %v7257, %v7099
      %v7306 = vadd.f32 %v7258, %v7104
      %v7307 = vadd.f32 %v7259, %v7107
      %v7308 = vadd.f32 %v7260, %v7112
      %v7309 = vadd.f32 %v7261, %v7115
      %v7310 = vadd.f32 %v7262, %v7120
      %v7311 = vadd.f32 %v7263, %v7123
      %v7312 = vadd.f32 %v7264, %v7128
      %v7313 = vadd.f32 %v7265, %v7131
      %v7314 = vadd.f32 %v7266, %v7136
      %v7315 = vadd.f32 %v7267, %v7139
      %v7316 = vadd.f32 %v7268, %v7144
      %v7317 = vadd.f32 %v7269, %v7147
      %v7318 = vadd.f32 %v7270, %v7152
      %v7319 = vadd.f32 %v7271, %v7155
      %v7320 = vadd.f32 %v7272, %v7160
      %v7321 = vadd.f32 %v7273, %v7163
      %v7322 = vadd.f32 %v7274, %v7168
      %v7323 = vadd.f32 %v7275, %v7171
      %v7324 = vadd.f32 %v7276, %v7176
      %v7325 = vadd.f32 %v7277, %v7179
      %v7326 = vadd.f32 %v7278, %v7184
      %v7327 = vadd.f32 %v7279, %v7187
      %v7328 = vadd.f32 %v7280, %v7192
      %v7329 = vadd.f32 %v7281, %v7195
      %v7330 = vadd.f32 %v7282, %v7200
      %v7331 = vadd.f32 %v7283, %v7203
      %v7332 = vadd.f32 %v7284, %v7208
      %v7333 = vadd.f32 %v7285, %v7211
      %v7334 = vadd.f32 %v7286, %v7216
      %v7335 = vadd.f32 %v7287, %v7219
      %v7336 = vadd.f32 %v7288, %v7224
      %v7337 = vadd.f32 %v7289, %v7227
      %v7338 = vadd.f32 %v7290, %v7232
      %v7339 = vadd.f32 %v7291, %v7235
      %v7340 = vadd.f32 %v7292, %v7240
      %v7341 = vadd.f32 %v7293, %v7243
      %7342 = vst [vmem:[#allocation3] sm:$0xff] %v7294
      %7343 = vst [vmem:[#allocation3 + $0x8] sm:$0xff] %v7295
      %7344 = vst [vmem:[#allocation3 + $0x10] sm:$0xff] %v7296
      %7345 = vst [vmem:[#allocation3 + $0x18] sm:$0xff] %v7297
      %7346 = vst [vmem:[#allocation3 + $0x20] sm:$0xff] %v7298
      %7347 = vst [vmem:[#allocation3 + $0x28] sm:$0xff] %v7299
      %7348 = vst [vmem:[#allocation3 + $0x30] sm:$0xff] %v7300
      %7349 = vst [vmem:[#allocation3 + $0x38] sm:$0xff] %v7301
      %7350 = vst [vmem:[#allocation3 + $0x40] sm:$0xff] %v7302
      %7351 = vst [vmem:[#allocation3 + $0x48] sm:$0xff] %v7303
      %7352 = vst [vmem:[#allocation3 + $0x50] sm:$0xff] %v7304
      %7353 = vst [vmem:[#allocation3 + $0x58] sm:$0xff] %v7305
      %7354 = vst [vmem:[#allocation3 + $0x60] sm:$0xff] %v7306
      %7355 = vst [vmem:[#allocation3 + $0x68] sm:$0xff] %v7307
      %7356 = vst [vmem:[#allocation3 + $0x70] sm:$0xff] %v7308
      %7357 = vst [vmem:[#allocation3 + $0x78] sm:$0xff] %v7309
      %7358 = vst [vmem:[#allocation3 + $0x80] sm:$0xff] %v7310
      %7359 = vst [vmem:[#allocation3 + $0x88] sm:$0xff] %v7311
      %7360 = vst [vmem:[#allocation3 + $0x90] sm:$0xff] %v7312
      %7361 = vst [vmem:[#allocation3 + $0x98] sm:$0xff] %v7313
      %7362 = vst [vmem:[#allocation3 + $0xa0] sm:$0xff] %v7314
      %7363 = vst [vmem:[#allocation3 + $0xa8] sm:$0xff] %v7315
      %7364 = vst [vmem:[#allocation3 + $0xb0] sm:$0xff] %v7316
      %7365 = vst [vmem:[#allocation3 + $0xb8] sm:$0xff] %v7317
      %7366 = vst [vmem:[#allocation3 + $0xc0] sm:$0xff] %v7318
      %7367 = vst [vmem:[#allocation3 + $0xc8] sm:$0xff] %v7319
      %7368 = vst [vmem:[#allocation3 + $0xd0] sm:$0xff] %v7320
      %7369 = vst [vmem:[#allocation3 + $0xd8] sm:$0xff] %v7321
      %7370 = vst [vmem:[#allocation3 + $0xe0] sm:$0xff] %v7322
      %7371 = vst [vmem:[#allocation3 + $0xe8] sm:$0xff] %v7323
      %7372 = vst [vmem:[#allocation3 + $0xf0] sm:$0xff] %v7324
      %7373 = vst [vmem:[#allocation3 + $0xf8] sm:$0xff] %v7325
      %7374 = vst [vmem:[#allocation3 + $0x100] sm:$0xff] %v7326
      %7375 = vst [vmem:[#allocation3 + $0x108] sm:$0xff] %v7327
      %7376 = vst [vmem:[#allocation3 + $0x110] sm:$0xff] %v7328
      %7377 = vst [vmem:[#allocation3 + $0x118] sm:$0xff] %v7329
      %7378 = vst [vmem:[#allocation3 + $0x120] sm:$0xff] %v7330
      %7379 = vst [vmem:[#allocation3 + $0x128] sm:$0xff] %v7331
      %7380 = vst [vmem:[#allocation3 + $0x130] sm:$0xff] %v7332
      %7381 = vst [vmem:[#allocation3 + $0x138] sm:$0xff] %v7333
      %7382 = vst [vmem:[#allocation3 + $0x140] sm:$0xff] %v7334
      %7383 = vst [vmem:[#allocation3 + $0x148] sm:$0xff] %v7335
      %7384 = vst [vmem:[#allocation3 + $0x150] sm:$0xff] %v7336
      %7385 = vst [vmem:[#allocation3 + $0x158] sm:$0xff] %v7337
      %7386 = vst [vmem:[#allocation3 + $0x160] sm:$0xff] %v7338
      %7387 = vst [vmem:[#allocation3 + $0x168] sm:$0xff] %v7339
      %7388 = vst [vmem:[#allocation3 + $0x170] sm:$0xff] %v7340
      %7389 = vst [vmem:[#allocation3 + $0x178] sm:$0xff] %v7341
      %v7390 = vld [vmem:[#allocation3] sm:$0xff]
      %v7391 = vld [vmem:[#allocation3 + $0x8] sm:$0xff]
      %v7392 = vld [vmem:[#allocation3 + $0x18] sm:$0xff]
      %v7393 = vld [vmem:[#allocation3 + $0x20] sm:$0xff]
      %v7394 = vld [vmem:[#allocation3 + $0x30] sm:$0xff]
      %v7395 = vld [vmem:[#allocation3 + $0x38] sm:$0xff]
      %v7396 = vld [vmem:[#allocation3 + $0x48] sm:$0xff]
      %v7397 = vld [vmem:[#allocation3 + $0x50] sm:$0xff]
      %v7398 = vld [vmem:[#allocation3 + $0x60] sm:$0xff]
      %v7399 = vld [vmem:[#allocation3 + $0x68] sm:$0xff]
      %v7400 = vld [vmem:[#allocation3 + $0x78] sm:$0xff]
      %v7401 = vld [vmem:[#allocation3 + $0x80] sm:$0xff]
      %v7402 = vld [vmem:[#allocation3 + $0x90] sm:$0xff]
      %v7403 = vld [vmem:[#allocation3 + $0x98] sm:$0xff]
      %v7404 = vld [vmem:[#allocation3 + $0xa8] sm:$0xff]
      %v7405 = vld [vmem:[#allocation3 + $0xb0] sm:$0xff]
      %v7406 = vld [vmem:[#allocation3 + $0xc0] sm:$0xff]
      %v7407 = vld [vmem:[#allocation3 + $0xc8] sm:$0xff]
      %v7408 = vld [vmem:[#allocation3 + $0xd8] sm:$0xff]
      %v7409 = vld [vmem:[#allocation3 + $0xe0] sm:$0xff]
      %v7410 = vld [vmem:[#allocation3 + $0xf0] sm:$0xff]
      %v7411 = vld [vmem:[#allocation3 + $0xf8] sm:$0xff]
      %v7412 = vld [vmem:[#allocation3 + $0x108] sm:$0xff]
      %v7413 = vld [vmem:[#allocation3 + $0x110] sm:$0xff]
      %v7414 = vld [vmem:[#allocation3 + $0x120] sm:$0xff]
      %v7415 = vld [vmem:[#allocation3 + $0x128] sm:$0xff]
      %v7416 = vld [vmem:[#allocation3 + $0x138] sm:$0xff]
      %v7417 = vld [vmem:[#allocation3 + $0x140] sm:$0xff]
      %v7418 = vld [vmem:[#allocation3 + $0x150] sm:$0xff]
      %v7419 = vld [vmem:[#allocation3 + $0x158] sm:$0xff]
      %v7420 = vld [vmem:[#allocation3 + $0x168] sm:$0xff]
      %v7421 = vld [vmem:[#allocation3 + $0x170] sm:$0xff]
      %v7422 = vpack.c.bf16 %v7391, %v7390
      %v7423 = vpack.c.bf16 %v7393, %v7392
      %v7424 = vpack.c.bf16 %v7395, %v7394
      %v7425 = vpack.c.bf16 %v7397, %v7396
      %v7426 = vpack.c.bf16 %v7399, %v7398
      %v7427 = vpack.c.bf16 %v7401, %v7400
      %v7428 = vpack.c.bf16 %v7403, %v7402
      %v7429 = vpack.c.bf16 %v7405, %v7404
      %v7430 = vpack.c.bf16 %v7407, %v7406
      %v7431 = vpack.c.bf16 %v7409, %v7408
      %v7432 = vpack.c.bf16 %v7411, %v7410
      %v7433 = vpack.c.bf16 %v7413, %v7412
      %v7434 = vpack.c.bf16 %v7415, %v7414
      %v7435 = vpack.c.bf16 %v7417, %v7416
      %v7436 = vpack.c.bf16 %v7419, %v7418
      %v7437 = vpack.c.bf16 %v7421, %v7420
      %v7454 = vunpack.c.l.b16 %v7422
      %v7455 = vunpack.c.h.b16 %v7422
      %v7456 = vunpack.c.l.b16 %v7423
      %v7457 = vunpack.c.h.b16 %v7423
      %v7458 = vunpack.c.l.b16 %v7424
      %v7459 = vunpack.c.h.b16 %v7424
      %v7460 = vunpack.c.l.b16 %v7425
      %v7461 = vunpack.c.h.b16 %v7425
      %v7462 = vunpack.c.l.b16 %v7426
      %v7463 = vunpack.c.h.b16 %v7426
      %v7464 = vunpack.c.l.b16 %v7427
      %v7465 = vunpack.c.h.b16 %v7427
      %v7466 = vunpack.c.l.b16 %v7428
      %v7467 = vunpack.c.h.b16 %v7428
      %v7468 = vunpack.c.l.b16 %v7429
      %v7469 = vunpack.c.h.b16 %v7429
      %v7470 = vunpack.c.l.b16 %v7430
      %v7471 = vunpack.c.h.b16 %v7430
      %v7472 = vunpack.c.l.b16 %v7431
      %v7473 = vunpack.c.h.b16 %v7431
      %v7474 = vunpack.c.l.b16 %v7432
      %v7475 = vunpack.c.h.b16 %v7432
      %v7476 = vunpack.c.l.b16 %v7433
      %v7477 = vunpack.c.h.b16 %v7433
      %v7478 = vunpack.c.l.b16 %v7434
      %v7479 = vunpack.c.h.b16 %v7434
      %v7480 = vunpack.c.l.b16 %v7435
      %v7481 = vunpack.c.h.b16 %v7435
      %v7482 = vunpack.c.l.b16 %v7436
      %v7483 = vunpack.c.h.b16 %v7436
      %v7484 = vunpack.c.l.b16 %v7437
      %v7485 = vunpack.c.h.b16 %v7437
      %v7486 = vpack.c.b16 %v7454, %v7454
      %v7487 = vpack.c.b16 %v7455, %v7455
      %v7488 = vpack.c.b16 %v7456, %v7456
      %v7489 = vpack.c.b16 %v7457, %v7457
      %v7490 = vpack.c.b16 %v7458, %v7458
      %v7491 = vpack.c.b16 %v7459, %v7459
      %v7492 = vpack.c.b16 %v7460, %v7460
      %v7493 = vpack.c.b16 %v7461, %v7461
      %v7494 = vpack.c.b16 %v7462, %v7462
      %v7495 = vpack.c.b16 %v7463, %v7463
      %v7496 = vpack.c.b16 %v7464, %v7464
      %v7497 = vpack.c.b16 %v7465, %v7465
      %v7498 = vpack.c.b16 %v7466, %v7466
      %v7499 = vpack.c.b16 %v7467, %v7467
      %v7500 = vpack.c.b16 %v7468, %v7468
      %v7501 = vpack.c.b16 %v7469, %v7469
      %v7502 = vpack.c.b16 %v7470, %v7470
      %v7503 = vpack.c.b16 %v7471, %v7471
      %v7504 = vpack.c.b16 %v7472, %v7472
      %v7505 = vpack.c.b16 %v7473, %v7473
      %v7506 = vpack.c.b16 %v7474, %v7474
      %v7507 = vpack.c.b16 %v7475, %v7475
      %v7508 = vpack.c.b16 %v7476, %v7476
      %v7509 = vpack.c.b16 %v7477, %v7477
      %v7510 = vpack.c.b16 %v7478, %v7478
      %v7511 = vpack.c.b16 %v7479, %v7479
      %v7512 = vpack.c.b16 %v7480, %v7480
      %v7513 = vpack.c.b16 %v7481, %v7481
      %v7514 = vpack.c.b16 %v7482, %v7482
      %v7515 = vpack.c.b16 %v7483, %v7483
      %v7516 = vpack.c.b16 %v7484, %v7484
      %v7517 = vpack.c.b16 %v7485, %v7485
      %7550 = vst [vmem:[%s281] sm:$0xf] %v7486
      %7551 = vst [vmem:[%s281 + $0x4] sm:$0xf] %v7487
      %7552 = vst [vmem:[%s281 + $0x8] sm:$0xf] %v7488
      %7553 = vst [vmem:[%s281 + $0xc] sm:$0xf] %v7489
      %7554 = vst [vmem:[%s281 + $0x10] sm:$0xf] %v7490
      %7555 = vst [vmem:[%s281 + $0x14] sm:$0xf] %v7491
      %7556 = vst [vmem:[%s281 + $0x18] sm:$0xf] %v7492
      %7557 = vst [vmem:[%s281 + $0x1c] sm:$0xf] %v7493
      %7558 = vst [vmem:[%s281 + $0x20] sm:$0xf] %v7494
      %7559 = vst [vmem:[%s281 + $0x24] sm:$0xf] %v7495
      %7560 = vst [vmem:[%s281 + $0x28] sm:$0xf] %v7496
      %7561 = vst [vmem:[%s281 + $0x2c] sm:$0xf] %v7497
      %7562 = vst [vmem:[%s281 + $0x30] sm:$0xf] %v7498
      %7563 = vst [vmem:[%s281 + $0x34] sm:$0xf] %v7499
      %7564 = vst [vmem:[%s281 + $0x38] sm:$0xf] %v7500
      %7565 = vst [vmem:[%s281 + $0x3c] sm:$0xf] %v7501
      %7566 = vst [vmem:[%s281 + $0x40] sm:$0xf] %v7502
      %7567 = vst [vmem:[%s281 + $0x44] sm:$0xf] %v7503
      %7568 = vst [vmem:[%s281 + $0x48] sm:$0xf] %v7504
      %7569 = vst [vmem:[%s281 + $0x4c] sm:$0xf] %v7505
      %7570 = vst [vmem:[%s281 + $0x50] sm:$0xf] %v7506
      %7571 = vst [vmem:[%s281 + $0x54] sm:$0xf] %v7507
      %7572 = vst [vmem:[%s281 + $0x58] sm:$0xf] %v7508
      %7573 = vst [vmem:[%s281 + $0x5c] sm:$0xf] %v7509
      %7574 = vst [vmem:[%s281 + $0x60] sm:$0xf] %v7510
      %7575 = vst [vmem:[%s281 + $0x64] sm:$0xf] %v7511
      %7576 = vst [vmem:[%s281 + $0x68] sm:$0xf] %v7512
      %7577 = vst [vmem:[%s281 + $0x6c] sm:$0xf] %v7513
      %7578 = vst [vmem:[%s281 + $0x70] sm:$0xf] %v7514
      %7579 = vst [vmem:[%s281 + $0x74] sm:$0xf] %v7515
      %7580 = vst [vmem:[%s281 + $0x78] sm:$0xf] %v7516
      %7581 = vst [vmem:[%s281 + $0x7c] sm:$0xf] %v7517
      %v7582 = vld [vmem:[%s286] sm:$0x1]
      %v7583 = vadd.f32 %v7390, %v7391
      %v7584 = vadd.f32 %v7583, %v7392
      %v7585 = vadd.f32 %v7584, %v7393
      %v7586 = vadd.f32 %v7585, %v7394
      %v7587 = vadd.f32 %v7586, %v7395
      %v7588 = vadd.f32 %v7587, %v7396
      %v7589 = vadd.f32 %v7588, %v7397
      %v7590 = vadd.f32 %v7589, %v7398
      %v7591 = vadd.f32 %v7590, %v7399
      %v7592 = vadd.f32 %v7591, %v7400
      %v7593 = vadd.f32 %v7592, %v7401
      %v7594 = vadd.f32 %v7593, %v7402
      %v7595 = vadd.f32 %v7594, %v7403
      %v7596 = vadd.f32 %v7595, %v7404
      %v7597 = vadd.f32 %v7596, %v7405
      %v7598 = vadd.f32 %v7597, %v7406
      %v7599 = vadd.f32 %v7598, %v7407
      %v7600 = vadd.f32 %v7599, %v7408
      %v7601 = vadd.f32 %v7600, %v7409
      %v7602 = vadd.f32 %v7601, %v7410
      %v7603 = vadd.f32 %v7602, %v7411
      %v7604 = vadd.f32 %v7603, %v7412
      %v7605 = vadd.f32 %v7604, %v7413
      %v7606 = vadd.f32 %v7605, %v7414
      %v7607 = vadd.f32 %v7606, %v7415
      %v7608 = vadd.f32 %v7607, %v7416
      %v7609 = vadd.f32 %v7608, %v7417
      %v7610 = vadd.f32 %v7609, %v7418
      %v7611 = vadd.f32 %v7610, %v7419
      %v7612 = vadd.f32 %v7611, %v7420
      %v7613 = vadd.f32 %v7612, %v7421
      %v7614 = vrot.slane %v7613, 4
      %v7615 = vadd.f32 %v7613, %v7614
      %v7616 = vrot.slane %v7615, 2
      %v7617 = vadd.f32 %v7615, %v7616
      %v7618 = vrot.slane %v7617, 1
      %v7619 = vadd.f32 %v7617, %v7618
      %v7620 = vadd.f32 %v7582, %v7619
      %7621 = vst [vmem:[%s286] sm:$0x1] %v7620
      %v7622 = vld [vmem:[%s286 + $0x1] sm:$0x1]
      %v7623 = vmul.f32 %v7390, %v7390
      %v7624 = vmul.f32 %v7391, %v7391
      %v7625 = vmul.f32 %v7392, %v7392
      %v7626 = vmul.f32 %v7393, %v7393
      %v7627 = vmul.f32 %v7394, %v7394
      %v7628 = vmul.f32 %v7395, %v7395
      %v7629 = vmul.f32 %v7396, %v7396
      %v7630 = vmul.f32 %v7397, %v7397
      %v7631 = vmul.f32 %v7398, %v7398
      %v7632 = vmul.f32 %v7399, %v7399
      %v7633 = vmul.f32 %v7400, %v7400
      %v7634 = vmul.f32 %v7401, %v7401
      %v7635 = vmul.f32 %v7402, %v7402
      %v7636 = vmul.f32 %v7403, %v7403
      %v7637 = vmul.f32 %v7404, %v7404
      %v7638 = vmul.f32 %v7405, %v7405
      %v7639 = vmul.f32 %v7406, %v7406
      %v7640 = vmul.f32 %v7407, %v7407
      %v7641 = vmul.f32 %v7408, %v7408
      %v7642 = vmul.f32 %v7409, %v7409
      %v7643 = vmul.f32 %v7410, %v7410
      %v7644 = vmul.f32 %v7411, %v7411
      %v7645 = vmul.f32 %v7412, %v7412
      %v7646 = vmul.f32 %v7413, %v7413
      %v7647 = vmul.f32 %v7414, %v7414
      %v7648 = vmul.f32 %v7415, %v7415
      %v7649 = vmul.f32 %v7416, %v7416
      %v7650 = vmul.f32 %v7417, %v7417
      %v7651 = vmul.f32 %v7418, %v7418
      %v7652 = vmul.f32 %v7419, %v7419
      %v7653 = vmul.f32 %v7420, %v7420
      %v7654 = vmul.f32 %v7421, %v7421
      %v7655 = vadd.f32 %v7623, %v7624
      %v7656 = vadd.f32 %v7655, %v7625
      %v7657 = vadd.f32 %v7656, %v7626
      %v7658 = vadd.f32 %v7657, %v7627
      %v7659 = vadd.f32 %v7658, %v7628
      %v7660 = vadd.f32 %v7659, %v7629
      %v7661 = vadd.f32 %v7660, %v7630
      %v7662 = vadd.f32 %v7661, %v7631
      %v7663 = vadd.f32 %v7662, %v7632
      %v7664 = vadd.f32 %v7663, %v7633
      %v7665 = vadd.f32 %v7664, %v7634
      %v7666 = vadd.f32 %v7665, %v7635
      %v7667 = vadd.f32 %v7666, %v7636
      %v7668 = vadd.f32 %v7667, %v7637
      %v7669 = vadd.f32 %v7668, %v7638
      %v7670 = vadd.f32 %v7669, %v7639
      %v7671 = vadd.f32 %v7670, %v7640
      %v7672 = vadd.f32 %v7671, %v7641
      %v7673 = vadd.f32 %v7672, %v7642
      %v7674 = vadd.f32 %v7673, %v7643
      %v7675 = vadd.f32 %v7674, %v7644
      %v7676 = vadd.f32 %v7675, %v7645
      %v7677 = vadd.f32 %v7676, %v7646
      %v7678 = vadd.f32 %v7677, %v7647
      %v7679 = vadd.f32 %v7678, %v7648
      %v7680 = vadd.f32 %v7679, %v7649
      %v7681 = vadd.f32 %v7680, %v7650
      %v7682 = vadd.f32 %v7681, %v7651
      %v7683 = vadd.f32 %v7682, %v7652
      %v7684 = vadd.f32 %v7683, %v7653
      %v7685 = vadd.f32 %v7684, %v7654
      %v7686 = vrot.slane %v7685, 4
      %v7687 = vadd.f32 %v7685, %v7686
      %v7688 = vrot.slane %v7687, 2
      %v7689 = vadd.f32 %v7687, %v7688
      %v7690 = vrot.slane %v7689, 1
      %v7691 = vadd.f32 %v7689, %v7690
      %v7692 = vadd.f32 %v7622, %v7691
      %7693 = vst [vmem:[%s286 + $0x1] sm:$0x1] %v7692
      %s7694 = sadd.s32 %s22, %s23
      %p7695 = scmp.lt.s32.totalorder %s7694, 1
      %s7696 = scalar_select %p7695, %s7694, 1
      %s7697 = smul.addr %s7696, 32
      %s7698 = smul.addr %s7697, 4
      %s7699 = scalar_lea.vmem %s5, %s7698
      %p7700 = scmp.lt.s32.totalorder %s22, 1
      %s7701 = scalar_select %p7700, %s22, 1
      %s7702 = smul.addr %s7701, 2
      %s7703 = scalar_lea.vmem %s6, %s7702
      // Predicated region
      $region45: #{resnext_bottleneck.5} parent=39 // pred_check
        %p7704 = pneg %p162
      $region46: #{resnext_bottleneck.5} parent=39 // pred_check_branch
        %7706 = sbr.rel (%p7704) target = $region48
      $region47: #{resnext_bottleneck.5} parent=39 // pred_region
        %s7707 = sadd.s32 %s22, %s23
      $region48: #{resnext_bottleneck.5} parent=39 // pred_fallthru
        _
      // Predicated region
      $region49: #{resnext_bottleneck.5} parent=39 // pred_check
        %p7708 = pneg %p188
      $region50: #{resnext_bottleneck.5} parent=39 // pred_check_branch
        %7710 = sbr.rel (%p7708) target = $region52
      $region51: #{resnext_bottleneck.5} parent=39 // pred_region
        _
      $region52: #{resnext_bottleneck.5} parent=39 // pred_fallthru
        _
    $region40: #{resnext_bottleneck.5} parent=5 // pred_fallthru
      _
    %p7711 = scmp.le.s32.totalorder 2, %s13
    // Predicated region
    $region53: #{resnext_bottleneck.5} parent=5 // pred_check
      %p7712 = pneg %p7711
    $region54: #{resnext_bottleneck.5} parent=5 // pred_check_branch
      %7714 = sbr.rel (%p7712) target = $region56
    $region55: #{resnext_bottleneck.5} parent=5 // pred_region
      %s7715 = ssub.s32 %s13, 2
      // Predicated region
      $region57: #{resnext_bottleneck.5} parent=55 // pred_check
        %p7716 = pneg %p168
      $region58: #{resnext_bottleneck.5} parent=55 // pred_check_branch
        %7718 = sbr.rel (%p7716) target = $region60
      $region59: #{resnext_bottleneck.5} parent=55 // pred_region
        %s7719 = sadd.s32 %s24, %s25
        %p7720 = scmp.lt.s32.totalorder %s7719, 1
        %s7721 = scalar_select %p7720, %s7719, 1
        %s7722 = smul.addr %s7721, 32
        %s7723 = smul.addr %s7722, 4
        %s7724 = scalar_lea.vmem %s5, %s7723
      $region60: #{resnext_bottleneck.5} parent=55 // pred_fallthru
        _
      // Predicated region
      $region61: #{resnext_bottleneck.5} parent=55 // pred_check
        %p7725 = pneg %p194
      $region62: #{resnext_bottleneck.5} parent=55 // pred_check_branch
        %7727 = sbr.rel (%p7725) target = $region64
      $region63: #{resnext_bottleneck.5} parent=55 // pred_region
        %p7728 = scmp.lt.s32.totalorder %s24, 1
        %s7729 = scalar_select %p7728, %s24, 1
        %s7730 = smul.addr %s7729, 2
        %s7731 = scalar_lea.vmem %s6, %s7730
      $region64: #{resnext_bottleneck.5} parent=55 // pred_fallthru
        _
    $region56: #{resnext_bottleneck.5} parent=5 // pred_fallthru
      _
  $region6: #{resnext_bottleneck.5} parent=0 // loop_footer
    %s17 = sadd.s32 1, %s13
  $region7: #{resnext_bottleneck.5} parent=0 // loop_footer_branch
    %12 = sbr.rel target = $region3
  $region8: #{resnext_bottleneck.5} parent=0 // loop_exit
    _

</llo_original>
